<compile_context>
chip_gen: v5e
topology: v5e:2x2
jax: 0.10.0
libtpu: 0.0.40
codegen_flags: <defaults>
</compile_context>

<pallas_src>
import jax
import jax.numpy as jnp
from jax.experimental import pallas as pl
from jax.experimental.pallas import tpu as pltpu


def _make_residual_block_kernel(bt, c_in, c_out, length, d1, project):
    """Fused kernel body. d1 = dilation of conv1 (static). conv2 has dilation 1."""
    f32 = jnp.float32

    def kernel(*refs):
        if project:
            (x_ref, w1_ref, b1_ref, w2_ref, b2_ref,
             wse1_ref, wse2_ref, wsc_ref, bsc_ref, o_ref, h_ref) = refs
        else:
            (x_ref, w1_ref, b1_ref, w2_ref, b2_ref,
             wse1_ref, wse2_ref, o_ref, h_ref) = refs

        lane = jax.lax.broadcasted_iota(jnp.int32, (1, length), 1)

        # Zero-fill masks implementing the conv "same" padding; built once per
        # grid step and shared by both convs when the dilations match.
        def masks(d):
            return lane >= d, lane < (length - d)

        mprev1, mnext1 = masks(d1)
        mprev2, mnext2 = (mprev1, mnext1) if d1 == 1 else masks(1)

        def tap_cat(v, d, mprev, mnext):
            # v: (C, L) -> (3C, L) = [v[m-d], v[m], v[m+d]] with zero fill at the
            # boundaries.  Lane rotation (XLU) + mask (VPU); no MXU work.
            prev = jnp.where(mprev, pltpu.roll(v, d, axis=1), 0)
            nxt = jnp.where(mnext, pltpu.roll(v, (length - d) % length, axis=1), 0)
            return jnp.concatenate([prev, v, nxt], axis=0)

        w1 = w1_ref[...]                       # (Co, 3*Cin)  tap-fused, BN folded
        b1 = b1_ref[...].astype(f32)           # (Co, 1)
        w2 = w2_ref[...]                       # (Co, 3*Co)
        b2 = b2_ref[...].astype(f32)

        # ---- conv1 + bn1 + relu: one K=3*Cin matmul per batch row, staged in VMEM ----
        for b in range(bt):
            xcat = tap_cat(x_ref[b], d1, mprev1, mnext1)           # (3*Cin, L)
            acc = jnp.dot(w1, xcat, preferred_element_type=f32) + b1
            h_ref[b] = jnp.maximum(acc, 0.0)

        # ---- conv2 + bn2: one K=3*Co matmul per batch row, updated in place ----
        for b in range(bt):
            hcat = tap_cat(h_ref[b], 1, mprev2, mnext2)            # (3*Co, L) f32
            h_ref[b] = jnp.dot(w2, hcat, preferred_element_type=f32) + b2

        # ---- SE: squeeze (1/L folded into wse1) -> fc1/relu -> fc2/sigmoid ----
        pool = jnp.sum(h_ref[...], axis=2)                         # (Bt, Co)
        se = jnp.maximum(
            jnp.dot(pool, wse1_ref[...].astype(f32), preferred_element_type=f32), 0.0)
        gates3 = jax.nn.sigmoid(
            jnp.dot(se, wse2_ref[...].astype(f32),
                    preferred_element_type=f32))[:, :, None]        # (Bt, Co, 1)

        if project:
            wsc = wsc_ref[...]                                      # (Co, Cin)
            bsc = bsc_ref[...].astype(f32)                          # (Co, 1)

        # ---- gate, shortcut (x re-read from VMEM here), final relu, store ----
        for b in range(bt):
            hb = h_ref[b] * gates3[b]                               # (Co, L) f32
            if project:
                sc_b = jnp.dot(wsc, x_ref[b], preferred_element_type=f32) + bsc
            else:
                sc_b = x_ref[b].astype(f32)                         # identity (Cin == Cout)
            o_ref[b] = jnp.maximum(hb + sc_b, 0.0).astype(o_ref.dtype)

    return kernel


def _fold_bn(conv_w, bn, eps=1e-5):
    """Fold inference BatchNorm into conv weights. conv_w: (Cout, Cin, K).
    Returns per-tap weights (K, Cout, Cin) with BN scale folded, and a (Cout, 1) bias."""
    gamma, beta, mean, var = bn
    scale = gamma / jnp.sqrt(var + eps)
    w = jnp.transpose(conv_w, (2, 0, 1)) * scale[None, :, None]
    bias = (beta - mean * scale)[:, None]
    return w.astype(jnp.float32), bias.astype(jnp.float32)


def _tap_fuse(w):
    """(K, Cout, Cin) -> (Cout, K*Cin), tap-major along the contraction axis,
    matching the kernel's [x[m-d], x[m], x[m+d]] channel concat."""
    k, co, ci = w.shape
    return jnp.transpose(w, (1, 0, 2)).reshape(co, k * ci)


def residual_block(x, params, *, stride=1, dilation=1, bt=8):
    """x: (B, Cin, L).  params: dict with conv1_w, bn1, conv2_w, bn2, se_fc1_w,
    se_fc2_w and (if projecting) sc_conv_w, bn_sc."""
    B, c_in, L = x.shape
    c_out = params["conv1_w"].shape[0]
    c_red = params["se_fc1_w"].shape[0]

    if stride != 1:
        # TODO(synk): strided conv1 / strided shortcut (stride != 1) not implemented in-kernel.
        raise NotImplementedError("residual_block Pallas kernel only supports stride == 1")
    assert dilation < L

    project = (stride != 1) or (c_in != c_out)

    # Batch tile: must divide B; prefer >=4 grid steps so each v7x TensorCore
    # gets >=2 pipelined steps (harmless on single-TC v5e/v6e).
    bt = min(bt, B)
    while bt > 1 and B % bt != 0:
        bt -= 1
    while bt > 1 and (B // bt) < 4 and bt % 2 == 0 and B % (bt // 2) == 0:
        bt //= 2
    assert B % bt == 0, "batch must be divisible by the batch tile"
    # TODO(synk): partial batch tiles (B % bt != 0) would need output masking.

    w1, b1 = _fold_bn(params["conv1_w"], params["bn1"])
    w2, b2 = _fold_bn(params["conv2_w"], params["bn2"])
    w1f = _tap_fuse(w1)                                            # (Cout, 3*Cin)
    w2f = _tap_fuse(w2)                                            # (Cout, 3*Cout)
    # SE weights pre-transposed; 1/L folded into fc1 (mean == sum @ (W1^T / L)).
    wse1t = (jnp.transpose(params["se_fc1_w"]) / float(L)).astype(jnp.float32)   # (Cout, Cr)
    wse2t = jnp.transpose(params["se_fc2_w"]).astype(jnp.float32)                # (Cr, Cout)

    args = [x, w1f, b1, w2f, b2, wse1t, wse2t]
    in_specs = [
        pl.BlockSpec((bt, c_in, L), lambda i: (i, 0, 0)),          # x: batch-tiled, lane-dense L
        pl.BlockSpec((c_out, 3 * c_in), lambda i: (0, 0)),         # weights: resident (const idx)
        pl.BlockSpec((c_out, 1), lambda i: (0, 0)),
        pl.BlockSpec((c_out, 3 * c_out), lambda i: (0, 0)),
        pl.BlockSpec((c_out, 1), lambda i: (0, 0)),
        pl.BlockSpec((c_out, c_red), lambda i: (0, 0)),
        pl.BlockSpec((c_red, c_out), lambda i: (0, 0)),
    ]
    if project:
        wsc, bsc = _fold_bn(params["sc_conv_w"], params["bn_sc"])  # (1, Cout, Cin), (Cout, 1)
        args += [wsc[0], bsc]
        in_specs += [
            pl.BlockSpec((c_out, c_in), lambda i: (0, 0)),
            pl.BlockSpec((c_out, 1), lambda i: (0, 0)),
        ]

    kernel = _make_residual_block_kernel(bt, c_in, c_out, L, dilation, project)

    # Actual footprint: double-buffered in/out tiles + resident weights + the f32
    # scratch.  Give ~4x headroom but stay well below v7x's 64 MiB physical VMEM.
    itemsize = jnp.dtype(x.dtype).itemsize
    tile_bytes = 2 * bt * (c_in + c_out) * L * itemsize + bt * c_out * L * 4
    vmem_limit = int(min(max(4 * tile_bytes, 8 << 20), 48 << 20))

    return pl.pallas_call(
        kernel,
        out_shape=jax.ShapeDtypeStruct((B, c_out, L), x.dtype),
        grid_spec=pltpu.PrefetchScalarGridSpec(
            num_scalar_prefetch=0,
            grid=(B // bt,),
            in_specs=in_specs,
            out_specs=pl.BlockSpec((bt, c_out, L), lambda i: (i, 0, 0)),
            scratch_shapes=[pltpu.VMEM((bt, c_out, L), jnp.float32)],
        ),
        compiler_params=pltpu.CompilerParams(
            dimension_semantics=("parallel",),
            vmem_limit_bytes=vmem_limit,
        ),
    )(*args)


# ----------------------------- pure-JAX reference -----------------------------
def residual_block_ref(x, params, *, stride=1, dilation=1, eps=1e-5):
    def conv1d(v, w, s, pad, dil):
        return jax.lax.conv_general_dilated(
            v, w, window_strides=(s,), padding=[(pad, pad)], rhs_dilation=(dil,),
            dimension_numbers=("NCH", "OIH", "NCH"))

    def bn(v, stats):
        g, b, m, var = stats
        s = g / jnp.sqrt(var + eps)
        return v * s[None, :, None] + (b - m * s)[None, :, None]

    out = jax.nn.relu(bn(conv1d(x, params["conv1_w"], stride, dilation, dilation), params["bn1"]))
    out = bn(conv1d(out, params["conv2_w"], 1, 1, 1), params["bn2"])
    # SE
    y = jnp.mean(out, axis=2)
    y = jax.nn.relu(y @ params["se_fc1_w"].T)
    y = jax.nn.sigmoid(y @ params["se_fc2_w"].T)[:, :, None]
    out = out * y
    c_in, c_out = x.shape[1], params["conv1_w"].shape[0]
    if stride != 1 or c_in != c_out:
        sc = bn(conv1d(x, params["sc_conv_w"], stride, 0, 1), params["bn_sc"])
    else:
        sc = x
    return jax.nn.relu(out + sc)


if __name__ == "__main__":
    # Test-only: keep the XLA reference convs/matmuls (and the in-kernel f32 dots
    # traced below) at full f32 precision so the correctness check is tight.
    jax.config.update("jax_default_matmul_precision", "highest")

    B, C_IN, C_OUT, L = 16, 32, 64, 128
    REDUCTION, STRIDE, DILATION = 16, 1, 1
    C_R = C_OUT // REDUCTION

    def make_bn(key, c):
        k1, k2, k3, k4 = jax.random.split(key, 4)
        gamma = 1.0 + 0.1 * jax.random.normal(k1, (c,), jnp.float32)
        beta = 0.1 * jax.random.normal(k2, (c,), jnp.float32)
        mean = 0.1 * jax.random.normal(k3, (c,), jnp.float32)
        var = 0.5 + jax.random.uniform(k4, (c,), jnp.float32)
        return gamma, beta, mean, var

    key = jax.random.PRNGKey(0)
    ks = jax.random.split(key, 9)
    params = {
        "conv1_w": 0.1 * jax.random.normal(ks[0], (C_OUT, C_IN, 3), jnp.float32),
        "bn1": make_bn(ks[1], C_OUT),
        "conv2_w": 0.05 * jax.random.normal(ks[2], (C_OUT, C_OUT, 3), jnp.float32),
        "bn2": make_bn(ks[3], C_OUT),
        "se_fc1_w": 0.1 * jax.random.normal(ks[4], (C_R, C_OUT), jnp.float32),
        "se_fc2_w": 0.1 * jax.random.normal(ks[5], (C_OUT, C_R), jnp.float32),
        "sc_conv_w": 0.1 * jax.random.normal(ks[6], (C_OUT, C_IN, 1), jnp.float32),
        "bn_sc": make_bn(ks[7], C_OUT),
    }
    x = jax.random.normal(ks[8], (B, C_IN, L), jnp.float32)

    out = jax.block_until_ready(residual_block(x, params, stride=STRIDE, dilation=DILATION))
    ref = residual_block_ref(x, params, stride=STRIDE, dilation=DILATION)

    assert out.shape == (B, C_OUT, L)
    assert jnp.allclose(out, ref, atol=2e-3, rtol=2e-3), float(jnp.max(jnp.abs(out - ref)))

    print("KERNEL_OK")
</pallas_src>

<mosaic_0001>
module attributes {stable_mosaic.version = 11 : i64} {
  func.func @kernel(%arg0: i32, %arg1: memref<4x32x128xf32, #tpu.memory_space<vmem>>, %arg2: memref<64x96xf32, #tpu.memory_space<vmem>>, %arg3: memref<64x1xf32, #tpu.memory_space<vmem>>, %arg4: memref<64x192xf32, #tpu.memory_space<vmem>>, %arg5: memref<64x1xf32, #tpu.memory_space<vmem>>, %arg6: memref<64x4xf32, #tpu.memory_space<vmem>>, %arg7: memref<4x64xf32, #tpu.memory_space<vmem>>, %arg8: memref<64x32xf32, #tpu.memory_space<vmem>>, %arg9: memref<64x1xf32, #tpu.memory_space<vmem>>, %arg10: memref<4x64x128xf32, #tpu.memory_space<vmem>>, %arg11: memref<4x64x128xf32, #tpu.memory_space<vmem>>) attributes {dimension_semantics = [#tpu.dimension_semantics<parallel>], iteration_bounds = array<i64: 4>, scalar_prefetch = 0 : i64, scratch_operands = 1 : i64, tpu.core_type = #tpu.core_type<tc>, window_params = [{transform_indices = @transform_0, window_bounds = array<i64: 4, 32, 128>}, {pipeline_mode = #tpu.pipeline_mode<synchronous>, transform_indices = @transform_1, window_bounds = array<i64: 64, 96>}, {pipeline_mode = #tpu.pipeline_mode<synchronous>, transform_indices = @transform_2, window_bounds = array<i64: 64, 1>}, {pipeline_mode = #tpu.pipeline_mode<synchronous>, transform_indices = @transform_3, window_bounds = array<i64: 64, 192>}, {pipeline_mode = #tpu.pipeline_mode<synchronous>, transform_indices = @transform_4, window_bounds = array<i64: 64, 1>}, {pipeline_mode = #tpu.pipeline_mode<synchronous>, transform_indices = @transform_5, window_bounds = array<i64: 64, 4>}, {pipeline_mode = #tpu.pipeline_mode<synchronous>, transform_indices = @transform_6, window_bounds = array<i64: 4, 64>}, {pipeline_mode = #tpu.pipeline_mode<synchronous>, transform_indices = @transform_7, window_bounds = array<i64: 64, 32>}, {pipeline_mode = #tpu.pipeline_mode<synchronous>, transform_indices = @transform_8, window_bounds = array<i64: 64, 1>}, {transform_indices = @transform_9, window_bounds = array<i64: 4, 64, 128>}]} {
    %0 = tpu.iota {dimensions = array<i32: 1>} : vector<1x128xi32>
    %c1_i32 = arith.constant 1 : i32
    %1 = vector.broadcast %c1_i32 : i32 to vector<1x128xi32>
    %2 = arith.cmpi sge, %0, %1 : vector<1x128xi32>
    %c127_i32 = arith.constant 127 : i32
    %3 = vector.broadcast %c127_i32 : i32 to vector<1x128xi32>
    %4 = arith.cmpi slt, %0, %3 : vector<1x128xi32>
    %c0 = arith.constant 0 : index
    %c0_0 = arith.constant 0 : index
    %5 = vector.load %arg2[%c0, %c0_0] : memref<64x96xf32, #tpu.memory_space<vmem>>, vector<64x96xf32>
    %c0_1 = arith.constant 0 : index
    %c0_2 = arith.constant 0 : index
    %6 = vector.load %arg3[%c0_1, %c0_2] : memref<64x1xf32, #tpu.memory_space<vmem>>, vector<64x1xf32>
    %c0_3 = arith.constant 0 : index
    %c0_4 = arith.constant 0 : index
    %7 = vector.load %arg4[%c0_3, %c0_4] : memref<64x192xf32, #tpu.memory_space<vmem>>, vector<64x192xf32>
    %c0_5 = arith.constant 0 : index
    %c0_6 = arith.constant 0 : index
    %8 = vector.load %arg5[%c0_5, %c0_6] : memref<64x1xf32, #tpu.memory_space<vmem>>, vector<64x1xf32>
    %c0_7 = arith.constant 0 : index
    %c0_8 = arith.constant 0 : index
    %c0_9 = arith.constant 0 : index
    %9 = vector.load %arg1[%c0_7, %c0_8, %c0_9] : memref<4x32x128xf32, #tpu.memory_space<vmem>>, vector<1x32x128xf32>
    %10 = vector.shape_cast %9 : vector<1x32x128xf32> to vector<32x128xf32>
    %c1_i32_10 = arith.constant 1 : i32
    %11 = tpu.dynamic_rotate %10 by %c1_i32_10 dim 1 : vector<32x128xf32>, i32 -> vector<32x128xf32>
    %c0_i32 = arith.constant 0 : i32
    %12 = arith.sitofp %c0_i32 : i32 to f32
    %13 = vector.shape_cast %2 : vector<1x128xi1> to vector<1x128xi1>
    %14 = vector.broadcast %13 : vector<1x128xi1> to vector<32x128xi1>
    %15 = vector.broadcast %12 : f32 to vector<32x128xf32>
    %16 = arith.select %14, %11, %15 : vector<32x128xi1>, vector<32x128xf32>
    %c127_i32_11 = arith.constant 127 : i32
    %17 = tpu.dynamic_rotate %10 by %c127_i32_11 dim 1 : vector<32x128xf32>, i32 -> vector<32x128xf32>
    %c0_i32_12 = arith.constant 0 : i32
    %18 = arith.sitofp %c0_i32_12 : i32 to f32
    %19 = vector.shape_cast %4 : vector<1x128xi1> to vector<1x128xi1>
    %20 = vector.broadcast %19 : vector<1x128xi1> to vector<32x128xi1>
    %21 = vector.broadcast %18 : f32 to vector<32x128xf32>
    %22 = arith.select %20, %17, %21 : vector<32x128xi1>, vector<32x128xf32>
    %23 = tpu.concatenate %16, %10, %22 in 0 : vector<32x128xf32>, vector<32x128xf32>, vector<32x128xf32> -> vector<96x128xf32>
    %cst = arith.constant dense<0.000000e+00> : vector<64x128xf32>
    %24 = tpu.matmul %5, %23, %cst {dimension_numbers = #tpu.dot_dimension_numbers<[1], [0], [0], [1], [0, 0, 1, 1], [], []>, precision = #tpu.contract_precision<fp32>} : vector<64x96xf32>, vector<96x128xf32>, vector<64x128xf32> -> vector<64x128xf32>
    %25 = vector.broadcast %6 : vector<64x1xf32> to vector<64x128xf32>
    %26 = arith.addf %24, %25 : vector<64x128xf32>
    %cst_13 = arith.constant 0.000000e+00 : f32
    %27 = vector.broadcast %cst_13 : f32 to vector<64x128xf32>
    %28 = arith.maximumf %26, %27 : vector<64x128xf32>
    %c0_14 = arith.constant 0 : index
    %c0_15 = arith.constant 0 : index
    %c0_16 = arith.constant 0 : index
    %29 = vector.load %arg11[%c0_14, %c0_15, %c0_16] : memref<4x64x128xf32, #tpu.memory_space<vmem>>, vector<1x64x128xf32>
    %30 = vector.shape_cast %29 : vector<1x64x128xf32> to vector<64x128xf32>
    %31 = vector.shape_cast %28 : vector<64x128xf32> to vector<1x64x128xf32>
    tpu.vector_store %arg11[%c0_14, %c0_15, %c0_16], %31 {strides = array<i32>} : memref<4x64x128xf32, #tpu.memory_space<vmem>>, vector<1x64x128xf32>,
    %c1 = arith.constant 1 : index
    %c0_17 = arith.constant 0 : index
    %c0_18 = arith.constant 0 : index
    %32 = vector.load %arg1[%c1, %c0_17, %c0_18] : memref<4x32x128xf32, #tpu.memory_space<vmem>>, vector<1x32x128xf32>
    %33 = vector.shape_cast %32 : vector<1x32x128xf32> to vector<32x128xf32>
    %c1_i32_19 = arith.constant 1 : i32
    %34 = tpu.dynamic_rotate %33 by %c1_i32_19 dim 1 : vector<32x128xf32>, i32 -> vector<32x128xf32>
    %c0_i32_20 = arith.constant 0 : i32
    %35 = arith.sitofp %c0_i32_20 : i32 to f32
    %36 = vector.shape_cast %2 : vector<1x128xi1> to vector<1x128xi1>
    %37 = vector.broadcast %36 : vector<1x128xi1> to vector<32x128xi1>
    %38 = vector.broadcast %35 : f32 to vector<32x128xf32>
    %39 = arith.select %37, %34, %38 : vector<32x128xi1>, vector<32x128xf32>
    %c127_i32_21 = arith.constant 127 : i32
    %40 = tpu.dynamic_rotate %33 by %c127_i32_21 dim 1 : vector<32x128xf32>, i32 -> vector<32x128xf32>
    %c0_i32_22 = arith.constant 0 : i32
    %41 = arith.sitofp %c0_i32_22 : i32 to f32
    %42 = vector.shape_cast %4 : vector<1x128xi1> to vector<1x128xi1>
    %43 = vector.broadcast %42 : vector<1x128xi1> to vector<32x128xi1>
    %44 = vector.broadcast %41 : f32 to vector<32x128xf32>
    %45 = arith.select %43, %40, %44 : vector<32x128xi1>, vector<32x128xf32>
    %46 = tpu.concatenate %39, %33, %45 in 0 : vector<32x128xf32>, vector<32x128xf32>, vector<32x128xf32> -> vector<96x128xf32>
    %cst_23 = arith.constant dense<0.000000e+00> : vector<64x128xf32>
    %47 = tpu.matmul %5, %46, %cst_23 {dimension_numbers = #tpu.dot_dimension_numbers<[1], [0], [0], [1], [0, 0, 1, 1], [], []>, precision = #tpu.contract_precision<fp32>} : vector<64x96xf32>, vector<96x128xf32>, vector<64x128xf32> -> vector<64x128xf32>
    %48 = vector.broadcast %6 : vector<64x1xf32> to vector<64x128xf32>
    %49 = arith.addf %47, %48 : vector<64x128xf32>
    %cst_24 = arith.constant 0.000000e+00 : f32
    %50 = vector.broadcast %cst_24 : f32 to vector<64x128xf32>
    %51 = arith.maximumf %49, %50 : vector<64x128xf32>
    %c1_25 = arith.constant 1 : index
    %c0_26 = arith.constant 0 : index
    %c0_27 = arith.constant 0 : index
    %52 = vector.load %arg11[%c1_25, %c0_26, %c0_27] : memref<4x64x128xf32, #tpu.memory_space<vmem>>, vector<1x64x128xf32>
    %53 = vector.shape_cast %52 : vector<1x64x128xf32> to vector<64x128xf32>
    %54 = vector.shape_cast %51 : vector<64x128xf32> to vector<1x64x128xf32>
    tpu.vector_store %arg11[%c1_25, %c0_26, %c0_27], %54 {strides = array<i32>} : memref<4x64x128xf32, #tpu.memory_space<vmem>>, vector<1x64x128xf32>,
    %c2 = arith.constant 2 : index
    %c0_28 = arith.constant 0 : index
    %c0_29 = arith.constant 0 : index
    %55 = vector.load %arg1[%c2, %c0_28, %c0_29] : memref<4x32x128xf32, #tpu.memory_space<vmem>>, vector<1x32x128xf32>
    %56 = vector.shape_cast %55 : vector<1x32x128xf32> to vector<32x128xf32>
    %c1_i32_30 = arith.constant 1 : i32
    %57 = tpu.dynamic_rotate %56 by %c1_i32_30 dim 1 : vector<32x128xf32>, i32 -> vector<32x128xf32>
    %c0_i32_31 = arith.constant 0 : i32
    %58 = arith.sitofp %c0_i32_31 : i32 to f32
    %59 = vector.shape_cast %2 : vector<1x128xi1> to vector<1x128xi1>
    %60 = vector.broadcast %59 : vector<1x128xi1> to vector<32x128xi1>
    %61 = vector.broadcast %58 : f32 to vector<32x128xf32>
    %62 = arith.select %60, %57, %61 : vector<32x128xi1>, vector<32x128xf32>
    %c127_i32_32 = arith.constant 127 : i32
    %63 = tpu.dynamic_rotate %56 by %c127_i32_32 dim 1 : vector<32x128xf32>, i32 -> vector<32x128xf32>
    %c0_i32_33 = arith.constant 0 : i32
    %64 = arith.sitofp %c0_i32_33 : i32 to f32
    %65 = vector.shape_cast %4 : vector<1x128xi1> to vector<1x128xi1>
    %66 = vector.broadcast %65 : vector<1x128xi1> to vector<32x128xi1>
    %67 = vector.broadcast %64 : f32 to vector<32x128xf32>
    %68 = arith.select %66, %63, %67 : vector<32x128xi1>, vector<32x128xf32>
    %69 = tpu.concatenate %62, %56, %68 in 0 : vector<32x128xf32>, vector<32x128xf32>, vector<32x128xf32> -> vector<96x128xf32>
    %cst_34 = arith.constant dense<0.000000e+00> : vector<64x128xf32>
    %70 = tpu.matmul %5, %69, %cst_34 {dimension_numbers = #tpu.dot_dimension_numbers<[1], [0], [0], [1], [0, 0, 1, 1], [], []>, precision = #tpu.contract_precision<fp32>} : vector<64x96xf32>, vector<96x128xf32>, vector<64x128xf32> -> vector<64x128xf32>
    %71 = vector.broadcast %6 : vector<64x1xf32> to vector<64x128xf32>
    %72 = arith.addf %70, %71 : vector<64x128xf32>
    %cst_35 = arith.constant 0.000000e+00 : f32
    %73 = vector.broadcast %cst_35 : f32 to vector<64x128xf32>
    %74 = arith.maximumf %72, %73 : vector<64x128xf32>
    %c2_36 = arith.constant 2 : index
    %c0_37 = arith.constant 0 : index
    %c0_38 = arith.constant 0 : index
    %75 = vector.load %arg11[%c2_36, %c0_37, %c0_38] : memref<4x64x128xf32, #tpu.memory_space<vmem>>, vector<1x64x128xf32>
    %76 = vector.shape_cast %75 : vector<1x64x128xf32> to vector<64x128xf32>
    %77 = vector.shape_cast %74 : vector<64x128xf32> to vector<1x64x128xf32>
    tpu.vector_store %arg11[%c2_36, %c0_37, %c0_38], %77 {strides = array<i32>} : memref<4x64x128xf32, #tpu.memory_space<vmem>>, vector<1x64x128xf32>,
    %c3 = arith.constant 3 : index
    %c0_39 = arith.constant 0 : index
    %c0_40 = arith.constant 0 : index
    %78 = vector.load %arg1[%c3, %c0_39, %c0_40] : memref<4x32x128xf32, #tpu.memory_space<vmem>>, vector<1x32x128xf32>
    %79 = vector.shape_cast %78 : vector<1x32x128xf32> to vector<32x128xf32>
    %c1_i32_41 = arith.constant 1 : i32
    %80 = tpu.dynamic_rotate %79 by %c1_i32_41 dim 1 : vector<32x128xf32>, i32 -> vector<32x128xf32>
    %c0_i32_42 = arith.constant 0 : i32
    %81 = arith.sitofp %c0_i32_42 : i32 to f32
    %82 = vector.shape_cast %2 : vector<1x128xi1> to vector<1x128xi1>
    %83 = vector.broadcast %82 : vector<1x128xi1> to vector<32x128xi1>
    %84 = vector.broadcast %81 : f32 to vector<32x128xf32>
    %85 = arith.select %83, %80, %84 : vector<32x128xi1>, vector<32x128xf32>
    %c127_i32_43 = arith.constant 127 : i32
    %86 = tpu.dynamic_rotate %79 by %c127_i32_43 dim 1 : vector<32x128xf32>, i32 -> vector<32x128xf32>
    %c0_i32_44 = arith.constant 0 : i32
    %87 = arith.sitofp %c0_i32_44 : i32 to f32
    %88 = vector.shape_cast %4 : vector<1x128xi1> to vector<1x128xi1>
    %89 = vector.broadcast %88 : vector<1x128xi1> to vector<32x128xi1>
    %90 = vector.broadcast %87 : f32 to vector<32x128xf32>
    %91 = arith.select %89, %86, %90 : vector<32x128xi1>, vector<32x128xf32>
    %92 = tpu.concatenate %85, %79, %91 in 0 : vector<32x128xf32>, vector<32x128xf32>, vector<32x128xf32> -> vector<96x128xf32>
    %cst_45 = arith.constant dense<0.000000e+00> : vector<64x128xf32>
    %93 = tpu.matmul %5, %92, %cst_45 {dimension_numbers = #tpu.dot_dimension_numbers<[1], [0], [0], [1], [0, 0, 1, 1], [], []>, precision = #tpu.contract_precision<fp32>} : vector<64x96xf32>, vector<96x128xf32>, vector<64x128xf32> -> vector<64x128xf32>
    %94 = vector.broadcast %6 : vector<64x1xf32> to vector<64x128xf32>
    %95 = arith.addf %93, %94 : vector<64x128xf32>
    %cst_46 = arith.constant 0.000000e+00 : f32
    %96 = vector.broadcast %cst_46 : f32 to vector<64x128xf32>
    %97 = arith.maximumf %95, %96 : vector<64x128xf32>
    %c3_47 = arith.constant 3 : index
    %c0_48 = arith.constant 0 : index
    %c0_49 = arith.constant 0 : index
    %98 = vector.load %arg11[%c3_47, %c0_48, %c0_49] : memref<4x64x128xf32, #tpu.memory_space<vmem>>, vector<1x64x128xf32>
    %99 = vector.shape_cast %98 : vector<1x64x128xf32> to vector<64x128xf32>
    %100 = vector.shape_cast %97 : vector<64x128xf32> to vector<1x64x128xf32>
    tpu.vector_store %arg11[%c3_47, %c0_48, %c0_49], %100 {strides = array<i32>} : memref<4x64x128xf32, #tpu.memory_space<vmem>>, vector<1x64x128xf32>,
    %c0_50 = arith.constant 0 : index
    %c0_51 = arith.constant 0 : index
    %c0_52 = arith.constant 0 : index
    %101 = vector.load %arg11[%c0_50, %c0_51, %c0_52] : memref<4x64x128xf32, #tpu.memory_space<vmem>>, vector<1x64x128xf32>
    %102 = vector.shape_cast %101 : vector<1x64x128xf32> to vector<64x128xf32>
    %c1_i32_53 = arith.constant 1 : i32
    %103 = tpu.dynamic_rotate %102 by %c1_i32_53 dim 1 : vector<64x128xf32>, i32 -> vector<64x128xf32>
    %c0_i32_54 = arith.constant 0 : i32
    %104 = arith.sitofp %c0_i32_54 : i32 to f32
    %105 = vector.shape_cast %2 : vector<1x128xi1> to vector<1x128xi1>
    %106 = vector.broadcast %105 : vector<1x128xi1> to vector<64x128xi1>
    %107 = vector.broadcast %104 : f32 to vector<64x128xf32>
    %108 = arith.select %106, %103, %107 : vector<64x128xi1>, vector<64x128xf32>
    %c127_i32_55 = arith.constant 127 : i32
    %109 = tpu.dynamic_rotate %102 by %c127_i32_55 dim 1 : vector<64x128xf32>, i32 -> vector<64x128xf32>
    %c0_i32_56 = arith.constant 0 : i32
    %110 = arith.sitofp %c0_i32_56 : i32 to f32
    %111 = vector.shape_cast %4 : vector<1x128xi1> to vector<1x128xi1>
    %112 = vector.broadcast %111 : vector<1x128xi1> to vector<64x128xi1>
    %113 = vector.broadcast %110 : f32 to vector<64x128xf32>
    %114 = arith.select %112, %109, %113 : vector<64x128xi1>, vector<64x128xf32>
    %115 = tpu.concatenate %108, %102, %114 in 0 : vector<64x128xf32>, vector<64x128xf32>, vector<64x128xf32> -> vector<192x128xf32>
    %cst_57 = arith.constant dense<0.000000e+00> : vector<64x128xf32>
    %116 = tpu.matmul %7, %115, %cst_57 {dimension_numbers = #tpu.dot_dimension_numbers<[1], [0], [0], [1], [0, 0, 1, 1], [], []>, precision = #tpu.contract_precision<fp32>} : vector<64x192xf32>, vector<192x128xf32>, vector<64x128xf32> -> vector<64x128xf32>
    %117 = vector.broadcast %8 : vector<64x1xf32> to vector<64x128xf32>
    %118 = arith.addf %116, %117 : vector<64x128xf32>
    %c0_58 = arith.constant 0 : index
    %c0_59 = arith.constant 0 : index
    %c0_60 = arith.constant 0 : index
    %119 = vector.load %arg11[%c0_58, %c0_59, %c0_60] : memref<4x64x128xf32, #tpu.memory_space<vmem>>, vector<1x64x128xf32>
    %120 = vector.shape_cast %119 : vector<1x64x128xf32> to vector<64x128xf32>
    %121 = vector.shape_cast %118 : vector<64x128xf32> to vector<1x64x128xf32>
    tpu.vector_store %arg11[%c0_58, %c0_59, %c0_60], %121 {strides = array<i32>} : memref<4x64x128xf32, #tpu.memory_space<vmem>>, vector<1x64x128xf32>,
    %c1_61 = arith.constant 1 : index
    %c0_62 = arith.constant 0 : index
    %c0_63 = arith.constant 0 : index
    %122 = vector.load %arg11[%c1_61, %c0_62, %c0_63] : memref<4x64x128xf32, #tpu.memory_space<vmem>>, vector<1x64x128xf32>
    %123 = vector.shape_cast %122 : vector<1x64x128xf32> to vector<64x128xf32>
    %c1_i32_64 = arith.constant 1 : i32
    %124 = tpu.dynamic_rotate %123 by %c1_i32_64 dim 1 : vector<64x128xf32>, i32 -> vector<64x128xf32>
    %c0_i32_65 = arith.constant 0 : i32
    %125 = arith.sitofp %c0_i32_65 : i32 to f32
    %126 = vector.shape_cast %2 : vector<1x128xi1> to vector<1x128xi1>
    %127 = vector.broadcast %126 : vector<1x128xi1> to vector<64x128xi1>
    %128 = vector.broadcast %125 : f32 to vector<64x128xf32>
    %129 = arith.select %127, %124, %128 : vector<64x128xi1>, vector<64x128xf32>
    %c127_i32_66 = arith.constant 127 : i32
    %130 = tpu.dynamic_rotate %123 by %c127_i32_66 dim 1 : vector<64x128xf32>, i32 -> vector<64x128xf32>
    %c0_i32_67 = arith.constant 0 : i32
    %131 = arith.sitofp %c0_i32_67 : i32 to f32
    %132 = vector.shape_cast %4 : vector<1x128xi1> to vector<1x128xi1>
    %133 = vector.broadcast %132 : vector<1x128xi1> to vector<64x128xi1>
    %134 = vector.broadcast %131 : f32 to vector<64x128xf32>
    %135 = arith.select %133, %130, %134 : vector<64x128xi1>, vector<64x128xf32>
    %136 = tpu.concatenate %129, %123, %135 in 0 : vector<64x128xf32>, vector<64x128xf32>, vector<64x128xf32> -> vector<192x128xf32>
    %cst_68 = arith.constant dense<0.000000e+00> : vector<64x128xf32>
    %137 = tpu.matmul %7, %136, %cst_68 {dimension_numbers = #tpu.dot_dimension_numbers<[1], [0], [0], [1], [0, 0, 1, 1], [], []>, precision = #tpu.contract_precision<fp32>} : vector<64x192xf32>, vector<192x128xf32>, vector<64x128xf32> -> vector<64x128xf32>
    %138 = vector.broadcast %8 : vector<64x1xf32> to vector<64x128xf32>
    %139 = arith.addf %137, %138 : vector<64x128xf32>
    %c1_69 = arith.constant 1 : index
    %c0_70 = arith.constant 0 : index
    %c0_71 = arith.constant 0 : index
    %140 = vector.load %arg11[%c1_69, %c0_70, %c0_71] : memref<4x64x128xf32, #tpu.memory_space<vmem>>, vector<1x64x128xf32>
    %141 = vector.shape_cast %140 : vector<1x64x128xf32> to vector<64x128xf32>
    %142 = vector.shape_cast %139 : vector<64x128xf32> to vector<1x64x128xf32>
    tpu.vector_store %arg11[%c1_69, %c0_70, %c0_71], %142 {strides = array<i32>} : memref<4x64x128xf32, #tpu.memory_space<vmem>>, vector<1x64x128xf32>,
    %c2_72 = arith.constant 2 : index
    %c0_73 = arith.constant 0 : index
    %c0_74 = arith.constant 0 : index
    %143 = vector.load %arg11[%c2_72, %c0_73, %c0_74] : memref<4x64x128xf32, #tpu.memory_space<vmem>>, vector<1x64x128xf32>
    %144 = vector.shape_cast %143 : vector<1x64x128xf32> to vector<64x128xf32>
    %c1_i32_75 = arith.constant 1 : i32
    %145 = tpu.dynamic_rotate %144 by %c1_i32_75 dim 1 : vector<64x128xf32>, i32 -> vector<64x128xf32>
    %c0_i32_76 = arith.constant 0 : i32
    %146 = arith.sitofp %c0_i32_76 : i32 to f32
    %147 = vector.shape_cast %2 : vector<1x128xi1> to vector<1x128xi1>
    %148 = vector.broadcast %147 : vector<1x128xi1> to vector<64x128xi1>
    %149 = vector.broadcast %146 : f32 to vector<64x128xf32>
    %150 = arith.select %148, %145, %149 : vector<64x128xi1>, vector<64x128xf32>
    %c127_i32_77 = arith.constant 127 : i32
    %151 = tpu.dynamic_rotate %144 by %c127_i32_77 dim 1 : vector<64x128xf32>, i32 -> vector<64x128xf32>
    %c0_i32_78 = arith.constant 0 : i32
    %152 = arith.sitofp %c0_i32_78 : i32 to f32
    %153 = vector.shape_cast %4 : vector<1x128xi1> to vector<1x128xi1>
    %154 = vector.broadcast %153 : vector<1x128xi1> to vector<64x128xi1>
    %155 = vector.broadcast %152 : f32 to vector<64x128xf32>
    %156 = arith.select %154, %151, %155 : vector<64x128xi1>, vector<64x128xf32>
    %157 = tpu.concatenate %150, %144, %156 in 0 : vector<64x128xf32>, vector<64x128xf32>, vector<64x128xf32> -> vector<192x128xf32>
    %cst_79 = arith.constant dense<0.000000e+00> : vector<64x128xf32>
    %158 = tpu.matmul %7, %157, %cst_79 {dimension_numbers = #tpu.dot_dimension_numbers<[1], [0], [0], [1], [0, 0, 1, 1], [], []>, precision = #tpu.contract_precision<fp32>} : vector<64x192xf32>, vector<192x128xf32>, vector<64x128xf32> -> vector<64x128xf32>
    %159 = vector.broadcast %8 : vector<64x1xf32> to vector<64x128xf32>
    %160 = arith.addf %158, %159 : vector<64x128xf32>
    %c2_80 = arith.constant 2 : index
    %c0_81 = arith.constant 0 : index
    %c0_82 = arith.constant 0 : index
    %161 = vector.load %arg11[%c2_80, %c0_81, %c0_82] : memref<4x64x128xf32, #tpu.memory_space<vmem>>, vector<1x64x128xf32>
    %162 = vector.shape_cast %161 : vector<1x64x128xf32> to vector<64x128xf32>
    %163 = vector.shape_cast %160 : vector<64x128xf32> to vector<1x64x128xf32>
    tpu.vector_store %arg11[%c2_80, %c0_81, %c0_82], %163 {strides = array<i32>} : memref<4x64x128xf32, #tpu.memory_space<vmem>>, vector<1x64x128xf32>,
    %c3_83 = arith.constant 3 : index
    %c0_84 = arith.constant 0 : index
    %c0_85 = arith.constant 0 : index
    %164 = vector.load %arg11[%c3_83, %c0_84, %c0_85] : memref<4x64x128xf32, #tpu.memory_space<vmem>>, vector<1x64x128xf32>
    %165 = vector.shape_cast %164 : vector<1x64x128xf32> to vector<64x128xf32>
    %c1_i32_86 = arith.constant 1 : i32
    %166 = tpu.dynamic_rotate %165 by %c1_i32_86 dim 1 : vector<64x128xf32>, i32 -> vector<64x128xf32>
    %c0_i32_87 = arith.constant 0 : i32
    %167 = arith.sitofp %c0_i32_87 : i32 to f32
    %168 = vector.shape_cast %2 : vector<1x128xi1> to vector<1x128xi1>
    %169 = vector.broadcast %168 : vector<1x128xi1> to vector<64x128xi1>
    %170 = vector.broadcast %167 : f32 to vector<64x128xf32>
    %171 = arith.select %169, %166, %170 : vector<64x128xi1>, vector<64x128xf32>
    %c127_i32_88 = arith.constant 127 : i32
    %172 = tpu.dynamic_rotate %165 by %c127_i32_88 dim 1 : vector<64x128xf32>, i32 -> vector<64x128xf32>
    %c0_i32_89 = arith.constant 0 : i32
    %173 = arith.sitofp %c0_i32_89 : i32 to f32
    %174 = vector.shape_cast %4 : vector<1x128xi1> to vector<1x128xi1>
    %175 = vector.broadcast %174 : vector<1x128xi1> to vector<64x128xi1>
    %176 = vector.broadcast %173 : f32 to vector<64x128xf32>
    %177 = arith.select %175, %172, %176 : vector<64x128xi1>, vector<64x128xf32>
    %178 = tpu.concatenate %171, %165, %177 in 0 : vector<64x128xf32>, vector<64x128xf32>, vector<64x128xf32> -> vector<192x128xf32>
    %cst_90 = arith.constant dense<0.000000e+00> : vector<64x128xf32>
    %179 = tpu.matmul %7, %178, %cst_90 {dimension_numbers = #tpu.dot_dimension_numbers<[1], [0], [0], [1], [0, 0, 1, 1], [], []>, precision = #tpu.contract_precision<fp32>} : vector<64x192xf32>, vector<192x128xf32>, vector<64x128xf32> -> vector<64x128xf32>
    %180 = vector.broadcast %8 : vector<64x1xf32> to vector<64x128xf32>
    %181 = arith.addf %179, %180 : vector<64x128xf32>
    %c3_91 = arith.constant 3 : index
    %c0_92 = arith.constant 0 : index
    %c0_93 = arith.constant 0 : index
    %182 = vector.load %arg11[%c3_91, %c0_92, %c0_93] : memref<4x64x128xf32, #tpu.memory_space<vmem>>, vector<1x64x128xf32>
    %183 = vector.shape_cast %182 : vector<1x64x128xf32> to vector<64x128xf32>
    %184 = vector.shape_cast %181 : vector<64x128xf32> to vector<1x64x128xf32>
    tpu.vector_store %arg11[%c3_91, %c0_92, %c0_93], %184 {strides = array<i32>} : memref<4x64x128xf32, #tpu.memory_space<vmem>>, vector<1x64x128xf32>,
    %c0_94 = arith.constant 0 : index
    %c0_95 = arith.constant 0 : index
    %c0_96 = arith.constant 0 : index
    %185 = vector.load %arg11[%c0_94, %c0_95, %c0_96] : memref<4x64x128xf32, #tpu.memory_space<vmem>>, vector<4x64x128xf32>
    %cst_97 = arith.constant dense<0.000000e+00> : vector<4x64xf32>
    %186 = vector.multi_reduction <add>, %185, %cst_97 [2] : vector<4x64x128xf32> to vector<4x64xf32>
    %c0_98 = arith.constant 0 : index
    %c0_99 = arith.constant 0 : index
    %187 = vector.load %arg6[%c0_98, %c0_99] : memref<64x4xf32, #tpu.memory_space<vmem>>, vector<64x4xf32>
    %cst_100 = arith.constant dense<0.000000e+00> : vector<4x4xf32>
    %188 = tpu.matmul %186, %187, %cst_100 {dimension_numbers = #tpu.dot_dimension_numbers<[1], [0], [0], [1], [0, 0, 1, 1], [], []>, precision = #tpu.contract_precision<fp32>} : vector<4x64xf32>, vector<64x4xf32>, vector<4x4xf32> -> vector<4x4xf32>
    %cst_101 = arith.constant 0.000000e+00 : f32
    %189 = vector.broadcast %cst_101 : f32 to vector<4x4xf32>
    %190 = arith.maximumf %188, %189 : vector<4x4xf32>
    %c0_102 = arith.constant 0 : index
    %c0_103 = arith.constant 0 : index
    %191 = vector.load %arg7[%c0_102, %c0_103] : memref<4x64xf32, #tpu.memory_space<vmem>>, vector<4x64xf32>
    %cst_104 = arith.constant dense<0.000000e+00> : vector<4x64xf32>
    %192 = tpu.matmul %190, %191, %cst_104 {dimension_numbers = #tpu.dot_dimension_numbers<[1], [0], [0], [1], [0, 0, 1, 1], [], []>, precision = #tpu.contract_precision<fp32>} : vector<4x4xf32>, vector<4x64xf32>, vector<4x64xf32> -> vector<4x64xf32>
    %193 = arith.negf %192 : vector<4x64xf32>
    %194 = math.exp %193 : vector<4x64xf32>
    %cst_105 = arith.constant 1.000000e+00 : f32
    %195 = vector.broadcast %cst_105 : f32 to vector<4x64xf32>
    %196 = arith.addf %195, %194 : vector<4x64xf32>
    %197 = arith.divf %195, %196 : vector<4x64xf32>
    %198 = vector.shape_cast %197 : vector<4x64xf32> to vector<4x64x1xf32>
    %c0_106 = arith.constant 0 : index
    %c0_107 = arith.constant 0 : index
    %199 = vector.load %arg8[%c0_106, %c0_107] : memref<64x32xf32, #tpu.memory_space<vmem>>, vector<64x32xf32>
    %c0_108 = arith.constant 0 : index
    %c0_109 = arith.constant 0 : index
    %200 = vector.load %arg9[%c0_108, %c0_109] : memref<64x1xf32, #tpu.memory_space<vmem>>, vector<64x1xf32>
    %c0_110 = arith.constant 0 : index
    %c0_111 = arith.constant 0 : index
    %c0_112 = arith.constant 0 : index
    %201 = vector.load %arg11[%c0_110, %c0_111, %c0_112] : memref<4x64x128xf32, #tpu.memory_space<vmem>>, vector<1x64x128xf32>
    %202 = vector.shape_cast %201 : vector<1x64x128xf32> to vector<64x128xf32>
    %203 = vector.extract_strided_slice %198 {offsets = [0, 0, 0], sizes = [1, 64, 1], strides = [1, 1, 1]} : vector<4x64x1xf32> to vector<1x64x1xf32>
    %204 = vector.shape_cast %203 : vector<1x64x1xf32> to vector<64x1xf32>
    %205 = vector.broadcast %204 : vector<64x1xf32> to vector<64x128xf32>
    %206 = arith.mulf %202, %205 : vector<64x128xf32>
    %c0_113 = arith.constant 0 : index
    %c0_114 = arith.constant 0 : index
    %c0_115 = arith.constant 0 : index
    %207 = vector.load %arg1[%c0_113, %c0_114, %c0_115] : memref<4x32x128xf32, #tpu.memory_space<vmem>>, vector<1x32x128xf32>
    %208 = vector.shape_cast %207 : vector<1x32x128xf32> to vector<32x128xf32>
    %cst_116 = arith.constant dense<0.000000e+00> : vector<64x128xf32>
    %209 = tpu.matmul %199, %208, %cst_116 {dimension_numbers = #tpu.dot_dimension_numbers<[1], [0], [0], [1], [0, 0, 1, 1], [], []>, precision = #tpu.contract_precision<fp32>} : vector<64x32xf32>, vector<32x128xf32>, vector<64x128xf32> -> vector<64x128xf32>
    %210 = vector.broadcast %200 : vector<64x1xf32> to vector<64x128xf32>
    %211 = arith.addf %209, %210 : vector<64x128xf32>
    %212 = arith.addf %206, %211 : vector<64x128xf32>
    %cst_117 = arith.constant 0.000000e+00 : f32
    %213 = vector.broadcast %cst_117 : f32 to vector<64x128xf32>
    %214 = arith.maximumf %212, %213 : vector<64x128xf32>
    %c0_118 = arith.constant 0 : index
    %c0_119 = arith.constant 0 : index
    %c0_120 = arith.constant 0 : index
    %215 = vector.load %arg10[%c0_118, %c0_119, %c0_120] : memref<4x64x128xf32, #tpu.memory_space<vmem>>, vector<1x64x128xf32>
    %216 = vector.shape_cast %215 : vector<1x64x128xf32> to vector<64x128xf32>
    %217 = vector.shape_cast %214 : vector<64x128xf32> to vector<1x64x128xf32>
    tpu.vector_store %arg10[%c0_118, %c0_119, %c0_120], %217 {strides = array<i32>} : memref<4x64x128xf32, #tpu.memory_space<vmem>>, vector<1x64x128xf32>,
    %c1_121 = arith.constant 1 : index
    %c0_122 = arith.constant 0 : index
    %c0_123 = arith.constant 0 : index
    %218 = vector.load %arg11[%c1_121, %c0_122, %c0_123] : memref<4x64x128xf32, #tpu.memory_space<vmem>>, vector<1x64x128xf32>
    %219 = vector.shape_cast %218 : vector<1x64x128xf32> to vector<64x128xf32>
    %220 = vector.extract_strided_slice %198 {offsets = [1, 0, 0], sizes = [1, 64, 1], strides = [1, 1, 1]} : vector<4x64x1xf32> to vector<1x64x1xf32>
    %221 = vector.shape_cast %220 : vector<1x64x1xf32> to vector<64x1xf32>
    %222 = vector.broadcast %221 : vector<64x1xf32> to vector<64x128xf32>
    %223 = arith.mulf %219, %222 : vector<64x128xf32>
    %c1_124 = arith.constant 1 : index
    %c0_125 = arith.constant 0 : index
    %c0_126 = arith.constant 0 : index
    %224 = vector.load %arg1[%c1_124, %c0_125, %c0_126] : memref<4x32x128xf32, #tpu.memory_space<vmem>>, vector<1x32x128xf32>
    %225 = vector.shape_cast %224 : vector<1x32x128xf32> to vector<32x128xf32>
    %cst_127 = arith.constant dense<0.000000e+00> : vector<64x128xf32>
    %226 = tpu.matmul %199, %225, %cst_127 {dimension_numbers = #tpu.dot_dimension_numbers<[1], [0], [0], [1], [0, 0, 1, 1], [], []>, precision = #tpu.contract_precision<fp32>} : vector<64x32xf32>, vector<32x128xf32>, vector<64x128xf32> -> vector<64x128xf32>
    %227 = vector.broadcast %200 : vector<64x1xf32> to vector<64x128xf32>
    %228 = arith.addf %226, %227 : vector<64x128xf32>
    %229 = arith.addf %223, %228 : vector<64x128xf32>
    %cst_128 = arith.constant 0.000000e+00 : f32
    %230 = vector.broadcast %cst_128 : f32 to vector<64x128xf32>
    %231 = arith.maximumf %229, %230 : vector<64x128xf32>
    %c1_129 = arith.constant 1 : index
    %c0_130 = arith.constant 0 : index
    %c0_131 = arith.constant 0 : index
    %232 = vector.load %arg10[%c1_129, %c0_130, %c0_131] : memref<4x64x128xf32, #tpu.memory_space<vmem>>, vector<1x64x128xf32>
    %233 = vector.shape_cast %232 : vector<1x64x128xf32> to vector<64x128xf32>
    %234 = vector.shape_cast %231 : vector<64x128xf32> to vector<1x64x128xf32>
    tpu.vector_store %arg10[%c1_129, %c0_130, %c0_131], %234 {strides = array<i32>} : memref<4x64x128xf32, #tpu.memory_space<vmem>>, vector<1x64x128xf32>,
    %c2_132 = arith.constant 2 : index
    %c0_133 = arith.constant 0 : index
    %c0_134 = arith.constant 0 : index
    %235 = vector.load %arg11[%c2_132, %c0_133, %c0_134] : memref<4x64x128xf32, #tpu.memory_space<vmem>>, vector<1x64x128xf32>
    %236 = vector.shape_cast %235 : vector<1x64x128xf32> to vector<64x128xf32>
    %237 = vector.extract_strided_slice %198 {offsets = [2, 0, 0], sizes = [1, 64, 1], strides = [1, 1, 1]} : vector<4x64x1xf32> to vector<1x64x1xf32>
    %238 = vector.shape_cast %237 : vector<1x64x1xf32> to vector<64x1xf32>
    %239 = vector.broadcast %238 : vector<64x1xf32> to vector<64x128xf32>
    %240 = arith.mulf %236, %239 : vector<64x128xf32>
    %c2_135 = arith.constant 2 : index
    %c0_136 = arith.constant 0 : index
    %c0_137 = arith.constant 0 : index
    %241 = vector.load %arg1[%c2_135, %c0_136, %c0_137] : memref<4x32x128xf32, #tpu.memory_space<vmem>>, vector<1x32x128xf32>
    %242 = vector.shape_cast %241 : vector<1x32x128xf32> to vector<32x128xf32>
    %cst_138 = arith.constant dense<0.000000e+00> : vector<64x128xf32>
    %243 = tpu.matmul %199, %242, %cst_138 {dimension_numbers = #tpu.dot_dimension_numbers<[1], [0], [0], [1], [0, 0, 1, 1], [], []>, precision = #tpu.contract_precision<fp32>} : vector<64x32xf32>, vector<32x128xf32>, vector<64x128xf32> -> vector<64x128xf32>
    %244 = vector.broadcast %200 : vector<64x1xf32> to vector<64x128xf32>
    %245 = arith.addf %243, %244 : vector<64x128xf32>
    %246 = arith.addf %240, %245 : vector<64x128xf32>
    %cst_139 = arith.constant 0.000000e+00 : f32
    %247 = vector.broadcast %cst_139 : f32 to vector<64x128xf32>
    %248 = arith.maximumf %246, %247 : vector<64x128xf32>
    %c2_140 = arith.constant 2 : index
    %c0_141 = arith.constant 0 : index
    %c0_142 = arith.constant 0 : index
    %249 = vector.load %arg10[%c2_140, %c0_141, %c0_142] : memref<4x64x128xf32, #tpu.memory_space<vmem>>, vector<1x64x128xf32>
    %250 = vector.shape_cast %249 : vector<1x64x128xf32> to vector<64x128xf32>
    %251 = vector.shape_cast %248 : vector<64x128xf32> to vector<1x64x128xf32>
    tpu.vector_store %arg10[%c2_140, %c0_141, %c0_142], %251 {strides = array<i32>} : memref<4x64x128xf32, #tpu.memory_space<vmem>>, vector<1x64x128xf32>,
    %c3_143 = arith.constant 3 : index
    %c0_144 = arith.constant 0 : index
    %c0_145 = arith.constant 0 : index
    %252 = vector.load %arg11[%c3_143, %c0_144, %c0_145] : memref<4x64x128xf32, #tpu.memory_space<vmem>>, vector<1x64x128xf32>
    %253 = vector.shape_cast %252 : vector<1x64x128xf32> to vector<64x128xf32>
    %254 = vector.extract_strided_slice %198 {offsets = [3, 0, 0], sizes = [1, 64, 1], strides = [1, 1, 1]} : vector<4x64x1xf32> to vector<1x64x1xf32>
    %255 = vector.shape_cast %254 : vector<1x64x1xf32> to vector<64x1xf32>
    %256 = vector.broadcast %255 : vector<64x1xf32> to vector<64x128xf32>
    %257 = arith.mulf %253, %256 : vector<64x128xf32>
    %c3_146 = arith.constant 3 : index
    %c0_147 = arith.constant 0 : index
    %c0_148 = arith.constant 0 : index
    %258 = vector.load %arg1[%c3_146, %c0_147, %c0_148] : memref<4x32x128xf32, #tpu.memory_space<vmem>>, vector<1x32x128xf32>
    %259 = vector.shape_cast %258 : vector<1x32x128xf32> to vector<32x128xf32>
    %cst_149 = arith.constant dense<0.000000e+00> : vector<64x128xf32>
    %260 = tpu.matmul %199, %259, %cst_149 {dimension_numbers = #tpu.dot_dimension_numbers<[1], [0], [0], [1], [0, 0, 1, 1], [], []>, precision = #tpu.contract_precision<fp32>} : vector<64x32xf32>, vector<32x128xf32>, vector<64x128xf32> -> vector<64x128xf32>
    %261 = vector.broadcast %200 : vector<64x1xf32> to vector<64x128xf32>
    %262 = arith.addf %260, %261 : vector<64x128xf32>
    %263 = arith.addf %257, %262 : vector<64x128xf32>
    %cst_150 = arith.constant 0.000000e+00 : f32
    %264 = vector.broadcast %cst_150 : f32 to vector<64x128xf32>
    %265 = arith.maximumf %263, %264 : vector<64x128xf32>
    %c3_151 = arith.constant 3 : index
    %c0_152 = arith.constant 0 : index
    %c0_153 = arith.constant 0 : index
    %266 = vector.load %arg10[%c3_151, %c0_152, %c0_153] : memref<4x64x128xf32, #tpu.memory_space<vmem>>, vector<1x64x128xf32>
    %267 = vector.shape_cast %266 : vector<1x64x128xf32> to vector<64x128xf32>
    %268 = vector.shape_cast %265 : vector<64x128xf32> to vector<1x64x128xf32>
    tpu.vector_store %arg10[%c3_151, %c0_152, %c0_153], %268 {strides = array<i32>} : memref<4x64x128xf32, #tpu.memory_space<vmem>>, vector<1x64x128xf32>,
    return
  }
  func.func @transform_0(%arg0: i32) -> (i32, i32, i32) {
    %c0_i32 = arith.constant 0 : i32
    %c0_i32_0 = arith.constant 0 : i32
    %c0_i32_1 = arith.constant 0 : i32
    return %arg0, %c0_i32, %c0_i32_0 : i32, i32, i32
  }
  func.func @transform_1(%arg0: i32) -> (i32, i32) {
    %c0_i32 = arith.constant 0 : i32
    %c0_i32_0 = arith.constant 0 : i32
    %c0_i32_1 = arith.constant 0 : i32
    return %c0_i32, %c0_i32_0 : i32, i32
  }
  func.func @transform_2(%arg0: i32) -> (i32, i32) {
    %c0_i32 = arith.constant 0 : i32
    %c0_i32_0 = arith.constant 0 : i32
    %c0_i32_1 = arith.constant 0 : i32
    return %c0_i32, %c0_i32_0 : i32, i32
  }
  func.func @transform_3(%arg0: i32) -> (i32, i32) {
    %c0_i32 = arith.constant 0 : i32
    %c0_i32_0 = arith.constant 0 : i32
    %c0_i32_1 = arith.constant 0 : i32
    return %c0_i32, %c0_i32_0 : i32, i32
  }
  func.func @transform_4(%arg0: i32) -> (i32, i32) {
    %c0_i32 = arith.constant 0 : i32
    %c0_i32_0 = arith.constant 0 : i32
    %c0_i32_1 = arith.constant 0 : i32
    return %c0_i32, %c0_i32_0 : i32, i32
  }
  func.func @transform_5(%arg0: i32) -> (i32, i32) {
    %c0_i32 = arith.constant 0 : i32
    %c0_i32_0 = arith.constant 0 : i32
    %c0_i32_1 = arith.constant 0 : i32
    return %c0_i32, %c0_i32_0 : i32, i32
  }
  func.func @transform_6(%arg0: i32) -> (i32, i32) {
    %c0_i32 = arith.constant 0 : i32
    %c0_i32_0 = arith.constant 0 : i32
    %c0_i32_1 = arith.constant 0 : i32
    return %c0_i32, %c0_i32_0 : i32, i32
  }
  func.func @transform_7(%arg0: i32) -> (i32, i32) {
    %c0_i32 = arith.constant 0 : i32
    %c0_i32_0 = arith.constant 0 : i32
    %c0_i32_1 = arith.constant 0 : i32
    return %c0_i32, %c0_i32_0 : i32, i32
  }
  func.func @transform_8(%arg0: i32) -> (i32, i32) {
    %c0_i32 = arith.constant 0 : i32
    %c0_i32_0 = arith.constant 0 : i32
    %c0_i32_1 = arith.constant 0 : i32
    return %c0_i32, %c0_i32_0 : i32, i32
  }
  func.func @transform_9(%arg0: i32) -> (i32, i32, i32) {
    %c0_i32 = arith.constant 0 : i32
    %c0_i32_0 = arith.constant 0 : i32
    %c0_i32_1 = arith.constant 0 : i32
    return %arg0, %c0_i32, %c0_i32_0 : i32, i32, i32
  }
}

</mosaic_0001>

<llo_original>
// kernel: tpu_custom_call.1
$region0: #{tpu_custom_call.1}
  #allocation0 [shape = 'u32[]', space=smem, size = 0x4, offset = 0x4, fixed_abs, tag = 'smem constant byte address 0x4 - core index']
  #allocation1 [shape = 'u32[72,128]{1,0:T(1,128)}', space=vmem, size = 0x9000, scoped, tag = 'internal scratch']
  #allocation2 [shape = 'f32[4,64,128]{2,1,0:T(8,128)}', space=vmem, size = 0x20000, scoped, tag = 'scratch operand']
  %s0 = inlined_call_operand.hbm [shape: f32[16,32,128], index: 0, kind: input, shape index: {}]
  %s1 = inlined_call_operand.vmem [shape: f32[64,96], index: 1, kind: input, shape index: {}]
  %s2 = inlined_call_operand.vmem [shape: f32[64,1], index: 2, kind: input, shape index: {}]
  %s3 = inlined_call_operand.vmem [shape: f32[64,192], index: 3, kind: input, shape index: {}]
  %s4 = inlined_call_operand.vmem [shape: f32[64,1], index: 4, kind: input, shape index: {}]
  %s5 = inlined_call_operand.vmem [shape: f32[64,4], index: 5, kind: input, shape index: {}]
  %s6 = inlined_call_operand.vmem [shape: f32[4,64], index: 6, kind: input, shape index: {}]
  %s7 = inlined_call_operand.vmem [shape: f32[64,32], index: 7, kind: input, shape index: {}]
  %s8 = inlined_call_operand.vmem [shape: f32[64,1], index: 8, kind: input, shape index: {}]
  %s9 = inlined_call_operand.hbm [shape: f32[16,64,128], index: 9, kind: output, shape index: {}]
  %s10 = sld [smem:[#allocation0]]
  $region73: #{tpu_custom_call.1} parent=0
    _
  %s12 = ssub.s32 1, %s10
  %s13 = scalar_select 0, %s12, %s10
  $region1: #{tpu_custom_call.1} parent=0
    #allocation3 [shape = 'u8[131072]{0}', space=vmem, size = 0x20000, scoped, tag = 'input window, operand 0']
    #allocation4 [shape = 's32[2]{0}', space=sflag, size = 0x8, scoped, tag = 'scoped memory for tpu_custom_call.1']
    #allocation5 [shape = 's32[2]{0}', space=sflag, size = 0x8, scoped, tag = 'scoped memory for tpu_custom_call.1']
    #allocation6 [shape = 'u8[262144]{0}', space=vmem, size = 0x40000, scoped, tag = 'output window, operand 0']
    %14 = vsyncpa [#allocation4], 0
    %s15 = scalar_lea.sflag [#allocation4], 1
    %16 = vsyncpa %s15, 0
    %17 = vsyncpa [#allocation5], 0
    %s18 = scalar_lea.sflag [#allocation5], 1
    %19 = vsyncpa %s18, 0
    loop: start=0, step=1, limit=6
    $region2: #{tpu_custom_call.1} parent=1 // loop_pre_header
      _
    $region3: #{tpu_custom_call.1} parent=1 // loop_header
      %s21 = sphi 0, %s25
      %p22 = scmp.ge.s32.totalorder %s21, 6
      %s31 = sphi 0, %s33
      %s34 = sphi 0, %s31
      %s35 = sphi 0, %s34
      %s51 = sphi 0, %s35
      %s55 = sphi 0, %s55
      %s57 = sphi 0, %s55
      %s58 = sphi 0, %s57
      %s72 = sphi 0, %s58
      %s76 = sphi 0, %s76
      %s78 = sphi 0, %s76
      %s79 = sphi 0, %s78
      %s93 = sphi 0, %s79
      %s97 = sphi 0, %s97
      %s99 = sphi 0, %s97
      %s100 = sphi 0, %s99
      %s114 = sphi 0, %s100
      %s118 = sphi 0, %s118
      %s120 = sphi 0, %s118
      %s121 = sphi 0, %s120
      %s135 = sphi 0, %s121
      %s139 = sphi 0, %s139
      %s141 = sphi 0, %s139
      %s142 = sphi 0, %s141
      %s156 = sphi 0, %s142
      %s160 = sphi 0, %s160
      %s162 = sphi 0, %s160
      %s163 = sphi 0, %s162
      %s177 = sphi 0, %s163
      %s181 = sphi 0, %s181
      %s183 = sphi 0, %s181
      %s184 = sphi 0, %s183
      %s198 = sphi 0, %s184
      %s202 = sphi 0, %s202
      %s204 = sphi 0, %s202
      %s205 = sphi 0, %s204
      %s219 = sphi 0, %s205
      %s225 = sphi 0, %s227
      %s228 = sphi 0, %s225
      %s229 = sphi 0, %s228
      %s245 = sphi 0, %s229
    $region4: #{tpu_custom_call.1} parent=1 // loop_header_branch
      %24 = sbr.rel (%p22) target = $region8
    $region5: #{tpu_custom_call.1} parent=1 // loop_body
      %s26 = ssub.s32 %s21, 1
      %s27 = ssub.s32 %s21, 2
      %s28 = sadd.s32 %s21, 1
      %s29 = ssub.s32 %s21, %s28
      %p30 = scmp.eq.s32.totalorder %s29, 0
      %s32 = sadd.s32 %s31, 1
      %s33 = scalar_select %p30, %s31, %s32
      %p36 = pneg %p30
      %p37 = scmp.eq.s32.totalorder %s21, 3
      %p38 = por %p36, %p37
      %p39 = scmp.ne.s32.totalorder %s31, %s34
      %p40 = scmp.eq.s32.totalorder %s21, 0
      %p41 = por %p39, %p40
      %p42 = scmp.ne.s32.totalorder %s31, %s34
      %p43 = scmp.eq.s32.totalorder %s26, 3
      %p44 = por %p42, %p43
      %p45 = scmp.ne.s32.totalorder %s34, %s35
      %p46 = scmp.eq.s32.totalorder %s26, 0
      %p47 = por %p45, %p46
      %p48 = scmp.ne.s32.totalorder %s34, %s35
      %p49 = scmp.eq.s32.totalorder %s27, 3
      %p50 = por %p48, %p49
      %p52 = scmp.ne.s32.totalorder %s35, %s51
      %p53 = scmp.eq.s32.totalorder %s27, 0
      %p54 = por %p52, %p53
      %s56 = sadd.s32 %s55, 1
      %p59 = scmp.eq.s32.totalorder %s21, 3
      %p60 = scmp.ne.s32.totalorder %s55, %s57
      %p61 = scmp.eq.s32.totalorder %s21, 0
      %p62 = por %p60, %p61
      %p63 = scmp.ne.s32.totalorder %s55, %s57
      %p64 = scmp.eq.s32.totalorder %s26, 3
      %p65 = por %p63, %p64
      %p66 = scmp.ne.s32.totalorder %s57, %s58
      %p67 = scmp.eq.s32.totalorder %s26, 0
      %p68 = por %p66, %p67
      %p69 = scmp.ne.s32.totalorder %s57, %s58
      %p70 = scmp.eq.s32.totalorder %s27, 3
      %p71 = por %p69, %p70
      %p73 = scmp.ne.s32.totalorder %s58, %s72
      %p74 = scmp.eq.s32.totalorder %s27, 0
      %p75 = por %p73, %p74
      %s77 = sadd.s32 %s76, 1
      %p80 = scmp.eq.s32.totalorder %s21, 3
      %p81 = scmp.ne.s32.totalorder %s76, %s78
      %p82 = scmp.eq.s32.totalorder %s21, 0
      %p83 = por %p81, %p82
      %p84 = scmp.ne.s32.totalorder %s76, %s78
      %p85 = scmp.eq.s32.totalorder %s26, 3
      %p86 = por %p84, %p85
      %p87 = scmp.ne.s32.totalorder %s78, %s79
      %p88 = scmp.eq.s32.totalorder %s26, 0
      %p89 = por %p87, %p88
      %p90 = scmp.ne.s32.totalorder %s78, %s79
      %p91 = scmp.eq.s32.totalorder %s27, 3
      %p92 = por %p90, %p91
      %p94 = scmp.ne.s32.totalorder %s79, %s93
      %p95 = scmp.eq.s32.totalorder %s27, 0
      %p96 = por %p94, %p95
      %s98 = sadd.s32 %s97, 1
      %p101 = scmp.eq.s32.totalorder %s21, 3
      %p102 = scmp.ne.s32.totalorder %s97, %s99
      %p103 = scmp.eq.s32.totalorder %s21, 0
      %p104 = por %p102, %p103
      %p105 = scmp.ne.s32.totalorder %s97, %s99
      %p106 = scmp.eq.s32.totalorder %s26, 3
      %p107 = por %p105, %p106
      %p108 = scmp.ne.s32.totalorder %s99, %s100
      %p109 = scmp.eq.s32.totalorder %s26, 0
      %p110 = por %p108, %p109
      %p111 = scmp.ne.s32.totalorder %s99, %s100
      %p112 = scmp.eq.s32.totalorder %s27, 3
      %p113 = por %p111, %p112
      %p115 = scmp.ne.s32.totalorder %s100, %s114
      %p116 = scmp.eq.s32.totalorder %s27, 0
      %p117 = por %p115, %p116
      %s119 = sadd.s32 %s118, 1
      %p122 = scmp.eq.s32.totalorder %s21, 3
      %p123 = scmp.ne.s32.totalorder %s118, %s120
      %p124 = scmp.eq.s32.totalorder %s21, 0
      %p125 = por %p123, %p124
      %p126 = scmp.ne.s32.totalorder %s118, %s120
      %p127 = scmp.eq.s32.totalorder %s26, 3
      %p128 = por %p126, %p127
      %p129 = scmp.ne.s32.totalorder %s120, %s121
      %p130 = scmp.eq.s32.totalorder %s26, 0
      %p131 = por %p129, %p130
      %p132 = scmp.ne.s32.totalorder %s120, %s121
      %p133 = scmp.eq.s32.totalorder %s27, 3
      %p134 = por %p132, %p133
      %p136 = scmp.ne.s32.totalorder %s121, %s135
      %p137 = scmp.eq.s32.totalorder %s27, 0
      %p138 = por %p136, %p137
      %s140 = sadd.s32 %s139, 1
      %p143 = scmp.eq.s32.totalorder %s21, 3
      %p144 = scmp.ne.s32.totalorder %s139, %s141
      %p145 = scmp.eq.s32.totalorder %s21, 0
      %p146 = por %p144, %p145
      %p147 = scmp.ne.s32.totalorder %s139, %s141
      %p148 = scmp.eq.s32.totalorder %s26, 3
      %p149 = por %p147, %p148
      %p150 = scmp.ne.s32.totalorder %s141, %s142
      %p151 = scmp.eq.s32.totalorder %s26, 0
      %p152 = por %p150, %p151
      %p153 = scmp.ne.s32.totalorder %s141, %s142
      %p154 = scmp.eq.s32.totalorder %s27, 3
      %p155 = por %p153, %p154
      %p157 = scmp.ne.s32.totalorder %s142, %s156
      %p158 = scmp.eq.s32.totalorder %s27, 0
      %p159 = por %p157, %p158
      %s161 = sadd.s32 %s160, 1
      %p164 = scmp.eq.s32.totalorder %s21, 3
      %p165 = scmp.ne.s32.totalorder %s160, %s162
      %p166 = scmp.eq.s32.totalorder %s21, 0
      %p167 = por %p165, %p166
      %p168 = scmp.ne.s32.totalorder %s160, %s162
      %p169 = scmp.eq.s32.totalorder %s26, 3
      %p170 = por %p168, %p169
      %p171 = scmp.ne.s32.totalorder %s162, %s163
      %p172 = scmp.eq.s32.totalorder %s26, 0
      %p173 = por %p171, %p172
      %p174 = scmp.ne.s32.totalorder %s162, %s163
      %p175 = scmp.eq.s32.totalorder %s27, 3
      %p176 = por %p174, %p175
      %p178 = scmp.ne.s32.totalorder %s163, %s177
      %p179 = scmp.eq.s32.totalorder %s27, 0
      %p180 = por %p178, %p179
      %s182 = sadd.s32 %s181, 1
      %p185 = scmp.eq.s32.totalorder %s21, 3
      %p186 = scmp.ne.s32.totalorder %s181, %s183
      %p187 = scmp.eq.s32.totalorder %s21, 0
      %p188 = por %p186, %p187
      %p189 = scmp.ne.s32.totalorder %s181, %s183
      %p190 = scmp.eq.s32.totalorder %s26, 3
      %p191 = por %p189, %p190
      %p192 = scmp.ne.s32.totalorder %s183, %s184
      %p193 = scmp.eq.s32.totalorder %s26, 0
      %p194 = por %p192, %p193
      %p195 = scmp.ne.s32.totalorder %s183, %s184
      %p196 = scmp.eq.s32.totalorder %s27, 3
      %p197 = por %p195, %p196
      %p199 = scmp.ne.s32.totalorder %s184, %s198
      %p200 = scmp.eq.s32.totalorder %s27, 0
      %p201 = por %p199, %p200
      %s203 = sadd.s32 %s202, 1
      %p206 = scmp.eq.s32.totalorder %s21, 3
      %p207 = scmp.ne.s32.totalorder %s202, %s204
      %p208 = scmp.eq.s32.totalorder %s21, 0
      %p209 = por %p207, %p208
      %p210 = scmp.ne.s32.totalorder %s202, %s204
      %p211 = scmp.eq.s32.totalorder %s26, 3
      %p212 = por %p210, %p211
      %p213 = scmp.ne.s32.totalorder %s204, %s205
      %p214 = scmp.eq.s32.totalorder %s26, 0
      %p215 = por %p213, %p214
      %p216 = scmp.ne.s32.totalorder %s204, %s205
      %p217 = scmp.eq.s32.totalorder %s27, 3
      %p218 = por %p216, %p217
      %p220 = scmp.ne.s32.totalorder %s205, %s219
      %p221 = scmp.eq.s32.totalorder %s27, 0
      %p222 = por %p220, %p221
      %s223 = ssub.s32 %s21, %s28
      %p224 = scmp.eq.s32.totalorder %s223, 0
      %s226 = sadd.s32 %s225, 1
      %s227 = scalar_select %p224, %s225, %s226
      %p230 = pneg %p224
      %p231 = scmp.eq.s32.totalorder %s21, 3
      %p232 = por %p230, %p231
      %p233 = scmp.ne.s32.totalorder %s225, %s228
      %p234 = scmp.eq.s32.totalorder %s21, 0
      %p235 = por %p233, %p234
      %p236 = scmp.ne.s32.totalorder %s225, %s228
      %p237 = scmp.eq.s32.totalorder %s26, 3
      %p238 = por %p236, %p237
      %p239 = scmp.ne.s32.totalorder %s228, %s229
      %p240 = scmp.eq.s32.totalorder %s26, 0
      %p241 = por %p239, %p240
      %p242 = scmp.ne.s32.totalorder %s228, %s229
      %p243 = scmp.eq.s32.totalorder %s27, 3
      %p244 = por %p242, %p243
      %p246 = scmp.ne.s32.totalorder %s229, %s245
      %p247 = scmp.eq.s32.totalorder %s27, 0
      %p248 = por %p246, %p247
      %p249 = scmp.le.s32.totalorder 1, %s21
      %p250 = scmp.lt.s32.totalorder %s21, 5
      %p251 = pnand %p249, %p250
      %p252 = pneg %p251
      // Predicated region
      $region9: #{tpu_custom_call.1} parent=5 // pred_check
        _
      $region10: #{tpu_custom_call.1} parent=5 // pred_check_branch
        %254 = sbr.rel (%p251) target = $region12
      $region11: #{tpu_custom_call.1} parent=5 // pred_region
        %s255 = ssub.s32 %s21, 1
        // Predicated region
        $region13: #{tpu_custom_call.1} parent=11 // pred_check
          %p256 = pneg %p68
        $region14: #{tpu_custom_call.1} parent=11 // pred_check_branch
          %258 = sbr.rel (%p256) target = $region16
        $region15: #{tpu_custom_call.1} parent=11 // pred_region
          _
        $region16: #{tpu_custom_call.1} parent=11 // pred_fallthru
          _
        // Predicated region
        $region17: #{tpu_custom_call.1} parent=11 // pred_check
          %p259 = pneg %p89
        $region18: #{tpu_custom_call.1} parent=11 // pred_check_branch
          %261 = sbr.rel (%p259) target = $region20
        $region19: #{tpu_custom_call.1} parent=11 // pred_region
          _
        $region20: #{tpu_custom_call.1} parent=11 // pred_fallthru
          _
        // Predicated region
        $region21: #{tpu_custom_call.1} parent=11 // pred_check
          %p262 = pneg %p110
        $region22: #{tpu_custom_call.1} parent=11 // pred_check_branch
          %264 = sbr.rel (%p262) target = $region24
        $region23: #{tpu_custom_call.1} parent=11 // pred_region
          _
        $region24: #{tpu_custom_call.1} parent=11 // pred_fallthru
          _
        // Predicated region
        $region25: #{tpu_custom_call.1} parent=11 // pred_check
          %p265 = pneg %p131
        $region26: #{tpu_custom_call.1} parent=11 // pred_check_branch
          %267 = sbr.rel (%p265) target = $region28
        $region27: #{tpu_custom_call.1} parent=11 // pred_region
          _
        $region28: #{tpu_custom_call.1} parent=11 // pred_fallthru
          _
        // Predicated region
        $region29: #{tpu_custom_call.1} parent=11 // pred_check
          %p268 = pneg %p152
        $region30: #{tpu_custom_call.1} parent=11 // pred_check_branch
          %270 = sbr.rel (%p268) target = $region32
        $region31: #{tpu_custom_call.1} parent=11 // pred_region
          _
        $region32: #{tpu_custom_call.1} parent=11 // pred_fallthru
          _
        // Predicated region
        $region33: #{tpu_custom_call.1} parent=11 // pred_check
          %p271 = pneg %p173
        $region34: #{tpu_custom_call.1} parent=11 // pred_check_branch
          %273 = sbr.rel (%p271) target = $region36
        $region35: #{tpu_custom_call.1} parent=11 // pred_region
          _
        $region36: #{tpu_custom_call.1} parent=11 // pred_fallthru
          _
        // Predicated region
        $region37: #{tpu_custom_call.1} parent=11 // pred_check
          %p274 = pneg %p194
        $region38: #{tpu_custom_call.1} parent=11 // pred_check_branch
          %276 = sbr.rel (%p274) target = $region40
        $region39: #{tpu_custom_call.1} parent=11 // pred_region
          _
        $region40: #{tpu_custom_call.1} parent=11 // pred_fallthru
          _
        // Predicated region
        $region41: #{tpu_custom_call.1} parent=11 // pred_check
          %p277 = pneg %p215
        $region42: #{tpu_custom_call.1} parent=11 // pred_check_branch
          %279 = sbr.rel (%p277) target = $region44
        $region43: #{tpu_custom_call.1} parent=11 // pred_region
          _
        $region44: #{tpu_custom_call.1} parent=11 // pred_fallthru
          _
      $region12: #{tpu_custom_call.1} parent=5 // pred_fallthru
        _
      %p280 = scmp.lt.s32.totalorder %s21, 4
      // Predicated region
      $region45: #{tpu_custom_call.1} parent=5 // pred_check
        %p281 = pneg %p280
      $region46: #{tpu_custom_call.1} parent=5 // pred_check_branch
        %283 = sbr.rel (%p281) target = $region48
      $region47: #{tpu_custom_call.1} parent=5 // pred_region
        // Predicated region
        $region49: #{tpu_custom_call.1} parent=47 // pred_check
          %p284 = pneg %p41
        $region50: #{tpu_custom_call.1} parent=47 // pred_check_branch
          %286 = sbr.rel (%p284) target = $region52
        $region51: #{tpu_custom_call.1} parent=47 // pred_region
          %s287 = sand.u32 %s31, 1
          %s288 = scalar_lea.sflag [#allocation4], %s287
          %s289 = sand.u32 %s31, 1
          %s290 = smul.addr %s289, 128
          %s291 = scalar_lea.vmem [#allocation3], %s290
          %s292 = smul.u32 4, %s21
          %294 = vsyncadd %s288, 0
          %s295 = smul.addr %s292, 4
          %s296 = smul.addr %s295, 8
          %s297 = scalar_lea.hbm %s0, %s296
          %s298 = sshll.u32 %s297, 4
          %s299 = int_to_ptr.hbm [resolvable:$true] %s298
          %s300 = sshll.u32 %s291, 4
          %s301 = int_to_ptr.vmem [resolvable:$true] %s300
          %306 = dma.hbm_to_vmem [thread:$0]  %s299, 2048, %s301, %s288, 128, 128, 8
        $region52: #{tpu_custom_call.1} parent=47 // pred_fallthru
          _
      $region48: #{tpu_custom_call.1} parent=5 // pred_fallthru
        _
      %p307 = scmp.le.s32.totalorder 1, %s21
      %p308 = scmp.lt.s32.totalorder %s21, 5
      %p309 = pnand %p307, %p308
      %p310 = pneg %p309
      // Predicated region
      $region53: #{tpu_custom_call.1} parent=5 // pred_check
        _
      $region54: #{tpu_custom_call.1} parent=5 // pred_check_branch
        %312 = sbr.rel (%p309) target = $region56
      $region55: #{tpu_custom_call.1} parent=5 // pred_region
        %s313 = ssub.s32 %s21, 1
        %s314 = sand.u32 %s34, 1
        %s315 = scalar_lea.sflag [#allocation4], %s314
        %s316 = sand.u32 %s34, 1
        %s317 = smul.addr %s316, 128
        %s318 = scalar_lea.vmem [#allocation3], %s317
        // Predicated region
        $region57: #{tpu_custom_call.1} parent=55 // pred_check
          %p319 = pneg %p47
        $region58: #{tpu_custom_call.1} parent=55 // pred_check_branch
          %321 = sbr.rel (%p319) target = $region60
        $region59: #{tpu_custom_call.1} parent=55 // pred_region
          %323 = dma.done %s315, 2048
        $region60: #{tpu_custom_call.1} parent=55 // pred_fallthru
          _
        %s324 = sand.u32 %s34, 1
        %s325 = scalar_lea.sflag [#allocation4], %s324
        %s326 = sand.u32 %s34, 1
        %s327 = smul.addr %s326, 128
        %s328 = scalar_lea.vmem [#allocation3], %s327
        %p329 = pneg %p47
        %p330 = pneg %p44
        %p331 = pneg %p68
        %p332 = pneg %p65
        %p333 = pneg %p89
        %p334 = pneg %p86
        %p335 = pneg %p110
        %p336 = pneg %p107
        %p337 = pneg %p131
        %p338 = pneg %p128
        %p339 = pneg %p152
        %p340 = pneg %p149
        %p341 = pneg %p173
        %p342 = pneg %p170
        %p343 = pneg %p194
        %p344 = pneg %p191
        %p345 = pneg %p215
        %p346 = pneg %p212
        %p347 = pneg %p241
        %p348 = pneg %p238
        %s349 = sand.u32 %s228, 1
        %s350 = scalar_lea.sflag [#allocation5], %s349
        %s351 = sand.u32 %s228, 1
        %s352 = smul.addr %s351, 256
        %s353 = scalar_lea.vmem [#allocation6], %s352
        %s354 = smul.u32 4, %s26
        %s355 = smul.u32 4, %s26
        %v356 = vlaneseq
        %v357 = vand.u32 %v356, 127
        %vm358 = vcmp.ge.s32.totalorder %v357, 1
        %vm359 = vcmp.lt.s32.totalorder %v357, 127
        %v360 = vld [vmem:[%s1] sm:$0xff]
        %v361 = vld [vmem:[%s1 + $0x8] sm:$0xff]
        %v362 = vld [vmem:[%s1 + $0x10] sm:$0xff]
        %v363 = vld [vmem:[%s1 + $0x18] sm:$0xff]
        %v364 = vld [vmem:[%s1 + $0x20] sm:$0xff]
        %v365 = vld [vmem:[%s1 + $0x28] sm:$0xff]
        %v366 = vld [vmem:[%s1 + $0x30] sm:$0xff]
        %v367 = vld [vmem:[%s1 + $0x38] sm:$0xff]
        %v368 = vld [vmem:[%s2] sm:$0xff]
        %v369 = vld [vmem:[%s2 + $0x8] sm:$0xff]
        %v370 = vld [vmem:[%s2 + $0x10] sm:$0xff]
        %v371 = vld [vmem:[%s2 + $0x18] sm:$0xff]
        %v372 = vld [vmem:[%s2 + $0x20] sm:$0xff]
        %v373 = vld [vmem:[%s2 + $0x28] sm:$0xff]
        %v374 = vld [vmem:[%s2 + $0x30] sm:$0xff]
        %v375 = vld [vmem:[%s2 + $0x38] sm:$0xff]
        %v376 = vld [vmem:[%s3] sm:$0xff]
        %v377 = vld [vmem:[%s3 + $0x8] sm:$0xff]
        %v378 = vld [vmem:[%s3 + $0x10] sm:$0xff]
        %v379 = vld [vmem:[%s3 + $0x18] sm:$0xff]
        %v380 = vld [vmem:[%s3 + $0x20] sm:$0xff]
        %v381 = vld [vmem:[%s3 + $0x28] sm:$0xff]
        %v382 = vld [vmem:[%s3 + $0x30] sm:$0xff]
        %v383 = vld [vmem:[%s3 + $0x38] sm:$0xff]
        %v384 = vld [vmem:[%s3 + $0x40] sm:$0xff]
        %v385 = vld [vmem:[%s3 + $0x48] sm:$0xff]
        %v386 = vld [vmem:[%s3 + $0x50] sm:$0xff]
        %v387 = vld [vmem:[%s3 + $0x58] sm:$0xff]
        %v388 = vld [vmem:[%s3 + $0x60] sm:$0xff]
        %v389 = vld [vmem:[%s3 + $0x68] sm:$0xff]
        %v390 = vld [vmem:[%s3 + $0x70] sm:$0xff]
        %v391 = vld [vmem:[%s3 + $0x78] sm:$0xff]
        %v392 = vld [vmem:[%s4] sm:$0xff]
        %v393 = vld [vmem:[%s4 + $0x8] sm:$0xff]
        %v394 = vld [vmem:[%s4 + $0x10] sm:$0xff]
        %v395 = vld [vmem:[%s4 + $0x18] sm:$0xff]
        %v396 = vld [vmem:[%s4 + $0x20] sm:$0xff]
        %v397 = vld [vmem:[%s4 + $0x28] sm:$0xff]
        %v398 = vld [vmem:[%s4 + $0x30] sm:$0xff]
        %v399 = vld [vmem:[%s4 + $0x38] sm:$0xff]
        %v400 = vld [vmem:[%s318] sm:$0xff]
        %v401 = vld [vmem:[%s318 + $0x8] sm:$0xff]
        %v402 = vld [vmem:[%s318 + $0x10] sm:$0xff]
        %v403 = vld [vmem:[%s318 + $0x18] sm:$0xff]
        %404 = vrot.lane.b32.xlu0 %v400, 1
        %v405 = vpop.permute.xlu0 %404
        %406 = vrot.lane.b32.xlu0 %v401, 1
        %v407 = vpop.permute.xlu0 %406
        %408 = vrot.lane.b32.xlu0 %v402, 1
        %v409 = vpop.permute.xlu0 %408
        %410 = vrot.lane.b32.xlu0 %v403, 1
        %v411 = vpop.permute.xlu0 %410
        %v412 = vsel %vm358, 1, 0
        %vm413 = vcmp.eq.s32.totalorder %v412, 1
        %v414 = vsel %vm413, %v405, 0.0
        %v415 = vsel %vm413, %v407, 0.0
        %v416 = vsel %vm413, %v409, 0.0
        %v417 = vsel %vm413, %v411, 0.0
        %418 = vrot.lane.b32.xlu0 %v400, 127
        %v419 = vpop.permute.xlu0 %418
        %420 = vrot.lane.b32.xlu0 %v401, 127
        %v421 = vpop.permute.xlu0 %420
        %422 = vrot.lane.b32.xlu0 %v402, 127
        %v423 = vpop.permute.xlu0 %422
        %424 = vrot.lane.b32.xlu0 %v403, 127
        %v425 = vpop.permute.xlu0 %424
        %v426 = vsel %vm359, 1, 0
        %vm427 = vcmp.eq.s32.totalorder %v426, 1
        %v428 = vsel %vm427, %v419, 0.0
        %v429 = vsel %vm427, %v421, 0.0
        %v430 = vsel %vm427, %v423, 0.0
        %v431 = vsel %vm427, %v425, 0.0
        %433 = vset.pattern.permute.xlu0 0
        %434 = vperm.xlu0 %433, %v368
        %v435 = vpop.permute.xlu0 %434
        %438 = vset.pattern.permute.xlu0 0
        %439 = vperm.xlu0 %438, %v369
        %v440 = vpop.permute.xlu0 %439
        %443 = vset.pattern.permute.xlu0 0
        %444 = vperm.xlu0 %443, %v370
        %v445 = vpop.permute.xlu0 %444
        %448 = vset.pattern.permute.xlu0 0
        %449 = vperm.xlu0 %448, %v371
        %v450 = vpop.permute.xlu0 %449
        %453 = vset.pattern.permute.xlu0 0
        %454 = vperm.xlu0 %453, %v372
        %v455 = vpop.permute.xlu0 %454
        %458 = vset.pattern.permute.xlu0 0
        %459 = vperm.xlu0 %458, %v373
        %v460 = vpop.permute.xlu0 %459
        %463 = vset.pattern.permute.xlu0 0
        %464 = vperm.xlu0 %463, %v374
        %v465 = vpop.permute.xlu0 %464
        %468 = vset.pattern.permute.xlu0 0
        %469 = vperm.xlu0 %468, %v375
        %v470 = vpop.permute.xlu0 %469
        %vm472 = vcmask 785408
        %v474 = vsel %vm472, %v360, 0
        %v477 = vsel %vm472, %v361, 0
        %v480 = vsel %vm472, %v362, 0
        %v483 = vsel %vm472, %v363, 0
        %v486 = vsel %vm472, %v364, 0
        %v489 = vsel %vm472, %v365, 0
        %v492 = vsel %vm472, %v366, 0
        %v495 = vsel %vm472, %v367, 0
        %497 = vmatpush.msra.mxu0 0.0
        %498 = vmatpush.msra.mxu0 0.0
        %499 = vmatpush.msra.mxu0 0.0
        %500 = vmatpush.msra.mxu0 0.0
        %v501 = vand.u32 %v431, 4294901760
        %502 = vmatpush.msra.mxu0 %v501
        %v503 = vand.u32 %v430, 4294901760
        %504 = vmatpush.msra.mxu0 %v503
        %v505 = vand.u32 %v429, 4294901760
        %506 = vmatpush.msra.mxu0 %v505
        %v507 = vand.u32 %v428, 4294901760
        %508 = vmatpush.msra.mxu0 %v507
        %v509 = vand.u32 %v403, 4294901760
        %510 = vmatpush.msra.mxu0 %v509
        %v511 = vand.u32 %v402, 4294901760
        %512 = vmatpush.msra.mxu0 %v511
        %v513 = vand.u32 %v401, 4294901760
        %514 = vmatpush.msra.mxu0 %v513
        %v515 = vand.u32 %v400, 4294901760
        %516 = vmatpush.msra.mxu0 %v515
        %v517 = vand.u32 %v417, 4294901760
        %518 = vmatpush.msra.mxu0 %v517
        %v519 = vand.u32 %v416, 4294901760
        %520 = vmatpush.msra.mxu0 %v519
        %v521 = vand.u32 %v415, 4294901760
        %522 = vmatpush.msra.mxu0 %v521
        %v523 = vand.u32 %v414, 4294901760
        %524 = vmatpush.msra.mxu0 %v523
        %v525 = vand.u32 %v474, 4294901760
        %v526 = vsub.f32 %v474, %v525
        %v527 = vand.u32 %v526, 4294901760
        %v528 = vsub.f32 %v526, %v527
        %v529 = vand.u32 %v528, 4294901760
        %530 = vmatmul.f32.gmra.mxu0 %v529
        %v531 = vpop.f32.mrf.mxu0
        %v532 = vadd.f32 %v435, %v531
        %v533 = vand.u32 %v477, 4294901760
        %v534 = vsub.f32 %v477, %v533
        %v535 = vand.u32 %v534, 4294901760
        %v536 = vsub.f32 %v534, %v535
        %v537 = vand.u32 %v536, 4294901760
        %538 = vmatmul.f32.gmra.mxu0 %v537
        %v539 = vpop.f32.mrf.mxu0
        %v540 = vadd.f32 %v440, %v539
        %v541 = vand.u32 %v480, 4294901760
        %v542 = vsub.f32 %v480, %v541
        %v543 = vand.u32 %v542, 4294901760
        %v544 = vsub.f32 %v542, %v543
        %v545 = vand.u32 %v544, 4294901760
        %546 = vmatmul.f32.gmra.mxu0 %v545
        %v547 = vpop.f32.mrf.mxu0
        %v548 = vadd.f32 %v445, %v547
        %v549 = vand.u32 %v483, 4294901760
        %v550 = vsub.f32 %v483, %v549
        %v551 = vand.u32 %v550, 4294901760
        %v552 = vsub.f32 %v550, %v551
        %v553 = vand.u32 %v552, 4294901760
        %554 = vmatmul.f32.gmra.mxu0 %v553
        %v555 = vpop.f32.mrf.mxu0
        %v556 = vadd.f32 %v450, %v555
        %v557 = vand.u32 %v486, 4294901760
        %v558 = vsub.f32 %v486, %v557
        %v559 = vand.u32 %v558, 4294901760
        %v560 = vsub.f32 %v558, %v559
        %v561 = vand.u32 %v560, 4294901760
        %562 = vmatmul.f32.gmra.mxu0 %v561
        %v563 = vpop.f32.mrf.mxu0
        %v564 = vadd.f32 %v455, %v563
        %v565 = vand.u32 %v489, 4294901760
        %v566 = vsub.f32 %v489, %v565
        %v567 = vand.u32 %v566, 4294901760
        %v568 = vsub.f32 %v566, %v567
        %v569 = vand.u32 %v568, 4294901760
        %570 = vmatmul.f32.gmra.mxu0 %v569
        %v571 = vpop.f32.mrf.mxu0
        %v572 = vadd.f32 %v460, %v571
        %v573 = vand.u32 %v492, 4294901760
        %v574 = vsub.f32 %v492, %v573
        %v575 = vand.u32 %v574, 4294901760
        %v576 = vsub.f32 %v574, %v575
        %v577 = vand.u32 %v576, 4294901760
        %578 = vmatmul.f32.gmra.mxu0 %v577
        %v579 = vpop.f32.mrf.mxu0
        %v580 = vadd.f32 %v465, %v579
        %v581 = vand.u32 %v495, 4294901760
        %v582 = vsub.f32 %v495, %v581
        %v583 = vand.u32 %v582, 4294901760
        %v584 = vsub.f32 %v582, %v583
        %v585 = vand.u32 %v584, 4294901760
        %586 = vmatmul.f32.gmra.mxu0 %v585
        %v587 = vpop.f32.mrf.mxu0
        %v588 = vadd.f32 %v470, %v587
        %589 = vdwg.mxu0
        %590 = vmatpush.msra.mxu0 0.0
        %591 = vmatpush.msra.mxu0 0.0
        %592 = vmatpush.msra.mxu0 0.0
        %593 = vmatpush.msra.mxu0 0.0
        %v594 = vand.u32 %v431, 4294901760
        %v595 = vsub.f32 %v431, %v594
        %v596 = vand.u32 %v595, 4294901760
        %v597 = vsub.f32 %v595, %v596
        %v598 = vand.u32 %v597, 4294901760
        %599 = vmatpush.msra.mxu0 %v598
        %v600 = vand.u32 %v430, 4294901760
        %v601 = vsub.f32 %v430, %v600
        %v602 = vand.u32 %v601, 4294901760
        %v603 = vsub.f32 %v601, %v602
        %v604 = vand.u32 %v603, 4294901760
        %605 = vmatpush.msra.mxu0 %v604
        %v606 = vand.u32 %v429, 4294901760
        %v607 = vsub.f32 %v429, %v606
        %v608 = vand.u32 %v607, 4294901760
        %v609 = vsub.f32 %v607, %v608
        %v610 = vand.u32 %v609, 4294901760
        %611 = vmatpush.msra.mxu0 %v610
        %v612 = vand.u32 %v428, 4294901760
        %v613 = vsub.f32 %v428, %v612
        %v614 = vand.u32 %v613, 4294901760
        %v615 = vsub.f32 %v613, %v614
        %v616 = vand.u32 %v615, 4294901760
        %617 = vmatpush.msra.mxu0 %v616
        %v618 = vand.u32 %v403, 4294901760
        %v619 = vsub.f32 %v403, %v618
        %v620 = vand.u32 %v619, 4294901760
        %v621 = vsub.f32 %v619, %v620
        %v622 = vand.u32 %v621, 4294901760
        %623 = vmatpush.msra.mxu0 %v622
        %v624 = vand.u32 %v402, 4294901760
        %v625 = vsub.f32 %v402, %v624
        %v626 = vand.u32 %v625, 4294901760
        %v627 = vsub.f32 %v625, %v626
        %v628 = vand.u32 %v627, 4294901760
        %629 = vmatpush.msra.mxu0 %v628
        %v630 = vand.u32 %v401, 4294901760
        %v631 = vsub.f32 %v401, %v630
        %v632 = vand.u32 %v631, 4294901760
        %v633 = vsub.f32 %v631, %v632
        %v634 = vand.u32 %v633, 4294901760
        %635 = vmatpush.msra.mxu0 %v634
        %v636 = vand.u32 %v400, 4294901760
        %v637 = vsub.f32 %v400, %v636
        %v638 = vand.u32 %v637, 4294901760
        %v639 = vsub.f32 %v637, %v638
        %v640 = vand.u32 %v639, 4294901760
        %641 = vmatpush.msra.mxu0 %v640
        %v642 = vand.u32 %v417, 4294901760
        %v643 = vsub.f32 %v417, %v642
        %v644 = vand.u32 %v643, 4294901760
        %v645 = vsub.f32 %v643, %v644
        %v646 = vand.u32 %v645, 4294901760
        %647 = vmatpush.msra.mxu0 %v646
        %v648 = vand.u32 %v416, 4294901760
        %v649 = vsub.f32 %v416, %v648
        %v650 = vand.u32 %v649, 4294901760
        %v651 = vsub.f32 %v649, %v650
        %v652 = vand.u32 %v651, 4294901760
        %653 = vmatpush.msra.mxu0 %v652
        %v654 = vand.u32 %v415, 4294901760
        %v655 = vsub.f32 %v415, %v654
        %v656 = vand.u32 %v655, 4294901760
        %v657 = vsub.f32 %v655, %v656
        %v658 = vand.u32 %v657, 4294901760
        %659 = vmatpush.msra.mxu0 %v658
        %v660 = vand.u32 %v414, 4294901760
        %v661 = vsub.f32 %v414, %v660
        %v662 = vand.u32 %v661, 4294901760
        %v663 = vsub.f32 %v661, %v662
        %v664 = vand.u32 %v663, 4294901760
        %665 = vmatpush.msra.mxu0 %v664
        %v666 = vand.u32 %v474, 4294901760
        %667 = vmatmul.f32.gmra.mxu0 %v666
        %v668 = vpop.f32.mrf.mxu0
        %v669 = vadd.f32 %v532, %v668
        %v670 = vand.u32 %v477, 4294901760
        %671 = vmatmul.f32.gmra.mxu0 %v670
        %v672 = vpop.f32.mrf.mxu0
        %v673 = vadd.f32 %v540, %v672
        %v674 = vand.u32 %v480, 4294901760
        %675 = vmatmul.f32.gmra.mxu0 %v674
        %v676 = vpop.f32.mrf.mxu0
        %v677 = vadd.f32 %v548, %v676
        %v678 = vand.u32 %v483, 4294901760
        %679 = vmatmul.f32.gmra.mxu0 %v678
        %v680 = vpop.f32.mrf.mxu0
        %v681 = vadd.f32 %v556, %v680
        %v682 = vand.u32 %v486, 4294901760
        %683 = vmatmul.f32.gmra.mxu0 %v682
        %v684 = vpop.f32.mrf.mxu0
        %v685 = vadd.f32 %v564, %v684
        %v686 = vand.u32 %v489, 4294901760
        %687 = vmatmul.f32.gmra.mxu0 %v686
        %v688 = vpop.f32.mrf.mxu0
        %v689 = vadd.f32 %v572, %v688
        %v690 = vand.u32 %v492, 4294901760
        %691 = vmatmul.f32.gmra.mxu0 %v690
        %v692 = vpop.f32.mrf.mxu0
        %v693 = vadd.f32 %v580, %v692
        %v694 = vand.u32 %v495, 4294901760
        %695 = vmatmul.f32.gmra.mxu0 %v694
        %v696 = vpop.f32.mrf.mxu0
        %v697 = vadd.f32 %v588, %v696
        %698 = vdwg.mxu0
        %699 = vmatpush.msra.mxu0 0.0
        %700 = vmatpush.msra.mxu0 0.0
        %701 = vmatpush.msra.mxu0 0.0
        %702 = vmatpush.msra.mxu0 0.0
        %v703 = vand.u32 %v431, 4294901760
        %v704 = vsub.f32 %v431, %v703
        %705 = vmatpush.msra.mxu0 %v704
        %v706 = vand.u32 %v430, 4294901760
        %v707 = vsub.f32 %v430, %v706
        %708 = vmatpush.msra.mxu0 %v707
        %v709 = vand.u32 %v429, 4294901760
        %v710 = vsub.f32 %v429, %v709
        %711 = vmatpush.msra.mxu0 %v710
        %v712 = vand.u32 %v428, 4294901760
        %v713 = vsub.f32 %v428, %v712
        %714 = vmatpush.msra.mxu0 %v713
        %v715 = vand.u32 %v403, 4294901760
        %v716 = vsub.f32 %v403, %v715
        %717 = vmatpush.msra.mxu0 %v716
        %v718 = vand.u32 %v402, 4294901760
        %v719 = vsub.f32 %v402, %v718
        %720 = vmatpush.msra.mxu0 %v719
        %v721 = vand.u32 %v401, 4294901760
        %v722 = vsub.f32 %v401, %v721
        %723 = vmatpush.msra.mxu0 %v722
        %v724 = vand.u32 %v400, 4294901760
        %v725 = vsub.f32 %v400, %v724
        %726 = vmatpush.msra.mxu0 %v725
        %v727 = vand.u32 %v417, 4294901760
        %v728 = vsub.f32 %v417, %v727
        %729 = vmatpush.msra.mxu0 %v728
        %v730 = vand.u32 %v416, 4294901760
        %v731 = vsub.f32 %v416, %v730
        %732 = vmatpush.msra.mxu0 %v731
        %v733 = vand.u32 %v415, 4294901760
        %v734 = vsub.f32 %v415, %v733
        %735 = vmatpush.msra.mxu0 %v734
        %v736 = vand.u32 %v414, 4294901760
        %v737 = vsub.f32 %v414, %v736
        %738 = vmatpush.msra.mxu0 %v737
        %v739 = vand.u32 %v474, 4294901760
        %v740 = vsub.f32 %v474, %v739
        %741 = vmatmul.f32.gmra.mxu0 %v740
        %v742 = vpop.f32.mrf.mxu0
        %v743 = vadd.f32 %v669, %v742
        %v744 = vand.u32 %v477, 4294901760
        %v745 = vsub.f32 %v477, %v744
        %746 = vmatmul.f32.gmra.mxu0 %v745
        %v747 = vpop.f32.mrf.mxu0
        %v748 = vadd.f32 %v673, %v747
        %v749 = vand.u32 %v480, 4294901760
        %v750 = vsub.f32 %v480, %v749
        %751 = vmatmul.f32.gmra.mxu0 %v750
        %v752 = vpop.f32.mrf.mxu0
        %v753 = vadd.f32 %v677, %v752
        %v754 = vand.u32 %v483, 4294901760
        %v755 = vsub.f32 %v483, %v754
        %756 = vmatmul.f32.gmra.mxu0 %v755
        %v757 = vpop.f32.mrf.mxu0
        %v758 = vadd.f32 %v681, %v757
        %v759 = vand.u32 %v486, 4294901760
        %v760 = vsub.f32 %v486, %v759
        %761 = vmatmul.f32.gmra.mxu0 %v760
        %v762 = vpop.f32.mrf.mxu0
        %v763 = vadd.f32 %v685, %v762
        %v764 = vand.u32 %v489, 4294901760
        %v765 = vsub.f32 %v489, %v764
        %766 = vmatmul.f32.gmra.mxu0 %v765
        %v767 = vpop.f32.mrf.mxu0
        %v768 = vadd.f32 %v689, %v767
        %v769 = vand.u32 %v492, 4294901760
        %v770 = vsub.f32 %v492, %v769
        %771 = vmatmul.f32.gmra.mxu0 %v770
        %v772 = vpop.f32.mrf.mxu0
        %v773 = vadd.f32 %v693, %v772
        %v774 = vand.u32 %v495, 4294901760
        %v775 = vsub.f32 %v495, %v774
        %776 = vmatmul.f32.gmra.mxu0 %v775
        %v777 = vpop.f32.mrf.mxu0
        %v778 = vadd.f32 %v697, %v777
        %779 = vdwg.mxu0
        %780 = vmatpush.msra.mxu0 0.0
        %781 = vmatpush.msra.mxu0 0.0
        %782 = vmatpush.msra.mxu0 0.0
        %783 = vmatpush.msra.mxu0 0.0
        %v784 = vand.u32 %v431, 4294901760
        %785 = vmatpush.msra.mxu0 %v784
        %v786 = vand.u32 %v430, 4294901760
        %787 = vmatpush.msra.mxu0 %v786
        %v788 = vand.u32 %v429, 4294901760
        %789 = vmatpush.msra.mxu0 %v788
        %v790 = vand.u32 %v428, 4294901760
        %791 = vmatpush.msra.mxu0 %v790
        %v792 = vand.u32 %v403, 4294901760
        %793 = vmatpush.msra.mxu0 %v792
        %v794 = vand.u32 %v402, 4294901760
        %795 = vmatpush.msra.mxu0 %v794
        %v796 = vand.u32 %v401, 4294901760
        %797 = vmatpush.msra.mxu0 %v796
        %v798 = vand.u32 %v400, 4294901760
        %799 = vmatpush.msra.mxu0 %v798
        %v800 = vand.u32 %v417, 4294901760
        %801 = vmatpush.msra.mxu0 %v800
        %v802 = vand.u32 %v416, 4294901760
        %803 = vmatpush.msra.mxu0 %v802
        %v804 = vand.u32 %v415, 4294901760
        %805 = vmatpush.msra.mxu0 %v804
        %v806 = vand.u32 %v414, 4294901760
        %807 = vmatpush.msra.mxu0 %v806
        %v808 = vand.u32 %v474, 4294901760
        %v809 = vsub.f32 %v474, %v808
        %v810 = vand.u32 %v809, 4294901760
        %811 = vmatmul.f32.gmra.mxu0 %v810
        %v812 = vpop.f32.mrf.mxu0
        %v813 = vadd.f32 %v743, %v812
        %v814 = vand.u32 %v477, 4294901760
        %v815 = vsub.f32 %v477, %v814
        %v816 = vand.u32 %v815, 4294901760
        %817 = vmatmul.f32.gmra.mxu0 %v816
        %v818 = vpop.f32.mrf.mxu0
        %v819 = vadd.f32 %v748, %v818
        %v820 = vand.u32 %v480, 4294901760
        %v821 = vsub.f32 %v480, %v820
        %v822 = vand.u32 %v821, 4294901760
        %823 = vmatmul.f32.gmra.mxu0 %v822
        %v824 = vpop.f32.mrf.mxu0
        %v825 = vadd.f32 %v753, %v824
        %v826 = vand.u32 %v483, 4294901760
        %v827 = vsub.f32 %v483, %v826
        %v828 = vand.u32 %v827, 4294901760
        %829 = vmatmul.f32.gmra.mxu0 %v828
        %v830 = vpop.f32.mrf.mxu0
        %v831 = vadd.f32 %v758, %v830
        %v832 = vand.u32 %v486, 4294901760
        %v833 = vsub.f32 %v486, %v832
        %v834 = vand.u32 %v833, 4294901760
        %835 = vmatmul.f32.gmra.mxu0 %v834
        %v836 = vpop.f32.mrf.mxu0
        %v837 = vadd.f32 %v763, %v836
        %v838 = vand.u32 %v489, 4294901760
        %v839 = vsub.f32 %v489, %v838
        %v840 = vand.u32 %v839, 4294901760
        %841 = vmatmul.f32.gmra.mxu0 %v840
        %v842 = vpop.f32.mrf.mxu0
        %v843 = vadd.f32 %v768, %v842
        %v844 = vand.u32 %v492, 4294901760
        %v845 = vsub.f32 %v492, %v844
        %v846 = vand.u32 %v845, 4294901760
        %847 = vmatmul.f32.gmra.mxu0 %v846
        %v848 = vpop.f32.mrf.mxu0
        %v849 = vadd.f32 %v773, %v848
        %v850 = vand.u32 %v495, 4294901760
        %v851 = vsub.f32 %v495, %v850
        %v852 = vand.u32 %v851, 4294901760
        %853 = vmatmul.f32.gmra.mxu0 %v852
        %v854 = vpop.f32.mrf.mxu0
        %v855 = vadd.f32 %v778, %v854
        %856 = vdwg.mxu0
        %857 = vmatpush.msra.mxu0 0.0
        %858 = vmatpush.msra.mxu0 0.0
        %859 = vmatpush.msra.mxu0 0.0
        %860 = vmatpush.msra.mxu0 0.0
        %v861 = vand.u32 %v431, 4294901760
        %v862 = vsub.f32 %v431, %v861
        %v863 = vand.u32 %v862, 4294901760
        %864 = vmatpush.msra.mxu0 %v863
        %v865 = vand.u32 %v430, 4294901760
        %v866 = vsub.f32 %v430, %v865
        %v867 = vand.u32 %v866, 4294901760
        %868 = vmatpush.msra.mxu0 %v867
        %v869 = vand.u32 %v429, 4294901760
        %v870 = vsub.f32 %v429, %v869
        %v871 = vand.u32 %v870, 4294901760
        %872 = vmatpush.msra.mxu0 %v871
        %v873 = vand.u32 %v428, 4294901760
        %v874 = vsub.f32 %v428, %v873
        %v875 = vand.u32 %v874, 4294901760
        %876 = vmatpush.msra.mxu0 %v875
        %v877 = vand.u32 %v403, 4294901760
        %v878 = vsub.f32 %v403, %v877
        %v879 = vand.u32 %v878, 4294901760
        %880 = vmatpush.msra.mxu0 %v879
        %v881 = vand.u32 %v402, 4294901760
        %v882 = vsub.f32 %v402, %v881
        %v883 = vand.u32 %v882, 4294901760
        %884 = vmatpush.msra.mxu0 %v883
        %v885 = vand.u32 %v401, 4294901760
        %v886 = vsub.f32 %v401, %v885
        %v887 = vand.u32 %v886, 4294901760
        %888 = vmatpush.msra.mxu0 %v887
        %v889 = vand.u32 %v400, 4294901760
        %v890 = vsub.f32 %v400, %v889
        %v891 = vand.u32 %v890, 4294901760
        %892 = vmatpush.msra.mxu0 %v891
        %v893 = vand.u32 %v417, 4294901760
        %v894 = vsub.f32 %v417, %v893
        %v895 = vand.u32 %v894, 4294901760
        %896 = vmatpush.msra.mxu0 %v895
        %v897 = vand.u32 %v416, 4294901760
        %v898 = vsub.f32 %v416, %v897
        %v899 = vand.u32 %v898, 4294901760
        %900 = vmatpush.msra.mxu0 %v899
        %v901 = vand.u32 %v415, 4294901760
        %v902 = vsub.f32 %v415, %v901
        %v903 = vand.u32 %v902, 4294901760
        %904 = vmatpush.msra.mxu0 %v903
        %v905 = vand.u32 %v414, 4294901760
        %v906 = vsub.f32 %v414, %v905
        %v907 = vand.u32 %v906, 4294901760
        %908 = vmatpush.msra.mxu0 %v907
        %v909 = vand.u32 %v474, 4294901760
        %910 = vmatmul.f32.gmra.mxu0 %v909
        %v911 = vpop.f32.mrf.mxu0
        %v912 = vadd.f32 %v813, %v911
        %v913 = vand.u32 %v477, 4294901760
        %914 = vmatmul.f32.gmra.mxu0 %v913
        %v915 = vpop.f32.mrf.mxu0
        %v916 = vadd.f32 %v819, %v915
        %v917 = vand.u32 %v480, 4294901760
        %918 = vmatmul.f32.gmra.mxu0 %v917
        %v919 = vpop.f32.mrf.mxu0
        %v920 = vadd.f32 %v825, %v919
        %v921 = vand.u32 %v483, 4294901760
        %922 = vmatmul.f32.gmra.mxu0 %v921
        %v923 = vpop.f32.mrf.mxu0
        %v924 = vadd.f32 %v831, %v923
        %v925 = vand.u32 %v486, 4294901760
        %926 = vmatmul.f32.gmra.mxu0 %v925
        %v927 = vpop.f32.mrf.mxu0
        %v928 = vadd.f32 %v837, %v927
        %v929 = vand.u32 %v489, 4294901760
        %930 = vmatmul.f32.gmra.mxu0 %v929
        %v931 = vpop.f32.mrf.mxu0
        %v932 = vadd.f32 %v843, %v931
        %v933 = vand.u32 %v492, 4294901760
        %934 = vmatmul.f32.gmra.mxu0 %v933
        %v935 = vpop.f32.mrf.mxu0
        %v936 = vadd.f32 %v849, %v935
        %v937 = vand.u32 %v495, 4294901760
        %938 = vmatmul.f32.gmra.mxu0 %v937
        %v939 = vpop.f32.mrf.mxu0
        %v940 = vadd.f32 %v855, %v939
        %941 = vdwg.mxu0
        %942 = vmatpush.msra.mxu0 0.0
        %943 = vmatpush.msra.mxu0 0.0
        %944 = vmatpush.msra.mxu0 0.0
        %945 = vmatpush.msra.mxu0 0.0
        %v946 = vand.u32 %v431, 4294901760
        %947 = vmatpush.msra.mxu0 %v946
        %v948 = vand.u32 %v430, 4294901760
        %949 = vmatpush.msra.mxu0 %v948
        %v950 = vand.u32 %v429, 4294901760
        %951 = vmatpush.msra.mxu0 %v950
        %v952 = vand.u32 %v428, 4294901760
        %953 = vmatpush.msra.mxu0 %v952
        %v954 = vand.u32 %v403, 4294901760
        %955 = vmatpush.msra.mxu0 %v954
        %v956 = vand.u32 %v402, 4294901760
        %957 = vmatpush.msra.mxu0 %v956
        %v958 = vand.u32 %v401, 4294901760
        %959 = vmatpush.msra.mxu0 %v958
        %v960 = vand.u32 %v400, 4294901760
        %961 = vmatpush.msra.mxu0 %v960
        %v962 = vand.u32 %v417, 4294901760
        %963 = vmatpush.msra.mxu0 %v962
        %v964 = vand.u32 %v416, 4294901760
        %965 = vmatpush.msra.mxu0 %v964
        %v966 = vand.u32 %v415, 4294901760
        %967 = vmatpush.msra.mxu0 %v966
        %v968 = vand.u32 %v414, 4294901760
        %969 = vmatpush.msra.mxu0 %v968
        %v970 = vand.u32 %v474, 4294901760
        %971 = vmatmul.f32.gmra.mxu0 %v970
        %v972 = vpop.f32.mrf.mxu0
        %v973 = vadd.f32 %v912, %v972
        %v974 = vand.u32 %v477, 4294901760
        %975 = vmatmul.f32.gmra.mxu0 %v974
        %v976 = vpop.f32.mrf.mxu0
        %v977 = vadd.f32 %v916, %v976
        %v978 = vand.u32 %v480, 4294901760
        %979 = vmatmul.f32.gmra.mxu0 %v978
        %v980 = vpop.f32.mrf.mxu0
        %v981 = vadd.f32 %v920, %v980
        %v982 = vand.u32 %v483, 4294901760
        %983 = vmatmul.f32.gmra.mxu0 %v982
        %v984 = vpop.f32.mrf.mxu0
        %v985 = vadd.f32 %v924, %v984
        %v986 = vand.u32 %v486, 4294901760
        %987 = vmatmul.f32.gmra.mxu0 %v986
        %v988 = vpop.f32.mrf.mxu0
        %v989 = vadd.f32 %v928, %v988
        %v990 = vand.u32 %v489, 4294901760
        %991 = vmatmul.f32.gmra.mxu0 %v990
        %v992 = vpop.f32.mrf.mxu0
        %v993 = vadd.f32 %v932, %v992
        %v994 = vand.u32 %v492, 4294901760
        %995 = vmatmul.f32.gmra.mxu0 %v994
        %v996 = vpop.f32.mrf.mxu0
        %v997 = vadd.f32 %v936, %v996
        %v998 = vand.u32 %v495, 4294901760
        %999 = vmatmul.f32.gmra.mxu0 %v998
        %v1000 = vpop.f32.mrf.mxu0
        %v1001 = vadd.f32 %v940, %v1000
        %1002 = vdwg.mxu0
        %v1003 = vmax.f32 %v973, 0.0
        %v1004 = vmax.f32 %v977, 0.0
        %v1005 = vmax.f32 %v981, 0.0
        %v1006 = vmax.f32 %v985, 0.0
        %v1007 = vmax.f32 %v989, 0.0
        %v1008 = vmax.f32 %v993, 0.0
        %v1009 = vmax.f32 %v997, 0.0
        %v1010 = vmax.f32 %v1001, 0.0
        %1011 = vst [vmem:[#allocation2] sm:$0xff] %v1003
        %1012 = vst [vmem:[#allocation2 + $0x8] sm:$0xff] %v1004
        %1013 = vst [vmem:[#allocation2 + $0x10] sm:$0xff] %v1005
        %1014 = vst [vmem:[#allocation2 + $0x18] sm:$0xff] %v1006
        %1015 = vst [vmem:[#allocation2 + $0x20] sm:$0xff] %v1007
        %1016 = vst [vmem:[#allocation2 + $0x28] sm:$0xff] %v1008
        %1017 = vst [vmem:[#allocation2 + $0x30] sm:$0xff] %v1009
        %1018 = vst [vmem:[#allocation2 + $0x38] sm:$0xff] %v1010
        %s1019 = scalar_lea.vmem %s318, 32 [#allocation3]
        %v1020 = vld [vmem:[%s1019] sm:$0xff]
        %v1021 = vld [vmem:[%s1019 + $0x8] sm:$0xff]
        %v1022 = vld [vmem:[%s1019 + $0x10] sm:$0xff]
        %v1023 = vld [vmem:[%s1019 + $0x18] sm:$0xff]
        %1024 = vrot.lane.b32.xlu0 %v1020, 1
        %v1025 = vpop.permute.xlu0 %1024
        %1026 = vrot.lane.b32.xlu0 %v1021, 1
        %v1027 = vpop.permute.xlu0 %1026
        %1028 = vrot.lane.b32.xlu0 %v1022, 1
        %v1029 = vpop.permute.xlu0 %1028
        %1030 = vrot.lane.b32.xlu0 %v1023, 1
        %v1031 = vpop.permute.xlu0 %1030
        %v1032 = vsel %vm413, %v1025, 0.0
        %v1033 = vsel %vm413, %v1027, 0.0
        %v1034 = vsel %vm413, %v1029, 0.0
        %v1035 = vsel %vm413, %v1031, 0.0
        %1036 = vrot.lane.b32.xlu0 %v1020, 127
        %v1037 = vpop.permute.xlu0 %1036
        %1038 = vrot.lane.b32.xlu0 %v1021, 127
        %v1039 = vpop.permute.xlu0 %1038
        %1040 = vrot.lane.b32.xlu0 %v1022, 127
        %v1041 = vpop.permute.xlu0 %1040
        %1042 = vrot.lane.b32.xlu0 %v1023, 127
        %v1043 = vpop.permute.xlu0 %1042
        %v1044 = vsel %vm427, %v1037, 0.0
        %v1045 = vsel %vm427, %v1039, 0.0
        %v1046 = vsel %vm427, %v1041, 0.0
        %v1047 = vsel %vm427, %v1043, 0.0
        %1048 = vmatpush.msra.mxu0 0.0
        %1049 = vmatpush.msra.mxu0 0.0
        %1050 = vmatpush.msra.mxu0 0.0
        %1051 = vmatpush.msra.mxu0 0.0
        %v1052 = vand.u32 %v1047, 4294901760
        %1053 = vmatpush.msra.mxu0 %v1052
        %v1054 = vand.u32 %v1046, 4294901760
        %1055 = vmatpush.msra.mxu0 %v1054
        %v1056 = vand.u32 %v1045, 4294901760
        %1057 = vmatpush.msra.mxu0 %v1056
        %v1058 = vand.u32 %v1044, 4294901760
        %1059 = vmatpush.msra.mxu0 %v1058
        %v1060 = vand.u32 %v1023, 4294901760
        %1061 = vmatpush.msra.mxu0 %v1060
        %v1062 = vand.u32 %v1022, 4294901760
        %1063 = vmatpush.msra.mxu0 %v1062
        %v1064 = vand.u32 %v1021, 4294901760
        %1065 = vmatpush.msra.mxu0 %v1064
        %v1066 = vand.u32 %v1020, 4294901760
        %1067 = vmatpush.msra.mxu0 %v1066
        %v1068 = vand.u32 %v1035, 4294901760
        %1069 = vmatpush.msra.mxu0 %v1068
        %v1070 = vand.u32 %v1034, 4294901760
        %1071 = vmatpush.msra.mxu0 %v1070
        %v1072 = vand.u32 %v1033, 4294901760
        %1073 = vmatpush.msra.mxu0 %v1072
        %v1074 = vand.u32 %v1032, 4294901760
        %1075 = vmatpush.msra.mxu0 %v1074
        %v1076 = vand.u32 %v474, 4294901760
        %v1077 = vsub.f32 %v474, %v1076
        %v1078 = vand.u32 %v1077, 4294901760
        %v1079 = vsub.f32 %v1077, %v1078
        %v1080 = vand.u32 %v1079, 4294901760
        %1081 = vmatmul.f32.gmra.mxu0 %v1080
        %v1082 = vpop.f32.mrf.mxu0
        %v1083 = vadd.f32 %v435, %v1082
        %v1084 = vand.u32 %v477, 4294901760
        %v1085 = vsub.f32 %v477, %v1084
        %v1086 = vand.u32 %v1085, 4294901760
        %v1087 = vsub.f32 %v1085, %v1086
        %v1088 = vand.u32 %v1087, 4294901760
        %1089 = vmatmul.f32.gmra.mxu0 %v1088
        %v1090 = vpop.f32.mrf.mxu0
        %v1091 = vadd.f32 %v440, %v1090
        %v1092 = vand.u32 %v480, 4294901760
        %v1093 = vsub.f32 %v480, %v1092
        %v1094 = vand.u32 %v1093, 4294901760
        %v1095 = vsub.f32 %v1093, %v1094
        %v1096 = vand.u32 %v1095, 4294901760
        %1097 = vmatmul.f32.gmra.mxu0 %v1096
        %v1098 = vpop.f32.mrf.mxu0
        %v1099 = vadd.f32 %v445, %v1098
        %v1100 = vand.u32 %v483, 4294901760
        %v1101 = vsub.f32 %v483, %v1100
        %v1102 = vand.u32 %v1101, 4294901760
        %v1103 = vsub.f32 %v1101, %v1102
        %v1104 = vand.u32 %v1103, 4294901760
        %1105 = vmatmul.f32.gmra.mxu0 %v1104
        %v1106 = vpop.f32.mrf.mxu0
        %v1107 = vadd.f32 %v450, %v1106
        %v1108 = vand.u32 %v486, 4294901760
        %v1109 = vsub.f32 %v486, %v1108
        %v1110 = vand.u32 %v1109, 4294901760
        %v1111 = vsub.f32 %v1109, %v1110
        %v1112 = vand.u32 %v1111, 4294901760
        %1113 = vmatmul.f32.gmra.mxu0 %v1112
        %v1114 = vpop.f32.mrf.mxu0
        %v1115 = vadd.f32 %v455, %v1114
        %v1116 = vand.u32 %v489, 4294901760
        %v1117 = vsub.f32 %v489, %v1116
        %v1118 = vand.u32 %v1117, 4294901760
        %v1119 = vsub.f32 %v1117, %v1118
        %v1120 = vand.u32 %v1119, 4294901760
        %1121 = vmatmul.f32.gmra.mxu0 %v1120
        %v1122 = vpop.f32.mrf.mxu0
        %v1123 = vadd.f32 %v460, %v1122
        %v1124 = vand.u32 %v492, 4294901760
        %v1125 = vsub.f32 %v492, %v1124
        %v1126 = vand.u32 %v1125, 4294901760
        %v1127 = vsub.f32 %v1125, %v1126
        %v1128 = vand.u32 %v1127, 4294901760
        %1129 = vmatmul.f32.gmra.mxu0 %v1128
        %v1130 = vpop.f32.mrf.mxu0
        %v1131 = vadd.f32 %v465, %v1130
        %v1132 = vand.u32 %v495, 4294901760
        %v1133 = vsub.f32 %v495, %v1132
        %v1134 = vand.u32 %v1133, 4294901760
        %v1135 = vsub.f32 %v1133, %v1134
        %v1136 = vand.u32 %v1135, 4294901760
        %1137 = vmatmul.f32.gmra.mxu0 %v1136
        %v1138 = vpop.f32.mrf.mxu0
        %v1139 = vadd.f32 %v470, %v1138
        %1140 = vdwg.mxu0
        %1141 = vmatpush.msra.mxu0 0.0
        %1142 = vmatpush.msra.mxu0 0.0
        %1143 = vmatpush.msra.mxu0 0.0
        %1144 = vmatpush.msra.mxu0 0.0
        %v1145 = vand.u32 %v1047, 4294901760
        %v1146 = vsub.f32 %v1047, %v1145
        %v1147 = vand.u32 %v1146, 4294901760
        %v1148 = vsub.f32 %v1146, %v1147
        %v1149 = vand.u32 %v1148, 4294901760
        %1150 = vmatpush.msra.mxu0 %v1149
        %v1151 = vand.u32 %v1046, 4294901760
        %v1152 = vsub.f32 %v1046, %v1151
        %v1153 = vand.u32 %v1152, 4294901760
        %v1154 = vsub.f32 %v1152, %v1153
        %v1155 = vand.u32 %v1154, 4294901760
        %1156 = vmatpush.msra.mxu0 %v1155
        %v1157 = vand.u32 %v1045, 4294901760
        %v1158 = vsub.f32 %v1045, %v1157
        %v1159 = vand.u32 %v1158, 4294901760
        %v1160 = vsub.f32 %v1158, %v1159
        %v1161 = vand.u32 %v1160, 4294901760
        %1162 = vmatpush.msra.mxu0 %v1161
        %v1163 = vand.u32 %v1044, 4294901760
        %v1164 = vsub.f32 %v1044, %v1163
        %v1165 = vand.u32 %v1164, 4294901760
        %v1166 = vsub.f32 %v1164, %v1165
        %v1167 = vand.u32 %v1166, 4294901760
        %1168 = vmatpush.msra.mxu0 %v1167
        %v1169 = vand.u32 %v1023, 4294901760
        %v1170 = vsub.f32 %v1023, %v1169
        %v1171 = vand.u32 %v1170, 4294901760
        %v1172 = vsub.f32 %v1170, %v1171
        %v1173 = vand.u32 %v1172, 4294901760
        %1174 = vmatpush.msra.mxu0 %v1173
        %v1175 = vand.u32 %v1022, 4294901760
        %v1176 = vsub.f32 %v1022, %v1175
        %v1177 = vand.u32 %v1176, 4294901760
        %v1178 = vsub.f32 %v1176, %v1177
        %v1179 = vand.u32 %v1178, 4294901760
        %1180 = vmatpush.msra.mxu0 %v1179
        %v1181 = vand.u32 %v1021, 4294901760
        %v1182 = vsub.f32 %v1021, %v1181
        %v1183 = vand.u32 %v1182, 4294901760
        %v1184 = vsub.f32 %v1182, %v1183
        %v1185 = vand.u32 %v1184, 4294901760
        %1186 = vmatpush.msra.mxu0 %v1185
        %v1187 = vand.u32 %v1020, 4294901760
        %v1188 = vsub.f32 %v1020, %v1187
        %v1189 = vand.u32 %v1188, 4294901760
        %v1190 = vsub.f32 %v1188, %v1189
        %v1191 = vand.u32 %v1190, 4294901760
        %1192 = vmatpush.msra.mxu0 %v1191
        %v1193 = vand.u32 %v1035, 4294901760
        %v1194 = vsub.f32 %v1035, %v1193
        %v1195 = vand.u32 %v1194, 4294901760
        %v1196 = vsub.f32 %v1194, %v1195
        %v1197 = vand.u32 %v1196, 4294901760
        %1198 = vmatpush.msra.mxu0 %v1197
        %v1199 = vand.u32 %v1034, 4294901760
        %v1200 = vsub.f32 %v1034, %v1199
        %v1201 = vand.u32 %v1200, 4294901760
        %v1202 = vsub.f32 %v1200, %v1201
        %v1203 = vand.u32 %v1202, 4294901760
        %1204 = vmatpush.msra.mxu0 %v1203
        %v1205 = vand.u32 %v1033, 4294901760
        %v1206 = vsub.f32 %v1033, %v1205
        %v1207 = vand.u32 %v1206, 4294901760
        %v1208 = vsub.f32 %v1206, %v1207
        %v1209 = vand.u32 %v1208, 4294901760
        %1210 = vmatpush.msra.mxu0 %v1209
        %v1211 = vand.u32 %v1032, 4294901760
        %v1212 = vsub.f32 %v1032, %v1211
        %v1213 = vand.u32 %v1212, 4294901760
        %v1214 = vsub.f32 %v1212, %v1213
        %v1215 = vand.u32 %v1214, 4294901760
        %1216 = vmatpush.msra.mxu0 %v1215
        %v1217 = vand.u32 %v474, 4294901760
        %1218 = vmatmul.f32.gmra.mxu0 %v1217
        %v1219 = vpop.f32.mrf.mxu0
        %v1220 = vadd.f32 %v1083, %v1219
        %v1221 = vand.u32 %v477, 4294901760
        %1222 = vmatmul.f32.gmra.mxu0 %v1221
        %v1223 = vpop.f32.mrf.mxu0
        %v1224 = vadd.f32 %v1091, %v1223
        %v1225 = vand.u32 %v480, 4294901760
        %1226 = vmatmul.f32.gmra.mxu0 %v1225
        %v1227 = vpop.f32.mrf.mxu0
        %v1228 = vadd.f32 %v1099, %v1227
        %v1229 = vand.u32 %v483, 4294901760
        %1230 = vmatmul.f32.gmra.mxu0 %v1229
        %v1231 = vpop.f32.mrf.mxu0
        %v1232 = vadd.f32 %v1107, %v1231
        %v1233 = vand.u32 %v486, 4294901760
        %1234 = vmatmul.f32.gmra.mxu0 %v1233
        %v1235 = vpop.f32.mrf.mxu0
        %v1236 = vadd.f32 %v1115, %v1235
        %v1237 = vand.u32 %v489, 4294901760
        %1238 = vmatmul.f32.gmra.mxu0 %v1237
        %v1239 = vpop.f32.mrf.mxu0
        %v1240 = vadd.f32 %v1123, %v1239
        %v1241 = vand.u32 %v492, 4294901760
        %1242 = vmatmul.f32.gmra.mxu0 %v1241
        %v1243 = vpop.f32.mrf.mxu0
        %v1244 = vadd.f32 %v1131, %v1243
        %v1245 = vand.u32 %v495, 4294901760
        %1246 = vmatmul.f32.gmra.mxu0 %v1245
        %v1247 = vpop.f32.mrf.mxu0
        %v1248 = vadd.f32 %v1139, %v1247
        %1249 = vdwg.mxu0
        %1250 = vmatpush.msra.mxu0 0.0
        %1251 = vmatpush.msra.mxu0 0.0
        %1252 = vmatpush.msra.mxu0 0.0
        %1253 = vmatpush.msra.mxu0 0.0
        %v1254 = vand.u32 %v1047, 4294901760
        %v1255 = vsub.f32 %v1047, %v1254
        %1256 = vmatpush.msra.mxu0 %v1255
        %v1257 = vand.u32 %v1046, 4294901760
        %v1258 = vsub.f32 %v1046, %v1257
        %1259 = vmatpush.msra.mxu0 %v1258
        %v1260 = vand.u32 %v1045, 4294901760
        %v1261 = vsub.f32 %v1045, %v1260
        %1262 = vmatpush.msra.mxu0 %v1261
        %v1263 = vand.u32 %v1044, 4294901760
        %v1264 = vsub.f32 %v1044, %v1263
        %1265 = vmatpush.msra.mxu0 %v1264
        %v1266 = vand.u32 %v1023, 4294901760
        %v1267 = vsub.f32 %v1023, %v1266
        %1268 = vmatpush.msra.mxu0 %v1267
        %v1269 = vand.u32 %v1022, 4294901760
        %v1270 = vsub.f32 %v1022, %v1269
        %1271 = vmatpush.msra.mxu0 %v1270
        %v1272 = vand.u32 %v1021, 4294901760
        %v1273 = vsub.f32 %v1021, %v1272
        %1274 = vmatpush.msra.mxu0 %v1273
        %v1275 = vand.u32 %v1020, 4294901760
        %v1276 = vsub.f32 %v1020, %v1275
        %1277 = vmatpush.msra.mxu0 %v1276
        %v1278 = vand.u32 %v1035, 4294901760
        %v1279 = vsub.f32 %v1035, %v1278
        %1280 = vmatpush.msra.mxu0 %v1279
        %v1281 = vand.u32 %v1034, 4294901760
        %v1282 = vsub.f32 %v1034, %v1281
        %1283 = vmatpush.msra.mxu0 %v1282
        %v1284 = vand.u32 %v1033, 4294901760
        %v1285 = vsub.f32 %v1033, %v1284
        %1286 = vmatpush.msra.mxu0 %v1285
        %v1287 = vand.u32 %v1032, 4294901760
        %v1288 = vsub.f32 %v1032, %v1287
        %1289 = vmatpush.msra.mxu0 %v1288
        %v1290 = vand.u32 %v474, 4294901760
        %v1291 = vsub.f32 %v474, %v1290
        %1292 = vmatmul.f32.gmra.mxu0 %v1291
        %v1293 = vpop.f32.mrf.mxu0
        %v1294 = vadd.f32 %v1220, %v1293
        %v1295 = vand.u32 %v477, 4294901760
        %v1296 = vsub.f32 %v477, %v1295
        %1297 = vmatmul.f32.gmra.mxu0 %v1296
        %v1298 = vpop.f32.mrf.mxu0
        %v1299 = vadd.f32 %v1224, %v1298
        %v1300 = vand.u32 %v480, 4294901760
        %v1301 = vsub.f32 %v480, %v1300
        %1302 = vmatmul.f32.gmra.mxu0 %v1301
        %v1303 = vpop.f32.mrf.mxu0
        %v1304 = vadd.f32 %v1228, %v1303
        %v1305 = vand.u32 %v483, 4294901760
        %v1306 = vsub.f32 %v483, %v1305
        %1307 = vmatmul.f32.gmra.mxu0 %v1306
        %v1308 = vpop.f32.mrf.mxu0
        %v1309 = vadd.f32 %v1232, %v1308
        %v1310 = vand.u32 %v486, 4294901760
        %v1311 = vsub.f32 %v486, %v1310
        %1312 = vmatmul.f32.gmra.mxu0 %v1311
        %v1313 = vpop.f32.mrf.mxu0
        %v1314 = vadd.f32 %v1236, %v1313
        %v1315 = vand.u32 %v489, 4294901760
        %v1316 = vsub.f32 %v489, %v1315
        %1317 = vmatmul.f32.gmra.mxu0 %v1316
        %v1318 = vpop.f32.mrf.mxu0
        %v1319 = vadd.f32 %v1240, %v1318
        %v1320 = vand.u32 %v492, 4294901760
        %v1321 = vsub.f32 %v492, %v1320
        %1322 = vmatmul.f32.gmra.mxu0 %v1321
        %v1323 = vpop.f32.mrf.mxu0
        %v1324 = vadd.f32 %v1244, %v1323
        %v1325 = vand.u32 %v495, 4294901760
        %v1326 = vsub.f32 %v495, %v1325
        %1327 = vmatmul.f32.gmra.mxu0 %v1326
        %v1328 = vpop.f32.mrf.mxu0
        %v1329 = vadd.f32 %v1248, %v1328
        %1330 = vdwg.mxu0
        %1331 = vmatpush.msra.mxu0 0.0
        %1332 = vmatpush.msra.mxu0 0.0
        %1333 = vmatpush.msra.mxu0 0.0
        %1334 = vmatpush.msra.mxu0 0.0
        %v1335 = vand.u32 %v1047, 4294901760
        %1336 = vmatpush.msra.mxu0 %v1335
        %v1337 = vand.u32 %v1046, 4294901760
        %1338 = vmatpush.msra.mxu0 %v1337
        %v1339 = vand.u32 %v1045, 4294901760
        %1340 = vmatpush.msra.mxu0 %v1339
        %v1341 = vand.u32 %v1044, 4294901760
        %1342 = vmatpush.msra.mxu0 %v1341
        %v1343 = vand.u32 %v1023, 4294901760
        %1344 = vmatpush.msra.mxu0 %v1343
        %v1345 = vand.u32 %v1022, 4294901760
        %1346 = vmatpush.msra.mxu0 %v1345
        %v1347 = vand.u32 %v1021, 4294901760
        %1348 = vmatpush.msra.mxu0 %v1347
        %v1349 = vand.u32 %v1020, 4294901760
        %1350 = vmatpush.msra.mxu0 %v1349
        %v1351 = vand.u32 %v1035, 4294901760
        %1352 = vmatpush.msra.mxu0 %v1351
        %v1353 = vand.u32 %v1034, 4294901760
        %1354 = vmatpush.msra.mxu0 %v1353
        %v1355 = vand.u32 %v1033, 4294901760
        %1356 = vmatpush.msra.mxu0 %v1355
        %v1357 = vand.u32 %v1032, 4294901760
        %1358 = vmatpush.msra.mxu0 %v1357
        %v1359 = vand.u32 %v474, 4294901760
        %v1360 = vsub.f32 %v474, %v1359
        %v1361 = vand.u32 %v1360, 4294901760
        %1362 = vmatmul.f32.gmra.mxu0 %v1361
        %v1363 = vpop.f32.mrf.mxu0
        %v1364 = vadd.f32 %v1294, %v1363
        %v1365 = vand.u32 %v477, 4294901760
        %v1366 = vsub.f32 %v477, %v1365
        %v1367 = vand.u32 %v1366, 4294901760
        %1368 = vmatmul.f32.gmra.mxu0 %v1367
        %v1369 = vpop.f32.mrf.mxu0
        %v1370 = vadd.f32 %v1299, %v1369
        %v1371 = vand.u32 %v480, 4294901760
        %v1372 = vsub.f32 %v480, %v1371
        %v1373 = vand.u32 %v1372, 4294901760
        %1374 = vmatmul.f32.gmra.mxu0 %v1373
        %v1375 = vpop.f32.mrf.mxu0
        %v1376 = vadd.f32 %v1304, %v1375
        %v1377 = vand.u32 %v483, 4294901760
        %v1378 = vsub.f32 %v483, %v1377
        %v1379 = vand.u32 %v1378, 4294901760
        %1380 = vmatmul.f32.gmra.mxu0 %v1379
        %v1381 = vpop.f32.mrf.mxu0
        %v1382 = vadd.f32 %v1309, %v1381
        %v1383 = vand.u32 %v486, 4294901760
        %v1384 = vsub.f32 %v486, %v1383
        %v1385 = vand.u32 %v1384, 4294901760
        %1386 = vmatmul.f32.gmra.mxu0 %v1385
        %v1387 = vpop.f32.mrf.mxu0
        %v1388 = vadd.f32 %v1314, %v1387
        %v1389 = vand.u32 %v489, 4294901760
        %v1390 = vsub.f32 %v489, %v1389
        %v1391 = vand.u32 %v1390, 4294901760
        %1392 = vmatmul.f32.gmra.mxu0 %v1391
        %v1393 = vpop.f32.mrf.mxu0
        %v1394 = vadd.f32 %v1319, %v1393
        %v1395 = vand.u32 %v492, 4294901760
        %v1396 = vsub.f32 %v492, %v1395
        %v1397 = vand.u32 %v1396, 4294901760
        %1398 = vmatmul.f32.gmra.mxu0 %v1397
        %v1399 = vpop.f32.mrf.mxu0
        %v1400 = vadd.f32 %v1324, %v1399
        %v1401 = vand.u32 %v495, 4294901760
        %v1402 = vsub.f32 %v495, %v1401
        %v1403 = vand.u32 %v1402, 4294901760
        %1404 = vmatmul.f32.gmra.mxu0 %v1403
        %v1405 = vpop.f32.mrf.mxu0
        %v1406 = vadd.f32 %v1329, %v1405
        %1407 = vdwg.mxu0
        %1408 = vmatpush.msra.mxu0 0.0
        %1409 = vmatpush.msra.mxu0 0.0
        %1410 = vmatpush.msra.mxu0 0.0
        %1411 = vmatpush.msra.mxu0 0.0
        %v1412 = vand.u32 %v1047, 4294901760
        %v1413 = vsub.f32 %v1047, %v1412
        %v1414 = vand.u32 %v1413, 4294901760
        %1415 = vmatpush.msra.mxu0 %v1414
        %v1416 = vand.u32 %v1046, 4294901760
        %v1417 = vsub.f32 %v1046, %v1416
        %v1418 = vand.u32 %v1417, 4294901760
        %1419 = vmatpush.msra.mxu0 %v1418
        %v1420 = vand.u32 %v1045, 4294901760
        %v1421 = vsub.f32 %v1045, %v1420
        %v1422 = vand.u32 %v1421, 4294901760
        %1423 = vmatpush.msra.mxu0 %v1422
        %v1424 = vand.u32 %v1044, 4294901760
        %v1425 = vsub.f32 %v1044, %v1424
        %v1426 = vand.u32 %v1425, 4294901760
        %1427 = vmatpush.msra.mxu0 %v1426
        %v1428 = vand.u32 %v1023, 4294901760
        %v1429 = vsub.f32 %v1023, %v1428
        %v1430 = vand.u32 %v1429, 4294901760
        %1431 = vmatpush.msra.mxu0 %v1430
        %v1432 = vand.u32 %v1022, 4294901760
        %v1433 = vsub.f32 %v1022, %v1432
        %v1434 = vand.u32 %v1433, 4294901760
        %1435 = vmatpush.msra.mxu0 %v1434
        %v1436 = vand.u32 %v1021, 4294901760
        %v1437 = vsub.f32 %v1021, %v1436
        %v1438 = vand.u32 %v1437, 4294901760
        %1439 = vmatpush.msra.mxu0 %v1438
        %v1440 = vand.u32 %v1020, 4294901760
        %v1441 = vsub.f32 %v1020, %v1440
        %v1442 = vand.u32 %v1441, 4294901760
        %1443 = vmatpush.msra.mxu0 %v1442
        %v1444 = vand.u32 %v1035, 4294901760
        %v1445 = vsub.f32 %v1035, %v1444
        %v1446 = vand.u32 %v1445, 4294901760
        %1447 = vmatpush.msra.mxu0 %v1446
        %v1448 = vand.u32 %v1034, 4294901760
        %v1449 = vsub.f32 %v1034, %v1448
        %v1450 = vand.u32 %v1449, 4294901760
        %1451 = vmatpush.msra.mxu0 %v1450
        %v1452 = vand.u32 %v1033, 4294901760
        %v1453 = vsub.f32 %v1033, %v1452
        %v1454 = vand.u32 %v1453, 4294901760
        %1455 = vmatpush.msra.mxu0 %v1454
        %v1456 = vand.u32 %v1032, 4294901760
        %v1457 = vsub.f32 %v1032, %v1456
        %v1458 = vand.u32 %v1457, 4294901760
        %1459 = vmatpush.msra.mxu0 %v1458
        %v1460 = vand.u32 %v474, 4294901760
        %1461 = vmatmul.f32.gmra.mxu0 %v1460
        %v1462 = vpop.f32.mrf.mxu0
        %v1463 = vadd.f32 %v1364, %v1462
        %v1464 = vand.u32 %v477, 4294901760
        %1465 = vmatmul.f32.gmra.mxu0 %v1464
        %v1466 = vpop.f32.mrf.mxu0
        %v1467 = vadd.f32 %v1370, %v1466
        %v1468 = vand.u32 %v480, 4294901760
        %1469 = vmatmul.f32.gmra.mxu0 %v1468
        %v1470 = vpop.f32.mrf.mxu0
        %v1471 = vadd.f32 %v1376, %v1470
        %v1472 = vand.u32 %v483, 4294901760
        %1473 = vmatmul.f32.gmra.mxu0 %v1472
        %v1474 = vpop.f32.mrf.mxu0
        %v1475 = vadd.f32 %v1382, %v1474
        %v1476 = vand.u32 %v486, 4294901760
        %1477 = vmatmul.f32.gmra.mxu0 %v1476
        %v1478 = vpop.f32.mrf.mxu0
        %v1479 = vadd.f32 %v1388, %v1478
        %v1480 = vand.u32 %v489, 4294901760
        %1481 = vmatmul.f32.gmra.mxu0 %v1480
        %v1482 = vpop.f32.mrf.mxu0
        %v1483 = vadd.f32 %v1394, %v1482
        %v1484 = vand.u32 %v492, 4294901760
        %1485 = vmatmul.f32.gmra.mxu0 %v1484
        %v1486 = vpop.f32.mrf.mxu0
        %v1487 = vadd.f32 %v1400, %v1486
        %v1488 = vand.u32 %v495, 4294901760
        %1489 = vmatmul.f32.gmra.mxu0 %v1488
        %v1490 = vpop.f32.mrf.mxu0
        %v1491 = vadd.f32 %v1406, %v1490
        %1492 = vdwg.mxu0
        %1493 = vmatpush.msra.mxu0 0.0
        %1494 = vmatpush.msra.mxu0 0.0
        %1495 = vmatpush.msra.mxu0 0.0
        %1496 = vmatpush.msra.mxu0 0.0
        %v1497 = vand.u32 %v1047, 4294901760
        %1498 = vmatpush.msra.mxu0 %v1497
        %v1499 = vand.u32 %v1046, 4294901760
        %1500 = vmatpush.msra.mxu0 %v1499
        %v1501 = vand.u32 %v1045, 4294901760
        %1502 = vmatpush.msra.mxu0 %v1501
        %v1503 = vand.u32 %v1044, 4294901760
        %1504 = vmatpush.msra.mxu0 %v1503
        %v1505 = vand.u32 %v1023, 4294901760
        %1506 = vmatpush.msra.mxu0 %v1505
        %v1507 = vand.u32 %v1022, 4294901760
        %1508 = vmatpush.msra.mxu0 %v1507
        %v1509 = vand.u32 %v1021, 4294901760
        %1510 = vmatpush.msra.mxu0 %v1509
        %v1511 = vand.u32 %v1020, 4294901760
        %1512 = vmatpush.msra.mxu0 %v1511
        %v1513 = vand.u32 %v1035, 4294901760
        %1514 = vmatpush.msra.mxu0 %v1513
        %v1515 = vand.u32 %v1034, 4294901760
        %1516 = vmatpush.msra.mxu0 %v1515
        %v1517 = vand.u32 %v1033, 4294901760
        %1518 = vmatpush.msra.mxu0 %v1517
        %v1519 = vand.u32 %v1032, 4294901760
        %1520 = vmatpush.msra.mxu0 %v1519
        %v1521 = vand.u32 %v474, 4294901760
        %1522 = vmatmul.f32.gmra.mxu0 %v1521
        %v1523 = vpop.f32.mrf.mxu0
        %v1524 = vadd.f32 %v1463, %v1523
        %v1525 = vand.u32 %v477, 4294901760
        %1526 = vmatmul.f32.gmra.mxu0 %v1525
        %v1527 = vpop.f32.mrf.mxu0
        %v1528 = vadd.f32 %v1467, %v1527
        %v1529 = vand.u32 %v480, 4294901760
        %1530 = vmatmul.f32.gmra.mxu0 %v1529
        %v1531 = vpop.f32.mrf.mxu0
        %v1532 = vadd.f32 %v1471, %v1531
        %v1533 = vand.u32 %v483, 4294901760
        %1534 = vmatmul.f32.gmra.mxu0 %v1533
        %v1535 = vpop.f32.mrf.mxu0
        %v1536 = vadd.f32 %v1475, %v1535
        %v1537 = vand.u32 %v486, 4294901760
        %1538 = vmatmul.f32.gmra.mxu0 %v1537
        %v1539 = vpop.f32.mrf.mxu0
        %v1540 = vadd.f32 %v1479, %v1539
        %v1541 = vand.u32 %v489, 4294901760
        %1542 = vmatmul.f32.gmra.mxu0 %v1541
        %v1543 = vpop.f32.mrf.mxu0
        %v1544 = vadd.f32 %v1483, %v1543
        %v1545 = vand.u32 %v492, 4294901760
        %1546 = vmatmul.f32.gmra.mxu0 %v1545
        %v1547 = vpop.f32.mrf.mxu0
        %v1548 = vadd.f32 %v1487, %v1547
        %v1549 = vand.u32 %v495, 4294901760
        %1550 = vmatmul.f32.gmra.mxu0 %v1549
        %v1551 = vpop.f32.mrf.mxu0
        %v1552 = vadd.f32 %v1491, %v1551
        %1553 = vdwg.mxu0
        %v1554 = vmax.f32 %v1524, 0.0
        %v1555 = vmax.f32 %v1528, 0.0
        %v1556 = vmax.f32 %v1532, 0.0
        %v1557 = vmax.f32 %v1536, 0.0
        %v1558 = vmax.f32 %v1540, 0.0
        %v1559 = vmax.f32 %v1544, 0.0
        %v1560 = vmax.f32 %v1548, 0.0
        %v1561 = vmax.f32 %v1552, 0.0
        %s1562 = scalar_lea.vmem [#allocation2], 64
        %1563 = vst [vmem:[%s1562] sm:$0xff] %v1554
        %1564 = vst [vmem:[%s1562 + $0x8] sm:$0xff] %v1555
        %1565 = vst [vmem:[%s1562 + $0x10] sm:$0xff] %v1556
        %1566 = vst [vmem:[%s1562 + $0x18] sm:$0xff] %v1557
        %1567 = vst [vmem:[%s1562 + $0x20] sm:$0xff] %v1558
        %1568 = vst [vmem:[%s1562 + $0x28] sm:$0xff] %v1559
        %1569 = vst [vmem:[%s1562 + $0x30] sm:$0xff] %v1560
        %1570 = vst [vmem:[%s1562 + $0x38] sm:$0xff] %v1561
        %s1571 = scalar_lea.vmem %s318, 64 [#allocation3]
        %v1572 = vld [vmem:[%s1571] sm:$0xff]
        %v1573 = vld [vmem:[%s1571 + $0x8] sm:$0xff]
        %v1574 = vld [vmem:[%s1571 + $0x10] sm:$0xff]
        %v1575 = vld [vmem:[%s1571 + $0x18] sm:$0xff]
        %1576 = vrot.lane.b32.xlu0 %v1572, 1
        %v1577 = vpop.permute.xlu0 %1576
        %1578 = vrot.lane.b32.xlu0 %v1573, 1
        %v1579 = vpop.permute.xlu0 %1578
        %1580 = vrot.lane.b32.xlu0 %v1574, 1
        %v1581 = vpop.permute.xlu0 %1580
        %1582 = vrot.lane.b32.xlu0 %v1575, 1
        %v1583 = vpop.permute.xlu0 %1582
        %v1584 = vsel %vm413, %v1577, 0.0
        %v1585 = vsel %vm413, %v1579, 0.0
        %v1586 = vsel %vm413, %v1581, 0.0
        %v1587 = vsel %vm413, %v1583, 0.0
        %1588 = vrot.lane.b32.xlu0 %v1572, 127
        %v1589 = vpop.permute.xlu0 %1588
        %1590 = vrot.lane.b32.xlu0 %v1573, 127
        %v1591 = vpop.permute.xlu0 %1590
        %1592 = vrot.lane.b32.xlu0 %v1574, 127
        %v1593 = vpop.permute.xlu0 %1592
        %1594 = vrot.lane.b32.xlu0 %v1575, 127
        %v1595 = vpop.permute.xlu0 %1594
        %v1596 = vsel %vm427, %v1589, 0.0
        %v1597 = vsel %vm427, %v1591, 0.0
        %v1598 = vsel %vm427, %v1593, 0.0
        %v1599 = vsel %vm427, %v1595, 0.0
        %1600 = vmatpush.msra.mxu0 0.0
        %1601 = vmatpush.msra.mxu0 0.0
        %1602 = vmatpush.msra.mxu0 0.0
        %1603 = vmatpush.msra.mxu0 0.0
        %v1604 = vand.u32 %v1599, 4294901760
        %1605 = vmatpush.msra.mxu0 %v1604
        %v1606 = vand.u32 %v1598, 4294901760
        %1607 = vmatpush.msra.mxu0 %v1606
        %v1608 = vand.u32 %v1597, 4294901760
        %1609 = vmatpush.msra.mxu0 %v1608
        %v1610 = vand.u32 %v1596, 4294901760
        %1611 = vmatpush.msra.mxu0 %v1610
        %v1612 = vand.u32 %v1575, 4294901760
        %1613 = vmatpush.msra.mxu0 %v1612
        %v1614 = vand.u32 %v1574, 4294901760
        %1615 = vmatpush.msra.mxu0 %v1614
        %v1616 = vand.u32 %v1573, 4294901760
        %1617 = vmatpush.msra.mxu0 %v1616
        %v1618 = vand.u32 %v1572, 4294901760
        %1619 = vmatpush.msra.mxu0 %v1618
        %v1620 = vand.u32 %v1587, 4294901760
        %1621 = vmatpush.msra.mxu0 %v1620
        %v1622 = vand.u32 %v1586, 4294901760
        %1623 = vmatpush.msra.mxu0 %v1622
        %v1624 = vand.u32 %v1585, 4294901760
        %1625 = vmatpush.msra.mxu0 %v1624
        %v1626 = vand.u32 %v1584, 4294901760
        %1627 = vmatpush.msra.mxu0 %v1626
        %v1628 = vand.u32 %v474, 4294901760
        %v1629 = vsub.f32 %v474, %v1628
        %v1630 = vand.u32 %v1629, 4294901760
        %v1631 = vsub.f32 %v1629, %v1630
        %v1632 = vand.u32 %v1631, 4294901760
        %1633 = vmatmul.f32.gmra.mxu0 %v1632
        %v1634 = vpop.f32.mrf.mxu0
        %v1635 = vadd.f32 %v435, %v1634
        %v1636 = vand.u32 %v477, 4294901760
        %v1637 = vsub.f32 %v477, %v1636
        %v1638 = vand.u32 %v1637, 4294901760
        %v1639 = vsub.f32 %v1637, %v1638
        %v1640 = vand.u32 %v1639, 4294901760
        %1641 = vmatmul.f32.gmra.mxu0 %v1640
        %v1642 = vpop.f32.mrf.mxu0
        %v1643 = vadd.f32 %v440, %v1642
        %v1644 = vand.u32 %v480, 4294901760
        %v1645 = vsub.f32 %v480, %v1644
        %v1646 = vand.u32 %v1645, 4294901760
        %v1647 = vsub.f32 %v1645, %v1646
        %v1648 = vand.u32 %v1647, 4294901760
        %1649 = vmatmul.f32.gmra.mxu0 %v1648
        %v1650 = vpop.f32.mrf.mxu0
        %v1651 = vadd.f32 %v445, %v1650
        %v1652 = vand.u32 %v483, 4294901760
        %v1653 = vsub.f32 %v483, %v1652
        %v1654 = vand.u32 %v1653, 4294901760
        %v1655 = vsub.f32 %v1653, %v1654
        %v1656 = vand.u32 %v1655, 4294901760
        %1657 = vmatmul.f32.gmra.mxu0 %v1656
        %v1658 = vpop.f32.mrf.mxu0
        %v1659 = vadd.f32 %v450, %v1658
        %v1660 = vand.u32 %v486, 4294901760
        %v1661 = vsub.f32 %v486, %v1660
        %v1662 = vand.u32 %v1661, 4294901760
        %v1663 = vsub.f32 %v1661, %v1662
        %v1664 = vand.u32 %v1663, 4294901760
        %1665 = vmatmul.f32.gmra.mxu0 %v1664
        %v1666 = vpop.f32.mrf.mxu0
        %v1667 = vadd.f32 %v455, %v1666
        %v1668 = vand.u32 %v489, 4294901760
        %v1669 = vsub.f32 %v489, %v1668
        %v1670 = vand.u32 %v1669, 4294901760
        %v1671 = vsub.f32 %v1669, %v1670
        %v1672 = vand.u32 %v1671, 4294901760
        %1673 = vmatmul.f32.gmra.mxu0 %v1672
        %v1674 = vpop.f32.mrf.mxu0
        %v1675 = vadd.f32 %v460, %v1674
        %v1676 = vand.u32 %v492, 4294901760
        %v1677 = vsub.f32 %v492, %v1676
        %v1678 = vand.u32 %v1677, 4294901760
        %v1679 = vsub.f32 %v1677, %v1678
        %v1680 = vand.u32 %v1679, 4294901760
        %1681 = vmatmul.f32.gmra.mxu0 %v1680
        %v1682 = vpop.f32.mrf.mxu0
        %v1683 = vadd.f32 %v465, %v1682
        %v1684 = vand.u32 %v495, 4294901760
        %v1685 = vsub.f32 %v495, %v1684
        %v1686 = vand.u32 %v1685, 4294901760
        %v1687 = vsub.f32 %v1685, %v1686
        %v1688 = vand.u32 %v1687, 4294901760
        %1689 = vmatmul.f32.gmra.mxu0 %v1688
        %v1690 = vpop.f32.mrf.mxu0
        %v1691 = vadd.f32 %v470, %v1690
        %1692 = vdwg.mxu0
        %1693 = vmatpush.msra.mxu0 0.0
        %1694 = vmatpush.msra.mxu0 0.0
        %1695 = vmatpush.msra.mxu0 0.0
        %1696 = vmatpush.msra.mxu0 0.0
        %v1697 = vand.u32 %v1599, 4294901760
        %v1698 = vsub.f32 %v1599, %v1697
        %v1699 = vand.u32 %v1698, 4294901760
        %v1700 = vsub.f32 %v1698, %v1699
        %v1701 = vand.u32 %v1700, 4294901760
        %1702 = vmatpush.msra.mxu0 %v1701
        %v1703 = vand.u32 %v1598, 4294901760
        %v1704 = vsub.f32 %v1598, %v1703
        %v1705 = vand.u32 %v1704, 4294901760
        %v1706 = vsub.f32 %v1704, %v1705
        %v1707 = vand.u32 %v1706, 4294901760
        %1708 = vmatpush.msra.mxu0 %v1707
        %v1709 = vand.u32 %v1597, 4294901760
        %v1710 = vsub.f32 %v1597, %v1709
        %v1711 = vand.u32 %v1710, 4294901760
        %v1712 = vsub.f32 %v1710, %v1711
        %v1713 = vand.u32 %v1712, 4294901760
        %1714 = vmatpush.msra.mxu0 %v1713
        %v1715 = vand.u32 %v1596, 4294901760
        %v1716 = vsub.f32 %v1596, %v1715
        %v1717 = vand.u32 %v1716, 4294901760
        %v1718 = vsub.f32 %v1716, %v1717
        %v1719 = vand.u32 %v1718, 4294901760
        %1720 = vmatpush.msra.mxu0 %v1719
        %v1721 = vand.u32 %v1575, 4294901760
        %v1722 = vsub.f32 %v1575, %v1721
        %v1723 = vand.u32 %v1722, 4294901760
        %v1724 = vsub.f32 %v1722, %v1723
        %v1725 = vand.u32 %v1724, 4294901760
        %1726 = vmatpush.msra.mxu0 %v1725
        %v1727 = vand.u32 %v1574, 4294901760
        %v1728 = vsub.f32 %v1574, %v1727
        %v1729 = vand.u32 %v1728, 4294901760
        %v1730 = vsub.f32 %v1728, %v1729
        %v1731 = vand.u32 %v1730, 4294901760
        %1732 = vmatpush.msra.mxu0 %v1731
        %v1733 = vand.u32 %v1573, 4294901760
        %v1734 = vsub.f32 %v1573, %v1733
        %v1735 = vand.u32 %v1734, 4294901760
        %v1736 = vsub.f32 %v1734, %v1735
        %v1737 = vand.u32 %v1736, 4294901760
        %1738 = vmatpush.msra.mxu0 %v1737
        %v1739 = vand.u32 %v1572, 4294901760
        %v1740 = vsub.f32 %v1572, %v1739
        %v1741 = vand.u32 %v1740, 4294901760
        %v1742 = vsub.f32 %v1740, %v1741
        %v1743 = vand.u32 %v1742, 4294901760
        %1744 = vmatpush.msra.mxu0 %v1743
        %v1745 = vand.u32 %v1587, 4294901760
        %v1746 = vsub.f32 %v1587, %v1745
        %v1747 = vand.u32 %v1746, 4294901760
        %v1748 = vsub.f32 %v1746, %v1747
        %v1749 = vand.u32 %v1748, 4294901760
        %1750 = vmatpush.msra.mxu0 %v1749
        %v1751 = vand.u32 %v1586, 4294901760
        %v1752 = vsub.f32 %v1586, %v1751
        %v1753 = vand.u32 %v1752, 4294901760
        %v1754 = vsub.f32 %v1752, %v1753
        %v1755 = vand.u32 %v1754, 4294901760
        %1756 = vmatpush.msra.mxu0 %v1755
        %v1757 = vand.u32 %v1585, 4294901760
        %v1758 = vsub.f32 %v1585, %v1757
        %v1759 = vand.u32 %v1758, 4294901760
        %v1760 = vsub.f32 %v1758, %v1759
        %v1761 = vand.u32 %v1760, 4294901760
        %1762 = vmatpush.msra.mxu0 %v1761
        %v1763 = vand.u32 %v1584, 4294901760
        %v1764 = vsub.f32 %v1584, %v1763
        %v1765 = vand.u32 %v1764, 4294901760
        %v1766 = vsub.f32 %v1764, %v1765
        %v1767 = vand.u32 %v1766, 4294901760
        %1768 = vmatpush.msra.mxu0 %v1767
        %v1769 = vand.u32 %v474, 4294901760
        %1770 = vmatmul.f32.gmra.mxu0 %v1769
        %v1771 = vpop.f32.mrf.mxu0
        %v1772 = vadd.f32 %v1635, %v1771
        %v1773 = vand.u32 %v477, 4294901760
        %1774 = vmatmul.f32.gmra.mxu0 %v1773
        %v1775 = vpop.f32.mrf.mxu0
        %v1776 = vadd.f32 %v1643, %v1775
        %v1777 = vand.u32 %v480, 4294901760
        %1778 = vmatmul.f32.gmra.mxu0 %v1777
        %v1779 = vpop.f32.mrf.mxu0
        %v1780 = vadd.f32 %v1651, %v1779
        %v1781 = vand.u32 %v483, 4294901760
        %1782 = vmatmul.f32.gmra.mxu0 %v1781
        %v1783 = vpop.f32.mrf.mxu0
        %v1784 = vadd.f32 %v1659, %v1783
        %v1785 = vand.u32 %v486, 4294901760
        %1786 = vmatmul.f32.gmra.mxu0 %v1785
        %v1787 = vpop.f32.mrf.mxu0
        %v1788 = vadd.f32 %v1667, %v1787
        %v1789 = vand.u32 %v489, 4294901760
        %1790 = vmatmul.f32.gmra.mxu0 %v1789
        %v1791 = vpop.f32.mrf.mxu0
        %v1792 = vadd.f32 %v1675, %v1791
        %v1793 = vand.u32 %v492, 4294901760
        %1794 = vmatmul.f32.gmra.mxu0 %v1793
        %v1795 = vpop.f32.mrf.mxu0
        %v1796 = vadd.f32 %v1683, %v1795
        %v1797 = vand.u32 %v495, 4294901760
        %1798 = vmatmul.f32.gmra.mxu0 %v1797
        %v1799 = vpop.f32.mrf.mxu0
        %v1800 = vadd.f32 %v1691, %v1799
        %1801 = vdwg.mxu0
        %1802 = vmatpush.msra.mxu0 0.0
        %1803 = vmatpush.msra.mxu0 0.0
        %1804 = vmatpush.msra.mxu0 0.0
        %1805 = vmatpush.msra.mxu0 0.0
        %v1806 = vand.u32 %v1599, 4294901760
        %v1807 = vsub.f32 %v1599, %v1806
        %1808 = vmatpush.msra.mxu0 %v1807
        %v1809 = vand.u32 %v1598, 4294901760
        %v1810 = vsub.f32 %v1598, %v1809
        %1811 = vmatpush.msra.mxu0 %v1810
        %v1812 = vand.u32 %v1597, 4294901760
        %v1813 = vsub.f32 %v1597, %v1812
        %1814 = vmatpush.msra.mxu0 %v1813
        %v1815 = vand.u32 %v1596, 4294901760
        %v1816 = vsub.f32 %v1596, %v1815
        %1817 = vmatpush.msra.mxu0 %v1816
        %v1818 = vand.u32 %v1575, 4294901760
        %v1819 = vsub.f32 %v1575, %v1818
        %1820 = vmatpush.msra.mxu0 %v1819
        %v1821 = vand.u32 %v1574, 4294901760
        %v1822 = vsub.f32 %v1574, %v1821
        %1823 = vmatpush.msra.mxu0 %v1822
        %v1824 = vand.u32 %v1573, 4294901760
        %v1825 = vsub.f32 %v1573, %v1824
        %1826 = vmatpush.msra.mxu0 %v1825
        %v1827 = vand.u32 %v1572, 4294901760
        %v1828 = vsub.f32 %v1572, %v1827
        %1829 = vmatpush.msra.mxu0 %v1828
        %v1830 = vand.u32 %v1587, 4294901760
        %v1831 = vsub.f32 %v1587, %v1830
        %1832 = vmatpush.msra.mxu0 %v1831
        %v1833 = vand.u32 %v1586, 4294901760
        %v1834 = vsub.f32 %v1586, %v1833
        %1835 = vmatpush.msra.mxu0 %v1834
        %v1836 = vand.u32 %v1585, 4294901760
        %v1837 = vsub.f32 %v1585, %v1836
        %1838 = vmatpush.msra.mxu0 %v1837
        %v1839 = vand.u32 %v1584, 4294901760
        %v1840 = vsub.f32 %v1584, %v1839
        %1841 = vmatpush.msra.mxu0 %v1840
        %v1842 = vand.u32 %v474, 4294901760
        %v1843 = vsub.f32 %v474, %v1842
        %1844 = vmatmul.f32.gmra.mxu0 %v1843
        %v1845 = vpop.f32.mrf.mxu0
        %v1846 = vadd.f32 %v1772, %v1845
        %v1847 = vand.u32 %v477, 4294901760
        %v1848 = vsub.f32 %v477, %v1847
        %1849 = vmatmul.f32.gmra.mxu0 %v1848
        %v1850 = vpop.f32.mrf.mxu0
        %v1851 = vadd.f32 %v1776, %v1850
        %v1852 = vand.u32 %v480, 4294901760
        %v1853 = vsub.f32 %v480, %v1852
        %1854 = vmatmul.f32.gmra.mxu0 %v1853
        %v1855 = vpop.f32.mrf.mxu0
        %v1856 = vadd.f32 %v1780, %v1855
        %v1857 = vand.u32 %v483, 4294901760
        %v1858 = vsub.f32 %v483, %v1857
        %1859 = vmatmul.f32.gmra.mxu0 %v1858
        %v1860 = vpop.f32.mrf.mxu0
        %v1861 = vadd.f32 %v1784, %v1860
        %v1862 = vand.u32 %v486, 4294901760
        %v1863 = vsub.f32 %v486, %v1862
        %1864 = vmatmul.f32.gmra.mxu0 %v1863
        %v1865 = vpop.f32.mrf.mxu0
        %v1866 = vadd.f32 %v1788, %v1865
        %v1867 = vand.u32 %v489, 4294901760
        %v1868 = vsub.f32 %v489, %v1867
        %1869 = vmatmul.f32.gmra.mxu0 %v1868
        %v1870 = vpop.f32.mrf.mxu0
        %v1871 = vadd.f32 %v1792, %v1870
        %v1872 = vand.u32 %v492, 4294901760
        %v1873 = vsub.f32 %v492, %v1872
        %1874 = vmatmul.f32.gmra.mxu0 %v1873
        %v1875 = vpop.f32.mrf.mxu0
        %v1876 = vadd.f32 %v1796, %v1875
        %v1877 = vand.u32 %v495, 4294901760
        %v1878 = vsub.f32 %v495, %v1877
        %1879 = vmatmul.f32.gmra.mxu0 %v1878
        %v1880 = vpop.f32.mrf.mxu0
        %v1881 = vadd.f32 %v1800, %v1880
        %1882 = vdwg.mxu0
        %1883 = vmatpush.msra.mxu0 0.0
        %1884 = vmatpush.msra.mxu0 0.0
        %1885 = vmatpush.msra.mxu0 0.0
        %1886 = vmatpush.msra.mxu0 0.0
        %v1887 = vand.u32 %v1599, 4294901760
        %1888 = vmatpush.msra.mxu0 %v1887
        %v1889 = vand.u32 %v1598, 4294901760
        %1890 = vmatpush.msra.mxu0 %v1889
        %v1891 = vand.u32 %v1597, 4294901760
        %1892 = vmatpush.msra.mxu0 %v1891
        %v1893 = vand.u32 %v1596, 4294901760
        %1894 = vmatpush.msra.mxu0 %v1893
        %v1895 = vand.u32 %v1575, 4294901760
        %1896 = vmatpush.msra.mxu0 %v1895
        %v1897 = vand.u32 %v1574, 4294901760
        %1898 = vmatpush.msra.mxu0 %v1897
        %v1899 = vand.u32 %v1573, 4294901760
        %1900 = vmatpush.msra.mxu0 %v1899
        %v1901 = vand.u32 %v1572, 4294901760
        %1902 = vmatpush.msra.mxu0 %v1901
        %v1903 = vand.u32 %v1587, 4294901760
        %1904 = vmatpush.msra.mxu0 %v1903
        %v1905 = vand.u32 %v1586, 4294901760
        %1906 = vmatpush.msra.mxu0 %v1905
        %v1907 = vand.u32 %v1585, 4294901760
        %1908 = vmatpush.msra.mxu0 %v1907
        %v1909 = vand.u32 %v1584, 4294901760
        %1910 = vmatpush.msra.mxu0 %v1909
        %v1911 = vand.u32 %v474, 4294901760
        %v1912 = vsub.f32 %v474, %v1911
        %v1913 = vand.u32 %v1912, 4294901760
        %1914 = vmatmul.f32.gmra.mxu0 %v1913
        %v1915 = vpop.f32.mrf.mxu0
        %v1916 = vadd.f32 %v1846, %v1915
        %v1917 = vand.u32 %v477, 4294901760
        %v1918 = vsub.f32 %v477, %v1917
        %v1919 = vand.u32 %v1918, 4294901760
        %1920 = vmatmul.f32.gmra.mxu0 %v1919
        %v1921 = vpop.f32.mrf.mxu0
        %v1922 = vadd.f32 %v1851, %v1921
        %v1923 = vand.u32 %v480, 4294901760
        %v1924 = vsub.f32 %v480, %v1923
        %v1925 = vand.u32 %v1924, 4294901760
        %1926 = vmatmul.f32.gmra.mxu0 %v1925
        %v1927 = vpop.f32.mrf.mxu0
        %v1928 = vadd.f32 %v1856, %v1927
        %v1929 = vand.u32 %v483, 4294901760
        %v1930 = vsub.f32 %v483, %v1929
        %v1931 = vand.u32 %v1930, 4294901760
        %1932 = vmatmul.f32.gmra.mxu0 %v1931
        %v1933 = vpop.f32.mrf.mxu0
        %v1934 = vadd.f32 %v1861, %v1933
        %v1935 = vand.u32 %v486, 4294901760
        %v1936 = vsub.f32 %v486, %v1935
        %v1937 = vand.u32 %v1936, 4294901760
        %1938 = vmatmul.f32.gmra.mxu0 %v1937
        %v1939 = vpop.f32.mrf.mxu0
        %v1940 = vadd.f32 %v1866, %v1939
        %v1941 = vand.u32 %v489, 4294901760
        %v1942 = vsub.f32 %v489, %v1941
        %v1943 = vand.u32 %v1942, 4294901760
        %1944 = vmatmul.f32.gmra.mxu0 %v1943
        %v1945 = vpop.f32.mrf.mxu0
        %v1946 = vadd.f32 %v1871, %v1945
        %v1947 = vand.u32 %v492, 4294901760
        %v1948 = vsub.f32 %v492, %v1947
        %v1949 = vand.u32 %v1948, 4294901760
        %1950 = vmatmul.f32.gmra.mxu0 %v1949
        %v1951 = vpop.f32.mrf.mxu0
        %v1952 = vadd.f32 %v1876, %v1951
        %v1953 = vand.u32 %v495, 4294901760
        %v1954 = vsub.f32 %v495, %v1953
        %v1955 = vand.u32 %v1954, 4294901760
        %1956 = vmatmul.f32.gmra.mxu0 %v1955
        %v1957 = vpop.f32.mrf.mxu0
        %v1958 = vadd.f32 %v1881, %v1957
        %1959 = vdwg.mxu0
        %1960 = vmatpush.msra.mxu0 0.0
        %1961 = vmatpush.msra.mxu0 0.0
        %1962 = vmatpush.msra.mxu0 0.0
        %1963 = vmatpush.msra.mxu0 0.0
        %v1964 = vand.u32 %v1599, 4294901760
        %v1965 = vsub.f32 %v1599, %v1964
        %v1966 = vand.u32 %v1965, 4294901760
        %1967 = vmatpush.msra.mxu0 %v1966
        %v1968 = vand.u32 %v1598, 4294901760
        %v1969 = vsub.f32 %v1598, %v1968
        %v1970 = vand.u32 %v1969, 4294901760
        %1971 = vmatpush.msra.mxu0 %v1970
        %v1972 = vand.u32 %v1597, 4294901760
        %v1973 = vsub.f32 %v1597, %v1972
        %v1974 = vand.u32 %v1973, 4294901760
        %1975 = vmatpush.msra.mxu0 %v1974
        %v1976 = vand.u32 %v1596, 4294901760
        %v1977 = vsub.f32 %v1596, %v1976
        %v1978 = vand.u32 %v1977, 4294901760
        %1979 = vmatpush.msra.mxu0 %v1978
        %v1980 = vand.u32 %v1575, 4294901760
        %v1981 = vsub.f32 %v1575, %v1980
        %v1982 = vand.u32 %v1981, 4294901760
        %1983 = vmatpush.msra.mxu0 %v1982
        %v1984 = vand.u32 %v1574, 4294901760
        %v1985 = vsub.f32 %v1574, %v1984
        %v1986 = vand.u32 %v1985, 4294901760
        %1987 = vmatpush.msra.mxu0 %v1986
        %v1988 = vand.u32 %v1573, 4294901760
        %v1989 = vsub.f32 %v1573, %v1988
        %v1990 = vand.u32 %v1989, 4294901760
        %1991 = vmatpush.msra.mxu0 %v1990
        %v1992 = vand.u32 %v1572, 4294901760
        %v1993 = vsub.f32 %v1572, %v1992
        %v1994 = vand.u32 %v1993, 4294901760
        %1995 = vmatpush.msra.mxu0 %v1994
        %v1996 = vand.u32 %v1587, 4294901760
        %v1997 = vsub.f32 %v1587, %v1996
        %v1998 = vand.u32 %v1997, 4294901760
        %1999 = vmatpush.msra.mxu0 %v1998
        %v2000 = vand.u32 %v1586, 4294901760
        %v2001 = vsub.f32 %v1586, %v2000
        %v2002 = vand.u32 %v2001, 4294901760
        %2003 = vmatpush.msra.mxu0 %v2002
        %v2004 = vand.u32 %v1585, 4294901760
        %v2005 = vsub.f32 %v1585, %v2004
        %v2006 = vand.u32 %v2005, 4294901760
        %2007 = vmatpush.msra.mxu0 %v2006
        %v2008 = vand.u32 %v1584, 4294901760
        %v2009 = vsub.f32 %v1584, %v2008
        %v2010 = vand.u32 %v2009, 4294901760
        %2011 = vmatpush.msra.mxu0 %v2010
        %v2012 = vand.u32 %v474, 4294901760
        %2013 = vmatmul.f32.gmra.mxu0 %v2012
        %v2014 = vpop.f32.mrf.mxu0
        %v2015 = vadd.f32 %v1916, %v2014
        %v2016 = vand.u32 %v477, 4294901760
        %2017 = vmatmul.f32.gmra.mxu0 %v2016
        %v2018 = vpop.f32.mrf.mxu0
        %v2019 = vadd.f32 %v1922, %v2018
        %v2020 = vand.u32 %v480, 4294901760
        %2021 = vmatmul.f32.gmra.mxu0 %v2020
        %v2022 = vpop.f32.mrf.mxu0
        %v2023 = vadd.f32 %v1928, %v2022
        %v2024 = vand.u32 %v483, 4294901760
        %2025 = vmatmul.f32.gmra.mxu0 %v2024
        %v2026 = vpop.f32.mrf.mxu0
        %v2027 = vadd.f32 %v1934, %v2026
        %v2028 = vand.u32 %v486, 4294901760
        %2029 = vmatmul.f32.gmra.mxu0 %v2028
        %v2030 = vpop.f32.mrf.mxu0
        %v2031 = vadd.f32 %v1940, %v2030
        %v2032 = vand.u32 %v489, 4294901760
        %2033 = vmatmul.f32.gmra.mxu0 %v2032
        %v2034 = vpop.f32.mrf.mxu0
        %v2035 = vadd.f32 %v1946, %v2034
        %v2036 = vand.u32 %v492, 4294901760
        %2037 = vmatmul.f32.gmra.mxu0 %v2036
        %v2038 = vpop.f32.mrf.mxu0
        %v2039 = vadd.f32 %v1952, %v2038
        %v2040 = vand.u32 %v495, 4294901760
        %2041 = vmatmul.f32.gmra.mxu0 %v2040
        %v2042 = vpop.f32.mrf.mxu0
        %v2043 = vadd.f32 %v1958, %v2042
        %2044 = vdwg.mxu0
        %2045 = vmatpush.msra.mxu0 0.0
        %2046 = vmatpush.msra.mxu0 0.0
        %2047 = vmatpush.msra.mxu0 0.0
        %2048 = vmatpush.msra.mxu0 0.0
        %v2049 = vand.u32 %v1599, 4294901760
        %2050 = vmatpush.msra.mxu0 %v2049
        %v2051 = vand.u32 %v1598, 4294901760
        %2052 = vmatpush.msra.mxu0 %v2051
        %v2053 = vand.u32 %v1597, 4294901760
        %2054 = vmatpush.msra.mxu0 %v2053
        %v2055 = vand.u32 %v1596, 4294901760
        %2056 = vmatpush.msra.mxu0 %v2055
        %v2057 = vand.u32 %v1575, 4294901760
        %2058 = vmatpush.msra.mxu0 %v2057
        %v2059 = vand.u32 %v1574, 4294901760
        %2060 = vmatpush.msra.mxu0 %v2059
        %v2061 = vand.u32 %v1573, 4294901760
        %2062 = vmatpush.msra.mxu0 %v2061
        %v2063 = vand.u32 %v1572, 4294901760
        %2064 = vmatpush.msra.mxu0 %v2063
        %v2065 = vand.u32 %v1587, 4294901760
        %2066 = vmatpush.msra.mxu0 %v2065
        %v2067 = vand.u32 %v1586, 4294901760
        %2068 = vmatpush.msra.mxu0 %v2067
        %v2069 = vand.u32 %v1585, 4294901760
        %2070 = vmatpush.msra.mxu0 %v2069
        %v2071 = vand.u32 %v1584, 4294901760
        %2072 = vmatpush.msra.mxu0 %v2071
        %v2073 = vand.u32 %v474, 4294901760
        %2074 = vmatmul.f32.gmra.mxu0 %v2073
        %v2075 = vpop.f32.mrf.mxu0
        %v2076 = vadd.f32 %v2015, %v2075
        %v2077 = vand.u32 %v477, 4294901760
        %2078 = vmatmul.f32.gmra.mxu0 %v2077
        %v2079 = vpop.f32.mrf.mxu0
        %v2080 = vadd.f32 %v2019, %v2079
        %v2081 = vand.u32 %v480, 4294901760
        %2082 = vmatmul.f32.gmra.mxu0 %v2081
        %v2083 = vpop.f32.mrf.mxu0
        %v2084 = vadd.f32 %v2023, %v2083
        %v2085 = vand.u32 %v483, 4294901760
        %2086 = vmatmul.f32.gmra.mxu0 %v2085
        %v2087 = vpop.f32.mrf.mxu0
        %v2088 = vadd.f32 %v2027, %v2087
        %v2089 = vand.u32 %v486, 4294901760
        %2090 = vmatmul.f32.gmra.mxu0 %v2089
        %v2091 = vpop.f32.mrf.mxu0
        %v2092 = vadd.f32 %v2031, %v2091
        %v2093 = vand.u32 %v489, 4294901760
        %2094 = vmatmul.f32.gmra.mxu0 %v2093
        %v2095 = vpop.f32.mrf.mxu0
        %v2096 = vadd.f32 %v2035, %v2095
        %v2097 = vand.u32 %v492, 4294901760
        %2098 = vmatmul.f32.gmra.mxu0 %v2097
        %v2099 = vpop.f32.mrf.mxu0
        %v2100 = vadd.f32 %v2039, %v2099
        %v2101 = vand.u32 %v495, 4294901760
        %2102 = vmatmul.f32.gmra.mxu0 %v2101
        %v2103 = vpop.f32.mrf.mxu0
        %v2104 = vadd.f32 %v2043, %v2103
        %2105 = vdwg.mxu0
        %v2106 = vmax.f32 %v2076, 0.0
        %v2107 = vmax.f32 %v2080, 0.0
        %v2108 = vmax.f32 %v2084, 0.0
        %v2109 = vmax.f32 %v2088, 0.0
        %v2110 = vmax.f32 %v2092, 0.0
        %v2111 = vmax.f32 %v2096, 0.0
        %v2112 = vmax.f32 %v2100, 0.0
        %v2113 = vmax.f32 %v2104, 0.0
        %s2114 = scalar_lea.vmem [#allocation2], 128
        %2115 = vst [vmem:[%s2114] sm:$0xff] %v2106
        %2116 = vst [vmem:[%s2114 + $0x8] sm:$0xff] %v2107
        %2117 = vst [vmem:[%s2114 + $0x10] sm:$0xff] %v2108
        %2118 = vst [vmem:[%s2114 + $0x18] sm:$0xff] %v2109
        %2119 = vst [vmem:[%s2114 + $0x20] sm:$0xff] %v2110
        %2120 = vst [vmem:[%s2114 + $0x28] sm:$0xff] %v2111
        %2121 = vst [vmem:[%s2114 + $0x30] sm:$0xff] %v2112
        %2122 = vst [vmem:[%s2114 + $0x38] sm:$0xff] %v2113
        %s2123 = scalar_lea.vmem %s318, 96 [#allocation3]
        %v2124 = vld [vmem:[%s2123] sm:$0xff]
        %v2125 = vld [vmem:[%s2123 + $0x8] sm:$0xff]
        %v2126 = vld [vmem:[%s2123 + $0x10] sm:$0xff]
        %v2127 = vld [vmem:[%s2123 + $0x18] sm:$0xff]
        %2128 = vrot.lane.b32.xlu0 %v2124, 1
        %v2129 = vpop.permute.xlu0 %2128
        %2130 = vrot.lane.b32.xlu0 %v2125, 1
        %v2131 = vpop.permute.xlu0 %2130
        %2132 = vrot.lane.b32.xlu0 %v2126, 1
        %v2133 = vpop.permute.xlu0 %2132
        %2134 = vrot.lane.b32.xlu0 %v2127, 1
        %v2135 = vpop.permute.xlu0 %2134
        %v2136 = vsel %vm413, %v2129, 0.0
        %v2137 = vsel %vm413, %v2131, 0.0
        %v2138 = vsel %vm413, %v2133, 0.0
        %v2139 = vsel %vm413, %v2135, 0.0
        %2140 = vrot.lane.b32.xlu0 %v2124, 127
        %v2141 = vpop.permute.xlu0 %2140
        %2142 = vrot.lane.b32.xlu0 %v2125, 127
        %v2143 = vpop.permute.xlu0 %2142
        %2144 = vrot.lane.b32.xlu0 %v2126, 127
        %v2145 = vpop.permute.xlu0 %2144
        %2146 = vrot.lane.b32.xlu0 %v2127, 127
        %v2147 = vpop.permute.xlu0 %2146
        %v2148 = vsel %vm427, %v2141, 0.0
        %v2149 = vsel %vm427, %v2143, 0.0
        %v2150 = vsel %vm427, %v2145, 0.0
        %v2151 = vsel %vm427, %v2147, 0.0
        %2152 = vmatpush.msra.mxu0 0.0
        %2153 = vmatpush.msra.mxu0 0.0
        %2154 = vmatpush.msra.mxu0 0.0
        %2155 = vmatpush.msra.mxu0 0.0
        %v2156 = vand.u32 %v2151, 4294901760
        %2157 = vmatpush.msra.mxu0 %v2156
        %v2158 = vand.u32 %v2150, 4294901760
        %2159 = vmatpush.msra.mxu0 %v2158
        %v2160 = vand.u32 %v2149, 4294901760
        %2161 = vmatpush.msra.mxu0 %v2160
        %v2162 = vand.u32 %v2148, 4294901760
        %2163 = vmatpush.msra.mxu0 %v2162
        %v2164 = vand.u32 %v2127, 4294901760
        %2165 = vmatpush.msra.mxu0 %v2164
        %v2166 = vand.u32 %v2126, 4294901760
        %2167 = vmatpush.msra.mxu0 %v2166
        %v2168 = vand.u32 %v2125, 4294901760
        %2169 = vmatpush.msra.mxu0 %v2168
        %v2170 = vand.u32 %v2124, 4294901760
        %2171 = vmatpush.msra.mxu0 %v2170
        %v2172 = vand.u32 %v2139, 4294901760
        %2173 = vmatpush.msra.mxu0 %v2172
        %v2174 = vand.u32 %v2138, 4294901760
        %2175 = vmatpush.msra.mxu0 %v2174
        %v2176 = vand.u32 %v2137, 4294901760
        %2177 = vmatpush.msra.mxu0 %v2176
        %v2178 = vand.u32 %v2136, 4294901760
        %2179 = vmatpush.msra.mxu0 %v2178
        %v2180 = vand.u32 %v474, 4294901760
        %v2181 = vsub.f32 %v474, %v2180
        %v2182 = vand.u32 %v2181, 4294901760
        %v2183 = vsub.f32 %v2181, %v2182
        %v2184 = vand.u32 %v2183, 4294901760
        %2185 = vmatmul.f32.gmra.mxu0 %v2184
        %v2186 = vpop.f32.mrf.mxu0
        %v2187 = vadd.f32 %v435, %v2186
        %v2188 = vand.u32 %v477, 4294901760
        %v2189 = vsub.f32 %v477, %v2188
        %v2190 = vand.u32 %v2189, 4294901760
        %v2191 = vsub.f32 %v2189, %v2190
        %v2192 = vand.u32 %v2191, 4294901760
        %2193 = vmatmul.f32.gmra.mxu0 %v2192
        %v2194 = vpop.f32.mrf.mxu0
        %v2195 = vadd.f32 %v440, %v2194
        %v2196 = vand.u32 %v480, 4294901760
        %v2197 = vsub.f32 %v480, %v2196
        %v2198 = vand.u32 %v2197, 4294901760
        %v2199 = vsub.f32 %v2197, %v2198
        %v2200 = vand.u32 %v2199, 4294901760
        %2201 = vmatmul.f32.gmra.mxu0 %v2200
        %v2202 = vpop.f32.mrf.mxu0
        %v2203 = vadd.f32 %v445, %v2202
        %v2204 = vand.u32 %v483, 4294901760
        %v2205 = vsub.f32 %v483, %v2204
        %v2206 = vand.u32 %v2205, 4294901760
        %v2207 = vsub.f32 %v2205, %v2206
        %v2208 = vand.u32 %v2207, 4294901760
        %2209 = vmatmul.f32.gmra.mxu0 %v2208
        %v2210 = vpop.f32.mrf.mxu0
        %v2211 = vadd.f32 %v450, %v2210
        %v2212 = vand.u32 %v486, 4294901760
        %v2213 = vsub.f32 %v486, %v2212
        %v2214 = vand.u32 %v2213, 4294901760
        %v2215 = vsub.f32 %v2213, %v2214
        %v2216 = vand.u32 %v2215, 4294901760
        %2217 = vmatmul.f32.gmra.mxu0 %v2216
        %v2218 = vpop.f32.mrf.mxu0
        %v2219 = vadd.f32 %v455, %v2218
        %v2220 = vand.u32 %v489, 4294901760
        %v2221 = vsub.f32 %v489, %v2220
        %v2222 = vand.u32 %v2221, 4294901760
        %v2223 = vsub.f32 %v2221, %v2222
        %v2224 = vand.u32 %v2223, 4294901760
        %2225 = vmatmul.f32.gmra.mxu0 %v2224
        %v2226 = vpop.f32.mrf.mxu0
        %v2227 = vadd.f32 %v460, %v2226
        %v2228 = vand.u32 %v492, 4294901760
        %v2229 = vsub.f32 %v492, %v2228
        %v2230 = vand.u32 %v2229, 4294901760
        %v2231 = vsub.f32 %v2229, %v2230
        %v2232 = vand.u32 %v2231, 4294901760
        %2233 = vmatmul.f32.gmra.mxu0 %v2232
        %v2234 = vpop.f32.mrf.mxu0
        %v2235 = vadd.f32 %v465, %v2234
        %v2236 = vand.u32 %v495, 4294901760
        %v2237 = vsub.f32 %v495, %v2236
        %v2238 = vand.u32 %v2237, 4294901760
        %v2239 = vsub.f32 %v2237, %v2238
        %v2240 = vand.u32 %v2239, 4294901760
        %2241 = vmatmul.f32.gmra.mxu0 %v2240
        %v2242 = vpop.f32.mrf.mxu0
        %v2243 = vadd.f32 %v470, %v2242
        %2244 = vdwg.mxu0
        %2245 = vmatpush.msra.mxu0 0.0
        %2246 = vmatpush.msra.mxu0 0.0
        %2247 = vmatpush.msra.mxu0 0.0
        %2248 = vmatpush.msra.mxu0 0.0
        %v2249 = vand.u32 %v2151, 4294901760
        %v2250 = vsub.f32 %v2151, %v2249
        %v2251 = vand.u32 %v2250, 4294901760
        %v2252 = vsub.f32 %v2250, %v2251
        %v2253 = vand.u32 %v2252, 4294901760
        %2254 = vmatpush.msra.mxu0 %v2253
        %v2255 = vand.u32 %v2150, 4294901760
        %v2256 = vsub.f32 %v2150, %v2255
        %v2257 = vand.u32 %v2256, 4294901760
        %v2258 = vsub.f32 %v2256, %v2257
        %v2259 = vand.u32 %v2258, 4294901760
        %2260 = vmatpush.msra.mxu0 %v2259
        %v2261 = vand.u32 %v2149, 4294901760
        %v2262 = vsub.f32 %v2149, %v2261
        %v2263 = vand.u32 %v2262, 4294901760
        %v2264 = vsub.f32 %v2262, %v2263
        %v2265 = vand.u32 %v2264, 4294901760
        %2266 = vmatpush.msra.mxu0 %v2265
        %v2267 = vand.u32 %v2148, 4294901760
        %v2268 = vsub.f32 %v2148, %v2267
        %v2269 = vand.u32 %v2268, 4294901760
        %v2270 = vsub.f32 %v2268, %v2269
        %v2271 = vand.u32 %v2270, 4294901760
        %2272 = vmatpush.msra.mxu0 %v2271
        %v2273 = vand.u32 %v2127, 4294901760
        %v2274 = vsub.f32 %v2127, %v2273
        %v2275 = vand.u32 %v2274, 4294901760
        %v2276 = vsub.f32 %v2274, %v2275
        %v2277 = vand.u32 %v2276, 4294901760
        %2278 = vmatpush.msra.mxu0 %v2277
        %v2279 = vand.u32 %v2126, 4294901760
        %v2280 = vsub.f32 %v2126, %v2279
        %v2281 = vand.u32 %v2280, 4294901760
        %v2282 = vsub.f32 %v2280, %v2281
        %v2283 = vand.u32 %v2282, 4294901760
        %2284 = vmatpush.msra.mxu0 %v2283
        %v2285 = vand.u32 %v2125, 4294901760
        %v2286 = vsub.f32 %v2125, %v2285
        %v2287 = vand.u32 %v2286, 4294901760
        %v2288 = vsub.f32 %v2286, %v2287
        %v2289 = vand.u32 %v2288, 4294901760
        %2290 = vmatpush.msra.mxu0 %v2289
        %v2291 = vand.u32 %v2124, 4294901760
        %v2292 = vsub.f32 %v2124, %v2291
        %v2293 = vand.u32 %v2292, 4294901760
        %v2294 = vsub.f32 %v2292, %v2293
        %v2295 = vand.u32 %v2294, 4294901760
        %2296 = vmatpush.msra.mxu0 %v2295
        %v2297 = vand.u32 %v2139, 4294901760
        %v2298 = vsub.f32 %v2139, %v2297
        %v2299 = vand.u32 %v2298, 4294901760
        %v2300 = vsub.f32 %v2298, %v2299
        %v2301 = vand.u32 %v2300, 4294901760
        %2302 = vmatpush.msra.mxu0 %v2301
        %v2303 = vand.u32 %v2138, 4294901760
        %v2304 = vsub.f32 %v2138, %v2303
        %v2305 = vand.u32 %v2304, 4294901760
        %v2306 = vsub.f32 %v2304, %v2305
        %v2307 = vand.u32 %v2306, 4294901760
        %2308 = vmatpush.msra.mxu0 %v2307
        %v2309 = vand.u32 %v2137, 4294901760
        %v2310 = vsub.f32 %v2137, %v2309
        %v2311 = vand.u32 %v2310, 4294901760
        %v2312 = vsub.f32 %v2310, %v2311
        %v2313 = vand.u32 %v2312, 4294901760
        %2314 = vmatpush.msra.mxu0 %v2313
        %v2315 = vand.u32 %v2136, 4294901760
        %v2316 = vsub.f32 %v2136, %v2315
        %v2317 = vand.u32 %v2316, 4294901760
        %v2318 = vsub.f32 %v2316, %v2317
        %v2319 = vand.u32 %v2318, 4294901760
        %2320 = vmatpush.msra.mxu0 %v2319
        %v2321 = vand.u32 %v474, 4294901760
        %2322 = vmatmul.f32.gmra.mxu0 %v2321
        %v2323 = vpop.f32.mrf.mxu0
        %v2324 = vadd.f32 %v2187, %v2323
        %v2325 = vand.u32 %v477, 4294901760
        %2326 = vmatmul.f32.gmra.mxu0 %v2325
        %v2327 = vpop.f32.mrf.mxu0
        %v2328 = vadd.f32 %v2195, %v2327
        %v2329 = vand.u32 %v480, 4294901760
        %2330 = vmatmul.f32.gmra.mxu0 %v2329
        %v2331 = vpop.f32.mrf.mxu0
        %v2332 = vadd.f32 %v2203, %v2331
        %v2333 = vand.u32 %v483, 4294901760
        %2334 = vmatmul.f32.gmra.mxu0 %v2333
        %v2335 = vpop.f32.mrf.mxu0
        %v2336 = vadd.f32 %v2211, %v2335
        %v2337 = vand.u32 %v486, 4294901760
        %2338 = vmatmul.f32.gmra.mxu0 %v2337
        %v2339 = vpop.f32.mrf.mxu0
        %v2340 = vadd.f32 %v2219, %v2339
        %v2341 = vand.u32 %v489, 4294901760
        %2342 = vmatmul.f32.gmra.mxu0 %v2341
        %v2343 = vpop.f32.mrf.mxu0
        %v2344 = vadd.f32 %v2227, %v2343
        %v2345 = vand.u32 %v492, 4294901760
        %2346 = vmatmul.f32.gmra.mxu0 %v2345
        %v2347 = vpop.f32.mrf.mxu0
        %v2348 = vadd.f32 %v2235, %v2347
        %v2349 = vand.u32 %v495, 4294901760
        %2350 = vmatmul.f32.gmra.mxu0 %v2349
        %v2351 = vpop.f32.mrf.mxu0
        %v2352 = vadd.f32 %v2243, %v2351
        %2353 = vdwg.mxu0
        %2354 = vmatpush.msra.mxu0 0.0
        %2355 = vmatpush.msra.mxu0 0.0
        %2356 = vmatpush.msra.mxu0 0.0
        %2357 = vmatpush.msra.mxu0 0.0
        %v2358 = vand.u32 %v2151, 4294901760
        %v2359 = vsub.f32 %v2151, %v2358
        %2360 = vmatpush.msra.mxu0 %v2359
        %v2361 = vand.u32 %v2150, 4294901760
        %v2362 = vsub.f32 %v2150, %v2361
        %2363 = vmatpush.msra.mxu0 %v2362
        %v2364 = vand.u32 %v2149, 4294901760
        %v2365 = vsub.f32 %v2149, %v2364
        %2366 = vmatpush.msra.mxu0 %v2365
        %v2367 = vand.u32 %v2148, 4294901760
        %v2368 = vsub.f32 %v2148, %v2367
        %2369 = vmatpush.msra.mxu0 %v2368
        %v2370 = vand.u32 %v2127, 4294901760
        %v2371 = vsub.f32 %v2127, %v2370
        %2372 = vmatpush.msra.mxu0 %v2371
        %v2373 = vand.u32 %v2126, 4294901760
        %v2374 = vsub.f32 %v2126, %v2373
        %2375 = vmatpush.msra.mxu0 %v2374
        %v2376 = vand.u32 %v2125, 4294901760
        %v2377 = vsub.f32 %v2125, %v2376
        %2378 = vmatpush.msra.mxu0 %v2377
        %v2379 = vand.u32 %v2124, 4294901760
        %v2380 = vsub.f32 %v2124, %v2379
        %2381 = vmatpush.msra.mxu0 %v2380
        %v2382 = vand.u32 %v2139, 4294901760
        %v2383 = vsub.f32 %v2139, %v2382
        %2384 = vmatpush.msra.mxu0 %v2383
        %v2385 = vand.u32 %v2138, 4294901760
        %v2386 = vsub.f32 %v2138, %v2385
        %2387 = vmatpush.msra.mxu0 %v2386
        %v2388 = vand.u32 %v2137, 4294901760
        %v2389 = vsub.f32 %v2137, %v2388
        %2390 = vmatpush.msra.mxu0 %v2389
        %v2391 = vand.u32 %v2136, 4294901760
        %v2392 = vsub.f32 %v2136, %v2391
        %2393 = vmatpush.msra.mxu0 %v2392
        %v2394 = vand.u32 %v474, 4294901760
        %v2395 = vsub.f32 %v474, %v2394
        %2396 = vmatmul.f32.gmra.mxu0 %v2395
        %v2397 = vpop.f32.mrf.mxu0
        %v2398 = vadd.f32 %v2324, %v2397
        %v2399 = vand.u32 %v477, 4294901760
        %v2400 = vsub.f32 %v477, %v2399
        %2401 = vmatmul.f32.gmra.mxu0 %v2400
        %v2402 = vpop.f32.mrf.mxu0
        %v2403 = vadd.f32 %v2328, %v2402
        %v2404 = vand.u32 %v480, 4294901760
        %v2405 = vsub.f32 %v480, %v2404
        %2406 = vmatmul.f32.gmra.mxu0 %v2405
        %v2407 = vpop.f32.mrf.mxu0
        %v2408 = vadd.f32 %v2332, %v2407
        %v2409 = vand.u32 %v483, 4294901760
        %v2410 = vsub.f32 %v483, %v2409
        %2411 = vmatmul.f32.gmra.mxu0 %v2410
        %v2412 = vpop.f32.mrf.mxu0
        %v2413 = vadd.f32 %v2336, %v2412
        %v2414 = vand.u32 %v486, 4294901760
        %v2415 = vsub.f32 %v486, %v2414
        %2416 = vmatmul.f32.gmra.mxu0 %v2415
        %v2417 = vpop.f32.mrf.mxu0
        %v2418 = vadd.f32 %v2340, %v2417
        %v2419 = vand.u32 %v489, 4294901760
        %v2420 = vsub.f32 %v489, %v2419
        %2421 = vmatmul.f32.gmra.mxu0 %v2420
        %v2422 = vpop.f32.mrf.mxu0
        %v2423 = vadd.f32 %v2344, %v2422
        %v2424 = vand.u32 %v492, 4294901760
        %v2425 = vsub.f32 %v492, %v2424
        %2426 = vmatmul.f32.gmra.mxu0 %v2425
        %v2427 = vpop.f32.mrf.mxu0
        %v2428 = vadd.f32 %v2348, %v2427
        %v2429 = vand.u32 %v495, 4294901760
        %v2430 = vsub.f32 %v495, %v2429
        %2431 = vmatmul.f32.gmra.mxu0 %v2430
        %v2432 = vpop.f32.mrf.mxu0
        %v2433 = vadd.f32 %v2352, %v2432
        %2434 = vdwg.mxu0
        %2435 = vmatpush.msra.mxu0 0.0
        %2436 = vmatpush.msra.mxu0 0.0
        %2437 = vmatpush.msra.mxu0 0.0
        %2438 = vmatpush.msra.mxu0 0.0
        %v2439 = vand.u32 %v2151, 4294901760
        %2440 = vmatpush.msra.mxu0 %v2439
        %v2441 = vand.u32 %v2150, 4294901760
        %2442 = vmatpush.msra.mxu0 %v2441
        %v2443 = vand.u32 %v2149, 4294901760
        %2444 = vmatpush.msra.mxu0 %v2443
        %v2445 = vand.u32 %v2148, 4294901760
        %2446 = vmatpush.msra.mxu0 %v2445
        %v2447 = vand.u32 %v2127, 4294901760
        %2448 = vmatpush.msra.mxu0 %v2447
        %v2449 = vand.u32 %v2126, 4294901760
        %2450 = vmatpush.msra.mxu0 %v2449
        %v2451 = vand.u32 %v2125, 4294901760
        %2452 = vmatpush.msra.mxu0 %v2451
        %v2453 = vand.u32 %v2124, 4294901760
        %2454 = vmatpush.msra.mxu0 %v2453
        %v2455 = vand.u32 %v2139, 4294901760
        %2456 = vmatpush.msra.mxu0 %v2455
        %v2457 = vand.u32 %v2138, 4294901760
        %2458 = vmatpush.msra.mxu0 %v2457
        %v2459 = vand.u32 %v2137, 4294901760
        %2460 = vmatpush.msra.mxu0 %v2459
        %v2461 = vand.u32 %v2136, 4294901760
        %2462 = vmatpush.msra.mxu0 %v2461
        %v2463 = vand.u32 %v474, 4294901760
        %v2464 = vsub.f32 %v474, %v2463
        %v2465 = vand.u32 %v2464, 4294901760
        %2466 = vmatmul.f32.gmra.mxu0 %v2465
        %v2467 = vpop.f32.mrf.mxu0
        %v2468 = vadd.f32 %v2398, %v2467
        %v2469 = vand.u32 %v477, 4294901760
        %v2470 = vsub.f32 %v477, %v2469
        %v2471 = vand.u32 %v2470, 4294901760
        %2472 = vmatmul.f32.gmra.mxu0 %v2471
        %v2473 = vpop.f32.mrf.mxu0
        %v2474 = vadd.f32 %v2403, %v2473
        %v2475 = vand.u32 %v480, 4294901760
        %v2476 = vsub.f32 %v480, %v2475
        %v2477 = vand.u32 %v2476, 4294901760
        %2478 = vmatmul.f32.gmra.mxu0 %v2477
        %v2479 = vpop.f32.mrf.mxu0
        %v2480 = vadd.f32 %v2408, %v2479
        %v2481 = vand.u32 %v483, 4294901760
        %v2482 = vsub.f32 %v483, %v2481
        %v2483 = vand.u32 %v2482, 4294901760
        %2484 = vmatmul.f32.gmra.mxu0 %v2483
        %v2485 = vpop.f32.mrf.mxu0
        %v2486 = vadd.f32 %v2413, %v2485
        %v2487 = vand.u32 %v486, 4294901760
        %v2488 = vsub.f32 %v486, %v2487
        %v2489 = vand.u32 %v2488, 4294901760
        %2490 = vmatmul.f32.gmra.mxu0 %v2489
        %v2491 = vpop.f32.mrf.mxu0
        %v2492 = vadd.f32 %v2418, %v2491
        %v2493 = vand.u32 %v489, 4294901760
        %v2494 = vsub.f32 %v489, %v2493
        %v2495 = vand.u32 %v2494, 4294901760
        %2496 = vmatmul.f32.gmra.mxu0 %v2495
        %v2497 = vpop.f32.mrf.mxu0
        %v2498 = vadd.f32 %v2423, %v2497
        %v2499 = vand.u32 %v492, 4294901760
        %v2500 = vsub.f32 %v492, %v2499
        %v2501 = vand.u32 %v2500, 4294901760
        %2502 = vmatmul.f32.gmra.mxu0 %v2501
        %v2503 = vpop.f32.mrf.mxu0
        %v2504 = vadd.f32 %v2428, %v2503
        %v2505 = vand.u32 %v495, 4294901760
        %v2506 = vsub.f32 %v495, %v2505
        %v2507 = vand.u32 %v2506, 4294901760
        %2508 = vmatmul.f32.gmra.mxu0 %v2507
        %v2509 = vpop.f32.mrf.mxu0
        %v2510 = vadd.f32 %v2433, %v2509
        %2511 = vdwg.mxu0
        %2512 = vmatpush.msra.mxu0 0.0
        %2513 = vmatpush.msra.mxu0 0.0
        %2514 = vmatpush.msra.mxu0 0.0
        %2515 = vmatpush.msra.mxu0 0.0
        %v2516 = vand.u32 %v2151, 4294901760
        %v2517 = vsub.f32 %v2151, %v2516
        %v2518 = vand.u32 %v2517, 4294901760
        %2519 = vmatpush.msra.mxu0 %v2518
        %v2520 = vand.u32 %v2150, 4294901760
        %v2521 = vsub.f32 %v2150, %v2520
        %v2522 = vand.u32 %v2521, 4294901760
        %2523 = vmatpush.msra.mxu0 %v2522
        %v2524 = vand.u32 %v2149, 4294901760
        %v2525 = vsub.f32 %v2149, %v2524
        %v2526 = vand.u32 %v2525, 4294901760
        %2527 = vmatpush.msra.mxu0 %v2526
        %v2528 = vand.u32 %v2148, 4294901760
        %v2529 = vsub.f32 %v2148, %v2528
        %v2530 = vand.u32 %v2529, 4294901760
        %2531 = vmatpush.msra.mxu0 %v2530
        %v2532 = vand.u32 %v2127, 4294901760
        %v2533 = vsub.f32 %v2127, %v2532
        %v2534 = vand.u32 %v2533, 4294901760
        %2535 = vmatpush.msra.mxu0 %v2534
        %v2536 = vand.u32 %v2126, 4294901760
        %v2537 = vsub.f32 %v2126, %v2536
        %v2538 = vand.u32 %v2537, 4294901760
        %2539 = vmatpush.msra.mxu0 %v2538
        %v2540 = vand.u32 %v2125, 4294901760
        %v2541 = vsub.f32 %v2125, %v2540
        %v2542 = vand.u32 %v2541, 4294901760
        %2543 = vmatpush.msra.mxu0 %v2542
        %v2544 = vand.u32 %v2124, 4294901760
        %v2545 = vsub.f32 %v2124, %v2544
        %v2546 = vand.u32 %v2545, 4294901760
        %2547 = vmatpush.msra.mxu0 %v2546
        %v2548 = vand.u32 %v2139, 4294901760
        %v2549 = vsub.f32 %v2139, %v2548
        %v2550 = vand.u32 %v2549, 4294901760
        %2551 = vmatpush.msra.mxu0 %v2550
        %v2552 = vand.u32 %v2138, 4294901760
        %v2553 = vsub.f32 %v2138, %v2552
        %v2554 = vand.u32 %v2553, 4294901760
        %2555 = vmatpush.msra.mxu0 %v2554
        %v2556 = vand.u32 %v2137, 4294901760
        %v2557 = vsub.f32 %v2137, %v2556
        %v2558 = vand.u32 %v2557, 4294901760
        %2559 = vmatpush.msra.mxu0 %v2558
        %v2560 = vand.u32 %v2136, 4294901760
        %v2561 = vsub.f32 %v2136, %v2560
        %v2562 = vand.u32 %v2561, 4294901760
        %2563 = vmatpush.msra.mxu0 %v2562
        %v2564 = vand.u32 %v474, 4294901760
        %2565 = vmatmul.f32.gmra.mxu0 %v2564
        %v2566 = vpop.f32.mrf.mxu0
        %v2567 = vadd.f32 %v2468, %v2566
        %v2568 = vand.u32 %v477, 4294901760
        %2569 = vmatmul.f32.gmra.mxu0 %v2568
        %v2570 = vpop.f32.mrf.mxu0
        %v2571 = vadd.f32 %v2474, %v2570
        %v2572 = vand.u32 %v480, 4294901760
        %2573 = vmatmul.f32.gmra.mxu0 %v2572
        %v2574 = vpop.f32.mrf.mxu0
        %v2575 = vadd.f32 %v2480, %v2574
        %v2576 = vand.u32 %v483, 4294901760
        %2577 = vmatmul.f32.gmra.mxu0 %v2576
        %v2578 = vpop.f32.mrf.mxu0
        %v2579 = vadd.f32 %v2486, %v2578
        %v2580 = vand.u32 %v486, 4294901760
        %2581 = vmatmul.f32.gmra.mxu0 %v2580
        %v2582 = vpop.f32.mrf.mxu0
        %v2583 = vadd.f32 %v2492, %v2582
        %v2584 = vand.u32 %v489, 4294901760
        %2585 = vmatmul.f32.gmra.mxu0 %v2584
        %v2586 = vpop.f32.mrf.mxu0
        %v2587 = vadd.f32 %v2498, %v2586
        %v2588 = vand.u32 %v492, 4294901760
        %2589 = vmatmul.f32.gmra.mxu0 %v2588
        %v2590 = vpop.f32.mrf.mxu0
        %v2591 = vadd.f32 %v2504, %v2590
        %v2592 = vand.u32 %v495, 4294901760
        %2593 = vmatmul.f32.gmra.mxu0 %v2592
        %v2594 = vpop.f32.mrf.mxu0
        %v2595 = vadd.f32 %v2510, %v2594
        %2596 = vdwg.mxu0
        %2597 = vmatpush.msra.mxu0 0.0
        %2598 = vmatpush.msra.mxu0 0.0
        %2599 = vmatpush.msra.mxu0 0.0
        %2600 = vmatpush.msra.mxu0 0.0
        %v2601 = vand.u32 %v2151, 4294901760
        %2602 = vmatpush.msra.mxu0 %v2601
        %v2603 = vand.u32 %v2150, 4294901760
        %2604 = vmatpush.msra.mxu0 %v2603
        %v2605 = vand.u32 %v2149, 4294901760
        %2606 = vmatpush.msra.mxu0 %v2605
        %v2607 = vand.u32 %v2148, 4294901760
        %2608 = vmatpush.msra.mxu0 %v2607
        %v2609 = vand.u32 %v2127, 4294901760
        %2610 = vmatpush.msra.mxu0 %v2609
        %v2611 = vand.u32 %v2126, 4294901760
        %2612 = vmatpush.msra.mxu0 %v2611
        %v2613 = vand.u32 %v2125, 4294901760
        %2614 = vmatpush.msra.mxu0 %v2613
        %v2615 = vand.u32 %v2124, 4294901760
        %2616 = vmatpush.msra.mxu0 %v2615
        %v2617 = vand.u32 %v2139, 4294901760
        %2618 = vmatpush.msra.mxu0 %v2617
        %v2619 = vand.u32 %v2138, 4294901760
        %2620 = vmatpush.msra.mxu0 %v2619
        %v2621 = vand.u32 %v2137, 4294901760
        %2622 = vmatpush.msra.mxu0 %v2621
        %v2623 = vand.u32 %v2136, 4294901760
        %2624 = vmatpush.msra.mxu0 %v2623
        %v2625 = vand.u32 %v474, 4294901760
        %2626 = vmatmul.f32.gmra.mxu0 %v2625
        %v2627 = vpop.f32.mrf.mxu0
        %v2628 = vadd.f32 %v2567, %v2627
        %v2629 = vand.u32 %v477, 4294901760
        %2630 = vmatmul.f32.gmra.mxu0 %v2629
        %v2631 = vpop.f32.mrf.mxu0
        %v2632 = vadd.f32 %v2571, %v2631
        %v2633 = vand.u32 %v480, 4294901760
        %2634 = vmatmul.f32.gmra.mxu0 %v2633
        %v2635 = vpop.f32.mrf.mxu0
        %v2636 = vadd.f32 %v2575, %v2635
        %v2637 = vand.u32 %v483, 4294901760
        %2638 = vmatmul.f32.gmra.mxu0 %v2637
        %v2639 = vpop.f32.mrf.mxu0
        %v2640 = vadd.f32 %v2579, %v2639
        %v2641 = vand.u32 %v486, 4294901760
        %2642 = vmatmul.f32.gmra.mxu0 %v2641
        %v2643 = vpop.f32.mrf.mxu0
        %v2644 = vadd.f32 %v2583, %v2643
        %v2645 = vand.u32 %v489, 4294901760
        %2646 = vmatmul.f32.gmra.mxu0 %v2645
        %v2647 = vpop.f32.mrf.mxu0
        %v2648 = vadd.f32 %v2587, %v2647
        %v2649 = vand.u32 %v492, 4294901760
        %2650 = vmatmul.f32.gmra.mxu0 %v2649
        %v2651 = vpop.f32.mrf.mxu0
        %v2652 = vadd.f32 %v2591, %v2651
        %v2653 = vand.u32 %v495, 4294901760
        %2654 = vmatmul.f32.gmra.mxu0 %v2653
        %v2655 = vpop.f32.mrf.mxu0
        %v2656 = vadd.f32 %v2595, %v2655
        %2657 = vdwg.mxu0
        %v2658 = vmax.f32 %v2628, 0.0
        %v2659 = vmax.f32 %v2632, 0.0
        %v2660 = vmax.f32 %v2636, 0.0
        %v2661 = vmax.f32 %v2640, 0.0
        %v2662 = vmax.f32 %v2644, 0.0
        %v2663 = vmax.f32 %v2648, 0.0
        %v2664 = vmax.f32 %v2652, 0.0
        %v2665 = vmax.f32 %v2656, 0.0
        %s2666 = scalar_lea.vmem [#allocation2], 192
        %2667 = vst [vmem:[%s2666] sm:$0xff] %v2658
        %2668 = vst [vmem:[%s2666 + $0x8] sm:$0xff] %v2659
        %2669 = vst [vmem:[%s2666 + $0x10] sm:$0xff] %v2660
        %2670 = vst [vmem:[%s2666 + $0x18] sm:$0xff] %v2661
        %2671 = vst [vmem:[%s2666 + $0x20] sm:$0xff] %v2662
        %2672 = vst [vmem:[%s2666 + $0x28] sm:$0xff] %v2663
        %2673 = vst [vmem:[%s2666 + $0x30] sm:$0xff] %v2664
        %2674 = vst [vmem:[%s2666 + $0x38] sm:$0xff] %v2665
        %v2675 = vld [vmem:[#allocation2] sm:$0xff]
        %v2676 = vld [vmem:[#allocation2 + $0x8] sm:$0xff]
        %v2677 = vld [vmem:[#allocation2 + $0x10] sm:$0xff]
        %v2678 = vld [vmem:[#allocation2 + $0x18] sm:$0xff]
        %v2679 = vld [vmem:[#allocation2 + $0x20] sm:$0xff]
        %v2680 = vld [vmem:[#allocation2 + $0x28] sm:$0xff]
        %v2681 = vld [vmem:[#allocation2 + $0x30] sm:$0xff]
        %v2682 = vld [vmem:[#allocation2 + $0x38] sm:$0xff]
        %2683 = vrot.lane.b32.xlu0 %v2675, 1
        %v2684 = vpop.permute.xlu0 %2683
        %2685 = vrot.lane.b32.xlu0 %v2676, 1
        %v2686 = vpop.permute.xlu0 %2685
        %2687 = vrot.lane.b32.xlu0 %v2677, 1
        %v2688 = vpop.permute.xlu0 %2687
        %2689 = vrot.lane.b32.xlu0 %v2678, 1
        %v2690 = vpop.permute.xlu0 %2689
        %2691 = vrot.lane.b32.xlu0 %v2679, 1
        %v2692 = vpop.permute.xlu0 %2691
        %2693 = vrot.lane.b32.xlu0 %v2680, 1
        %v2694 = vpop.permute.xlu0 %2693
        %2695 = vrot.lane.b32.xlu0 %v2681, 1
        %v2696 = vpop.permute.xlu0 %2695
        %2697 = vrot.lane.b32.xlu0 %v2682, 1
        %v2698 = vpop.permute.xlu0 %2697
        %v2699 = vsel %vm413, %v2684, 0.0
        %v2700 = vsel %vm413, %v2686, 0.0
        %v2701 = vsel %vm413, %v2688, 0.0
        %v2702 = vsel %vm413, %v2690, 0.0
        %v2703 = vsel %vm413, %v2692, 0.0
        %v2704 = vsel %vm413, %v2694, 0.0
        %v2705 = vsel %vm413, %v2696, 0.0
        %v2706 = vsel %vm413, %v2698, 0.0
        %2707 = vrot.lane.b32.xlu0 %v2675, 127
        %v2708 = vpop.permute.xlu0 %2707
        %2709 = vrot.lane.b32.xlu0 %v2676, 127
        %v2710 = vpop.permute.xlu0 %2709
        %2711 = vrot.lane.b32.xlu0 %v2677, 127
        %v2712 = vpop.permute.xlu0 %2711
        %2713 = vrot.lane.b32.xlu0 %v2678, 127
        %v2714 = vpop.permute.xlu0 %2713
        %2715 = vrot.lane.b32.xlu0 %v2679, 127
        %v2716 = vpop.permute.xlu0 %2715
        %2717 = vrot.lane.b32.xlu0 %v2680, 127
        %v2718 = vpop.permute.xlu0 %2717
        %2719 = vrot.lane.b32.xlu0 %v2681, 127
        %v2720 = vpop.permute.xlu0 %2719
        %2721 = vrot.lane.b32.xlu0 %v2682, 127
        %v2722 = vpop.permute.xlu0 %2721
        %v2723 = vsel %vm427, %v2708, 0.0
        %v2724 = vsel %vm427, %v2710, 0.0
        %v2725 = vsel %vm427, %v2712, 0.0
        %v2726 = vsel %vm427, %v2714, 0.0
        %v2727 = vsel %vm427, %v2716, 0.0
        %v2728 = vsel %vm427, %v2718, 0.0
        %v2729 = vsel %vm427, %v2720, 0.0
        %v2730 = vsel %vm427, %v2722, 0.0
        %2732 = vset.pattern.permute.xlu0 0
        %2733 = vperm.xlu0 %2732, %v392
        %v2734 = vpop.permute.xlu0 %2733
        %2737 = vset.pattern.permute.xlu0 0
        %2738 = vperm.xlu0 %2737, %v393
        %v2739 = vpop.permute.xlu0 %2738
        %2742 = vset.pattern.permute.xlu0 0
        %2743 = vperm.xlu0 %2742, %v394
        %v2744 = vpop.permute.xlu0 %2743
        %2747 = vset.pattern.permute.xlu0 0
        %2748 = vperm.xlu0 %2747, %v395
        %v2749 = vpop.permute.xlu0 %2748
        %2752 = vset.pattern.permute.xlu0 0
        %2753 = vperm.xlu0 %2752, %v396
        %v2754 = vpop.permute.xlu0 %2753
        %2757 = vset.pattern.permute.xlu0 0
        %2758 = vperm.xlu0 %2757, %v397
        %v2759 = vpop.permute.xlu0 %2758
        %2762 = vset.pattern.permute.xlu0 0
        %2763 = vperm.xlu0 %2762, %v398
        %v2764 = vpop.permute.xlu0 %2763
        %2767 = vset.pattern.permute.xlu0 0
        %2768 = vperm.xlu0 %2767, %v399
        %v2769 = vpop.permute.xlu0 %2768
        %vm2771 = vcmask 523264
        %v2773 = vsel %vm2771, %v377, 0
        %v2776 = vsel %vm2771, %v379, 0
        %v2779 = vsel %vm2771, %v381, 0
        %v2782 = vsel %vm2771, %v383, 0
        %v2785 = vsel %vm2771, %v385, 0
        %v2788 = vsel %vm2771, %v387, 0
        %v2791 = vsel %vm2771, %v389, 0
        %v2794 = vsel %vm2771, %v391, 0
        %v2796 = vand.u32 %v2682, 4294901760
        %2797 = vmatpush.msra.mxu0 %v2796
        %v2798 = vand.u32 %v2681, 4294901760
        %2799 = vmatpush.msra.mxu0 %v2798
        %v2800 = vand.u32 %v2680, 4294901760
        %2801 = vmatpush.msra.mxu0 %v2800
        %v2802 = vand.u32 %v2679, 4294901760
        %2803 = vmatpush.msra.mxu0 %v2802
        %v2804 = vand.u32 %v2678, 4294901760
        %2805 = vmatpush.msra.mxu0 %v2804
        %v2806 = vand.u32 %v2677, 4294901760
        %2807 = vmatpush.msra.mxu0 %v2806
        %v2808 = vand.u32 %v2676, 4294901760
        %2809 = vmatpush.msra.mxu0 %v2808
        %v2810 = vand.u32 %v2675, 4294901760
        %2811 = vmatpush.msra.mxu0 %v2810
        %v2812 = vand.u32 %v2706, 4294901760
        %2813 = vmatpush.msra.mxu0 %v2812
        %v2814 = vand.u32 %v2705, 4294901760
        %2815 = vmatpush.msra.mxu0 %v2814
        %v2816 = vand.u32 %v2704, 4294901760
        %2817 = vmatpush.msra.mxu0 %v2816
        %v2818 = vand.u32 %v2703, 4294901760
        %2819 = vmatpush.msra.mxu0 %v2818
        %v2820 = vand.u32 %v2702, 4294901760
        %2821 = vmatpush.msra.mxu0 %v2820
        %v2822 = vand.u32 %v2701, 4294901760
        %2823 = vmatpush.msra.mxu0 %v2822
        %v2824 = vand.u32 %v2700, 4294901760
        %2825 = vmatpush.msra.mxu0 %v2824
        %v2826 = vand.u32 %v2699, 4294901760
        %2827 = vmatpush.msra.mxu0 %v2826
        %v2828 = vand.u32 %v376, 4294901760
        %v2829 = vsub.f32 %v376, %v2828
        %v2830 = vand.u32 %v2829, 4294901760
        %v2831 = vsub.f32 %v2829, %v2830
        %v2832 = vand.u32 %v2831, 4294901760
        %2833 = vmatmul.f32.gmra.mxu0 %v2832
        %v2834 = vpop.f32.mrf.mxu0
        %v2835 = vadd.f32 %v2734, %v2834
        %v2836 = vand.u32 %v378, 4294901760
        %v2837 = vsub.f32 %v378, %v2836
        %v2838 = vand.u32 %v2837, 4294901760
        %v2839 = vsub.f32 %v2837, %v2838
        %v2840 = vand.u32 %v2839, 4294901760
        %2841 = vmatmul.f32.gmra.mxu0 %v2840
        %v2842 = vpop.f32.mrf.mxu0
        %v2843 = vadd.f32 %v2739, %v2842
        %v2844 = vand.u32 %v380, 4294901760
        %v2845 = vsub.f32 %v380, %v2844
        %v2846 = vand.u32 %v2845, 4294901760
        %v2847 = vsub.f32 %v2845, %v2846
        %v2848 = vand.u32 %v2847, 4294901760
        %2849 = vmatmul.f32.gmra.mxu0 %v2848
        %v2850 = vpop.f32.mrf.mxu0
        %v2851 = vadd.f32 %v2744, %v2850
        %v2852 = vand.u32 %v382, 4294901760
        %v2853 = vsub.f32 %v382, %v2852
        %v2854 = vand.u32 %v2853, 4294901760
        %v2855 = vsub.f32 %v2853, %v2854
        %v2856 = vand.u32 %v2855, 4294901760
        %2857 = vmatmul.f32.gmra.mxu0 %v2856
        %v2858 = vpop.f32.mrf.mxu0
        %v2859 = vadd.f32 %v2749, %v2858
        %v2860 = vand.u32 %v384, 4294901760
        %v2861 = vsub.f32 %v384, %v2860
        %v2862 = vand.u32 %v2861, 4294901760
        %v2863 = vsub.f32 %v2861, %v2862
        %v2864 = vand.u32 %v2863, 4294901760
        %2865 = vmatmul.f32.gmra.mxu0 %v2864
        %v2866 = vpop.f32.mrf.mxu0
        %v2867 = vadd.f32 %v2754, %v2866
        %v2868 = vand.u32 %v386, 4294901760
        %v2869 = vsub.f32 %v386, %v2868
        %v2870 = vand.u32 %v2869, 4294901760
        %v2871 = vsub.f32 %v2869, %v2870
        %v2872 = vand.u32 %v2871, 4294901760
        %2873 = vmatmul.f32.gmra.mxu0 %v2872
        %v2874 = vpop.f32.mrf.mxu0
        %v2875 = vadd.f32 %v2759, %v2874
        %v2876 = vand.u32 %v388, 4294901760
        %v2877 = vsub.f32 %v388, %v2876
        %v2878 = vand.u32 %v2877, 4294901760
        %v2879 = vsub.f32 %v2877, %v2878
        %v2880 = vand.u32 %v2879, 4294901760
        %2881 = vmatmul.f32.gmra.mxu0 %v2880
        %v2882 = vpop.f32.mrf.mxu0
        %v2883 = vadd.f32 %v2764, %v2882
        %v2884 = vand.u32 %v390, 4294901760
        %v2885 = vsub.f32 %v390, %v2884
        %v2886 = vand.u32 %v2885, 4294901760
        %v2887 = vsub.f32 %v2885, %v2886
        %v2888 = vand.u32 %v2887, 4294901760
        %2889 = vmatmul.f32.gmra.mxu0 %v2888
        %v2890 = vpop.f32.mrf.mxu0
        %v2891 = vadd.f32 %v2769, %v2890
        %2892 = vdwg.mxu0
        %v2893 = vand.u32 %v2682, 4294901760
        %v2894 = vsub.f32 %v2682, %v2893
        %v2895 = vand.u32 %v2894, 4294901760
        %v2896 = vsub.f32 %v2894, %v2895
        %v2897 = vand.u32 %v2896, 4294901760
        %2898 = vmatpush.msra.mxu0 %v2897
        %v2899 = vand.u32 %v2681, 4294901760
        %v2900 = vsub.f32 %v2681, %v2899
        %v2901 = vand.u32 %v2900, 4294901760
        %v2902 = vsub.f32 %v2900, %v2901
        %v2903 = vand.u32 %v2902, 4294901760
        %2904 = vmatpush.msra.mxu0 %v2903
        %v2905 = vand.u32 %v2680, 4294901760
        %v2906 = vsub.f32 %v2680, %v2905
        %v2907 = vand.u32 %v2906, 4294901760
        %v2908 = vsub.f32 %v2906, %v2907
        %v2909 = vand.u32 %v2908, 4294901760
        %2910 = vmatpush.msra.mxu0 %v2909
        %v2911 = vand.u32 %v2679, 4294901760
        %v2912 = vsub.f32 %v2679, %v2911
        %v2913 = vand.u32 %v2912, 4294901760
        %v2914 = vsub.f32 %v2912, %v2913
        %v2915 = vand.u32 %v2914, 4294901760
        %2916 = vmatpush.msra.mxu0 %v2915
        %v2917 = vand.u32 %v2678, 4294901760
        %v2918 = vsub.f32 %v2678, %v2917
        %v2919 = vand.u32 %v2918, 4294901760
        %v2920 = vsub.f32 %v2918, %v2919
        %v2921 = vand.u32 %v2920, 4294901760
        %2922 = vmatpush.msra.mxu0 %v2921
        %v2923 = vand.u32 %v2677, 4294901760
        %v2924 = vsub.f32 %v2677, %v2923
        %v2925 = vand.u32 %v2924, 4294901760
        %v2926 = vsub.f32 %v2924, %v2925
        %v2927 = vand.u32 %v2926, 4294901760
        %2928 = vmatpush.msra.mxu0 %v2927
        %v2929 = vand.u32 %v2676, 4294901760
        %v2930 = vsub.f32 %v2676, %v2929
        %v2931 = vand.u32 %v2930, 4294901760
        %v2932 = vsub.f32 %v2930, %v2931
        %v2933 = vand.u32 %v2932, 4294901760
        %2934 = vmatpush.msra.mxu0 %v2933
        %v2935 = vand.u32 %v2675, 4294901760
        %v2936 = vsub.f32 %v2675, %v2935
        %v2937 = vand.u32 %v2936, 4294901760
        %v2938 = vsub.f32 %v2936, %v2937
        %v2939 = vand.u32 %v2938, 4294901760
        %2940 = vmatpush.msra.mxu0 %v2939
        %v2941 = vand.u32 %v2706, 4294901760
        %v2942 = vsub.f32 %v2706, %v2941
        %v2943 = vand.u32 %v2942, 4294901760
        %v2944 = vsub.f32 %v2942, %v2943
        %v2945 = vand.u32 %v2944, 4294901760
        %2946 = vmatpush.msra.mxu0 %v2945
        %v2947 = vand.u32 %v2705, 4294901760
        %v2948 = vsub.f32 %v2705, %v2947
        %v2949 = vand.u32 %v2948, 4294901760
        %v2950 = vsub.f32 %v2948, %v2949
        %v2951 = vand.u32 %v2950, 4294901760
        %2952 = vmatpush.msra.mxu0 %v2951
        %v2953 = vand.u32 %v2704, 4294901760
        %v2954 = vsub.f32 %v2704, %v2953
        %v2955 = vand.u32 %v2954, 4294901760
        %v2956 = vsub.f32 %v2954, %v2955
        %v2957 = vand.u32 %v2956, 4294901760
        %2958 = vmatpush.msra.mxu0 %v2957
        %v2959 = vand.u32 %v2703, 4294901760
        %v2960 = vsub.f32 %v2703, %v2959
        %v2961 = vand.u32 %v2960, 4294901760
        %v2962 = vsub.f32 %v2960, %v2961
        %v2963 = vand.u32 %v2962, 4294901760
        %2964 = vmatpush.msra.mxu0 %v2963
        %v2965 = vand.u32 %v2702, 4294901760
        %v2966 = vsub.f32 %v2702, %v2965
        %v2967 = vand.u32 %v2966, 4294901760
        %v2968 = vsub.f32 %v2966, %v2967
        %v2969 = vand.u32 %v2968, 4294901760
        %2970 = vmatpush.msra.mxu0 %v2969
        %v2971 = vand.u32 %v2701, 4294901760
        %v2972 = vsub.f32 %v2701, %v2971
        %v2973 = vand.u32 %v2972, 4294901760
        %v2974 = vsub.f32 %v2972, %v2973
        %v2975 = vand.u32 %v2974, 4294901760
        %2976 = vmatpush.msra.mxu0 %v2975
        %v2977 = vand.u32 %v2700, 4294901760
        %v2978 = vsub.f32 %v2700, %v2977
        %v2979 = vand.u32 %v2978, 4294901760
        %v2980 = vsub.f32 %v2978, %v2979
        %v2981 = vand.u32 %v2980, 4294901760
        %2982 = vmatpush.msra.mxu0 %v2981
        %v2983 = vand.u32 %v2699, 4294901760
        %v2984 = vsub.f32 %v2699, %v2983
        %v2985 = vand.u32 %v2984, 4294901760
        %v2986 = vsub.f32 %v2984, %v2985
        %v2987 = vand.u32 %v2986, 4294901760
        %2988 = vmatpush.msra.mxu0 %v2987
        %v2989 = vand.u32 %v376, 4294901760
        %2990 = vmatmul.f32.gmra.mxu0 %v2989
        %v2991 = vpop.f32.mrf.mxu0
        %v2992 = vadd.f32 %v2835, %v2991
        %v2993 = vand.u32 %v378, 4294901760
        %2994 = vmatmul.f32.gmra.mxu0 %v2993
        %v2995 = vpop.f32.mrf.mxu0
        %v2996 = vadd.f32 %v2843, %v2995
        %v2997 = vand.u32 %v380, 4294901760
        %2998 = vmatmul.f32.gmra.mxu0 %v2997
        %v2999 = vpop.f32.mrf.mxu0
        %v3000 = vadd.f32 %v2851, %v2999
        %v3001 = vand.u32 %v382, 4294901760
        %3002 = vmatmul.f32.gmra.mxu0 %v3001
        %v3003 = vpop.f32.mrf.mxu0
        %v3004 = vadd.f32 %v2859, %v3003
        %v3005 = vand.u32 %v384, 4294901760
        %3006 = vmatmul.f32.gmra.mxu0 %v3005
        %v3007 = vpop.f32.mrf.mxu0
        %v3008 = vadd.f32 %v2867, %v3007
        %v3009 = vand.u32 %v386, 4294901760
        %3010 = vmatmul.f32.gmra.mxu0 %v3009
        %v3011 = vpop.f32.mrf.mxu0
        %v3012 = vadd.f32 %v2875, %v3011
        %v3013 = vand.u32 %v388, 4294901760
        %3014 = vmatmul.f32.gmra.mxu0 %v3013
        %v3015 = vpop.f32.mrf.mxu0
        %v3016 = vadd.f32 %v2883, %v3015
        %v3017 = vand.u32 %v390, 4294901760
        %3018 = vmatmul.f32.gmra.mxu0 %v3017
        %v3019 = vpop.f32.mrf.mxu0
        %v3020 = vadd.f32 %v2891, %v3019
        %3021 = vdwg.mxu0
        %v3022 = vand.u32 %v2682, 4294901760
        %v3023 = vsub.f32 %v2682, %v3022
        %3024 = vmatpush.msra.mxu0 %v3023
        %v3025 = vand.u32 %v2681, 4294901760
        %v3026 = vsub.f32 %v2681, %v3025
        %3027 = vmatpush.msra.mxu0 %v3026
        %v3028 = vand.u32 %v2680, 4294901760
        %v3029 = vsub.f32 %v2680, %v3028
        %3030 = vmatpush.msra.mxu0 %v3029
        %v3031 = vand.u32 %v2679, 4294901760
        %v3032 = vsub.f32 %v2679, %v3031
        %3033 = vmatpush.msra.mxu0 %v3032
        %v3034 = vand.u32 %v2678, 4294901760
        %v3035 = vsub.f32 %v2678, %v3034
        %3036 = vmatpush.msra.mxu0 %v3035
        %v3037 = vand.u32 %v2677, 4294901760
        %v3038 = vsub.f32 %v2677, %v3037
        %3039 = vmatpush.msra.mxu0 %v3038
        %v3040 = vand.u32 %v2676, 4294901760
        %v3041 = vsub.f32 %v2676, %v3040
        %3042 = vmatpush.msra.mxu0 %v3041
        %v3043 = vand.u32 %v2675, 4294901760
        %v3044 = vsub.f32 %v2675, %v3043
        %3045 = vmatpush.msra.mxu0 %v3044
        %v3046 = vand.u32 %v2706, 4294901760
        %v3047 = vsub.f32 %v2706, %v3046
        %3048 = vmatpush.msra.mxu0 %v3047
        %v3049 = vand.u32 %v2705, 4294901760
        %v3050 = vsub.f32 %v2705, %v3049
        %3051 = vmatpush.msra.mxu0 %v3050
        %v3052 = vand.u32 %v2704, 4294901760
        %v3053 = vsub.f32 %v2704, %v3052
        %3054 = vmatpush.msra.mxu0 %v3053
        %v3055 = vand.u32 %v2703, 4294901760
        %v3056 = vsub.f32 %v2703, %v3055
        %3057 = vmatpush.msra.mxu0 %v3056
        %v3058 = vand.u32 %v2702, 4294901760
        %v3059 = vsub.f32 %v2702, %v3058
        %3060 = vmatpush.msra.mxu0 %v3059
        %v3061 = vand.u32 %v2701, 4294901760
        %v3062 = vsub.f32 %v2701, %v3061
        %3063 = vmatpush.msra.mxu0 %v3062
        %v3064 = vand.u32 %v2700, 4294901760
        %v3065 = vsub.f32 %v2700, %v3064
        %3066 = vmatpush.msra.mxu0 %v3065
        %v3067 = vand.u32 %v2699, 4294901760
        %v3068 = vsub.f32 %v2699, %v3067
        %3069 = vmatpush.msra.mxu0 %v3068
        %v3070 = vand.u32 %v376, 4294901760
        %v3071 = vsub.f32 %v376, %v3070
        %3072 = vmatmul.f32.gmra.mxu0 %v3071
        %v3073 = vpop.f32.mrf.mxu0
        %v3074 = vadd.f32 %v2992, %v3073
        %v3075 = vand.u32 %v378, 4294901760
        %v3076 = vsub.f32 %v378, %v3075
        %3077 = vmatmul.f32.gmra.mxu0 %v3076
        %v3078 = vpop.f32.mrf.mxu0
        %v3079 = vadd.f32 %v2996, %v3078
        %v3080 = vand.u32 %v380, 4294901760
        %v3081 = vsub.f32 %v380, %v3080
        %3082 = vmatmul.f32.gmra.mxu0 %v3081
        %v3083 = vpop.f32.mrf.mxu0
        %v3084 = vadd.f32 %v3000, %v3083
        %v3085 = vand.u32 %v382, 4294901760
        %v3086 = vsub.f32 %v382, %v3085
        %3087 = vmatmul.f32.gmra.mxu0 %v3086
        %v3088 = vpop.f32.mrf.mxu0
        %v3089 = vadd.f32 %v3004, %v3088
        %v3090 = vand.u32 %v384, 4294901760
        %v3091 = vsub.f32 %v384, %v3090
        %3092 = vmatmul.f32.gmra.mxu0 %v3091
        %v3093 = vpop.f32.mrf.mxu0
        %v3094 = vadd.f32 %v3008, %v3093
        %v3095 = vand.u32 %v386, 4294901760
        %v3096 = vsub.f32 %v386, %v3095
        %3097 = vmatmul.f32.gmra.mxu0 %v3096
        %v3098 = vpop.f32.mrf.mxu0
        %v3099 = vadd.f32 %v3012, %v3098
        %v3100 = vand.u32 %v388, 4294901760
        %v3101 = vsub.f32 %v388, %v3100
        %3102 = vmatmul.f32.gmra.mxu0 %v3101
        %v3103 = vpop.f32.mrf.mxu0
        %v3104 = vadd.f32 %v3016, %v3103
        %v3105 = vand.u32 %v390, 4294901760
        %v3106 = vsub.f32 %v390, %v3105
        %3107 = vmatmul.f32.gmra.mxu0 %v3106
        %v3108 = vpop.f32.mrf.mxu0
        %v3109 = vadd.f32 %v3020, %v3108
        %3110 = vdwg.mxu0
        %v3111 = vand.u32 %v2682, 4294901760
        %3112 = vmatpush.msra.mxu0 %v3111
        %v3113 = vand.u32 %v2681, 4294901760
        %3114 = vmatpush.msra.mxu0 %v3113
        %v3115 = vand.u32 %v2680, 4294901760
        %3116 = vmatpush.msra.mxu0 %v3115
        %v3117 = vand.u32 %v2679, 4294901760
        %3118 = vmatpush.msra.mxu0 %v3117
        %v3119 = vand.u32 %v2678, 4294901760
        %3120 = vmatpush.msra.mxu0 %v3119
        %v3121 = vand.u32 %v2677, 4294901760
        %3122 = vmatpush.msra.mxu0 %v3121
        %v3123 = vand.u32 %v2676, 4294901760
        %3124 = vmatpush.msra.mxu0 %v3123
        %v3125 = vand.u32 %v2675, 4294901760
        %3126 = vmatpush.msra.mxu0 %v3125
        %v3127 = vand.u32 %v2706, 4294901760
        %3128 = vmatpush.msra.mxu0 %v3127
        %v3129 = vand.u32 %v2705, 4294901760
        %3130 = vmatpush.msra.mxu0 %v3129
        %v3131 = vand.u32 %v2704, 4294901760
        %3132 = vmatpush.msra.mxu0 %v3131
        %v3133 = vand.u32 %v2703, 4294901760
        %3134 = vmatpush.msra.mxu0 %v3133
        %v3135 = vand.u32 %v2702, 4294901760
        %3136 = vmatpush.msra.mxu0 %v3135
        %v3137 = vand.u32 %v2701, 4294901760
        %3138 = vmatpush.msra.mxu0 %v3137
        %v3139 = vand.u32 %v2700, 4294901760
        %3140 = vmatpush.msra.mxu0 %v3139
        %v3141 = vand.u32 %v2699, 4294901760
        %3142 = vmatpush.msra.mxu0 %v3141
        %v3143 = vand.u32 %v376, 4294901760
        %v3144 = vsub.f32 %v376, %v3143
        %v3145 = vand.u32 %v3144, 4294901760
        %3146 = vmatmul.f32.gmra.mxu0 %v3145
        %v3147 = vpop.f32.mrf.mxu0
        %v3148 = vadd.f32 %v3074, %v3147
        %v3149 = vand.u32 %v378, 4294901760
        %v3150 = vsub.f32 %v378, %v3149
        %v3151 = vand.u32 %v3150, 4294901760
        %3152 = vmatmul.f32.gmra.mxu0 %v3151
        %v3153 = vpop.f32.mrf.mxu0
        %v3154 = vadd.f32 %v3079, %v3153
        %v3155 = vand.u32 %v380, 4294901760
        %v3156 = vsub.f32 %v380, %v3155
        %v3157 = vand.u32 %v3156, 4294901760
        %3158 = vmatmul.f32.gmra.mxu0 %v3157
        %v3159 = vpop.f32.mrf.mxu0
        %v3160 = vadd.f32 %v3084, %v3159
        %v3161 = vand.u32 %v382, 4294901760
        %v3162 = vsub.f32 %v382, %v3161
        %v3163 = vand.u32 %v3162, 4294901760
        %3164 = vmatmul.f32.gmra.mxu0 %v3163
        %v3165 = vpop.f32.mrf.mxu0
        %v3166 = vadd.f32 %v3089, %v3165
        %v3167 = vand.u32 %v384, 4294901760
        %v3168 = vsub.f32 %v384, %v3167
        %v3169 = vand.u32 %v3168, 4294901760
        %3170 = vmatmul.f32.gmra.mxu0 %v3169
        %v3171 = vpop.f32.mrf.mxu0
        %v3172 = vadd.f32 %v3094, %v3171
        %v3173 = vand.u32 %v386, 4294901760
        %v3174 = vsub.f32 %v386, %v3173
        %v3175 = vand.u32 %v3174, 4294901760
        %3176 = vmatmul.f32.gmra.mxu0 %v3175
        %v3177 = vpop.f32.mrf.mxu0
        %v3178 = vadd.f32 %v3099, %v3177
        %v3179 = vand.u32 %v388, 4294901760
        %v3180 = vsub.f32 %v388, %v3179
        %v3181 = vand.u32 %v3180, 4294901760
        %3182 = vmatmul.f32.gmra.mxu0 %v3181
        %v3183 = vpop.f32.mrf.mxu0
        %v3184 = vadd.f32 %v3104, %v3183
        %v3185 = vand.u32 %v390, 4294901760
        %v3186 = vsub.f32 %v390, %v3185
        %v3187 = vand.u32 %v3186, 4294901760
        %3188 = vmatmul.f32.gmra.mxu0 %v3187
        %v3189 = vpop.f32.mrf.mxu0
        %v3190 = vadd.f32 %v3109, %v3189
        %3191 = vdwg.mxu0
        %v3192 = vand.u32 %v2682, 4294901760
        %v3193 = vsub.f32 %v2682, %v3192
        %v3194 = vand.u32 %v3193, 4294901760
        %3195 = vmatpush.msra.mxu0 %v3194
        %v3196 = vand.u32 %v2681, 4294901760
        %v3197 = vsub.f32 %v2681, %v3196
        %v3198 = vand.u32 %v3197, 4294901760
        %3199 = vmatpush.msra.mxu0 %v3198
        %v3200 = vand.u32 %v2680, 4294901760
        %v3201 = vsub.f32 %v2680, %v3200
        %v3202 = vand.u32 %v3201, 4294901760
        %3203 = vmatpush.msra.mxu0 %v3202
        %v3204 = vand.u32 %v2679, 4294901760
        %v3205 = vsub.f32 %v2679, %v3204
        %v3206 = vand.u32 %v3205, 4294901760
        %3207 = vmatpush.msra.mxu0 %v3206
        %v3208 = vand.u32 %v2678, 4294901760
        %v3209 = vsub.f32 %v2678, %v3208
        %v3210 = vand.u32 %v3209, 4294901760
        %3211 = vmatpush.msra.mxu0 %v3210
        %v3212 = vand.u32 %v2677, 4294901760
        %v3213 = vsub.f32 %v2677, %v3212
        %v3214 = vand.u32 %v3213, 4294901760
        %3215 = vmatpush.msra.mxu0 %v3214
        %v3216 = vand.u32 %v2676, 4294901760
        %v3217 = vsub.f32 %v2676, %v3216
        %v3218 = vand.u32 %v3217, 4294901760
        %3219 = vmatpush.msra.mxu0 %v3218
        %v3220 = vand.u32 %v2675, 4294901760
        %v3221 = vsub.f32 %v2675, %v3220
        %v3222 = vand.u32 %v3221, 4294901760
        %3223 = vmatpush.msra.mxu0 %v3222
        %v3224 = vand.u32 %v2706, 4294901760
        %v3225 = vsub.f32 %v2706, %v3224
        %v3226 = vand.u32 %v3225, 4294901760
        %3227 = vmatpush.msra.mxu0 %v3226
        %v3228 = vand.u32 %v2705, 4294901760
        %v3229 = vsub.f32 %v2705, %v3228
        %v3230 = vand.u32 %v3229, 4294901760
        %3231 = vmatpush.msra.mxu0 %v3230
        %v3232 = vand.u32 %v2704, 4294901760
        %v3233 = vsub.f32 %v2704, %v3232
        %v3234 = vand.u32 %v3233, 4294901760
        %3235 = vmatpush.msra.mxu0 %v3234
        %v3236 = vand.u32 %v2703, 4294901760
        %v3237 = vsub.f32 %v2703, %v3236
        %v3238 = vand.u32 %v3237, 4294901760
        %3239 = vmatpush.msra.mxu0 %v3238
        %v3240 = vand.u32 %v2702, 4294901760
        %v3241 = vsub.f32 %v2702, %v3240
        %v3242 = vand.u32 %v3241, 4294901760
        %3243 = vmatpush.msra.mxu0 %v3242
        %v3244 = vand.u32 %v2701, 4294901760
        %v3245 = vsub.f32 %v2701, %v3244
        %v3246 = vand.u32 %v3245, 4294901760
        %3247 = vmatpush.msra.mxu0 %v3246
        %v3248 = vand.u32 %v2700, 4294901760
        %v3249 = vsub.f32 %v2700, %v3248
        %v3250 = vand.u32 %v3249, 4294901760
        %3251 = vmatpush.msra.mxu0 %v3250
        %v3252 = vand.u32 %v2699, 4294901760
        %v3253 = vsub.f32 %v2699, %v3252
        %v3254 = vand.u32 %v3253, 4294901760
        %3255 = vmatpush.msra.mxu0 %v3254
        %v3256 = vand.u32 %v376, 4294901760
        %3257 = vmatmul.f32.gmra.mxu0 %v3256
        %v3258 = vpop.f32.mrf.mxu0
        %v3259 = vadd.f32 %v3148, %v3258
        %v3260 = vand.u32 %v378, 4294901760
        %3261 = vmatmul.f32.gmra.mxu0 %v3260
        %v3262 = vpop.f32.mrf.mxu0
        %v3263 = vadd.f32 %v3154, %v3262
        %v3264 = vand.u32 %v380, 4294901760
        %3265 = vmatmul.f32.gmra.mxu0 %v3264
        %v3266 = vpop.f32.mrf.mxu0
        %v3267 = vadd.f32 %v3160, %v3266
        %v3268 = vand.u32 %v382, 4294901760
        %3269 = vmatmul.f32.gmra.mxu0 %v3268
        %v3270 = vpop.f32.mrf.mxu0
        %v3271 = vadd.f32 %v3166, %v3270
        %v3272 = vand.u32 %v384, 4294901760
        %3273 = vmatmul.f32.gmra.mxu0 %v3272
        %v3274 = vpop.f32.mrf.mxu0
        %v3275 = vadd.f32 %v3172, %v3274
        %v3276 = vand.u32 %v386, 4294901760
        %3277 = vmatmul.f32.gmra.mxu0 %v3276
        %v3278 = vpop.f32.mrf.mxu0
        %v3279 = vadd.f32 %v3178, %v3278
        %v3280 = vand.u32 %v388, 4294901760
        %3281 = vmatmul.f32.gmra.mxu0 %v3280
        %v3282 = vpop.f32.mrf.mxu0
        %v3283 = vadd.f32 %v3184, %v3282
        %v3284 = vand.u32 %v390, 4294901760
        %3285 = vmatmul.f32.gmra.mxu0 %v3284
        %v3286 = vpop.f32.mrf.mxu0
        %v3287 = vadd.f32 %v3190, %v3286
        %3288 = vdwg.mxu0
        %v3289 = vand.u32 %v2682, 4294901760
        %3290 = vmatpush.msra.mxu0 %v3289
        %v3291 = vand.u32 %v2681, 4294901760
        %3292 = vmatpush.msra.mxu0 %v3291
        %v3293 = vand.u32 %v2680, 4294901760
        %3294 = vmatpush.msra.mxu0 %v3293
        %v3295 = vand.u32 %v2679, 4294901760
        %3296 = vmatpush.msra.mxu0 %v3295
        %v3297 = vand.u32 %v2678, 4294901760
        %3298 = vmatpush.msra.mxu0 %v3297
        %v3299 = vand.u32 %v2677, 4294901760
        %3300 = vmatpush.msra.mxu0 %v3299
        %v3301 = vand.u32 %v2676, 4294901760
        %3302 = vmatpush.msra.mxu0 %v3301
        %v3303 = vand.u32 %v2675, 4294901760
        %3304 = vmatpush.msra.mxu0 %v3303
        %v3305 = vand.u32 %v2706, 4294901760
        %3306 = vmatpush.msra.mxu0 %v3305
        %v3307 = vand.u32 %v2705, 4294901760
        %3308 = vmatpush.msra.mxu0 %v3307
        %v3309 = vand.u32 %v2704, 4294901760
        %3310 = vmatpush.msra.mxu0 %v3309
        %v3311 = vand.u32 %v2703, 4294901760
        %3312 = vmatpush.msra.mxu0 %v3311
        %v3313 = vand.u32 %v2702, 4294901760
        %3314 = vmatpush.msra.mxu0 %v3313
        %v3315 = vand.u32 %v2701, 4294901760
        %3316 = vmatpush.msra.mxu0 %v3315
        %v3317 = vand.u32 %v2700, 4294901760
        %3318 = vmatpush.msra.mxu0 %v3317
        %v3319 = vand.u32 %v2699, 4294901760
        %3320 = vmatpush.msra.mxu0 %v3319
        %v3321 = vand.u32 %v376, 4294901760
        %3322 = vmatmul.f32.gmra.mxu0 %v3321
        %v3323 = vpop.f32.mrf.mxu0
        %v3324 = vadd.f32 %v3259, %v3323
        %v3325 = vand.u32 %v378, 4294901760
        %3326 = vmatmul.f32.gmra.mxu0 %v3325
        %v3327 = vpop.f32.mrf.mxu0
        %v3328 = vadd.f32 %v3263, %v3327
        %v3329 = vand.u32 %v380, 4294901760
        %3330 = vmatmul.f32.gmra.mxu0 %v3329
        %v3331 = vpop.f32.mrf.mxu0
        %v3332 = vadd.f32 %v3267, %v3331
        %v3333 = vand.u32 %v382, 4294901760
        %3334 = vmatmul.f32.gmra.mxu0 %v3333
        %v3335 = vpop.f32.mrf.mxu0
        %v3336 = vadd.f32 %v3271, %v3335
        %v3337 = vand.u32 %v384, 4294901760
        %3338 = vmatmul.f32.gmra.mxu0 %v3337
        %v3339 = vpop.f32.mrf.mxu0
        %v3340 = vadd.f32 %v3275, %v3339
        %v3341 = vand.u32 %v386, 4294901760
        %3342 = vmatmul.f32.gmra.mxu0 %v3341
        %v3343 = vpop.f32.mrf.mxu0
        %v3344 = vadd.f32 %v3279, %v3343
        %v3345 = vand.u32 %v388, 4294901760
        %3346 = vmatmul.f32.gmra.mxu0 %v3345
        %v3347 = vpop.f32.mrf.mxu0
        %v3348 = vadd.f32 %v3283, %v3347
        %v3349 = vand.u32 %v390, 4294901760
        %3350 = vmatmul.f32.gmra.mxu0 %v3349
        %v3351 = vpop.f32.mrf.mxu0
        %v3352 = vadd.f32 %v3287, %v3351
        %3353 = vdwg.mxu0
        %3354 = vmatpush.msra.mxu0 0.0
        %3355 = vmatpush.msra.mxu0 0.0
        %3356 = vmatpush.msra.mxu0 0.0
        %3357 = vmatpush.msra.mxu0 0.0
        %3358 = vmatpush.msra.mxu0 0.0
        %3359 = vmatpush.msra.mxu0 0.0
        %3360 = vmatpush.msra.mxu0 0.0
        %3361 = vmatpush.msra.mxu0 0.0
        %v3362 = vand.u32 %v2730, 4294901760
        %3363 = vmatpush.msra.mxu0 %v3362
        %v3364 = vand.u32 %v2729, 4294901760
        %3365 = vmatpush.msra.mxu0 %v3364
        %v3366 = vand.u32 %v2728, 4294901760
        %3367 = vmatpush.msra.mxu0 %v3366
        %v3368 = vand.u32 %v2727, 4294901760
        %3369 = vmatpush.msra.mxu0 %v3368
        %v3370 = vand.u32 %v2726, 4294901760
        %3371 = vmatpush.msra.mxu0 %v3370
        %v3372 = vand.u32 %v2725, 4294901760
        %3373 = vmatpush.msra.mxu0 %v3372
        %v3374 = vand.u32 %v2724, 4294901760
        %3375 = vmatpush.msra.mxu0 %v3374
        %v3376 = vand.u32 %v2723, 4294901760
        %3377 = vmatpush.msra.mxu0 %v3376
        %v3378 = vand.u32 %v2773, 4294901760
        %v3379 = vsub.f32 %v2773, %v3378
        %v3380 = vand.u32 %v3379, 4294901760
        %v3381 = vsub.f32 %v3379, %v3380
        %v3382 = vand.u32 %v3381, 4294901760
        %3383 = vmatmul.f32.gmra.mxu0 %v3382
        %v3384 = vpop.f32.mrf.mxu0
        %v3385 = vadd.f32 %v3324, %v3384
        %v3386 = vand.u32 %v2776, 4294901760
        %v3387 = vsub.f32 %v2776, %v3386
        %v3388 = vand.u32 %v3387, 4294901760
        %v3389 = vsub.f32 %v3387, %v3388
        %v3390 = vand.u32 %v3389, 4294901760
        %3391 = vmatmul.f32.gmra.mxu0 %v3390
        %v3392 = vpop.f32.mrf.mxu0
        %v3393 = vadd.f32 %v3328, %v3392
        %v3394 = vand.u32 %v2779, 4294901760
        %v3395 = vsub.f32 %v2779, %v3394
        %v3396 = vand.u32 %v3395, 4294901760
        %v3397 = vsub.f32 %v3395, %v3396
        %v3398 = vand.u32 %v3397, 4294901760
        %3399 = vmatmul.f32.gmra.mxu0 %v3398
        %v3400 = vpop.f32.mrf.mxu0
        %v3401 = vadd.f32 %v3332, %v3400
        %v3402 = vand.u32 %v2782, 4294901760
        %v3403 = vsub.f32 %v2782, %v3402
        %v3404 = vand.u32 %v3403, 4294901760
        %v3405 = vsub.f32 %v3403, %v3404
        %v3406 = vand.u32 %v3405, 4294901760
        %3407 = vmatmul.f32.gmra.mxu0 %v3406
        %v3408 = vpop.f32.mrf.mxu0
        %v3409 = vadd.f32 %v3336, %v3408
        %v3410 = vand.u32 %v2785, 4294901760
        %v3411 = vsub.f32 %v2785, %v3410
        %v3412 = vand.u32 %v3411, 4294901760
        %v3413 = vsub.f32 %v3411, %v3412
        %v3414 = vand.u32 %v3413, 4294901760
        %3415 = vmatmul.f32.gmra.mxu0 %v3414
        %v3416 = vpop.f32.mrf.mxu0
        %v3417 = vadd.f32 %v3340, %v3416
        %v3418 = vand.u32 %v2788, 4294901760
        %v3419 = vsub.f32 %v2788, %v3418
        %v3420 = vand.u32 %v3419, 4294901760
        %v3421 = vsub.f32 %v3419, %v3420
        %v3422 = vand.u32 %v3421, 4294901760
        %3423 = vmatmul.f32.gmra.mxu0 %v3422
        %v3424 = vpop.f32.mrf.mxu0
        %v3425 = vadd.f32 %v3344, %v3424
        %v3426 = vand.u32 %v2791, 4294901760
        %v3427 = vsub.f32 %v2791, %v3426
        %v3428 = vand.u32 %v3427, 4294901760
        %v3429 = vsub.f32 %v3427, %v3428
        %v3430 = vand.u32 %v3429, 4294901760
        %3431 = vmatmul.f32.gmra.mxu0 %v3430
        %v3432 = vpop.f32.mrf.mxu0
        %v3433 = vadd.f32 %v3348, %v3432
        %v3434 = vand.u32 %v2794, 4294901760
        %v3435 = vsub.f32 %v2794, %v3434
        %v3436 = vand.u32 %v3435, 4294901760
        %v3437 = vsub.f32 %v3435, %v3436
        %v3438 = vand.u32 %v3437, 4294901760
        %3439 = vmatmul.f32.gmra.mxu0 %v3438
        %v3440 = vpop.f32.mrf.mxu0
        %v3441 = vadd.f32 %v3352, %v3440
        %3442 = vdwg.mxu0
        %3443 = vmatpush.msra.mxu0 0.0
        %3444 = vmatpush.msra.mxu0 0.0
        %3445 = vmatpush.msra.mxu0 0.0
        %3446 = vmatpush.msra.mxu0 0.0
        %3447 = vmatpush.msra.mxu0 0.0
        %3448 = vmatpush.msra.mxu0 0.0
        %3449 = vmatpush.msra.mxu0 0.0
        %3450 = vmatpush.msra.mxu0 0.0
        %v3451 = vand.u32 %v2730, 4294901760
        %v3452 = vsub.f32 %v2730, %v3451
        %v3453 = vand.u32 %v3452, 4294901760
        %v3454 = vsub.f32 %v3452, %v3453
        %v3455 = vand.u32 %v3454, 4294901760
        %3456 = vmatpush.msra.mxu0 %v3455
        %v3457 = vand.u32 %v2729, 4294901760
        %v3458 = vsub.f32 %v2729, %v3457
        %v3459 = vand.u32 %v3458, 4294901760
        %v3460 = vsub.f32 %v3458, %v3459
        %v3461 = vand.u32 %v3460, 4294901760
        %3462 = vmatpush.msra.mxu0 %v3461
        %v3463 = vand.u32 %v2728, 4294901760
        %v3464 = vsub.f32 %v2728, %v3463
        %v3465 = vand.u32 %v3464, 4294901760
        %v3466 = vsub.f32 %v3464, %v3465
        %v3467 = vand.u32 %v3466, 4294901760
        %3468 = vmatpush.msra.mxu0 %v3467
        %v3469 = vand.u32 %v2727, 4294901760
        %v3470 = vsub.f32 %v2727, %v3469
        %v3471 = vand.u32 %v3470, 4294901760
        %v3472 = vsub.f32 %v3470, %v3471
        %v3473 = vand.u32 %v3472, 4294901760
        %3474 = vmatpush.msra.mxu0 %v3473
        %v3475 = vand.u32 %v2726, 4294901760
        %v3476 = vsub.f32 %v2726, %v3475
        %v3477 = vand.u32 %v3476, 4294901760
        %v3478 = vsub.f32 %v3476, %v3477
        %v3479 = vand.u32 %v3478, 4294901760
        %3480 = vmatpush.msra.mxu0 %v3479
        %v3481 = vand.u32 %v2725, 4294901760
        %v3482 = vsub.f32 %v2725, %v3481
        %v3483 = vand.u32 %v3482, 4294901760
        %v3484 = vsub.f32 %v3482, %v3483
        %v3485 = vand.u32 %v3484, 4294901760
        %3486 = vmatpush.msra.mxu0 %v3485
        %v3487 = vand.u32 %v2724, 4294901760
        %v3488 = vsub.f32 %v2724, %v3487
        %v3489 = vand.u32 %v3488, 4294901760
        %v3490 = vsub.f32 %v3488, %v3489
        %v3491 = vand.u32 %v3490, 4294901760
        %3492 = vmatpush.msra.mxu0 %v3491
        %v3493 = vand.u32 %v2723, 4294901760
        %v3494 = vsub.f32 %v2723, %v3493
        %v3495 = vand.u32 %v3494, 4294901760
        %v3496 = vsub.f32 %v3494, %v3495
        %v3497 = vand.u32 %v3496, 4294901760
        %3498 = vmatpush.msra.mxu0 %v3497
        %v3499 = vand.u32 %v2773, 4294901760
        %3500 = vmatmul.f32.gmra.mxu0 %v3499
        %v3501 = vpop.f32.mrf.mxu0
        %v3502 = vadd.f32 %v3385, %v3501
        %v3503 = vand.u32 %v2776, 4294901760
        %3504 = vmatmul.f32.gmra.mxu0 %v3503
        %v3505 = vpop.f32.mrf.mxu0
        %v3506 = vadd.f32 %v3393, %v3505
        %v3507 = vand.u32 %v2779, 4294901760
        %3508 = vmatmul.f32.gmra.mxu0 %v3507
        %v3509 = vpop.f32.mrf.mxu0
        %v3510 = vadd.f32 %v3401, %v3509
        %v3511 = vand.u32 %v2782, 4294901760
        %3512 = vmatmul.f32.gmra.mxu0 %v3511
        %v3513 = vpop.f32.mrf.mxu0
        %v3514 = vadd.f32 %v3409, %v3513
        %v3515 = vand.u32 %v2785, 4294901760
        %3516 = vmatmul.f32.gmra.mxu0 %v3515
        %v3517 = vpop.f32.mrf.mxu0
        %v3518 = vadd.f32 %v3417, %v3517
        %v3519 = vand.u32 %v2788, 4294901760
        %3520 = vmatmul.f32.gmra.mxu0 %v3519
        %v3521 = vpop.f32.mrf.mxu0
        %v3522 = vadd.f32 %v3425, %v3521
        %v3523 = vand.u32 %v2791, 4294901760
        %3524 = vmatmul.f32.gmra.mxu0 %v3523
        %v3525 = vpop.f32.mrf.mxu0
        %v3526 = vadd.f32 %v3433, %v3525
        %v3527 = vand.u32 %v2794, 4294901760
        %3528 = vmatmul.f32.gmra.mxu0 %v3527
        %v3529 = vpop.f32.mrf.mxu0
        %v3530 = vadd.f32 %v3441, %v3529
        %3531 = vdwg.mxu0
        %3532 = vmatpush.msra.mxu0 0.0
        %3533 = vmatpush.msra.mxu0 0.0
        %3534 = vmatpush.msra.mxu0 0.0
        %3535 = vmatpush.msra.mxu0 0.0
        %3536 = vmatpush.msra.mxu0 0.0
        %3537 = vmatpush.msra.mxu0 0.0
        %3538 = vmatpush.msra.mxu0 0.0
        %3539 = vmatpush.msra.mxu0 0.0
        %v3540 = vand.u32 %v2730, 4294901760
        %v3541 = vsub.f32 %v2730, %v3540
        %3542 = vmatpush.msra.mxu0 %v3541
        %v3543 = vand.u32 %v2729, 4294901760
        %v3544 = vsub.f32 %v2729, %v3543
        %3545 = vmatpush.msra.mxu0 %v3544
        %v3546 = vand.u32 %v2728, 4294901760
        %v3547 = vsub.f32 %v2728, %v3546
        %3548 = vmatpush.msra.mxu0 %v3547
        %v3549 = vand.u32 %v2727, 4294901760
        %v3550 = vsub.f32 %v2727, %v3549
        %3551 = vmatpush.msra.mxu0 %v3550
        %v3552 = vand.u32 %v2726, 4294901760
        %v3553 = vsub.f32 %v2726, %v3552
        %3554 = vmatpush.msra.mxu0 %v3553
        %v3555 = vand.u32 %v2725, 4294901760
        %v3556 = vsub.f32 %v2725, %v3555
        %3557 = vmatpush.msra.mxu0 %v3556
        %v3558 = vand.u32 %v2724, 4294901760
        %v3559 = vsub.f32 %v2724, %v3558
        %3560 = vmatpush.msra.mxu0 %v3559
        %v3561 = vand.u32 %v2723, 4294901760
        %v3562 = vsub.f32 %v2723, %v3561
        %3563 = vmatpush.msra.mxu0 %v3562
        %v3564 = vand.u32 %v2773, 4294901760
        %v3565 = vsub.f32 %v2773, %v3564
        %3566 = vmatmul.f32.gmra.mxu0 %v3565
        %v3567 = vpop.f32.mrf.mxu0
        %v3568 = vadd.f32 %v3502, %v3567
        %v3569 = vand.u32 %v2776, 4294901760
        %v3570 = vsub.f32 %v2776, %v3569
        %3571 = vmatmul.f32.gmra.mxu0 %v3570
        %v3572 = vpop.f32.mrf.mxu0
        %v3573 = vadd.f32 %v3506, %v3572
        %v3574 = vand.u32 %v2779, 4294901760
        %v3575 = vsub.f32 %v2779, %v3574
        %3576 = vmatmul.f32.gmra.mxu0 %v3575
        %v3577 = vpop.f32.mrf.mxu0
        %v3578 = vadd.f32 %v3510, %v3577
        %v3579 = vand.u32 %v2782, 4294901760
        %v3580 = vsub.f32 %v2782, %v3579
        %3581 = vmatmul.f32.gmra.mxu0 %v3580
        %v3582 = vpop.f32.mrf.mxu0
        %v3583 = vadd.f32 %v3514, %v3582
        %v3584 = vand.u32 %v2785, 4294901760
        %v3585 = vsub.f32 %v2785, %v3584
        %3586 = vmatmul.f32.gmra.mxu0 %v3585
        %v3587 = vpop.f32.mrf.mxu0
        %v3588 = vadd.f32 %v3518, %v3587
        %v3589 = vand.u32 %v2788, 4294901760
        %v3590 = vsub.f32 %v2788, %v3589
        %3591 = vmatmul.f32.gmra.mxu0 %v3590
        %v3592 = vpop.f32.mrf.mxu0
        %v3593 = vadd.f32 %v3522, %v3592
        %v3594 = vand.u32 %v2791, 4294901760
        %v3595 = vsub.f32 %v2791, %v3594
        %3596 = vmatmul.f32.gmra.mxu0 %v3595
        %v3597 = vpop.f32.mrf.mxu0
        %v3598 = vadd.f32 %v3526, %v3597
        %v3599 = vand.u32 %v2794, 4294901760
        %v3600 = vsub.f32 %v2794, %v3599
        %3601 = vmatmul.f32.gmra.mxu0 %v3600
        %v3602 = vpop.f32.mrf.mxu0
        %v3603 = vadd.f32 %v3530, %v3602
        %3604 = vdwg.mxu0
        %3605 = vmatpush.msra.mxu0 0.0
        %3606 = vmatpush.msra.mxu0 0.0
        %3607 = vmatpush.msra.mxu0 0.0
        %3608 = vmatpush.msra.mxu0 0.0
        %3609 = vmatpush.msra.mxu0 0.0
        %3610 = vmatpush.msra.mxu0 0.0
        %3611 = vmatpush.msra.mxu0 0.0
        %3612 = vmatpush.msra.mxu0 0.0
        %v3613 = vand.u32 %v2730, 4294901760
        %3614 = vmatpush.msra.mxu0 %v3613
        %v3615 = vand.u32 %v2729, 4294901760
        %3616 = vmatpush.msra.mxu0 %v3615
        %v3617 = vand.u32 %v2728, 4294901760
        %3618 = vmatpush.msra.mxu0 %v3617
        %v3619 = vand.u32 %v2727, 4294901760
        %3620 = vmatpush.msra.mxu0 %v3619
        %v3621 = vand.u32 %v2726, 4294901760
        %3622 = vmatpush.msra.mxu0 %v3621
        %v3623 = vand.u32 %v2725, 4294901760
        %3624 = vmatpush.msra.mxu0 %v3623
        %v3625 = vand.u32 %v2724, 4294901760
        %3626 = vmatpush.msra.mxu0 %v3625
        %v3627 = vand.u32 %v2723, 4294901760
        %3628 = vmatpush.msra.mxu0 %v3627
        %v3629 = vand.u32 %v2773, 4294901760
        %v3630 = vsub.f32 %v2773, %v3629
        %v3631 = vand.u32 %v3630, 4294901760
        %3632 = vmatmul.f32.gmra.mxu0 %v3631
        %v3633 = vpop.f32.mrf.mxu0
        %v3634 = vadd.f32 %v3568, %v3633
        %v3635 = vand.u32 %v2776, 4294901760
        %v3636 = vsub.f32 %v2776, %v3635
        %v3637 = vand.u32 %v3636, 4294901760
        %3638 = vmatmul.f32.gmra.mxu0 %v3637
        %v3639 = vpop.f32.mrf.mxu0
        %v3640 = vadd.f32 %v3573, %v3639
        %v3641 = vand.u32 %v2779, 4294901760
        %v3642 = vsub.f32 %v2779, %v3641
        %v3643 = vand.u32 %v3642, 4294901760
        %3644 = vmatmul.f32.gmra.mxu0 %v3643
        %v3645 = vpop.f32.mrf.mxu0
        %v3646 = vadd.f32 %v3578, %v3645
        %v3647 = vand.u32 %v2782, 4294901760
        %v3648 = vsub.f32 %v2782, %v3647
        %v3649 = vand.u32 %v3648, 4294901760
        %3650 = vmatmul.f32.gmra.mxu0 %v3649
        %v3651 = vpop.f32.mrf.mxu0
        %v3652 = vadd.f32 %v3583, %v3651
        %v3653 = vand.u32 %v2785, 4294901760
        %v3654 = vsub.f32 %v2785, %v3653
        %v3655 = vand.u32 %v3654, 4294901760
        %3656 = vmatmul.f32.gmra.mxu0 %v3655
        %v3657 = vpop.f32.mrf.mxu0
        %v3658 = vadd.f32 %v3588, %v3657
        %v3659 = vand.u32 %v2788, 4294901760
        %v3660 = vsub.f32 %v2788, %v3659
        %v3661 = vand.u32 %v3660, 4294901760
        %3662 = vmatmul.f32.gmra.mxu0 %v3661
        %v3663 = vpop.f32.mrf.mxu0
        %v3664 = vadd.f32 %v3593, %v3663
        %v3665 = vand.u32 %v2791, 4294901760
        %v3666 = vsub.f32 %v2791, %v3665
        %v3667 = vand.u32 %v3666, 4294901760
        %3668 = vmatmul.f32.gmra.mxu0 %v3667
        %v3669 = vpop.f32.mrf.mxu0
        %v3670 = vadd.f32 %v3598, %v3669
        %v3671 = vand.u32 %v2794, 4294901760
        %v3672 = vsub.f32 %v2794, %v3671
        %v3673 = vand.u32 %v3672, 4294901760
        %3674 = vmatmul.f32.gmra.mxu0 %v3673
        %v3675 = vpop.f32.mrf.mxu0
        %v3676 = vadd.f32 %v3603, %v3675
        %3677 = vdwg.mxu0
        %3678 = vmatpush.msra.mxu0 0.0
        %3679 = vmatpush.msra.mxu0 0.0
        %3680 = vmatpush.msra.mxu0 0.0
        %3681 = vmatpush.msra.mxu0 0.0
        %3682 = vmatpush.msra.mxu0 0.0
        %3683 = vmatpush.msra.mxu0 0.0
        %3684 = vmatpush.msra.mxu0 0.0
        %3685 = vmatpush.msra.mxu0 0.0
        %v3686 = vand.u32 %v2730, 4294901760
        %v3687 = vsub.f32 %v2730, %v3686
        %v3688 = vand.u32 %v3687, 4294901760
        %3689 = vmatpush.msra.mxu0 %v3688
        %v3690 = vand.u32 %v2729, 4294901760
        %v3691 = vsub.f32 %v2729, %v3690
        %v3692 = vand.u32 %v3691, 4294901760
        %3693 = vmatpush.msra.mxu0 %v3692
        %v3694 = vand.u32 %v2728, 4294901760
        %v3695 = vsub.f32 %v2728, %v3694
        %v3696 = vand.u32 %v3695, 4294901760
        %3697 = vmatpush.msra.mxu0 %v3696
        %v3698 = vand.u32 %v2727, 4294901760
        %v3699 = vsub.f32 %v2727, %v3698
        %v3700 = vand.u32 %v3699, 4294901760
        %3701 = vmatpush.msra.mxu0 %v3700
        %v3702 = vand.u32 %v2726, 4294901760
        %v3703 = vsub.f32 %v2726, %v3702
        %v3704 = vand.u32 %v3703, 4294901760
        %3705 = vmatpush.msra.mxu0 %v3704
        %v3706 = vand.u32 %v2725, 4294901760
        %v3707 = vsub.f32 %v2725, %v3706
        %v3708 = vand.u32 %v3707, 4294901760
        %3709 = vmatpush.msra.mxu0 %v3708
        %v3710 = vand.u32 %v2724, 4294901760
        %v3711 = vsub.f32 %v2724, %v3710
        %v3712 = vand.u32 %v3711, 4294901760
        %3713 = vmatpush.msra.mxu0 %v3712
        %v3714 = vand.u32 %v2723, 4294901760
        %v3715 = vsub.f32 %v2723, %v3714
        %v3716 = vand.u32 %v3715, 4294901760
        %3717 = vmatpush.msra.mxu0 %v3716
        %v3718 = vand.u32 %v2773, 4294901760
        %3719 = vmatmul.f32.gmra.mxu0 %v3718
        %v3720 = vpop.f32.mrf.mxu0
        %v3721 = vadd.f32 %v3634, %v3720
        %v3722 = vand.u32 %v2776, 4294901760
        %3723 = vmatmul.f32.gmra.mxu0 %v3722
        %v3724 = vpop.f32.mrf.mxu0
        %v3725 = vadd.f32 %v3640, %v3724
        %v3726 = vand.u32 %v2779, 4294901760
        %3727 = vmatmul.f32.gmra.mxu0 %v3726
        %v3728 = vpop.f32.mrf.mxu0
        %v3729 = vadd.f32 %v3646, %v3728
        %v3730 = vand.u32 %v2782, 4294901760
        %3731 = vmatmul.f32.gmra.mxu0 %v3730
        %v3732 = vpop.f32.mrf.mxu0
        %v3733 = vadd.f32 %v3652, %v3732
        %v3734 = vand.u32 %v2785, 4294901760
        %3735 = vmatmul.f32.gmra.mxu0 %v3734
        %v3736 = vpop.f32.mrf.mxu0
        %v3737 = vadd.f32 %v3658, %v3736
        %v3738 = vand.u32 %v2788, 4294901760
        %3739 = vmatmul.f32.gmra.mxu0 %v3738
        %v3740 = vpop.f32.mrf.mxu0
        %v3741 = vadd.f32 %v3664, %v3740
        %v3742 = vand.u32 %v2791, 4294901760
        %3743 = vmatmul.f32.gmra.mxu0 %v3742
        %v3744 = vpop.f32.mrf.mxu0
        %v3745 = vadd.f32 %v3670, %v3744
        %v3746 = vand.u32 %v2794, 4294901760
        %3747 = vmatmul.f32.gmra.mxu0 %v3746
        %v3748 = vpop.f32.mrf.mxu0
        %v3749 = vadd.f32 %v3676, %v3748
        %3750 = vdwg.mxu0
        %3751 = vmatpush.msra.mxu0 0.0
        %3752 = vmatpush.msra.mxu0 0.0
        %3753 = vmatpush.msra.mxu0 0.0
        %3754 = vmatpush.msra.mxu0 0.0
        %3755 = vmatpush.msra.mxu0 0.0
        %3756 = vmatpush.msra.mxu0 0.0
        %3757 = vmatpush.msra.mxu0 0.0
        %3758 = vmatpush.msra.mxu0 0.0
        %v3759 = vand.u32 %v2730, 4294901760
        %3760 = vmatpush.msra.mxu0 %v3759
        %v3761 = vand.u32 %v2729, 4294901760
        %3762 = vmatpush.msra.mxu0 %v3761
        %v3763 = vand.u32 %v2728, 4294901760
        %3764 = vmatpush.msra.mxu0 %v3763
        %v3765 = vand.u32 %v2727, 4294901760
        %3766 = vmatpush.msra.mxu0 %v3765
        %v3767 = vand.u32 %v2726, 4294901760
        %3768 = vmatpush.msra.mxu0 %v3767
        %v3769 = vand.u32 %v2725, 4294901760
        %3770 = vmatpush.msra.mxu0 %v3769
        %v3771 = vand.u32 %v2724, 4294901760
        %3772 = vmatpush.msra.mxu0 %v3771
        %v3773 = vand.u32 %v2723, 4294901760
        %3774 = vmatpush.msra.mxu0 %v3773
        %v3775 = vand.u32 %v2773, 4294901760
        %3776 = vmatmul.f32.gmra.mxu0 %v3775
        %v3777 = vpop.f32.mrf.mxu0
        %v3778 = vadd.f32 %v3721, %v3777
        %v3779 = vand.u32 %v2776, 4294901760
        %3780 = vmatmul.f32.gmra.mxu0 %v3779
        %v3781 = vpop.f32.mrf.mxu0
        %v3782 = vadd.f32 %v3725, %v3781
        %v3783 = vand.u32 %v2779, 4294901760
        %3784 = vmatmul.f32.gmra.mxu0 %v3783
        %v3785 = vpop.f32.mrf.mxu0
        %v3786 = vadd.f32 %v3729, %v3785
        %v3787 = vand.u32 %v2782, 4294901760
        %3788 = vmatmul.f32.gmra.mxu0 %v3787
        %v3789 = vpop.f32.mrf.mxu0
        %v3790 = vadd.f32 %v3733, %v3789
        %v3791 = vand.u32 %v2785, 4294901760
        %3792 = vmatmul.f32.gmra.mxu0 %v3791
        %v3793 = vpop.f32.mrf.mxu0
        %v3794 = vadd.f32 %v3737, %v3793
        %v3795 = vand.u32 %v2788, 4294901760
        %3796 = vmatmul.f32.gmra.mxu0 %v3795
        %v3797 = vpop.f32.mrf.mxu0
        %v3798 = vadd.f32 %v3741, %v3797
        %v3799 = vand.u32 %v2791, 4294901760
        %3800 = vmatmul.f32.gmra.mxu0 %v3799
        %v3801 = vpop.f32.mrf.mxu0
        %v3802 = vadd.f32 %v3745, %v3801
        %v3803 = vand.u32 %v2794, 4294901760
        %3804 = vmatmul.f32.gmra.mxu0 %v3803
        %v3805 = vpop.f32.mrf.mxu0
        %v3806 = vadd.f32 %v3749, %v3805
        %3807 = vdwg.mxu0
        %3808 = vst [vmem:[#allocation2] sm:$0xff] %v3778
        %3809 = vst [vmem:[#allocation2 + $0x8] sm:$0xff] %v3782
        %3810 = vst [vmem:[#allocation2 + $0x10] sm:$0xff] %v3786
        %3811 = vst [vmem:[#allocation2 + $0x18] sm:$0xff] %v3790
        %3812 = vst [vmem:[#allocation2 + $0x20] sm:$0xff] %v3794
        %3813 = vst [vmem:[#allocation2 + $0x28] sm:$0xff] %v3798
        %3814 = vst [vmem:[#allocation2 + $0x30] sm:$0xff] %v3802
        %3815 = vst [vmem:[#allocation2 + $0x38] sm:$0xff] %v3806
        %v3816 = vld [vmem:[%s1562] sm:$0xff]
        %v3817 = vld [vmem:[%s1562 + $0x8] sm:$0xff]
        %v3818 = vld [vmem:[%s1562 + $0x10] sm:$0xff]
        %v3819 = vld [vmem:[%s1562 + $0x18] sm:$0xff]
        %v3820 = vld [vmem:[%s1562 + $0x20] sm:$0xff]
        %v3821 = vld [vmem:[%s1562 + $0x28] sm:$0xff]
        %v3822 = vld [vmem:[%s1562 + $0x30] sm:$0xff]
        %v3823 = vld [vmem:[%s1562 + $0x38] sm:$0xff]
        %3824 = vrot.lane.b32.xlu0 %v3816, 1
        %v3825 = vpop.permute.xlu0 %3824
        %3826 = vrot.lane.b32.xlu0 %v3817, 1
        %v3827 = vpop.permute.xlu0 %3826
        %3828 = vrot.lane.b32.xlu0 %v3818, 1
        %v3829 = vpop.permute.xlu0 %3828
        %3830 = vrot.lane.b32.xlu0 %v3819, 1
        %v3831 = vpop.permute.xlu0 %3830
        %3832 = vrot.lane.b32.xlu0 %v3820, 1
        %v3833 = vpop.permute.xlu0 %3832
        %3834 = vrot.lane.b32.xlu0 %v3821, 1
        %v3835 = vpop.permute.xlu0 %3834
        %3836 = vrot.lane.b32.xlu0 %v3822, 1
        %v3837 = vpop.permute.xlu0 %3836
        %3838 = vrot.lane.b32.xlu0 %v3823, 1
        %v3839 = vpop.permute.xlu0 %3838
        %v3840 = vsel %vm413, %v3825, 0.0
        %v3841 = vsel %vm413, %v3827, 0.0
        %v3842 = vsel %vm413, %v3829, 0.0
        %v3843 = vsel %vm413, %v3831, 0.0
        %v3844 = vsel %vm413, %v3833, 0.0
        %v3845 = vsel %vm413, %v3835, 0.0
        %v3846 = vsel %vm413, %v3837, 0.0
        %v3847 = vsel %vm413, %v3839, 0.0
        %3848 = vrot.lane.b32.xlu0 %v3816, 127
        %v3849 = vpop.permute.xlu0 %3848
        %3850 = vrot.lane.b32.xlu0 %v3817, 127
        %v3851 = vpop.permute.xlu0 %3850
        %3852 = vrot.lane.b32.xlu0 %v3818, 127
        %v3853 = vpop.permute.xlu0 %3852
        %3854 = vrot.lane.b32.xlu0 %v3819, 127
        %v3855 = vpop.permute.xlu0 %3854
        %3856 = vrot.lane.b32.xlu0 %v3820, 127
        %v3857 = vpop.permute.xlu0 %3856
        %3858 = vrot.lane.b32.xlu0 %v3821, 127
        %v3859 = vpop.permute.xlu0 %3858
        %3860 = vrot.lane.b32.xlu0 %v3822, 127
        %v3861 = vpop.permute.xlu0 %3860
        %3862 = vrot.lane.b32.xlu0 %v3823, 127
        %v3863 = vpop.permute.xlu0 %3862
        %v3864 = vsel %vm427, %v3849, 0.0
        %v3865 = vsel %vm427, %v3851, 0.0
        %v3866 = vsel %vm427, %v3853, 0.0
        %v3867 = vsel %vm427, %v3855, 0.0
        %v3868 = vsel %vm427, %v3857, 0.0
        %v3869 = vsel %vm427, %v3859, 0.0
        %v3870 = vsel %vm427, %v3861, 0.0
        %v3871 = vsel %vm427, %v3863, 0.0
        %v3872 = vand.u32 %v3823, 4294901760
        %3873 = vmatpush.msra.mxu0 %v3872
        %v3874 = vand.u32 %v3822, 4294901760
        %3875 = vmatpush.msra.mxu0 %v3874
        %v3876 = vand.u32 %v3821, 4294901760
        %3877 = vmatpush.msra.mxu0 %v3876
        %v3878 = vand.u32 %v3820, 4294901760
        %3879 = vmatpush.msra.mxu0 %v3878
        %v3880 = vand.u32 %v3819, 4294901760
        %3881 = vmatpush.msra.mxu0 %v3880
        %v3882 = vand.u32 %v3818, 4294901760
        %3883 = vmatpush.msra.mxu0 %v3882
        %v3884 = vand.u32 %v3817, 4294901760
        %3885 = vmatpush.msra.mxu0 %v3884
        %v3886 = vand.u32 %v3816, 4294901760
        %3887 = vmatpush.msra.mxu0 %v3886
        %v3888 = vand.u32 %v3847, 4294901760
        %3889 = vmatpush.msra.mxu0 %v3888
        %v3890 = vand.u32 %v3846, 4294901760
        %3891 = vmatpush.msra.mxu0 %v3890
        %v3892 = vand.u32 %v3845, 4294901760
        %3893 = vmatpush.msra.mxu0 %v3892
        %v3894 = vand.u32 %v3844, 4294901760
        %3895 = vmatpush.msra.mxu0 %v3894
        %v3896 = vand.u32 %v3843, 4294901760
        %3897 = vmatpush.msra.mxu0 %v3896
        %v3898 = vand.u32 %v3842, 4294901760
        %3899 = vmatpush.msra.mxu0 %v3898
        %v3900 = vand.u32 %v3841, 4294901760
        %3901 = vmatpush.msra.mxu0 %v3900
        %v3902 = vand.u32 %v3840, 4294901760
        %3903 = vmatpush.msra.mxu0 %v3902
        %v3904 = vand.u32 %v376, 4294901760
        %v3905 = vsub.f32 %v376, %v3904
        %v3906 = vand.u32 %v3905, 4294901760
        %v3907 = vsub.f32 %v3905, %v3906
        %v3908 = vand.u32 %v3907, 4294901760
        %3909 = vmatmul.f32.gmra.mxu0 %v3908
        %v3910 = vpop.f32.mrf.mxu0
        %v3911 = vadd.f32 %v2734, %v3910
        %v3912 = vand.u32 %v378, 4294901760
        %v3913 = vsub.f32 %v378, %v3912
        %v3914 = vand.u32 %v3913, 4294901760
        %v3915 = vsub.f32 %v3913, %v3914
        %v3916 = vand.u32 %v3915, 4294901760
        %3917 = vmatmul.f32.gmra.mxu0 %v3916
        %v3918 = vpop.f32.mrf.mxu0
        %v3919 = vadd.f32 %v2739, %v3918
        %v3920 = vand.u32 %v380, 4294901760
        %v3921 = vsub.f32 %v380, %v3920
        %v3922 = vand.u32 %v3921, 4294901760
        %v3923 = vsub.f32 %v3921, %v3922
        %v3924 = vand.u32 %v3923, 4294901760
        %3925 = vmatmul.f32.gmra.mxu0 %v3924
        %v3926 = vpop.f32.mrf.mxu0
        %v3927 = vadd.f32 %v2744, %v3926
        %v3928 = vand.u32 %v382, 4294901760
        %v3929 = vsub.f32 %v382, %v3928
        %v3930 = vand.u32 %v3929, 4294901760
        %v3931 = vsub.f32 %v3929, %v3930
        %v3932 = vand.u32 %v3931, 4294901760
        %3933 = vmatmul.f32.gmra.mxu0 %v3932
        %v3934 = vpop.f32.mrf.mxu0
        %v3935 = vadd.f32 %v2749, %v3934
        %v3936 = vand.u32 %v384, 4294901760
        %v3937 = vsub.f32 %v384, %v3936
        %v3938 = vand.u32 %v3937, 4294901760
        %v3939 = vsub.f32 %v3937, %v3938
        %v3940 = vand.u32 %v3939, 4294901760
        %3941 = vmatmul.f32.gmra.mxu0 %v3940
        %v3942 = vpop.f32.mrf.mxu0
        %v3943 = vadd.f32 %v2754, %v3942
        %v3944 = vand.u32 %v386, 4294901760
        %v3945 = vsub.f32 %v386, %v3944
        %v3946 = vand.u32 %v3945, 4294901760
        %v3947 = vsub.f32 %v3945, %v3946
        %v3948 = vand.u32 %v3947, 4294901760
        %3949 = vmatmul.f32.gmra.mxu0 %v3948
        %v3950 = vpop.f32.mrf.mxu0
        %v3951 = vadd.f32 %v2759, %v3950
        %v3952 = vand.u32 %v388, 4294901760
        %v3953 = vsub.f32 %v388, %v3952
        %v3954 = vand.u32 %v3953, 4294901760
        %v3955 = vsub.f32 %v3953, %v3954
        %v3956 = vand.u32 %v3955, 4294901760
        %3957 = vmatmul.f32.gmra.mxu0 %v3956
        %v3958 = vpop.f32.mrf.mxu0
        %v3959 = vadd.f32 %v2764, %v3958
        %v3960 = vand.u32 %v390, 4294901760
        %v3961 = vsub.f32 %v390, %v3960
        %v3962 = vand.u32 %v3961, 4294901760
        %v3963 = vsub.f32 %v3961, %v3962
        %v3964 = vand.u32 %v3963, 4294901760
        %3965 = vmatmul.f32.gmra.mxu0 %v3964
        %v3966 = vpop.f32.mrf.mxu0
        %v3967 = vadd.f32 %v2769, %v3966
        %3968 = vdwg.mxu0
        %v3969 = vand.u32 %v3823, 4294901760
        %v3970 = vsub.f32 %v3823, %v3969
        %v3971 = vand.u32 %v3970, 4294901760
        %v3972 = vsub.f32 %v3970, %v3971
        %v3973 = vand.u32 %v3972, 4294901760
        %3974 = vmatpush.msra.mxu0 %v3973
        %v3975 = vand.u32 %v3822, 4294901760
        %v3976 = vsub.f32 %v3822, %v3975
        %v3977 = vand.u32 %v3976, 4294901760
        %v3978 = vsub.f32 %v3976, %v3977
        %v3979 = vand.u32 %v3978, 4294901760
        %3980 = vmatpush.msra.mxu0 %v3979
        %v3981 = vand.u32 %v3821, 4294901760
        %v3982 = vsub.f32 %v3821, %v3981
        %v3983 = vand.u32 %v3982, 4294901760
        %v3984 = vsub.f32 %v3982, %v3983
        %v3985 = vand.u32 %v3984, 4294901760
        %3986 = vmatpush.msra.mxu0 %v3985
        %v3987 = vand.u32 %v3820, 4294901760
        %v3988 = vsub.f32 %v3820, %v3987
        %v3989 = vand.u32 %v3988, 4294901760
        %v3990 = vsub.f32 %v3988, %v3989
        %v3991 = vand.u32 %v3990, 4294901760
        %3992 = vmatpush.msra.mxu0 %v3991
        %v3993 = vand.u32 %v3819, 4294901760
        %v3994 = vsub.f32 %v3819, %v3993
        %v3995 = vand.u32 %v3994, 4294901760
        %v3996 = vsub.f32 %v3994, %v3995
        %v3997 = vand.u32 %v3996, 4294901760
        %3998 = vmatpush.msra.mxu0 %v3997
        %v3999 = vand.u32 %v3818, 4294901760
        %v4000 = vsub.f32 %v3818, %v3999
        %v4001 = vand.u32 %v4000, 4294901760
        %v4002 = vsub.f32 %v4000, %v4001
        %v4003 = vand.u32 %v4002, 4294901760
        %4004 = vmatpush.msra.mxu0 %v4003
        %v4005 = vand.u32 %v3817, 4294901760
        %v4006 = vsub.f32 %v3817, %v4005
        %v4007 = vand.u32 %v4006, 4294901760
        %v4008 = vsub.f32 %v4006, %v4007
        %v4009 = vand.u32 %v4008, 4294901760
        %4010 = vmatpush.msra.mxu0 %v4009
        %v4011 = vand.u32 %v3816, 4294901760
        %v4012 = vsub.f32 %v3816, %v4011
        %v4013 = vand.u32 %v4012, 4294901760
        %v4014 = vsub.f32 %v4012, %v4013
        %v4015 = vand.u32 %v4014, 4294901760
        %4016 = vmatpush.msra.mxu0 %v4015
        %v4017 = vand.u32 %v3847, 4294901760
        %v4018 = vsub.f32 %v3847, %v4017
        %v4019 = vand.u32 %v4018, 4294901760
        %v4020 = vsub.f32 %v4018, %v4019
        %v4021 = vand.u32 %v4020, 4294901760
        %4022 = vmatpush.msra.mxu0 %v4021
        %v4023 = vand.u32 %v3846, 4294901760
        %v4024 = vsub.f32 %v3846, %v4023
        %v4025 = vand.u32 %v4024, 4294901760
        %v4026 = vsub.f32 %v4024, %v4025
        %v4027 = vand.u32 %v4026, 4294901760
        %4028 = vmatpush.msra.mxu0 %v4027
        %v4029 = vand.u32 %v3845, 4294901760
        %v4030 = vsub.f32 %v3845, %v4029
        %v4031 = vand.u32 %v4030, 4294901760
        %v4032 = vsub.f32 %v4030, %v4031
        %v4033 = vand.u32 %v4032, 4294901760
        %4034 = vmatpush.msra.mxu0 %v4033
        %v4035 = vand.u32 %v3844, 4294901760
        %v4036 = vsub.f32 %v3844, %v4035
        %v4037 = vand.u32 %v4036, 4294901760
        %v4038 = vsub.f32 %v4036, %v4037
        %v4039 = vand.u32 %v4038, 4294901760
        %4040 = vmatpush.msra.mxu0 %v4039
        %v4041 = vand.u32 %v3843, 4294901760
        %v4042 = vsub.f32 %v3843, %v4041
        %v4043 = vand.u32 %v4042, 4294901760
        %v4044 = vsub.f32 %v4042, %v4043
        %v4045 = vand.u32 %v4044, 4294901760
        %4046 = vmatpush.msra.mxu0 %v4045
        %v4047 = vand.u32 %v3842, 4294901760
        %v4048 = vsub.f32 %v3842, %v4047
        %v4049 = vand.u32 %v4048, 4294901760
        %v4050 = vsub.f32 %v4048, %v4049
        %v4051 = vand.u32 %v4050, 4294901760
        %4052 = vmatpush.msra.mxu0 %v4051
        %v4053 = vand.u32 %v3841, 4294901760
        %v4054 = vsub.f32 %v3841, %v4053
        %v4055 = vand.u32 %v4054, 4294901760
        %v4056 = vsub.f32 %v4054, %v4055
        %v4057 = vand.u32 %v4056, 4294901760
        %4058 = vmatpush.msra.mxu0 %v4057
        %v4059 = vand.u32 %v3840, 4294901760
        %v4060 = vsub.f32 %v3840, %v4059
        %v4061 = vand.u32 %v4060, 4294901760
        %v4062 = vsub.f32 %v4060, %v4061
        %v4063 = vand.u32 %v4062, 4294901760
        %4064 = vmatpush.msra.mxu0 %v4063
        %v4065 = vand.u32 %v376, 4294901760
        %4066 = vmatmul.f32.gmra.mxu0 %v4065
        %v4067 = vpop.f32.mrf.mxu0
        %v4068 = vadd.f32 %v3911, %v4067
        %v4069 = vand.u32 %v378, 4294901760
        %4070 = vmatmul.f32.gmra.mxu0 %v4069
        %v4071 = vpop.f32.mrf.mxu0
        %v4072 = vadd.f32 %v3919, %v4071
        %v4073 = vand.u32 %v380, 4294901760
        %4074 = vmatmul.f32.gmra.mxu0 %v4073
        %v4075 = vpop.f32.mrf.mxu0
        %v4076 = vadd.f32 %v3927, %v4075
        %v4077 = vand.u32 %v382, 4294901760
        %4078 = vmatmul.f32.gmra.mxu0 %v4077
        %v4079 = vpop.f32.mrf.mxu0
        %v4080 = vadd.f32 %v3935, %v4079
        %v4081 = vand.u32 %v384, 4294901760
        %4082 = vmatmul.f32.gmra.mxu0 %v4081
        %v4083 = vpop.f32.mrf.mxu0
        %v4084 = vadd.f32 %v3943, %v4083
        %v4085 = vand.u32 %v386, 4294901760
        %4086 = vmatmul.f32.gmra.mxu0 %v4085
        %v4087 = vpop.f32.mrf.mxu0
        %v4088 = vadd.f32 %v3951, %v4087
        %v4089 = vand.u32 %v388, 4294901760
        %4090 = vmatmul.f32.gmra.mxu0 %v4089
        %v4091 = vpop.f32.mrf.mxu0
        %v4092 = vadd.f32 %v3959, %v4091
        %v4093 = vand.u32 %v390, 4294901760
        %4094 = vmatmul.f32.gmra.mxu0 %v4093
        %v4095 = vpop.f32.mrf.mxu0
        %v4096 = vadd.f32 %v3967, %v4095
        %4097 = vdwg.mxu0
        %v4098 = vand.u32 %v3823, 4294901760
        %v4099 = vsub.f32 %v3823, %v4098
        %4100 = vmatpush.msra.mxu0 %v4099
        %v4101 = vand.u32 %v3822, 4294901760
        %v4102 = vsub.f32 %v3822, %v4101
        %4103 = vmatpush.msra.mxu0 %v4102
        %v4104 = vand.u32 %v3821, 4294901760
        %v4105 = vsub.f32 %v3821, %v4104
        %4106 = vmatpush.msra.mxu0 %v4105
        %v4107 = vand.u32 %v3820, 4294901760
        %v4108 = vsub.f32 %v3820, %v4107
        %4109 = vmatpush.msra.mxu0 %v4108
        %v4110 = vand.u32 %v3819, 4294901760
        %v4111 = vsub.f32 %v3819, %v4110
        %4112 = vmatpush.msra.mxu0 %v4111
        %v4113 = vand.u32 %v3818, 4294901760
        %v4114 = vsub.f32 %v3818, %v4113
        %4115 = vmatpush.msra.mxu0 %v4114
        %v4116 = vand.u32 %v3817, 4294901760
        %v4117 = vsub.f32 %v3817, %v4116
        %4118 = vmatpush.msra.mxu0 %v4117
        %v4119 = vand.u32 %v3816, 4294901760
        %v4120 = vsub.f32 %v3816, %v4119
        %4121 = vmatpush.msra.mxu0 %v4120
        %v4122 = vand.u32 %v3847, 4294901760
        %v4123 = vsub.f32 %v3847, %v4122
        %4124 = vmatpush.msra.mxu0 %v4123
        %v4125 = vand.u32 %v3846, 4294901760
        %v4126 = vsub.f32 %v3846, %v4125
        %4127 = vmatpush.msra.mxu0 %v4126
        %v4128 = vand.u32 %v3845, 4294901760
        %v4129 = vsub.f32 %v3845, %v4128
        %4130 = vmatpush.msra.mxu0 %v4129
        %v4131 = vand.u32 %v3844, 4294901760
        %v4132 = vsub.f32 %v3844, %v4131
        %4133 = vmatpush.msra.mxu0 %v4132
        %v4134 = vand.u32 %v3843, 4294901760
        %v4135 = vsub.f32 %v3843, %v4134
        %4136 = vmatpush.msra.mxu0 %v4135
        %v4137 = vand.u32 %v3842, 4294901760
        %v4138 = vsub.f32 %v3842, %v4137
        %4139 = vmatpush.msra.mxu0 %v4138
        %v4140 = vand.u32 %v3841, 4294901760
        %v4141 = vsub.f32 %v3841, %v4140
        %4142 = vmatpush.msra.mxu0 %v4141
        %v4143 = vand.u32 %v3840, 4294901760
        %v4144 = vsub.f32 %v3840, %v4143
        %4145 = vmatpush.msra.mxu0 %v4144
        %v4146 = vand.u32 %v376, 4294901760
        %v4147 = vsub.f32 %v376, %v4146
        %4148 = vmatmul.f32.gmra.mxu0 %v4147
        %v4149 = vpop.f32.mrf.mxu0
        %v4150 = vadd.f32 %v4068, %v4149
        %v4151 = vand.u32 %v378, 4294901760
        %v4152 = vsub.f32 %v378, %v4151
        %4153 = vmatmul.f32.gmra.mxu0 %v4152
        %v4154 = vpop.f32.mrf.mxu0
        %v4155 = vadd.f32 %v4072, %v4154
        %v4156 = vand.u32 %v380, 4294901760
        %v4157 = vsub.f32 %v380, %v4156
        %4158 = vmatmul.f32.gmra.mxu0 %v4157
        %v4159 = vpop.f32.mrf.mxu0
        %v4160 = vadd.f32 %v4076, %v4159
        %v4161 = vand.u32 %v382, 4294901760
        %v4162 = vsub.f32 %v382, %v4161
        %4163 = vmatmul.f32.gmra.mxu0 %v4162
        %v4164 = vpop.f32.mrf.mxu0
        %v4165 = vadd.f32 %v4080, %v4164
        %v4166 = vand.u32 %v384, 4294901760
        %v4167 = vsub.f32 %v384, %v4166
        %4168 = vmatmul.f32.gmra.mxu0 %v4167
        %v4169 = vpop.f32.mrf.mxu0
        %v4170 = vadd.f32 %v4084, %v4169
        %v4171 = vand.u32 %v386, 4294901760
        %v4172 = vsub.f32 %v386, %v4171
        %4173 = vmatmul.f32.gmra.mxu0 %v4172
        %v4174 = vpop.f32.mrf.mxu0
        %v4175 = vadd.f32 %v4088, %v4174
        %v4176 = vand.u32 %v388, 4294901760
        %v4177 = vsub.f32 %v388, %v4176
        %4178 = vmatmul.f32.gmra.mxu0 %v4177
        %v4179 = vpop.f32.mrf.mxu0
        %v4180 = vadd.f32 %v4092, %v4179
        %v4181 = vand.u32 %v390, 4294901760
        %v4182 = vsub.f32 %v390, %v4181
        %4183 = vmatmul.f32.gmra.mxu0 %v4182
        %v4184 = vpop.f32.mrf.mxu0
        %v4185 = vadd.f32 %v4096, %v4184
        %4186 = vdwg.mxu0
        %v4187 = vand.u32 %v3823, 4294901760
        %4188 = vmatpush.msra.mxu0 %v4187
        %v4189 = vand.u32 %v3822, 4294901760
        %4190 = vmatpush.msra.mxu0 %v4189
        %v4191 = vand.u32 %v3821, 4294901760
        %4192 = vmatpush.msra.mxu0 %v4191
        %v4193 = vand.u32 %v3820, 4294901760
        %4194 = vmatpush.msra.mxu0 %v4193
        %v4195 = vand.u32 %v3819, 4294901760
        %4196 = vmatpush.msra.mxu0 %v4195
        %v4197 = vand.u32 %v3818, 4294901760
        %4198 = vmatpush.msra.mxu0 %v4197
        %v4199 = vand.u32 %v3817, 4294901760
        %4200 = vmatpush.msra.mxu0 %v4199
        %v4201 = vand.u32 %v3816, 4294901760
        %4202 = vmatpush.msra.mxu0 %v4201
        %v4203 = vand.u32 %v3847, 4294901760
        %4204 = vmatpush.msra.mxu0 %v4203
        %v4205 = vand.u32 %v3846, 4294901760
        %4206 = vmatpush.msra.mxu0 %v4205
        %v4207 = vand.u32 %v3845, 4294901760
        %4208 = vmatpush.msra.mxu0 %v4207
        %v4209 = vand.u32 %v3844, 4294901760
        %4210 = vmatpush.msra.mxu0 %v4209
        %v4211 = vand.u32 %v3843, 4294901760
        %4212 = vmatpush.msra.mxu0 %v4211
        %v4213 = vand.u32 %v3842, 4294901760
        %4214 = vmatpush.msra.mxu0 %v4213
        %v4215 = vand.u32 %v3841, 4294901760
        %4216 = vmatpush.msra.mxu0 %v4215
        %v4217 = vand.u32 %v3840, 4294901760
        %4218 = vmatpush.msra.mxu0 %v4217
        %v4219 = vand.u32 %v376, 4294901760
        %v4220 = vsub.f32 %v376, %v4219
        %v4221 = vand.u32 %v4220, 4294901760
        %4222 = vmatmul.f32.gmra.mxu0 %v4221
        %v4223 = vpop.f32.mrf.mxu0
        %v4224 = vadd.f32 %v4150, %v4223
        %v4225 = vand.u32 %v378, 4294901760
        %v4226 = vsub.f32 %v378, %v4225
        %v4227 = vand.u32 %v4226, 4294901760
        %4228 = vmatmul.f32.gmra.mxu0 %v4227
        %v4229 = vpop.f32.mrf.mxu0
        %v4230 = vadd.f32 %v4155, %v4229
        %v4231 = vand.u32 %v380, 4294901760
        %v4232 = vsub.f32 %v380, %v4231
        %v4233 = vand.u32 %v4232, 4294901760
        %4234 = vmatmul.f32.gmra.mxu0 %v4233
        %v4235 = vpop.f32.mrf.mxu0
        %v4236 = vadd.f32 %v4160, %v4235
        %v4237 = vand.u32 %v382, 4294901760
        %v4238 = vsub.f32 %v382, %v4237
        %v4239 = vand.u32 %v4238, 4294901760
        %4240 = vmatmul.f32.gmra.mxu0 %v4239
        %v4241 = vpop.f32.mrf.mxu0
        %v4242 = vadd.f32 %v4165, %v4241
        %v4243 = vand.u32 %v384, 4294901760
        %v4244 = vsub.f32 %v384, %v4243
        %v4245 = vand.u32 %v4244, 4294901760
        %4246 = vmatmul.f32.gmra.mxu0 %v4245
        %v4247 = vpop.f32.mrf.mxu0
        %v4248 = vadd.f32 %v4170, %v4247
        %v4249 = vand.u32 %v386, 4294901760
        %v4250 = vsub.f32 %v386, %v4249
        %v4251 = vand.u32 %v4250, 4294901760
        %4252 = vmatmul.f32.gmra.mxu0 %v4251
        %v4253 = vpop.f32.mrf.mxu0
        %v4254 = vadd.f32 %v4175, %v4253
        %v4255 = vand.u32 %v388, 4294901760
        %v4256 = vsub.f32 %v388, %v4255
        %v4257 = vand.u32 %v4256, 4294901760
        %4258 = vmatmul.f32.gmra.mxu0 %v4257
        %v4259 = vpop.f32.mrf.mxu0
        %v4260 = vadd.f32 %v4180, %v4259
        %v4261 = vand.u32 %v390, 4294901760
        %v4262 = vsub.f32 %v390, %v4261
        %v4263 = vand.u32 %v4262, 4294901760
        %4264 = vmatmul.f32.gmra.mxu0 %v4263
        %v4265 = vpop.f32.mrf.mxu0
        %v4266 = vadd.f32 %v4185, %v4265
        %4267 = vdwg.mxu0
        %v4268 = vand.u32 %v3823, 4294901760
        %v4269 = vsub.f32 %v3823, %v4268
        %v4270 = vand.u32 %v4269, 4294901760
        %4271 = vmatpush.msra.mxu0 %v4270
        %v4272 = vand.u32 %v3822, 4294901760
        %v4273 = vsub.f32 %v3822, %v4272
        %v4274 = vand.u32 %v4273, 4294901760
        %4275 = vmatpush.msra.mxu0 %v4274
        %v4276 = vand.u32 %v3821, 4294901760
        %v4277 = vsub.f32 %v3821, %v4276
        %v4278 = vand.u32 %v4277, 4294901760
        %4279 = vmatpush.msra.mxu0 %v4278
        %v4280 = vand.u32 %v3820, 4294901760
        %v4281 = vsub.f32 %v3820, %v4280
        %v4282 = vand.u32 %v4281, 4294901760
        %4283 = vmatpush.msra.mxu0 %v4282
        %v4284 = vand.u32 %v3819, 4294901760
        %v4285 = vsub.f32 %v3819, %v4284
        %v4286 = vand.u32 %v4285, 4294901760
        %4287 = vmatpush.msra.mxu0 %v4286
        %v4288 = vand.u32 %v3818, 4294901760
        %v4289 = vsub.f32 %v3818, %v4288
        %v4290 = vand.u32 %v4289, 4294901760
        %4291 = vmatpush.msra.mxu0 %v4290
        %v4292 = vand.u32 %v3817, 4294901760
        %v4293 = vsub.f32 %v3817, %v4292
        %v4294 = vand.u32 %v4293, 4294901760
        %4295 = vmatpush.msra.mxu0 %v4294
        %v4296 = vand.u32 %v3816, 4294901760
        %v4297 = vsub.f32 %v3816, %v4296
        %v4298 = vand.u32 %v4297, 4294901760
        %4299 = vmatpush.msra.mxu0 %v4298
        %v4300 = vand.u32 %v3847, 4294901760
        %v4301 = vsub.f32 %v3847, %v4300
        %v4302 = vand.u32 %v4301, 4294901760
        %4303 = vmatpush.msra.mxu0 %v4302
        %v4304 = vand.u32 %v3846, 4294901760
        %v4305 = vsub.f32 %v3846, %v4304
        %v4306 = vand.u32 %v4305, 4294901760
        %4307 = vmatpush.msra.mxu0 %v4306
        %v4308 = vand.u32 %v3845, 4294901760
        %v4309 = vsub.f32 %v3845, %v4308
        %v4310 = vand.u32 %v4309, 4294901760
        %4311 = vmatpush.msra.mxu0 %v4310
        %v4312 = vand.u32 %v3844, 4294901760
        %v4313 = vsub.f32 %v3844, %v4312
        %v4314 = vand.u32 %v4313, 4294901760
        %4315 = vmatpush.msra.mxu0 %v4314
        %v4316 = vand.u32 %v3843, 4294901760
        %v4317 = vsub.f32 %v3843, %v4316
        %v4318 = vand.u32 %v4317, 4294901760
        %4319 = vmatpush.msra.mxu0 %v4318
        %v4320 = vand.u32 %v3842, 4294901760
        %v4321 = vsub.f32 %v3842, %v4320
        %v4322 = vand.u32 %v4321, 4294901760
        %4323 = vmatpush.msra.mxu0 %v4322
        %v4324 = vand.u32 %v3841, 4294901760
        %v4325 = vsub.f32 %v3841, %v4324
        %v4326 = vand.u32 %v4325, 4294901760
        %4327 = vmatpush.msra.mxu0 %v4326
        %v4328 = vand.u32 %v3840, 4294901760
        %v4329 = vsub.f32 %v3840, %v4328
        %v4330 = vand.u32 %v4329, 4294901760
        %4331 = vmatpush.msra.mxu0 %v4330
        %v4332 = vand.u32 %v376, 4294901760
        %4333 = vmatmul.f32.gmra.mxu0 %v4332
        %v4334 = vpop.f32.mrf.mxu0
        %v4335 = vadd.f32 %v4224, %v4334
        %v4336 = vand.u32 %v378, 4294901760
        %4337 = vmatmul.f32.gmra.mxu0 %v4336
        %v4338 = vpop.f32.mrf.mxu0
        %v4339 = vadd.f32 %v4230, %v4338
        %v4340 = vand.u32 %v380, 4294901760
        %4341 = vmatmul.f32.gmra.mxu0 %v4340
        %v4342 = vpop.f32.mrf.mxu0
        %v4343 = vadd.f32 %v4236, %v4342
        %v4344 = vand.u32 %v382, 4294901760
        %4345 = vmatmul.f32.gmra.mxu0 %v4344
        %v4346 = vpop.f32.mrf.mxu0
        %v4347 = vadd.f32 %v4242, %v4346
        %v4348 = vand.u32 %v384, 4294901760
        %4349 = vmatmul.f32.gmra.mxu0 %v4348
        %v4350 = vpop.f32.mrf.mxu0
        %v4351 = vadd.f32 %v4248, %v4350
        %v4352 = vand.u32 %v386, 4294901760
        %4353 = vmatmul.f32.gmra.mxu0 %v4352
        %v4354 = vpop.f32.mrf.mxu0
        %v4355 = vadd.f32 %v4254, %v4354
        %v4356 = vand.u32 %v388, 4294901760
        %4357 = vmatmul.f32.gmra.mxu0 %v4356
        %v4358 = vpop.f32.mrf.mxu0
        %v4359 = vadd.f32 %v4260, %v4358
        %v4360 = vand.u32 %v390, 4294901760
        %4361 = vmatmul.f32.gmra.mxu0 %v4360
        %v4362 = vpop.f32.mrf.mxu0
        %v4363 = vadd.f32 %v4266, %v4362
        %4364 = vdwg.mxu0
        %v4365 = vand.u32 %v3823, 4294901760
        %4366 = vmatpush.msra.mxu0 %v4365
        %v4367 = vand.u32 %v3822, 4294901760
        %4368 = vmatpush.msra.mxu0 %v4367
        %v4369 = vand.u32 %v3821, 4294901760
        %4370 = vmatpush.msra.mxu0 %v4369
        %v4371 = vand.u32 %v3820, 4294901760
        %4372 = vmatpush.msra.mxu0 %v4371
        %v4373 = vand.u32 %v3819, 4294901760
        %4374 = vmatpush.msra.mxu0 %v4373
        %v4375 = vand.u32 %v3818, 4294901760
        %4376 = vmatpush.msra.mxu0 %v4375
        %v4377 = vand.u32 %v3817, 4294901760
        %4378 = vmatpush.msra.mxu0 %v4377
        %v4379 = vand.u32 %v3816, 4294901760
        %4380 = vmatpush.msra.mxu0 %v4379
        %v4381 = vand.u32 %v3847, 4294901760
        %4382 = vmatpush.msra.mxu0 %v4381
        %v4383 = vand.u32 %v3846, 4294901760
        %4384 = vmatpush.msra.mxu0 %v4383
        %v4385 = vand.u32 %v3845, 4294901760
        %4386 = vmatpush.msra.mxu0 %v4385
        %v4387 = vand.u32 %v3844, 4294901760
        %4388 = vmatpush.msra.mxu0 %v4387
        %v4389 = vand.u32 %v3843, 4294901760
        %4390 = vmatpush.msra.mxu0 %v4389
        %v4391 = vand.u32 %v3842, 4294901760
        %4392 = vmatpush.msra.mxu0 %v4391
        %v4393 = vand.u32 %v3841, 4294901760
        %4394 = vmatpush.msra.mxu0 %v4393
        %v4395 = vand.u32 %v3840, 4294901760
        %4396 = vmatpush.msra.mxu0 %v4395
        %v4397 = vand.u32 %v376, 4294901760
        %4398 = vmatmul.f32.gmra.mxu0 %v4397
        %v4399 = vpop.f32.mrf.mxu0
        %v4400 = vadd.f32 %v4335, %v4399
        %v4401 = vand.u32 %v378, 4294901760
        %4402 = vmatmul.f32.gmra.mxu0 %v4401
        %v4403 = vpop.f32.mrf.mxu0
        %v4404 = vadd.f32 %v4339, %v4403
        %v4405 = vand.u32 %v380, 4294901760
        %4406 = vmatmul.f32.gmra.mxu0 %v4405
        %v4407 = vpop.f32.mrf.mxu0
        %v4408 = vadd.f32 %v4343, %v4407
        %v4409 = vand.u32 %v382, 4294901760
        %4410 = vmatmul.f32.gmra.mxu0 %v4409
        %v4411 = vpop.f32.mrf.mxu0
        %v4412 = vadd.f32 %v4347, %v4411
        %v4413 = vand.u32 %v384, 4294901760
        %4414 = vmatmul.f32.gmra.mxu0 %v4413
        %v4415 = vpop.f32.mrf.mxu0
        %v4416 = vadd.f32 %v4351, %v4415
        %v4417 = vand.u32 %v386, 4294901760
        %4418 = vmatmul.f32.gmra.mxu0 %v4417
        %v4419 = vpop.f32.mrf.mxu0
        %v4420 = vadd.f32 %v4355, %v4419
        %v4421 = vand.u32 %v388, 4294901760
        %4422 = vmatmul.f32.gmra.mxu0 %v4421
        %v4423 = vpop.f32.mrf.mxu0
        %v4424 = vadd.f32 %v4359, %v4423
        %v4425 = vand.u32 %v390, 4294901760
        %4426 = vmatmul.f32.gmra.mxu0 %v4425
        %v4427 = vpop.f32.mrf.mxu0
        %v4428 = vadd.f32 %v4363, %v4427
        %4429 = vdwg.mxu0
        %4430 = vmatpush.msra.mxu0 0.0
        %4431 = vmatpush.msra.mxu0 0.0
        %4432 = vmatpush.msra.mxu0 0.0
        %4433 = vmatpush.msra.mxu0 0.0
        %4434 = vmatpush.msra.mxu0 0.0
        %4435 = vmatpush.msra.mxu0 0.0
        %4436 = vmatpush.msra.mxu0 0.0
        %4437 = vmatpush.msra.mxu0 0.0
        %v4438 = vand.u32 %v3871, 4294901760
        %4439 = vmatpush.msra.mxu0 %v4438
        %v4440 = vand.u32 %v3870, 4294901760
        %4441 = vmatpush.msra.mxu0 %v4440
        %v4442 = vand.u32 %v3869, 4294901760
        %4443 = vmatpush.msra.mxu0 %v4442
        %v4444 = vand.u32 %v3868, 4294901760
        %4445 = vmatpush.msra.mxu0 %v4444
        %v4446 = vand.u32 %v3867, 4294901760
        %4447 = vmatpush.msra.mxu0 %v4446
        %v4448 = vand.u32 %v3866, 4294901760
        %4449 = vmatpush.msra.mxu0 %v4448
        %v4450 = vand.u32 %v3865, 4294901760
        %4451 = vmatpush.msra.mxu0 %v4450
        %v4452 = vand.u32 %v3864, 4294901760
        %4453 = vmatpush.msra.mxu0 %v4452
        %v4454 = vand.u32 %v2773, 4294901760
        %v4455 = vsub.f32 %v2773, %v4454
        %v4456 = vand.u32 %v4455, 4294901760
        %v4457 = vsub.f32 %v4455, %v4456
        %v4458 = vand.u32 %v4457, 4294901760
        %4459 = vmatmul.f32.gmra.mxu0 %v4458
        %v4460 = vpop.f32.mrf.mxu0
        %v4461 = vadd.f32 %v4400, %v4460
        %v4462 = vand.u32 %v2776, 4294901760
        %v4463 = vsub.f32 %v2776, %v4462
        %v4464 = vand.u32 %v4463, 4294901760
        %v4465 = vsub.f32 %v4463, %v4464
        %v4466 = vand.u32 %v4465, 4294901760
        %4467 = vmatmul.f32.gmra.mxu0 %v4466
        %v4468 = vpop.f32.mrf.mxu0
        %v4469 = vadd.f32 %v4404, %v4468
        %v4470 = vand.u32 %v2779, 4294901760
        %v4471 = vsub.f32 %v2779, %v4470
        %v4472 = vand.u32 %v4471, 4294901760
        %v4473 = vsub.f32 %v4471, %v4472
        %v4474 = vand.u32 %v4473, 4294901760
        %4475 = vmatmul.f32.gmra.mxu0 %v4474
        %v4476 = vpop.f32.mrf.mxu0
        %v4477 = vadd.f32 %v4408, %v4476
        %v4478 = vand.u32 %v2782, 4294901760
        %v4479 = vsub.f32 %v2782, %v4478
        %v4480 = vand.u32 %v4479, 4294901760
        %v4481 = vsub.f32 %v4479, %v4480
        %v4482 = vand.u32 %v4481, 4294901760
        %4483 = vmatmul.f32.gmra.mxu0 %v4482
        %v4484 = vpop.f32.mrf.mxu0
        %v4485 = vadd.f32 %v4412, %v4484
        %v4486 = vand.u32 %v2785, 4294901760
        %v4487 = vsub.f32 %v2785, %v4486
        %v4488 = vand.u32 %v4487, 4294901760
        %v4489 = vsub.f32 %v4487, %v4488
        %v4490 = vand.u32 %v4489, 4294901760
        %4491 = vmatmul.f32.gmra.mxu0 %v4490
        %v4492 = vpop.f32.mrf.mxu0
        %v4493 = vadd.f32 %v4416, %v4492
        %v4494 = vand.u32 %v2788, 4294901760
        %v4495 = vsub.f32 %v2788, %v4494
        %v4496 = vand.u32 %v4495, 4294901760
        %v4497 = vsub.f32 %v4495, %v4496
        %v4498 = vand.u32 %v4497, 4294901760
        %4499 = vmatmul.f32.gmra.mxu0 %v4498
        %v4500 = vpop.f32.mrf.mxu0
        %v4501 = vadd.f32 %v4420, %v4500
        %v4502 = vand.u32 %v2791, 4294901760
        %v4503 = vsub.f32 %v2791, %v4502
        %v4504 = vand.u32 %v4503, 4294901760
        %v4505 = vsub.f32 %v4503, %v4504
        %v4506 = vand.u32 %v4505, 4294901760
        %4507 = vmatmul.f32.gmra.mxu0 %v4506
        %v4508 = vpop.f32.mrf.mxu0
        %v4509 = vadd.f32 %v4424, %v4508
        %v4510 = vand.u32 %v2794, 4294901760
        %v4511 = vsub.f32 %v2794, %v4510
        %v4512 = vand.u32 %v4511, 4294901760
        %v4513 = vsub.f32 %v4511, %v4512
        %v4514 = vand.u32 %v4513, 4294901760
        %4515 = vmatmul.f32.gmra.mxu0 %v4514
        %v4516 = vpop.f32.mrf.mxu0
        %v4517 = vadd.f32 %v4428, %v4516
        %4518 = vdwg.mxu0
        %4519 = vmatpush.msra.mxu0 0.0
        %4520 = vmatpush.msra.mxu0 0.0
        %4521 = vmatpush.msra.mxu0 0.0
        %4522 = vmatpush.msra.mxu0 0.0
        %4523 = vmatpush.msra.mxu0 0.0
        %4524 = vmatpush.msra.mxu0 0.0
        %4525 = vmatpush.msra.mxu0 0.0
        %4526 = vmatpush.msra.mxu0 0.0
        %v4527 = vand.u32 %v3871, 4294901760
        %v4528 = vsub.f32 %v3871, %v4527
        %v4529 = vand.u32 %v4528, 4294901760
        %v4530 = vsub.f32 %v4528, %v4529
        %v4531 = vand.u32 %v4530, 4294901760
        %4532 = vmatpush.msra.mxu0 %v4531
        %v4533 = vand.u32 %v3870, 4294901760
        %v4534 = vsub.f32 %v3870, %v4533
        %v4535 = vand.u32 %v4534, 4294901760
        %v4536 = vsub.f32 %v4534, %v4535
        %v4537 = vand.u32 %v4536, 4294901760
        %4538 = vmatpush.msra.mxu0 %v4537
        %v4539 = vand.u32 %v3869, 4294901760
        %v4540 = vsub.f32 %v3869, %v4539
        %v4541 = vand.u32 %v4540, 4294901760
        %v4542 = vsub.f32 %v4540, %v4541
        %v4543 = vand.u32 %v4542, 4294901760
        %4544 = vmatpush.msra.mxu0 %v4543
        %v4545 = vand.u32 %v3868, 4294901760
        %v4546 = vsub.f32 %v3868, %v4545
        %v4547 = vand.u32 %v4546, 4294901760
        %v4548 = vsub.f32 %v4546, %v4547
        %v4549 = vand.u32 %v4548, 4294901760
        %4550 = vmatpush.msra.mxu0 %v4549
        %v4551 = vand.u32 %v3867, 4294901760
        %v4552 = vsub.f32 %v3867, %v4551
        %v4553 = vand.u32 %v4552, 4294901760
        %v4554 = vsub.f32 %v4552, %v4553
        %v4555 = vand.u32 %v4554, 4294901760
        %4556 = vmatpush.msra.mxu0 %v4555
        %v4557 = vand.u32 %v3866, 4294901760
        %v4558 = vsub.f32 %v3866, %v4557
        %v4559 = vand.u32 %v4558, 4294901760
        %v4560 = vsub.f32 %v4558, %v4559
        %v4561 = vand.u32 %v4560, 4294901760
        %4562 = vmatpush.msra.mxu0 %v4561
        %v4563 = vand.u32 %v3865, 4294901760
        %v4564 = vsub.f32 %v3865, %v4563
        %v4565 = vand.u32 %v4564, 4294901760
        %v4566 = vsub.f32 %v4564, %v4565
        %v4567 = vand.u32 %v4566, 4294901760
        %4568 = vmatpush.msra.mxu0 %v4567
        %v4569 = vand.u32 %v3864, 4294901760
        %v4570 = vsub.f32 %v3864, %v4569
        %v4571 = vand.u32 %v4570, 4294901760
        %v4572 = vsub.f32 %v4570, %v4571
        %v4573 = vand.u32 %v4572, 4294901760
        %4574 = vmatpush.msra.mxu0 %v4573
        %v4575 = vand.u32 %v2773, 4294901760
        %4576 = vmatmul.f32.gmra.mxu0 %v4575
        %v4577 = vpop.f32.mrf.mxu0
        %v4578 = vadd.f32 %v4461, %v4577
        %v4579 = vand.u32 %v2776, 4294901760
        %4580 = vmatmul.f32.gmra.mxu0 %v4579
        %v4581 = vpop.f32.mrf.mxu0
        %v4582 = vadd.f32 %v4469, %v4581
        %v4583 = vand.u32 %v2779, 4294901760
        %4584 = vmatmul.f32.gmra.mxu0 %v4583
        %v4585 = vpop.f32.mrf.mxu0
        %v4586 = vadd.f32 %v4477, %v4585
        %v4587 = vand.u32 %v2782, 4294901760
        %4588 = vmatmul.f32.gmra.mxu0 %v4587
        %v4589 = vpop.f32.mrf.mxu0
        %v4590 = vadd.f32 %v4485, %v4589
        %v4591 = vand.u32 %v2785, 4294901760
        %4592 = vmatmul.f32.gmra.mxu0 %v4591
        %v4593 = vpop.f32.mrf.mxu0
        %v4594 = vadd.f32 %v4493, %v4593
        %v4595 = vand.u32 %v2788, 4294901760
        %4596 = vmatmul.f32.gmra.mxu0 %v4595
        %v4597 = vpop.f32.mrf.mxu0
        %v4598 = vadd.f32 %v4501, %v4597
        %v4599 = vand.u32 %v2791, 4294901760
        %4600 = vmatmul.f32.gmra.mxu0 %v4599
        %v4601 = vpop.f32.mrf.mxu0
        %v4602 = vadd.f32 %v4509, %v4601
        %v4603 = vand.u32 %v2794, 4294901760
        %4604 = vmatmul.f32.gmra.mxu0 %v4603
        %v4605 = vpop.f32.mrf.mxu0
        %v4606 = vadd.f32 %v4517, %v4605
        %4607 = vdwg.mxu0
        %4608 = vmatpush.msra.mxu0 0.0
        %4609 = vmatpush.msra.mxu0 0.0
        %4610 = vmatpush.msra.mxu0 0.0
        %4611 = vmatpush.msra.mxu0 0.0
        %4612 = vmatpush.msra.mxu0 0.0
        %4613 = vmatpush.msra.mxu0 0.0
        %4614 = vmatpush.msra.mxu0 0.0
        %4615 = vmatpush.msra.mxu0 0.0
        %v4616 = vand.u32 %v3871, 4294901760
        %v4617 = vsub.f32 %v3871, %v4616
        %4618 = vmatpush.msra.mxu0 %v4617
        %v4619 = vand.u32 %v3870, 4294901760
        %v4620 = vsub.f32 %v3870, %v4619
        %4621 = vmatpush.msra.mxu0 %v4620
        %v4622 = vand.u32 %v3869, 4294901760
        %v4623 = vsub.f32 %v3869, %v4622
        %4624 = vmatpush.msra.mxu0 %v4623
        %v4625 = vand.u32 %v3868, 4294901760
        %v4626 = vsub.f32 %v3868, %v4625
        %4627 = vmatpush.msra.mxu0 %v4626
        %v4628 = vand.u32 %v3867, 4294901760
        %v4629 = vsub.f32 %v3867, %v4628
        %4630 = vmatpush.msra.mxu0 %v4629
        %v4631 = vand.u32 %v3866, 4294901760
        %v4632 = vsub.f32 %v3866, %v4631
        %4633 = vmatpush.msra.mxu0 %v4632
        %v4634 = vand.u32 %v3865, 4294901760
        %v4635 = vsub.f32 %v3865, %v4634
        %4636 = vmatpush.msra.mxu0 %v4635
        %v4637 = vand.u32 %v3864, 4294901760
        %v4638 = vsub.f32 %v3864, %v4637
        %4639 = vmatpush.msra.mxu0 %v4638
        %v4640 = vand.u32 %v2773, 4294901760
        %v4641 = vsub.f32 %v2773, %v4640
        %4642 = vmatmul.f32.gmra.mxu0 %v4641
        %v4643 = vpop.f32.mrf.mxu0
        %v4644 = vadd.f32 %v4578, %v4643
        %v4645 = vand.u32 %v2776, 4294901760
        %v4646 = vsub.f32 %v2776, %v4645
        %4647 = vmatmul.f32.gmra.mxu0 %v4646
        %v4648 = vpop.f32.mrf.mxu0
        %v4649 = vadd.f32 %v4582, %v4648
        %v4650 = vand.u32 %v2779, 4294901760
        %v4651 = vsub.f32 %v2779, %v4650
        %4652 = vmatmul.f32.gmra.mxu0 %v4651
        %v4653 = vpop.f32.mrf.mxu0
        %v4654 = vadd.f32 %v4586, %v4653
        %v4655 = vand.u32 %v2782, 4294901760
        %v4656 = vsub.f32 %v2782, %v4655
        %4657 = vmatmul.f32.gmra.mxu0 %v4656
        %v4658 = vpop.f32.mrf.mxu0
        %v4659 = vadd.f32 %v4590, %v4658
        %v4660 = vand.u32 %v2785, 4294901760
        %v4661 = vsub.f32 %v2785, %v4660
        %4662 = vmatmul.f32.gmra.mxu0 %v4661
        %v4663 = vpop.f32.mrf.mxu0
        %v4664 = vadd.f32 %v4594, %v4663
        %v4665 = vand.u32 %v2788, 4294901760
        %v4666 = vsub.f32 %v2788, %v4665
        %4667 = vmatmul.f32.gmra.mxu0 %v4666
        %v4668 = vpop.f32.mrf.mxu0
        %v4669 = vadd.f32 %v4598, %v4668
        %v4670 = vand.u32 %v2791, 4294901760
        %v4671 = vsub.f32 %v2791, %v4670
        %4672 = vmatmul.f32.gmra.mxu0 %v4671
        %v4673 = vpop.f32.mrf.mxu0
        %v4674 = vadd.f32 %v4602, %v4673
        %v4675 = vand.u32 %v2794, 4294901760
        %v4676 = vsub.f32 %v2794, %v4675
        %4677 = vmatmul.f32.gmra.mxu0 %v4676
        %v4678 = vpop.f32.mrf.mxu0
        %v4679 = vadd.f32 %v4606, %v4678
        %4680 = vdwg.mxu0
        %4681 = vmatpush.msra.mxu0 0.0
        %4682 = vmatpush.msra.mxu0 0.0
        %4683 = vmatpush.msra.mxu0 0.0
        %4684 = vmatpush.msra.mxu0 0.0
        %4685 = vmatpush.msra.mxu0 0.0
        %4686 = vmatpush.msra.mxu0 0.0
        %4687 = vmatpush.msra.mxu0 0.0
        %4688 = vmatpush.msra.mxu0 0.0
        %v4689 = vand.u32 %v3871, 4294901760
        %4690 = vmatpush.msra.mxu0 %v4689
        %v4691 = vand.u32 %v3870, 4294901760
        %4692 = vmatpush.msra.mxu0 %v4691
        %v4693 = vand.u32 %v3869, 4294901760
        %4694 = vmatpush.msra.mxu0 %v4693
        %v4695 = vand.u32 %v3868, 4294901760
        %4696 = vmatpush.msra.mxu0 %v4695
        %v4697 = vand.u32 %v3867, 4294901760
        %4698 = vmatpush.msra.mxu0 %v4697
        %v4699 = vand.u32 %v3866, 4294901760
        %4700 = vmatpush.msra.mxu0 %v4699
        %v4701 = vand.u32 %v3865, 4294901760
        %4702 = vmatpush.msra.mxu0 %v4701
        %v4703 = vand.u32 %v3864, 4294901760
        %4704 = vmatpush.msra.mxu0 %v4703
        %v4705 = vand.u32 %v2773, 4294901760
        %v4706 = vsub.f32 %v2773, %v4705
        %v4707 = vand.u32 %v4706, 4294901760
        %4708 = vmatmul.f32.gmra.mxu0 %v4707
        %v4709 = vpop.f32.mrf.mxu0
        %v4710 = vadd.f32 %v4644, %v4709
        %v4711 = vand.u32 %v2776, 4294901760
        %v4712 = vsub.f32 %v2776, %v4711
        %v4713 = vand.u32 %v4712, 4294901760
        %4714 = vmatmul.f32.gmra.mxu0 %v4713
        %v4715 = vpop.f32.mrf.mxu0
        %v4716 = vadd.f32 %v4649, %v4715
        %v4717 = vand.u32 %v2779, 4294901760
        %v4718 = vsub.f32 %v2779, %v4717
        %v4719 = vand.u32 %v4718, 4294901760
        %4720 = vmatmul.f32.gmra.mxu0 %v4719
        %v4721 = vpop.f32.mrf.mxu0
        %v4722 = vadd.f32 %v4654, %v4721
        %v4723 = vand.u32 %v2782, 4294901760
        %v4724 = vsub.f32 %v2782, %v4723
        %v4725 = vand.u32 %v4724, 4294901760
        %4726 = vmatmul.f32.gmra.mxu0 %v4725
        %v4727 = vpop.f32.mrf.mxu0
        %v4728 = vadd.f32 %v4659, %v4727
        %v4729 = vand.u32 %v2785, 4294901760
        %v4730 = vsub.f32 %v2785, %v4729
        %v4731 = vand.u32 %v4730, 4294901760
        %4732 = vmatmul.f32.gmra.mxu0 %v4731
        %v4733 = vpop.f32.mrf.mxu0
        %v4734 = vadd.f32 %v4664, %v4733
        %v4735 = vand.u32 %v2788, 4294901760
        %v4736 = vsub.f32 %v2788, %v4735
        %v4737 = vand.u32 %v4736, 4294901760
        %4738 = vmatmul.f32.gmra.mxu0 %v4737
        %v4739 = vpop.f32.mrf.mxu0
        %v4740 = vadd.f32 %v4669, %v4739
        %v4741 = vand.u32 %v2791, 4294901760
        %v4742 = vsub.f32 %v2791, %v4741
        %v4743 = vand.u32 %v4742, 4294901760
        %4744 = vmatmul.f32.gmra.mxu0 %v4743
        %v4745 = vpop.f32.mrf.mxu0
        %v4746 = vadd.f32 %v4674, %v4745
        %v4747 = vand.u32 %v2794, 4294901760
        %v4748 = vsub.f32 %v2794, %v4747
        %v4749 = vand.u32 %v4748, 4294901760
        %4750 = vmatmul.f32.gmra.mxu0 %v4749
        %v4751 = vpop.f32.mrf.mxu0
        %v4752 = vadd.f32 %v4679, %v4751
        %4753 = vdwg.mxu0
        %4754 = vmatpush.msra.mxu0 0.0
        %4755 = vmatpush.msra.mxu0 0.0
        %4756 = vmatpush.msra.mxu0 0.0
        %4757 = vmatpush.msra.mxu0 0.0
        %4758 = vmatpush.msra.mxu0 0.0
        %4759 = vmatpush.msra.mxu0 0.0
        %4760 = vmatpush.msra.mxu0 0.0
        %4761 = vmatpush.msra.mxu0 0.0
        %v4762 = vand.u32 %v3871, 4294901760
        %v4763 = vsub.f32 %v3871, %v4762
        %v4764 = vand.u32 %v4763, 4294901760
        %4765 = vmatpush.msra.mxu0 %v4764
        %v4766 = vand.u32 %v3870, 4294901760
        %v4767 = vsub.f32 %v3870, %v4766
        %v4768 = vand.u32 %v4767, 4294901760
        %4769 = vmatpush.msra.mxu0 %v4768
        %v4770 = vand.u32 %v3869, 4294901760
        %v4771 = vsub.f32 %v3869, %v4770
        %v4772 = vand.u32 %v4771, 4294901760
        %4773 = vmatpush.msra.mxu0 %v4772
        %v4774 = vand.u32 %v3868, 4294901760
        %v4775 = vsub.f32 %v3868, %v4774
        %v4776 = vand.u32 %v4775, 4294901760
        %4777 = vmatpush.msra.mxu0 %v4776
        %v4778 = vand.u32 %v3867, 4294901760
        %v4779 = vsub.f32 %v3867, %v4778
        %v4780 = vand.u32 %v4779, 4294901760
        %4781 = vmatpush.msra.mxu0 %v4780
        %v4782 = vand.u32 %v3866, 4294901760
        %v4783 = vsub.f32 %v3866, %v4782
        %v4784 = vand.u32 %v4783, 4294901760
        %4785 = vmatpush.msra.mxu0 %v4784
        %v4786 = vand.u32 %v3865, 4294901760
        %v4787 = vsub.f32 %v3865, %v4786
        %v4788 = vand.u32 %v4787, 4294901760
        %4789 = vmatpush.msra.mxu0 %v4788
        %v4790 = vand.u32 %v3864, 4294901760
        %v4791 = vsub.f32 %v3864, %v4790
        %v4792 = vand.u32 %v4791, 4294901760
        %4793 = vmatpush.msra.mxu0 %v4792
        %v4794 = vand.u32 %v2773, 4294901760
        %4795 = vmatmul.f32.gmra.mxu0 %v4794
        %v4796 = vpop.f32.mrf.mxu0
        %v4797 = vadd.f32 %v4710, %v4796
        %v4798 = vand.u32 %v2776, 4294901760
        %4799 = vmatmul.f32.gmra.mxu0 %v4798
        %v4800 = vpop.f32.mrf.mxu0
        %v4801 = vadd.f32 %v4716, %v4800
        %v4802 = vand.u32 %v2779, 4294901760
        %4803 = vmatmul.f32.gmra.mxu0 %v4802
        %v4804 = vpop.f32.mrf.mxu0
        %v4805 = vadd.f32 %v4722, %v4804
        %v4806 = vand.u32 %v2782, 4294901760
        %4807 = vmatmul.f32.gmra.mxu0 %v4806
        %v4808 = vpop.f32.mrf.mxu0
        %v4809 = vadd.f32 %v4728, %v4808
        %v4810 = vand.u32 %v2785, 4294901760
        %4811 = vmatmul.f32.gmra.mxu0 %v4810
        %v4812 = vpop.f32.mrf.mxu0
        %v4813 = vadd.f32 %v4734, %v4812
        %v4814 = vand.u32 %v2788, 4294901760
        %4815 = vmatmul.f32.gmra.mxu0 %v4814
        %v4816 = vpop.f32.mrf.mxu0
        %v4817 = vadd.f32 %v4740, %v4816
        %v4818 = vand.u32 %v2791, 4294901760
        %4819 = vmatmul.f32.gmra.mxu0 %v4818
        %v4820 = vpop.f32.mrf.mxu0
        %v4821 = vadd.f32 %v4746, %v4820
        %v4822 = vand.u32 %v2794, 4294901760
        %4823 = vmatmul.f32.gmra.mxu0 %v4822
        %v4824 = vpop.f32.mrf.mxu0
        %v4825 = vadd.f32 %v4752, %v4824
        %4826 = vdwg.mxu0
        %4827 = vmatpush.msra.mxu0 0.0
        %4828 = vmatpush.msra.mxu0 0.0
        %4829 = vmatpush.msra.mxu0 0.0
        %4830 = vmatpush.msra.mxu0 0.0
        %4831 = vmatpush.msra.mxu0 0.0
        %4832 = vmatpush.msra.mxu0 0.0
        %4833 = vmatpush.msra.mxu0 0.0
        %4834 = vmatpush.msra.mxu0 0.0
        %v4835 = vand.u32 %v3871, 4294901760
        %4836 = vmatpush.msra.mxu0 %v4835
        %v4837 = vand.u32 %v3870, 4294901760
        %4838 = vmatpush.msra.mxu0 %v4837
        %v4839 = vand.u32 %v3869, 4294901760
        %4840 = vmatpush.msra.mxu0 %v4839
        %v4841 = vand.u32 %v3868, 4294901760
        %4842 = vmatpush.msra.mxu0 %v4841
        %v4843 = vand.u32 %v3867, 4294901760
        %4844 = vmatpush.msra.mxu0 %v4843
        %v4845 = vand.u32 %v3866, 4294901760
        %4846 = vmatpush.msra.mxu0 %v4845
        %v4847 = vand.u32 %v3865, 4294901760
        %4848 = vmatpush.msra.mxu0 %v4847
        %v4849 = vand.u32 %v3864, 4294901760
        %4850 = vmatpush.msra.mxu0 %v4849
        %v4851 = vand.u32 %v2773, 4294901760
        %4852 = vmatmul.f32.gmra.mxu0 %v4851
        %v4853 = vpop.f32.mrf.mxu0
        %v4854 = vadd.f32 %v4797, %v4853
        %v4855 = vand.u32 %v2776, 4294901760
        %4856 = vmatmul.f32.gmra.mxu0 %v4855
        %v4857 = vpop.f32.mrf.mxu0
        %v4858 = vadd.f32 %v4801, %v4857
        %v4859 = vand.u32 %v2779, 4294901760
        %4860 = vmatmul.f32.gmra.mxu0 %v4859
        %v4861 = vpop.f32.mrf.mxu0
        %v4862 = vadd.f32 %v4805, %v4861
        %v4863 = vand.u32 %v2782, 4294901760
        %4864 = vmatmul.f32.gmra.mxu0 %v4863
        %v4865 = vpop.f32.mrf.mxu0
        %v4866 = vadd.f32 %v4809, %v4865
        %v4867 = vand.u32 %v2785, 4294901760
        %4868 = vmatmul.f32.gmra.mxu0 %v4867
        %v4869 = vpop.f32.mrf.mxu0
        %v4870 = vadd.f32 %v4813, %v4869
        %v4871 = vand.u32 %v2788, 4294901760
        %4872 = vmatmul.f32.gmra.mxu0 %v4871
        %v4873 = vpop.f32.mrf.mxu0
        %v4874 = vadd.f32 %v4817, %v4873
        %v4875 = vand.u32 %v2791, 4294901760
        %4876 = vmatmul.f32.gmra.mxu0 %v4875
        %v4877 = vpop.f32.mrf.mxu0
        %v4878 = vadd.f32 %v4821, %v4877
        %v4879 = vand.u32 %v2794, 4294901760
        %4880 = vmatmul.f32.gmra.mxu0 %v4879
        %v4881 = vpop.f32.mrf.mxu0
        %v4882 = vadd.f32 %v4825, %v4881
        %4883 = vdwg.mxu0
        %4884 = vst [vmem:[%s1562] sm:$0xff] %v4854
        %4885 = vst [vmem:[%s1562 + $0x8] sm:$0xff] %v4858
        %4886 = vst [vmem:[%s1562 + $0x10] sm:$0xff] %v4862
        %4887 = vst [vmem:[%s1562 + $0x18] sm:$0xff] %v4866
        %4888 = vst [vmem:[%s1562 + $0x20] sm:$0xff] %v4870
        %4889 = vst [vmem:[%s1562 + $0x28] sm:$0xff] %v4874
        %4890 = vst [vmem:[%s1562 + $0x30] sm:$0xff] %v4878
        %4891 = vst [vmem:[%s1562 + $0x38] sm:$0xff] %v4882
        %v4892 = vld [vmem:[%s2114] sm:$0xff]
        %v4893 = vld [vmem:[%s2114 + $0x8] sm:$0xff]
        %v4894 = vld [vmem:[%s2114 + $0x10] sm:$0xff]
        %v4895 = vld [vmem:[%s2114 + $0x18] sm:$0xff]
        %v4896 = vld [vmem:[%s2114 + $0x20] sm:$0xff]
        %v4897 = vld [vmem:[%s2114 + $0x28] sm:$0xff]
        %v4898 = vld [vmem:[%s2114 + $0x30] sm:$0xff]
        %v4899 = vld [vmem:[%s2114 + $0x38] sm:$0xff]
        %4900 = vrot.lane.b32.xlu0 %v4892, 1
        %v4901 = vpop.permute.xlu0 %4900
        %4902 = vrot.lane.b32.xlu0 %v4893, 1
        %v4903 = vpop.permute.xlu0 %4902
        %4904 = vrot.lane.b32.xlu0 %v4894, 1
        %v4905 = vpop.permute.xlu0 %4904
        %4906 = vrot.lane.b32.xlu0 %v4895, 1
        %v4907 = vpop.permute.xlu0 %4906
        %4908 = vrot.lane.b32.xlu0 %v4896, 1
        %v4909 = vpop.permute.xlu0 %4908
        %4910 = vrot.lane.b32.xlu0 %v4897, 1
        %v4911 = vpop.permute.xlu0 %4910
        %4912 = vrot.lane.b32.xlu0 %v4898, 1
        %v4913 = vpop.permute.xlu0 %4912
        %4914 = vrot.lane.b32.xlu0 %v4899, 1
        %v4915 = vpop.permute.xlu0 %4914
        %v4916 = vsel %vm413, %v4901, 0.0
        %v4917 = vsel %vm413, %v4903, 0.0
        %v4918 = vsel %vm413, %v4905, 0.0
        %v4919 = vsel %vm413, %v4907, 0.0
        %v4920 = vsel %vm413, %v4909, 0.0
        %v4921 = vsel %vm413, %v4911, 0.0
        %v4922 = vsel %vm413, %v4913, 0.0
        %v4923 = vsel %vm413, %v4915, 0.0
        %4924 = vrot.lane.b32.xlu0 %v4892, 127
        %v4925 = vpop.permute.xlu0 %4924
        %4926 = vrot.lane.b32.xlu0 %v4893, 127
        %v4927 = vpop.permute.xlu0 %4926
        %4928 = vrot.lane.b32.xlu0 %v4894, 127
        %v4929 = vpop.permute.xlu0 %4928
        %4930 = vrot.lane.b32.xlu0 %v4895, 127
        %v4931 = vpop.permute.xlu0 %4930
        %4932 = vrot.lane.b32.xlu0 %v4896, 127
        %v4933 = vpop.permute.xlu0 %4932
        %4934 = vrot.lane.b32.xlu0 %v4897, 127
        %v4935 = vpop.permute.xlu0 %4934
        %4936 = vrot.lane.b32.xlu0 %v4898, 127
        %v4937 = vpop.permute.xlu0 %4936
        %4938 = vrot.lane.b32.xlu0 %v4899, 127
        %v4939 = vpop.permute.xlu0 %4938
        %v4940 = vsel %vm427, %v4925, 0.0
        %v4941 = vsel %vm427, %v4927, 0.0
        %v4942 = vsel %vm427, %v4929, 0.0
        %v4943 = vsel %vm427, %v4931, 0.0
        %v4944 = vsel %vm427, %v4933, 0.0
        %v4945 = vsel %vm427, %v4935, 0.0
        %v4946 = vsel %vm427, %v4937, 0.0
        %v4947 = vsel %vm427, %v4939, 0.0
        %v4948 = vand.u32 %v4899, 4294901760
        %4949 = vmatpush.msra.mxu0 %v4948
        %v4950 = vand.u32 %v4898, 4294901760
        %4951 = vmatpush.msra.mxu0 %v4950
        %v4952 = vand.u32 %v4897, 4294901760
        %4953 = vmatpush.msra.mxu0 %v4952
        %v4954 = vand.u32 %v4896, 4294901760
        %4955 = vmatpush.msra.mxu0 %v4954
        %v4956 = vand.u32 %v4895, 4294901760
        %4957 = vmatpush.msra.mxu0 %v4956
        %v4958 = vand.u32 %v4894, 4294901760
        %4959 = vmatpush.msra.mxu0 %v4958
        %v4960 = vand.u32 %v4893, 4294901760
        %4961 = vmatpush.msra.mxu0 %v4960
        %v4962 = vand.u32 %v4892, 4294901760
        %4963 = vmatpush.msra.mxu0 %v4962
        %v4964 = vand.u32 %v4923, 4294901760
        %4965 = vmatpush.msra.mxu0 %v4964
        %v4966 = vand.u32 %v4922, 4294901760
        %4967 = vmatpush.msra.mxu0 %v4966
        %v4968 = vand.u32 %v4921, 4294901760
        %4969 = vmatpush.msra.mxu0 %v4968
        %v4970 = vand.u32 %v4920, 4294901760
        %4971 = vmatpush.msra.mxu0 %v4970
        %v4972 = vand.u32 %v4919, 4294901760
        %4973 = vmatpush.msra.mxu0 %v4972
        %v4974 = vand.u32 %v4918, 4294901760
        %4975 = vmatpush.msra.mxu0 %v4974
        %v4976 = vand.u32 %v4917, 4294901760
        %4977 = vmatpush.msra.mxu0 %v4976
        %v4978 = vand.u32 %v4916, 4294901760
        %4979 = vmatpush.msra.mxu0 %v4978
        %v4980 = vand.u32 %v376, 4294901760
        %v4981 = vsub.f32 %v376, %v4980
        %v4982 = vand.u32 %v4981, 4294901760
        %v4983 = vsub.f32 %v4981, %v4982
        %v4984 = vand.u32 %v4983, 4294901760
        %4985 = vmatmul.f32.gmra.mxu0 %v4984
        %v4986 = vpop.f32.mrf.mxu0
        %v4987 = vadd.f32 %v2734, %v4986
        %v4988 = vand.u32 %v378, 4294901760
        %v4989 = vsub.f32 %v378, %v4988
        %v4990 = vand.u32 %v4989, 4294901760
        %v4991 = vsub.f32 %v4989, %v4990
        %v4992 = vand.u32 %v4991, 4294901760
        %4993 = vmatmul.f32.gmra.mxu0 %v4992
        %v4994 = vpop.f32.mrf.mxu0
        %v4995 = vadd.f32 %v2739, %v4994
        %v4996 = vand.u32 %v380, 4294901760
        %v4997 = vsub.f32 %v380, %v4996
        %v4998 = vand.u32 %v4997, 4294901760
        %v4999 = vsub.f32 %v4997, %v4998
        %v5000 = vand.u32 %v4999, 4294901760
        %5001 = vmatmul.f32.gmra.mxu0 %v5000
        %v5002 = vpop.f32.mrf.mxu0
        %v5003 = vadd.f32 %v2744, %v5002
        %v5004 = vand.u32 %v382, 4294901760
        %v5005 = vsub.f32 %v382, %v5004
        %v5006 = vand.u32 %v5005, 4294901760
        %v5007 = vsub.f32 %v5005, %v5006
        %v5008 = vand.u32 %v5007, 4294901760
        %5009 = vmatmul.f32.gmra.mxu0 %v5008
        %v5010 = vpop.f32.mrf.mxu0
        %v5011 = vadd.f32 %v2749, %v5010
        %v5012 = vand.u32 %v384, 4294901760
        %v5013 = vsub.f32 %v384, %v5012
        %v5014 = vand.u32 %v5013, 4294901760
        %v5015 = vsub.f32 %v5013, %v5014
        %v5016 = vand.u32 %v5015, 4294901760
        %5017 = vmatmul.f32.gmra.mxu0 %v5016
        %v5018 = vpop.f32.mrf.mxu0
        %v5019 = vadd.f32 %v2754, %v5018
        %v5020 = vand.u32 %v386, 4294901760
        %v5021 = vsub.f32 %v386, %v5020
        %v5022 = vand.u32 %v5021, 4294901760
        %v5023 = vsub.f32 %v5021, %v5022
        %v5024 = vand.u32 %v5023, 4294901760
        %5025 = vmatmul.f32.gmra.mxu0 %v5024
        %v5026 = vpop.f32.mrf.mxu0
        %v5027 = vadd.f32 %v2759, %v5026
        %v5028 = vand.u32 %v388, 4294901760
        %v5029 = vsub.f32 %v388, %v5028
        %v5030 = vand.u32 %v5029, 4294901760
        %v5031 = vsub.f32 %v5029, %v5030
        %v5032 = vand.u32 %v5031, 4294901760
        %5033 = vmatmul.f32.gmra.mxu0 %v5032
        %v5034 = vpop.f32.mrf.mxu0
        %v5035 = vadd.f32 %v2764, %v5034
        %v5036 = vand.u32 %v390, 4294901760
        %v5037 = vsub.f32 %v390, %v5036
        %v5038 = vand.u32 %v5037, 4294901760
        %v5039 = vsub.f32 %v5037, %v5038
        %v5040 = vand.u32 %v5039, 4294901760
        %5041 = vmatmul.f32.gmra.mxu0 %v5040
        %v5042 = vpop.f32.mrf.mxu0
        %v5043 = vadd.f32 %v2769, %v5042
        %5044 = vdwg.mxu0
        %v5045 = vand.u32 %v4899, 4294901760
        %v5046 = vsub.f32 %v4899, %v5045
        %v5047 = vand.u32 %v5046, 4294901760
        %v5048 = vsub.f32 %v5046, %v5047
        %v5049 = vand.u32 %v5048, 4294901760
        %5050 = vmatpush.msra.mxu0 %v5049
        %v5051 = vand.u32 %v4898, 4294901760
        %v5052 = vsub.f32 %v4898, %v5051
        %v5053 = vand.u32 %v5052, 4294901760
        %v5054 = vsub.f32 %v5052, %v5053
        %v5055 = vand.u32 %v5054, 4294901760
        %5056 = vmatpush.msra.mxu0 %v5055
        %v5057 = vand.u32 %v4897, 4294901760
        %v5058 = vsub.f32 %v4897, %v5057
        %v5059 = vand.u32 %v5058, 4294901760
        %v5060 = vsub.f32 %v5058, %v5059
        %v5061 = vand.u32 %v5060, 4294901760
        %5062 = vmatpush.msra.mxu0 %v5061
        %v5063 = vand.u32 %v4896, 4294901760
        %v5064 = vsub.f32 %v4896, %v5063
        %v5065 = vand.u32 %v5064, 4294901760
        %v5066 = vsub.f32 %v5064, %v5065
        %v5067 = vand.u32 %v5066, 4294901760
        %5068 = vmatpush.msra.mxu0 %v5067
        %v5069 = vand.u32 %v4895, 4294901760
        %v5070 = vsub.f32 %v4895, %v5069
        %v5071 = vand.u32 %v5070, 4294901760
        %v5072 = vsub.f32 %v5070, %v5071
        %v5073 = vand.u32 %v5072, 4294901760
        %5074 = vmatpush.msra.mxu0 %v5073
        %v5075 = vand.u32 %v4894, 4294901760
        %v5076 = vsub.f32 %v4894, %v5075
        %v5077 = vand.u32 %v5076, 4294901760
        %v5078 = vsub.f32 %v5076, %v5077
        %v5079 = vand.u32 %v5078, 4294901760
        %5080 = vmatpush.msra.mxu0 %v5079
        %v5081 = vand.u32 %v4893, 4294901760
        %v5082 = vsub.f32 %v4893, %v5081
        %v5083 = vand.u32 %v5082, 4294901760
        %v5084 = vsub.f32 %v5082, %v5083
        %v5085 = vand.u32 %v5084, 4294901760
        %5086 = vmatpush.msra.mxu0 %v5085
        %v5087 = vand.u32 %v4892, 4294901760
        %v5088 = vsub.f32 %v4892, %v5087
        %v5089 = vand.u32 %v5088, 4294901760
        %v5090 = vsub.f32 %v5088, %v5089
        %v5091 = vand.u32 %v5090, 4294901760
        %5092 = vmatpush.msra.mxu0 %v5091
        %v5093 = vand.u32 %v4923, 4294901760
        %v5094 = vsub.f32 %v4923, %v5093
        %v5095 = vand.u32 %v5094, 4294901760
        %v5096 = vsub.f32 %v5094, %v5095
        %v5097 = vand.u32 %v5096, 4294901760
        %5098 = vmatpush.msra.mxu0 %v5097
        %v5099 = vand.u32 %v4922, 4294901760
        %v5100 = vsub.f32 %v4922, %v5099
        %v5101 = vand.u32 %v5100, 4294901760
        %v5102 = vsub.f32 %v5100, %v5101
        %v5103 = vand.u32 %v5102, 4294901760
        %5104 = vmatpush.msra.mxu0 %v5103
        %v5105 = vand.u32 %v4921, 4294901760
        %v5106 = vsub.f32 %v4921, %v5105
        %v5107 = vand.u32 %v5106, 4294901760
        %v5108 = vsub.f32 %v5106, %v5107
        %v5109 = vand.u32 %v5108, 4294901760
        %5110 = vmatpush.msra.mxu0 %v5109
        %v5111 = vand.u32 %v4920, 4294901760
        %v5112 = vsub.f32 %v4920, %v5111
        %v5113 = vand.u32 %v5112, 4294901760
        %v5114 = vsub.f32 %v5112, %v5113
        %v5115 = vand.u32 %v5114, 4294901760
        %5116 = vmatpush.msra.mxu0 %v5115
        %v5117 = vand.u32 %v4919, 4294901760
        %v5118 = vsub.f32 %v4919, %v5117
        %v5119 = vand.u32 %v5118, 4294901760
        %v5120 = vsub.f32 %v5118, %v5119
        %v5121 = vand.u32 %v5120, 4294901760
        %5122 = vmatpush.msra.mxu0 %v5121
        %v5123 = vand.u32 %v4918, 4294901760
        %v5124 = vsub.f32 %v4918, %v5123
        %v5125 = vand.u32 %v5124, 4294901760
        %v5126 = vsub.f32 %v5124, %v5125
        %v5127 = vand.u32 %v5126, 4294901760
        %5128 = vmatpush.msra.mxu0 %v5127
        %v5129 = vand.u32 %v4917, 4294901760
        %v5130 = vsub.f32 %v4917, %v5129
        %v5131 = vand.u32 %v5130, 4294901760
        %v5132 = vsub.f32 %v5130, %v5131
        %v5133 = vand.u32 %v5132, 4294901760
        %5134 = vmatpush.msra.mxu0 %v5133
        %v5135 = vand.u32 %v4916, 4294901760
        %v5136 = vsub.f32 %v4916, %v5135
        %v5137 = vand.u32 %v5136, 4294901760
        %v5138 = vsub.f32 %v5136, %v5137
        %v5139 = vand.u32 %v5138, 4294901760
        %5140 = vmatpush.msra.mxu0 %v5139
        %v5141 = vand.u32 %v376, 4294901760
        %5142 = vmatmul.f32.gmra.mxu0 %v5141
        %v5143 = vpop.f32.mrf.mxu0
        %v5144 = vadd.f32 %v4987, %v5143
        %v5145 = vand.u32 %v378, 4294901760
        %5146 = vmatmul.f32.gmra.mxu0 %v5145
        %v5147 = vpop.f32.mrf.mxu0
        %v5148 = vadd.f32 %v4995, %v5147
        %v5149 = vand.u32 %v380, 4294901760
        %5150 = vmatmul.f32.gmra.mxu0 %v5149
        %v5151 = vpop.f32.mrf.mxu0
        %v5152 = vadd.f32 %v5003, %v5151
        %v5153 = vand.u32 %v382, 4294901760
        %5154 = vmatmul.f32.gmra.mxu0 %v5153
        %v5155 = vpop.f32.mrf.mxu0
        %v5156 = vadd.f32 %v5011, %v5155
        %v5157 = vand.u32 %v384, 4294901760
        %5158 = vmatmul.f32.gmra.mxu0 %v5157
        %v5159 = vpop.f32.mrf.mxu0
        %v5160 = vadd.f32 %v5019, %v5159
        %v5161 = vand.u32 %v386, 4294901760
        %5162 = vmatmul.f32.gmra.mxu0 %v5161
        %v5163 = vpop.f32.mrf.mxu0
        %v5164 = vadd.f32 %v5027, %v5163
        %v5165 = vand.u32 %v388, 4294901760
        %5166 = vmatmul.f32.gmra.mxu0 %v5165
        %v5167 = vpop.f32.mrf.mxu0
        %v5168 = vadd.f32 %v5035, %v5167
        %v5169 = vand.u32 %v390, 4294901760
        %5170 = vmatmul.f32.gmra.mxu0 %v5169
        %v5171 = vpop.f32.mrf.mxu0
        %v5172 = vadd.f32 %v5043, %v5171
        %5173 = vdwg.mxu0
        %v5174 = vand.u32 %v4899, 4294901760
        %v5175 = vsub.f32 %v4899, %v5174
        %5176 = vmatpush.msra.mxu0 %v5175
        %v5177 = vand.u32 %v4898, 4294901760
        %v5178 = vsub.f32 %v4898, %v5177
        %5179 = vmatpush.msra.mxu0 %v5178
        %v5180 = vand.u32 %v4897, 4294901760
        %v5181 = vsub.f32 %v4897, %v5180
        %5182 = vmatpush.msra.mxu0 %v5181
        %v5183 = vand.u32 %v4896, 4294901760
        %v5184 = vsub.f32 %v4896, %v5183
        %5185 = vmatpush.msra.mxu0 %v5184
        %v5186 = vand.u32 %v4895, 4294901760
        %v5187 = vsub.f32 %v4895, %v5186
        %5188 = vmatpush.msra.mxu0 %v5187
        %v5189 = vand.u32 %v4894, 4294901760
        %v5190 = vsub.f32 %v4894, %v5189
        %5191 = vmatpush.msra.mxu0 %v5190
        %v5192 = vand.u32 %v4893, 4294901760
        %v5193 = vsub.f32 %v4893, %v5192
        %5194 = vmatpush.msra.mxu0 %v5193
        %v5195 = vand.u32 %v4892, 4294901760
        %v5196 = vsub.f32 %v4892, %v5195
        %5197 = vmatpush.msra.mxu0 %v5196
        %v5198 = vand.u32 %v4923, 4294901760
        %v5199 = vsub.f32 %v4923, %v5198
        %5200 = vmatpush.msra.mxu0 %v5199
        %v5201 = vand.u32 %v4922, 4294901760
        %v5202 = vsub.f32 %v4922, %v5201
        %5203 = vmatpush.msra.mxu0 %v5202
        %v5204 = vand.u32 %v4921, 4294901760
        %v5205 = vsub.f32 %v4921, %v5204
        %5206 = vmatpush.msra.mxu0 %v5205
        %v5207 = vand.u32 %v4920, 4294901760
        %v5208 = vsub.f32 %v4920, %v5207
        %5209 = vmatpush.msra.mxu0 %v5208
        %v5210 = vand.u32 %v4919, 4294901760
        %v5211 = vsub.f32 %v4919, %v5210
        %5212 = vmatpush.msra.mxu0 %v5211
        %v5213 = vand.u32 %v4918, 4294901760
        %v5214 = vsub.f32 %v4918, %v5213
        %5215 = vmatpush.msra.mxu0 %v5214
        %v5216 = vand.u32 %v4917, 4294901760
        %v5217 = vsub.f32 %v4917, %v5216
        %5218 = vmatpush.msra.mxu0 %v5217
        %v5219 = vand.u32 %v4916, 4294901760
        %v5220 = vsub.f32 %v4916, %v5219
        %5221 = vmatpush.msra.mxu0 %v5220
        %v5222 = vand.u32 %v376, 4294901760
        %v5223 = vsub.f32 %v376, %v5222
        %5224 = vmatmul.f32.gmra.mxu0 %v5223
        %v5225 = vpop.f32.mrf.mxu0
        %v5226 = vadd.f32 %v5144, %v5225
        %v5227 = vand.u32 %v378, 4294901760
        %v5228 = vsub.f32 %v378, %v5227
        %5229 = vmatmul.f32.gmra.mxu0 %v5228
        %v5230 = vpop.f32.mrf.mxu0
        %v5231 = vadd.f32 %v5148, %v5230
        %v5232 = vand.u32 %v380, 4294901760
        %v5233 = vsub.f32 %v380, %v5232
        %5234 = vmatmul.f32.gmra.mxu0 %v5233
        %v5235 = vpop.f32.mrf.mxu0
        %v5236 = vadd.f32 %v5152, %v5235
        %v5237 = vand.u32 %v382, 4294901760
        %v5238 = vsub.f32 %v382, %v5237
        %5239 = vmatmul.f32.gmra.mxu0 %v5238
        %v5240 = vpop.f32.mrf.mxu0
        %v5241 = vadd.f32 %v5156, %v5240
        %v5242 = vand.u32 %v384, 4294901760
        %v5243 = vsub.f32 %v384, %v5242
        %5244 = vmatmul.f32.gmra.mxu0 %v5243
        %v5245 = vpop.f32.mrf.mxu0
        %v5246 = vadd.f32 %v5160, %v5245
        %v5247 = vand.u32 %v386, 4294901760
        %v5248 = vsub.f32 %v386, %v5247
        %5249 = vmatmul.f32.gmra.mxu0 %v5248
        %v5250 = vpop.f32.mrf.mxu0
        %v5251 = vadd.f32 %v5164, %v5250
        %v5252 = vand.u32 %v388, 4294901760
        %v5253 = vsub.f32 %v388, %v5252
        %5254 = vmatmul.f32.gmra.mxu0 %v5253
        %v5255 = vpop.f32.mrf.mxu0
        %v5256 = vadd.f32 %v5168, %v5255
        %v5257 = vand.u32 %v390, 4294901760
        %v5258 = vsub.f32 %v390, %v5257
        %5259 = vmatmul.f32.gmra.mxu0 %v5258
        %v5260 = vpop.f32.mrf.mxu0
        %v5261 = vadd.f32 %v5172, %v5260
        %5262 = vdwg.mxu0
        %v5263 = vand.u32 %v4899, 4294901760
        %5264 = vmatpush.msra.mxu0 %v5263
        %v5265 = vand.u32 %v4898, 4294901760
        %5266 = vmatpush.msra.mxu0 %v5265
        %v5267 = vand.u32 %v4897, 4294901760
        %5268 = vmatpush.msra.mxu0 %v5267
        %v5269 = vand.u32 %v4896, 4294901760
        %5270 = vmatpush.msra.mxu0 %v5269
        %v5271 = vand.u32 %v4895, 4294901760
        %5272 = vmatpush.msra.mxu0 %v5271
        %v5273 = vand.u32 %v4894, 4294901760
        %5274 = vmatpush.msra.mxu0 %v5273
        %v5275 = vand.u32 %v4893, 4294901760
        %5276 = vmatpush.msra.mxu0 %v5275
        %v5277 = vand.u32 %v4892, 4294901760
        %5278 = vmatpush.msra.mxu0 %v5277
        %v5279 = vand.u32 %v4923, 4294901760
        %5280 = vmatpush.msra.mxu0 %v5279
        %v5281 = vand.u32 %v4922, 4294901760
        %5282 = vmatpush.msra.mxu0 %v5281
        %v5283 = vand.u32 %v4921, 4294901760
        %5284 = vmatpush.msra.mxu0 %v5283
        %v5285 = vand.u32 %v4920, 4294901760
        %5286 = vmatpush.msra.mxu0 %v5285
        %v5287 = vand.u32 %v4919, 4294901760
        %5288 = vmatpush.msra.mxu0 %v5287
        %v5289 = vand.u32 %v4918, 4294901760
        %5290 = vmatpush.msra.mxu0 %v5289
        %v5291 = vand.u32 %v4917, 4294901760
        %5292 = vmatpush.msra.mxu0 %v5291
        %v5293 = vand.u32 %v4916, 4294901760
        %5294 = vmatpush.msra.mxu0 %v5293
        %v5295 = vand.u32 %v376, 4294901760
        %v5296 = vsub.f32 %v376, %v5295
        %v5297 = vand.u32 %v5296, 4294901760
        %5298 = vmatmul.f32.gmra.mxu0 %v5297
        %v5299 = vpop.f32.mrf.mxu0
        %v5300 = vadd.f32 %v5226, %v5299
        %v5301 = vand.u32 %v378, 4294901760
        %v5302 = vsub.f32 %v378, %v5301
        %v5303 = vand.u32 %v5302, 4294901760
        %5304 = vmatmul.f32.gmra.mxu0 %v5303
        %v5305 = vpop.f32.mrf.mxu0
        %v5306 = vadd.f32 %v5231, %v5305
        %v5307 = vand.u32 %v380, 4294901760
        %v5308 = vsub.f32 %v380, %v5307
        %v5309 = vand.u32 %v5308, 4294901760
        %5310 = vmatmul.f32.gmra.mxu0 %v5309
        %v5311 = vpop.f32.mrf.mxu0
        %v5312 = vadd.f32 %v5236, %v5311
        %v5313 = vand.u32 %v382, 4294901760
        %v5314 = vsub.f32 %v382, %v5313
        %v5315 = vand.u32 %v5314, 4294901760
        %5316 = vmatmul.f32.gmra.mxu0 %v5315
        %v5317 = vpop.f32.mrf.mxu0
        %v5318 = vadd.f32 %v5241, %v5317
        %v5319 = vand.u32 %v384, 4294901760
        %v5320 = vsub.f32 %v384, %v5319
        %v5321 = vand.u32 %v5320, 4294901760
        %5322 = vmatmul.f32.gmra.mxu0 %v5321
        %v5323 = vpop.f32.mrf.mxu0
        %v5324 = vadd.f32 %v5246, %v5323
        %v5325 = vand.u32 %v386, 4294901760
        %v5326 = vsub.f32 %v386, %v5325
        %v5327 = vand.u32 %v5326, 4294901760
        %5328 = vmatmul.f32.gmra.mxu0 %v5327
        %v5329 = vpop.f32.mrf.mxu0
        %v5330 = vadd.f32 %v5251, %v5329
        %v5331 = vand.u32 %v388, 4294901760
        %v5332 = vsub.f32 %v388, %v5331
        %v5333 = vand.u32 %v5332, 4294901760
        %5334 = vmatmul.f32.gmra.mxu0 %v5333
        %v5335 = vpop.f32.mrf.mxu0
        %v5336 = vadd.f32 %v5256, %v5335
        %v5337 = vand.u32 %v390, 4294901760
        %v5338 = vsub.f32 %v390, %v5337
        %v5339 = vand.u32 %v5338, 4294901760
        %5340 = vmatmul.f32.gmra.mxu0 %v5339
        %v5341 = vpop.f32.mrf.mxu0
        %v5342 = vadd.f32 %v5261, %v5341
        %5343 = vdwg.mxu0
        %v5344 = vand.u32 %v4899, 4294901760
        %v5345 = vsub.f32 %v4899, %v5344
        %v5346 = vand.u32 %v5345, 4294901760
        %5347 = vmatpush.msra.mxu0 %v5346
        %v5348 = vand.u32 %v4898, 4294901760
        %v5349 = vsub.f32 %v4898, %v5348
        %v5350 = vand.u32 %v5349, 4294901760
        %5351 = vmatpush.msra.mxu0 %v5350
        %v5352 = vand.u32 %v4897, 4294901760
        %v5353 = vsub.f32 %v4897, %v5352
        %v5354 = vand.u32 %v5353, 4294901760
        %5355 = vmatpush.msra.mxu0 %v5354
        %v5356 = vand.u32 %v4896, 4294901760
        %v5357 = vsub.f32 %v4896, %v5356
        %v5358 = vand.u32 %v5357, 4294901760
        %5359 = vmatpush.msra.mxu0 %v5358
        %v5360 = vand.u32 %v4895, 4294901760
        %v5361 = vsub.f32 %v4895, %v5360
        %v5362 = vand.u32 %v5361, 4294901760
        %5363 = vmatpush.msra.mxu0 %v5362
        %v5364 = vand.u32 %v4894, 4294901760
        %v5365 = vsub.f32 %v4894, %v5364
        %v5366 = vand.u32 %v5365, 4294901760
        %5367 = vmatpush.msra.mxu0 %v5366
        %v5368 = vand.u32 %v4893, 4294901760
        %v5369 = vsub.f32 %v4893, %v5368
        %v5370 = vand.u32 %v5369, 4294901760
        %5371 = vmatpush.msra.mxu0 %v5370
        %v5372 = vand.u32 %v4892, 4294901760
        %v5373 = vsub.f32 %v4892, %v5372
        %v5374 = vand.u32 %v5373, 4294901760
        %5375 = vmatpush.msra.mxu0 %v5374
        %v5376 = vand.u32 %v4923, 4294901760
        %v5377 = vsub.f32 %v4923, %v5376
        %v5378 = vand.u32 %v5377, 4294901760
        %5379 = vmatpush.msra.mxu0 %v5378
        %v5380 = vand.u32 %v4922, 4294901760
        %v5381 = vsub.f32 %v4922, %v5380
        %v5382 = vand.u32 %v5381, 4294901760
        %5383 = vmatpush.msra.mxu0 %v5382
        %v5384 = vand.u32 %v4921, 4294901760
        %v5385 = vsub.f32 %v4921, %v5384
        %v5386 = vand.u32 %v5385, 4294901760
        %5387 = vmatpush.msra.mxu0 %v5386
        %v5388 = vand.u32 %v4920, 4294901760
        %v5389 = vsub.f32 %v4920, %v5388
        %v5390 = vand.u32 %v5389, 4294901760
        %5391 = vmatpush.msra.mxu0 %v5390
        %v5392 = vand.u32 %v4919, 4294901760
        %v5393 = vsub.f32 %v4919, %v5392
        %v5394 = vand.u32 %v5393, 4294901760
        %5395 = vmatpush.msra.mxu0 %v5394
        %v5396 = vand.u32 %v4918, 4294901760
        %v5397 = vsub.f32 %v4918, %v5396
        %v5398 = vand.u32 %v5397, 4294901760
        %5399 = vmatpush.msra.mxu0 %v5398
        %v5400 = vand.u32 %v4917, 4294901760
        %v5401 = vsub.f32 %v4917, %v5400
        %v5402 = vand.u32 %v5401, 4294901760
        %5403 = vmatpush.msra.mxu0 %v5402
        %v5404 = vand.u32 %v4916, 4294901760
        %v5405 = vsub.f32 %v4916, %v5404
        %v5406 = vand.u32 %v5405, 4294901760
        %5407 = vmatpush.msra.mxu0 %v5406
        %v5408 = vand.u32 %v376, 4294901760
        %5409 = vmatmul.f32.gmra.mxu0 %v5408
        %v5410 = vpop.f32.mrf.mxu0
        %v5411 = vadd.f32 %v5300, %v5410
        %v5412 = vand.u32 %v378, 4294901760
        %5413 = vmatmul.f32.gmra.mxu0 %v5412
        %v5414 = vpop.f32.mrf.mxu0
        %v5415 = vadd.f32 %v5306, %v5414
        %v5416 = vand.u32 %v380, 4294901760
        %5417 = vmatmul.f32.gmra.mxu0 %v5416
        %v5418 = vpop.f32.mrf.mxu0
        %v5419 = vadd.f32 %v5312, %v5418
        %v5420 = vand.u32 %v382, 4294901760
        %5421 = vmatmul.f32.gmra.mxu0 %v5420
        %v5422 = vpop.f32.mrf.mxu0
        %v5423 = vadd.f32 %v5318, %v5422
        %v5424 = vand.u32 %v384, 4294901760
        %5425 = vmatmul.f32.gmra.mxu0 %v5424
        %v5426 = vpop.f32.mrf.mxu0
        %v5427 = vadd.f32 %v5324, %v5426
        %v5428 = vand.u32 %v386, 4294901760
        %5429 = vmatmul.f32.gmra.mxu0 %v5428
        %v5430 = vpop.f32.mrf.mxu0
        %v5431 = vadd.f32 %v5330, %v5430
        %v5432 = vand.u32 %v388, 4294901760
        %5433 = vmatmul.f32.gmra.mxu0 %v5432
        %v5434 = vpop.f32.mrf.mxu0
        %v5435 = vadd.f32 %v5336, %v5434
        %v5436 = vand.u32 %v390, 4294901760
        %5437 = vmatmul.f32.gmra.mxu0 %v5436
        %v5438 = vpop.f32.mrf.mxu0
        %v5439 = vadd.f32 %v5342, %v5438
        %5440 = vdwg.mxu0
        %v5441 = vand.u32 %v4899, 4294901760
        %5442 = vmatpush.msra.mxu0 %v5441
        %v5443 = vand.u32 %v4898, 4294901760
        %5444 = vmatpush.msra.mxu0 %v5443
        %v5445 = vand.u32 %v4897, 4294901760
        %5446 = vmatpush.msra.mxu0 %v5445
        %v5447 = vand.u32 %v4896, 4294901760
        %5448 = vmatpush.msra.mxu0 %v5447
        %v5449 = vand.u32 %v4895, 4294901760
        %5450 = vmatpush.msra.mxu0 %v5449
        %v5451 = vand.u32 %v4894, 4294901760
        %5452 = vmatpush.msra.mxu0 %v5451
        %v5453 = vand.u32 %v4893, 4294901760
        %5454 = vmatpush.msra.mxu0 %v5453
        %v5455 = vand.u32 %v4892, 4294901760
        %5456 = vmatpush.msra.mxu0 %v5455
        %v5457 = vand.u32 %v4923, 4294901760
        %5458 = vmatpush.msra.mxu0 %v5457
        %v5459 = vand.u32 %v4922, 4294901760
        %5460 = vmatpush.msra.mxu0 %v5459
        %v5461 = vand.u32 %v4921, 4294901760
        %5462 = vmatpush.msra.mxu0 %v5461
        %v5463 = vand.u32 %v4920, 4294901760
        %5464 = vmatpush.msra.mxu0 %v5463
        %v5465 = vand.u32 %v4919, 4294901760
        %5466 = vmatpush.msra.mxu0 %v5465
        %v5467 = vand.u32 %v4918, 4294901760
        %5468 = vmatpush.msra.mxu0 %v5467
        %v5469 = vand.u32 %v4917, 4294901760
        %5470 = vmatpush.msra.mxu0 %v5469
        %v5471 = vand.u32 %v4916, 4294901760
        %5472 = vmatpush.msra.mxu0 %v5471
        %v5473 = vand.u32 %v376, 4294901760
        %5474 = vmatmul.f32.gmra.mxu0 %v5473
        %v5475 = vpop.f32.mrf.mxu0
        %v5476 = vadd.f32 %v5411, %v5475
        %v5477 = vand.u32 %v378, 4294901760
        %5478 = vmatmul.f32.gmra.mxu0 %v5477
        %v5479 = vpop.f32.mrf.mxu0
        %v5480 = vadd.f32 %v5415, %v5479
        %v5481 = vand.u32 %v380, 4294901760
        %5482 = vmatmul.f32.gmra.mxu0 %v5481
        %v5483 = vpop.f32.mrf.mxu0
        %v5484 = vadd.f32 %v5419, %v5483
        %v5485 = vand.u32 %v382, 4294901760
        %5486 = vmatmul.f32.gmra.mxu0 %v5485
        %v5487 = vpop.f32.mrf.mxu0
        %v5488 = vadd.f32 %v5423, %v5487
        %v5489 = vand.u32 %v384, 4294901760
        %5490 = vmatmul.f32.gmra.mxu0 %v5489
        %v5491 = vpop.f32.mrf.mxu0
        %v5492 = vadd.f32 %v5427, %v5491
        %v5493 = vand.u32 %v386, 4294901760
        %5494 = vmatmul.f32.gmra.mxu0 %v5493
        %v5495 = vpop.f32.mrf.mxu0
        %v5496 = vadd.f32 %v5431, %v5495
        %v5497 = vand.u32 %v388, 4294901760
        %5498 = vmatmul.f32.gmra.mxu0 %v5497
        %v5499 = vpop.f32.mrf.mxu0
        %v5500 = vadd.f32 %v5435, %v5499
        %v5501 = vand.u32 %v390, 4294901760
        %5502 = vmatmul.f32.gmra.mxu0 %v5501
        %v5503 = vpop.f32.mrf.mxu0
        %v5504 = vadd.f32 %v5439, %v5503
        %5505 = vdwg.mxu0
        %5506 = vmatpush.msra.mxu0 0.0
        %5507 = vmatpush.msra.mxu0 0.0
        %5508 = vmatpush.msra.mxu0 0.0
        %5509 = vmatpush.msra.mxu0 0.0
        %5510 = vmatpush.msra.mxu0 0.0
        %5511 = vmatpush.msra.mxu0 0.0
        %5512 = vmatpush.msra.mxu0 0.0
        %5513 = vmatpush.msra.mxu0 0.0
        %v5514 = vand.u32 %v4947, 4294901760
        %5515 = vmatpush.msra.mxu0 %v5514
        %v5516 = vand.u32 %v4946, 4294901760
        %5517 = vmatpush.msra.mxu0 %v5516
        %v5518 = vand.u32 %v4945, 4294901760
        %5519 = vmatpush.msra.mxu0 %v5518
        %v5520 = vand.u32 %v4944, 4294901760
        %5521 = vmatpush.msra.mxu0 %v5520
        %v5522 = vand.u32 %v4943, 4294901760
        %5523 = vmatpush.msra.mxu0 %v5522
        %v5524 = vand.u32 %v4942, 4294901760
        %5525 = vmatpush.msra.mxu0 %v5524
        %v5526 = vand.u32 %v4941, 4294901760
        %5527 = vmatpush.msra.mxu0 %v5526
        %v5528 = vand.u32 %v4940, 4294901760
        %5529 = vmatpush.msra.mxu0 %v5528
        %v5530 = vand.u32 %v2773, 4294901760
        %v5531 = vsub.f32 %v2773, %v5530
        %v5532 = vand.u32 %v5531, 4294901760
        %v5533 = vsub.f32 %v5531, %v5532
        %v5534 = vand.u32 %v5533, 4294901760
        %5535 = vmatmul.f32.gmra.mxu0 %v5534
        %v5536 = vpop.f32.mrf.mxu0
        %v5537 = vadd.f32 %v5476, %v5536
        %v5538 = vand.u32 %v2776, 4294901760
        %v5539 = vsub.f32 %v2776, %v5538
        %v5540 = vand.u32 %v5539, 4294901760
        %v5541 = vsub.f32 %v5539, %v5540
        %v5542 = vand.u32 %v5541, 4294901760
        %5543 = vmatmul.f32.gmra.mxu0 %v5542
        %v5544 = vpop.f32.mrf.mxu0
        %v5545 = vadd.f32 %v5480, %v5544
        %v5546 = vand.u32 %v2779, 4294901760
        %v5547 = vsub.f32 %v2779, %v5546
        %v5548 = vand.u32 %v5547, 4294901760
        %v5549 = vsub.f32 %v5547, %v5548
        %v5550 = vand.u32 %v5549, 4294901760
        %5551 = vmatmul.f32.gmra.mxu0 %v5550
        %v5552 = vpop.f32.mrf.mxu0
        %v5553 = vadd.f32 %v5484, %v5552
        %v5554 = vand.u32 %v2782, 4294901760
        %v5555 = vsub.f32 %v2782, %v5554
        %v5556 = vand.u32 %v5555, 4294901760
        %v5557 = vsub.f32 %v5555, %v5556
        %v5558 = vand.u32 %v5557, 4294901760
        %5559 = vmatmul.f32.gmra.mxu0 %v5558
        %v5560 = vpop.f32.mrf.mxu0
        %v5561 = vadd.f32 %v5488, %v5560
        %v5562 = vand.u32 %v2785, 4294901760
        %v5563 = vsub.f32 %v2785, %v5562
        %v5564 = vand.u32 %v5563, 4294901760
        %v5565 = vsub.f32 %v5563, %v5564
        %v5566 = vand.u32 %v5565, 4294901760
        %5567 = vmatmul.f32.gmra.mxu0 %v5566
        %v5568 = vpop.f32.mrf.mxu0
        %v5569 = vadd.f32 %v5492, %v5568
        %v5570 = vand.u32 %v2788, 4294901760
        %v5571 = vsub.f32 %v2788, %v5570
        %v5572 = vand.u32 %v5571, 4294901760
        %v5573 = vsub.f32 %v5571, %v5572
        %v5574 = vand.u32 %v5573, 4294901760
        %5575 = vmatmul.f32.gmra.mxu0 %v5574
        %v5576 = vpop.f32.mrf.mxu0
        %v5577 = vadd.f32 %v5496, %v5576
        %v5578 = vand.u32 %v2791, 4294901760
        %v5579 = vsub.f32 %v2791, %v5578
        %v5580 = vand.u32 %v5579, 4294901760
        %v5581 = vsub.f32 %v5579, %v5580
        %v5582 = vand.u32 %v5581, 4294901760
        %5583 = vmatmul.f32.gmra.mxu0 %v5582
        %v5584 = vpop.f32.mrf.mxu0
        %v5585 = vadd.f32 %v5500, %v5584
        %v5586 = vand.u32 %v2794, 4294901760
        %v5587 = vsub.f32 %v2794, %v5586
        %v5588 = vand.u32 %v5587, 4294901760
        %v5589 = vsub.f32 %v5587, %v5588
        %v5590 = vand.u32 %v5589, 4294901760
        %5591 = vmatmul.f32.gmra.mxu0 %v5590
        %v5592 = vpop.f32.mrf.mxu0
        %v5593 = vadd.f32 %v5504, %v5592
        %5594 = vdwg.mxu0
        %5595 = vmatpush.msra.mxu0 0.0
        %5596 = vmatpush.msra.mxu0 0.0
        %5597 = vmatpush.msra.mxu0 0.0
        %5598 = vmatpush.msra.mxu0 0.0
        %5599 = vmatpush.msra.mxu0 0.0
        %5600 = vmatpush.msra.mxu0 0.0
        %5601 = vmatpush.msra.mxu0 0.0
        %5602 = vmatpush.msra.mxu0 0.0
        %v5603 = vand.u32 %v4947, 4294901760
        %v5604 = vsub.f32 %v4947, %v5603
        %v5605 = vand.u32 %v5604, 4294901760
        %v5606 = vsub.f32 %v5604, %v5605
        %v5607 = vand.u32 %v5606, 4294901760
        %5608 = vmatpush.msra.mxu0 %v5607
        %v5609 = vand.u32 %v4946, 4294901760
        %v5610 = vsub.f32 %v4946, %v5609
        %v5611 = vand.u32 %v5610, 4294901760
        %v5612 = vsub.f32 %v5610, %v5611
        %v5613 = vand.u32 %v5612, 4294901760
        %5614 = vmatpush.msra.mxu0 %v5613
        %v5615 = vand.u32 %v4945, 4294901760
        %v5616 = vsub.f32 %v4945, %v5615
        %v5617 = vand.u32 %v5616, 4294901760
        %v5618 = vsub.f32 %v5616, %v5617
        %v5619 = vand.u32 %v5618, 4294901760
        %5620 = vmatpush.msra.mxu0 %v5619
        %v5621 = vand.u32 %v4944, 4294901760
        %v5622 = vsub.f32 %v4944, %v5621
        %v5623 = vand.u32 %v5622, 4294901760
        %v5624 = vsub.f32 %v5622, %v5623
        %v5625 = vand.u32 %v5624, 4294901760
        %5626 = vmatpush.msra.mxu0 %v5625
        %v5627 = vand.u32 %v4943, 4294901760
        %v5628 = vsub.f32 %v4943, %v5627
        %v5629 = vand.u32 %v5628, 4294901760
        %v5630 = vsub.f32 %v5628, %v5629
        %v5631 = vand.u32 %v5630, 4294901760
        %5632 = vmatpush.msra.mxu0 %v5631
        %v5633 = vand.u32 %v4942, 4294901760
        %v5634 = vsub.f32 %v4942, %v5633
        %v5635 = vand.u32 %v5634, 4294901760
        %v5636 = vsub.f32 %v5634, %v5635
        %v5637 = vand.u32 %v5636, 4294901760
        %5638 = vmatpush.msra.mxu0 %v5637
        %v5639 = vand.u32 %v4941, 4294901760
        %v5640 = vsub.f32 %v4941, %v5639
        %v5641 = vand.u32 %v5640, 4294901760
        %v5642 = vsub.f32 %v5640, %v5641
        %v5643 = vand.u32 %v5642, 4294901760
        %5644 = vmatpush.msra.mxu0 %v5643
        %v5645 = vand.u32 %v4940, 4294901760
        %v5646 = vsub.f32 %v4940, %v5645
        %v5647 = vand.u32 %v5646, 4294901760
        %v5648 = vsub.f32 %v5646, %v5647
        %v5649 = vand.u32 %v5648, 4294901760
        %5650 = vmatpush.msra.mxu0 %v5649
        %v5651 = vand.u32 %v2773, 4294901760
        %5652 = vmatmul.f32.gmra.mxu0 %v5651
        %v5653 = vpop.f32.mrf.mxu0
        %v5654 = vadd.f32 %v5537, %v5653
        %v5655 = vand.u32 %v2776, 4294901760
        %5656 = vmatmul.f32.gmra.mxu0 %v5655
        %v5657 = vpop.f32.mrf.mxu0
        %v5658 = vadd.f32 %v5545, %v5657
        %v5659 = vand.u32 %v2779, 4294901760
        %5660 = vmatmul.f32.gmra.mxu0 %v5659
        %v5661 = vpop.f32.mrf.mxu0
        %v5662 = vadd.f32 %v5553, %v5661
        %v5663 = vand.u32 %v2782, 4294901760
        %5664 = vmatmul.f32.gmra.mxu0 %v5663
        %v5665 = vpop.f32.mrf.mxu0
        %v5666 = vadd.f32 %v5561, %v5665
        %v5667 = vand.u32 %v2785, 4294901760
        %5668 = vmatmul.f32.gmra.mxu0 %v5667
        %v5669 = vpop.f32.mrf.mxu0
        %v5670 = vadd.f32 %v5569, %v5669
        %v5671 = vand.u32 %v2788, 4294901760
        %5672 = vmatmul.f32.gmra.mxu0 %v5671
        %v5673 = vpop.f32.mrf.mxu0
        %v5674 = vadd.f32 %v5577, %v5673
        %v5675 = vand.u32 %v2791, 4294901760
        %5676 = vmatmul.f32.gmra.mxu0 %v5675
        %v5677 = vpop.f32.mrf.mxu0
        %v5678 = vadd.f32 %v5585, %v5677
        %v5679 = vand.u32 %v2794, 4294901760
        %5680 = vmatmul.f32.gmra.mxu0 %v5679
        %v5681 = vpop.f32.mrf.mxu0
        %v5682 = vadd.f32 %v5593, %v5681
        %5683 = vdwg.mxu0
        %5684 = vmatpush.msra.mxu0 0.0
        %5685 = vmatpush.msra.mxu0 0.0
        %5686 = vmatpush.msra.mxu0 0.0
        %5687 = vmatpush.msra.mxu0 0.0
        %5688 = vmatpush.msra.mxu0 0.0
        %5689 = vmatpush.msra.mxu0 0.0
        %5690 = vmatpush.msra.mxu0 0.0
        %5691 = vmatpush.msra.mxu0 0.0
        %v5692 = vand.u32 %v4947, 4294901760
        %v5693 = vsub.f32 %v4947, %v5692
        %5694 = vmatpush.msra.mxu0 %v5693
        %v5695 = vand.u32 %v4946, 4294901760
        %v5696 = vsub.f32 %v4946, %v5695
        %5697 = vmatpush.msra.mxu0 %v5696
        %v5698 = vand.u32 %v4945, 4294901760
        %v5699 = vsub.f32 %v4945, %v5698
        %5700 = vmatpush.msra.mxu0 %v5699
        %v5701 = vand.u32 %v4944, 4294901760
        %v5702 = vsub.f32 %v4944, %v5701
        %5703 = vmatpush.msra.mxu0 %v5702
        %v5704 = vand.u32 %v4943, 4294901760
        %v5705 = vsub.f32 %v4943, %v5704
        %5706 = vmatpush.msra.mxu0 %v5705
        %v5707 = vand.u32 %v4942, 4294901760
        %v5708 = vsub.f32 %v4942, %v5707
        %5709 = vmatpush.msra.mxu0 %v5708
        %v5710 = vand.u32 %v4941, 4294901760
        %v5711 = vsub.f32 %v4941, %v5710
        %5712 = vmatpush.msra.mxu0 %v5711
        %v5713 = vand.u32 %v4940, 4294901760
        %v5714 = vsub.f32 %v4940, %v5713
        %5715 = vmatpush.msra.mxu0 %v5714
        %v5716 = vand.u32 %v2773, 4294901760
        %v5717 = vsub.f32 %v2773, %v5716
        %5718 = vmatmul.f32.gmra.mxu0 %v5717
        %v5719 = vpop.f32.mrf.mxu0
        %v5720 = vadd.f32 %v5654, %v5719
        %v5721 = vand.u32 %v2776, 4294901760
        %v5722 = vsub.f32 %v2776, %v5721
        %5723 = vmatmul.f32.gmra.mxu0 %v5722
        %v5724 = vpop.f32.mrf.mxu0
        %v5725 = vadd.f32 %v5658, %v5724
        %v5726 = vand.u32 %v2779, 4294901760
        %v5727 = vsub.f32 %v2779, %v5726
        %5728 = vmatmul.f32.gmra.mxu0 %v5727
        %v5729 = vpop.f32.mrf.mxu0
        %v5730 = vadd.f32 %v5662, %v5729
        %v5731 = vand.u32 %v2782, 4294901760
        %v5732 = vsub.f32 %v2782, %v5731
        %5733 = vmatmul.f32.gmra.mxu0 %v5732
        %v5734 = vpop.f32.mrf.mxu0
        %v5735 = vadd.f32 %v5666, %v5734
        %v5736 = vand.u32 %v2785, 4294901760
        %v5737 = vsub.f32 %v2785, %v5736
        %5738 = vmatmul.f32.gmra.mxu0 %v5737
        %v5739 = vpop.f32.mrf.mxu0
        %v5740 = vadd.f32 %v5670, %v5739
        %v5741 = vand.u32 %v2788, 4294901760
        %v5742 = vsub.f32 %v2788, %v5741
        %5743 = vmatmul.f32.gmra.mxu0 %v5742
        %v5744 = vpop.f32.mrf.mxu0
        %v5745 = vadd.f32 %v5674, %v5744
        %v5746 = vand.u32 %v2791, 4294901760
        %v5747 = vsub.f32 %v2791, %v5746
        %5748 = vmatmul.f32.gmra.mxu0 %v5747
        %v5749 = vpop.f32.mrf.mxu0
        %v5750 = vadd.f32 %v5678, %v5749
        %v5751 = vand.u32 %v2794, 4294901760
        %v5752 = vsub.f32 %v2794, %v5751
        %5753 = vmatmul.f32.gmra.mxu0 %v5752
        %v5754 = vpop.f32.mrf.mxu0
        %v5755 = vadd.f32 %v5682, %v5754
        %5756 = vdwg.mxu0
        %5757 = vmatpush.msra.mxu0 0.0
        %5758 = vmatpush.msra.mxu0 0.0
        %5759 = vmatpush.msra.mxu0 0.0
        %5760 = vmatpush.msra.mxu0 0.0
        %5761 = vmatpush.msra.mxu0 0.0
        %5762 = vmatpush.msra.mxu0 0.0
        %5763 = vmatpush.msra.mxu0 0.0
        %5764 = vmatpush.msra.mxu0 0.0
        %v5765 = vand.u32 %v4947, 4294901760
        %5766 = vmatpush.msra.mxu0 %v5765
        %v5767 = vand.u32 %v4946, 4294901760
        %5768 = vmatpush.msra.mxu0 %v5767
        %v5769 = vand.u32 %v4945, 4294901760
        %5770 = vmatpush.msra.mxu0 %v5769
        %v5771 = vand.u32 %v4944, 4294901760
        %5772 = vmatpush.msra.mxu0 %v5771
        %v5773 = vand.u32 %v4943, 4294901760
        %5774 = vmatpush.msra.mxu0 %v5773
        %v5775 = vand.u32 %v4942, 4294901760
        %5776 = vmatpush.msra.mxu0 %v5775
        %v5777 = vand.u32 %v4941, 4294901760
        %5778 = vmatpush.msra.mxu0 %v5777
        %v5779 = vand.u32 %v4940, 4294901760
        %5780 = vmatpush.msra.mxu0 %v5779
        %v5781 = vand.u32 %v2773, 4294901760
        %v5782 = vsub.f32 %v2773, %v5781
        %v5783 = vand.u32 %v5782, 4294901760
        %5784 = vmatmul.f32.gmra.mxu0 %v5783
        %v5785 = vpop.f32.mrf.mxu0
        %v5786 = vadd.f32 %v5720, %v5785
        %v5787 = vand.u32 %v2776, 4294901760
        %v5788 = vsub.f32 %v2776, %v5787
        %v5789 = vand.u32 %v5788, 4294901760
        %5790 = vmatmul.f32.gmra.mxu0 %v5789
        %v5791 = vpop.f32.mrf.mxu0
        %v5792 = vadd.f32 %v5725, %v5791
        %v5793 = vand.u32 %v2779, 4294901760
        %v5794 = vsub.f32 %v2779, %v5793
        %v5795 = vand.u32 %v5794, 4294901760
        %5796 = vmatmul.f32.gmra.mxu0 %v5795
        %v5797 = vpop.f32.mrf.mxu0
        %v5798 = vadd.f32 %v5730, %v5797
        %v5799 = vand.u32 %v2782, 4294901760
        %v5800 = vsub.f32 %v2782, %v5799
        %v5801 = vand.u32 %v5800, 4294901760
        %5802 = vmatmul.f32.gmra.mxu0 %v5801
        %v5803 = vpop.f32.mrf.mxu0
        %v5804 = vadd.f32 %v5735, %v5803
        %v5805 = vand.u32 %v2785, 4294901760
        %v5806 = vsub.f32 %v2785, %v5805
        %v5807 = vand.u32 %v5806, 4294901760
        %5808 = vmatmul.f32.gmra.mxu0 %v5807
        %v5809 = vpop.f32.mrf.mxu0
        %v5810 = vadd.f32 %v5740, %v5809
        %v5811 = vand.u32 %v2788, 4294901760
        %v5812 = vsub.f32 %v2788, %v5811
        %v5813 = vand.u32 %v5812, 4294901760
        %5814 = vmatmul.f32.gmra.mxu0 %v5813
        %v5815 = vpop.f32.mrf.mxu0
        %v5816 = vadd.f32 %v5745, %v5815
        %v5817 = vand.u32 %v2791, 4294901760
        %v5818 = vsub.f32 %v2791, %v5817
        %v5819 = vand.u32 %v5818, 4294901760
        %5820 = vmatmul.f32.gmra.mxu0 %v5819
        %v5821 = vpop.f32.mrf.mxu0
        %v5822 = vadd.f32 %v5750, %v5821
        %v5823 = vand.u32 %v2794, 4294901760
        %v5824 = vsub.f32 %v2794, %v5823
        %v5825 = vand.u32 %v5824, 4294901760
        %5826 = vmatmul.f32.gmra.mxu0 %v5825
        %v5827 = vpop.f32.mrf.mxu0
        %v5828 = vadd.f32 %v5755, %v5827
        %5829 = vdwg.mxu0
        %5830 = vmatpush.msra.mxu0 0.0
        %5831 = vmatpush.msra.mxu0 0.0
        %5832 = vmatpush.msra.mxu0 0.0
        %5833 = vmatpush.msra.mxu0 0.0
        %5834 = vmatpush.msra.mxu0 0.0
        %5835 = vmatpush.msra.mxu0 0.0
        %5836 = vmatpush.msra.mxu0 0.0
        %5837 = vmatpush.msra.mxu0 0.0
        %v5838 = vand.u32 %v4947, 4294901760
        %v5839 = vsub.f32 %v4947, %v5838
        %v5840 = vand.u32 %v5839, 4294901760
        %5841 = vmatpush.msra.mxu0 %v5840
        %v5842 = vand.u32 %v4946, 4294901760
        %v5843 = vsub.f32 %v4946, %v5842
        %v5844 = vand.u32 %v5843, 4294901760
        %5845 = vmatpush.msra.mxu0 %v5844
        %v5846 = vand.u32 %v4945, 4294901760
        %v5847 = vsub.f32 %v4945, %v5846
        %v5848 = vand.u32 %v5847, 4294901760
        %5849 = vmatpush.msra.mxu0 %v5848
        %v5850 = vand.u32 %v4944, 4294901760
        %v5851 = vsub.f32 %v4944, %v5850
        %v5852 = vand.u32 %v5851, 4294901760
        %5853 = vmatpush.msra.mxu0 %v5852
        %v5854 = vand.u32 %v4943, 4294901760
        %v5855 = vsub.f32 %v4943, %v5854
        %v5856 = vand.u32 %v5855, 4294901760
        %5857 = vmatpush.msra.mxu0 %v5856
        %v5858 = vand.u32 %v4942, 4294901760
        %v5859 = vsub.f32 %v4942, %v5858
        %v5860 = vand.u32 %v5859, 4294901760
        %5861 = vmatpush.msra.mxu0 %v5860
        %v5862 = vand.u32 %v4941, 4294901760
        %v5863 = vsub.f32 %v4941, %v5862
        %v5864 = vand.u32 %v5863, 4294901760
        %5865 = vmatpush.msra.mxu0 %v5864
        %v5866 = vand.u32 %v4940, 4294901760
        %v5867 = vsub.f32 %v4940, %v5866
        %v5868 = vand.u32 %v5867, 4294901760
        %5869 = vmatpush.msra.mxu0 %v5868
        %v5870 = vand.u32 %v2773, 4294901760
        %5871 = vmatmul.f32.gmra.mxu0 %v5870
        %v5872 = vpop.f32.mrf.mxu0
        %v5873 = vadd.f32 %v5786, %v5872
        %v5874 = vand.u32 %v2776, 4294901760
        %5875 = vmatmul.f32.gmra.mxu0 %v5874
        %v5876 = vpop.f32.mrf.mxu0
        %v5877 = vadd.f32 %v5792, %v5876
        %v5878 = vand.u32 %v2779, 4294901760
        %5879 = vmatmul.f32.gmra.mxu0 %v5878
        %v5880 = vpop.f32.mrf.mxu0
        %v5881 = vadd.f32 %v5798, %v5880
        %v5882 = vand.u32 %v2782, 4294901760
        %5883 = vmatmul.f32.gmra.mxu0 %v5882
        %v5884 = vpop.f32.mrf.mxu0
        %v5885 = vadd.f32 %v5804, %v5884
        %v5886 = vand.u32 %v2785, 4294901760
        %5887 = vmatmul.f32.gmra.mxu0 %v5886
        %v5888 = vpop.f32.mrf.mxu0
        %v5889 = vadd.f32 %v5810, %v5888
        %v5890 = vand.u32 %v2788, 4294901760
        %5891 = vmatmul.f32.gmra.mxu0 %v5890
        %v5892 = vpop.f32.mrf.mxu0
        %v5893 = vadd.f32 %v5816, %v5892
        %v5894 = vand.u32 %v2791, 4294901760
        %5895 = vmatmul.f32.gmra.mxu0 %v5894
        %v5896 = vpop.f32.mrf.mxu0
        %v5897 = vadd.f32 %v5822, %v5896
        %v5898 = vand.u32 %v2794, 4294901760
        %5899 = vmatmul.f32.gmra.mxu0 %v5898
        %v5900 = vpop.f32.mrf.mxu0
        %v5901 = vadd.f32 %v5828, %v5900
        %5902 = vdwg.mxu0
        %5903 = vmatpush.msra.mxu0 0.0
        %5904 = vmatpush.msra.mxu0 0.0
        %5905 = vmatpush.msra.mxu0 0.0
        %5906 = vmatpush.msra.mxu0 0.0
        %5907 = vmatpush.msra.mxu0 0.0
        %5908 = vmatpush.msra.mxu0 0.0
        %5909 = vmatpush.msra.mxu0 0.0
        %5910 = vmatpush.msra.mxu0 0.0
        %v5911 = vand.u32 %v4947, 4294901760
        %5912 = vmatpush.msra.mxu0 %v5911
        %v5913 = vand.u32 %v4946, 4294901760
        %5914 = vmatpush.msra.mxu0 %v5913
        %v5915 = vand.u32 %v4945, 4294901760
        %5916 = vmatpush.msra.mxu0 %v5915
        %v5917 = vand.u32 %v4944, 4294901760
        %5918 = vmatpush.msra.mxu0 %v5917
        %v5919 = vand.u32 %v4943, 4294901760
        %5920 = vmatpush.msra.mxu0 %v5919
        %v5921 = vand.u32 %v4942, 4294901760
        %5922 = vmatpush.msra.mxu0 %v5921
        %v5923 = vand.u32 %v4941, 4294901760
        %5924 = vmatpush.msra.mxu0 %v5923
        %v5925 = vand.u32 %v4940, 4294901760
        %5926 = vmatpush.msra.mxu0 %v5925
        %v5927 = vand.u32 %v2773, 4294901760
        %5928 = vmatmul.f32.gmra.mxu0 %v5927
        %v5929 = vpop.f32.mrf.mxu0
        %v5930 = vadd.f32 %v5873, %v5929
        %v5931 = vand.u32 %v2776, 4294901760
        %5932 = vmatmul.f32.gmra.mxu0 %v5931
        %v5933 = vpop.f32.mrf.mxu0
        %v5934 = vadd.f32 %v5877, %v5933
        %v5935 = vand.u32 %v2779, 4294901760
        %5936 = vmatmul.f32.gmra.mxu0 %v5935
        %v5937 = vpop.f32.mrf.mxu0
        %v5938 = vadd.f32 %v5881, %v5937
        %v5939 = vand.u32 %v2782, 4294901760
        %5940 = vmatmul.f32.gmra.mxu0 %v5939
        %v5941 = vpop.f32.mrf.mxu0
        %v5942 = vadd.f32 %v5885, %v5941
        %v5943 = vand.u32 %v2785, 4294901760
        %5944 = vmatmul.f32.gmra.mxu0 %v5943
        %v5945 = vpop.f32.mrf.mxu0
        %v5946 = vadd.f32 %v5889, %v5945
        %v5947 = vand.u32 %v2788, 4294901760
        %5948 = vmatmul.f32.gmra.mxu0 %v5947
        %v5949 = vpop.f32.mrf.mxu0
        %v5950 = vadd.f32 %v5893, %v5949
        %v5951 = vand.u32 %v2791, 4294901760
        %5952 = vmatmul.f32.gmra.mxu0 %v5951
        %v5953 = vpop.f32.mrf.mxu0
        %v5954 = vadd.f32 %v5897, %v5953
        %v5955 = vand.u32 %v2794, 4294901760
        %5956 = vmatmul.f32.gmra.mxu0 %v5955
        %v5957 = vpop.f32.mrf.mxu0
        %v5958 = vadd.f32 %v5901, %v5957
        %5959 = vdwg.mxu0
        %5960 = vst [vmem:[%s2114] sm:$0xff] %v5930
        %5961 = vst [vmem:[%s2114 + $0x8] sm:$0xff] %v5934
        %5962 = vst [vmem:[%s2114 + $0x10] sm:$0xff] %v5938
        %5963 = vst [vmem:[%s2114 + $0x18] sm:$0xff] %v5942
        %5964 = vst [vmem:[%s2114 + $0x20] sm:$0xff] %v5946
        %5965 = vst [vmem:[%s2114 + $0x28] sm:$0xff] %v5950
        %5966 = vst [vmem:[%s2114 + $0x30] sm:$0xff] %v5954
        %5967 = vst [vmem:[%s2114 + $0x38] sm:$0xff] %v5958
        %v5968 = vld [vmem:[%s2666] sm:$0xff]
        %v5969 = vld [vmem:[%s2666 + $0x8] sm:$0xff]
        %v5970 = vld [vmem:[%s2666 + $0x10] sm:$0xff]
        %v5971 = vld [vmem:[%s2666 + $0x18] sm:$0xff]
        %v5972 = vld [vmem:[%s2666 + $0x20] sm:$0xff]
        %v5973 = vld [vmem:[%s2666 + $0x28] sm:$0xff]
        %v5974 = vld [vmem:[%s2666 + $0x30] sm:$0xff]
        %v5975 = vld [vmem:[%s2666 + $0x38] sm:$0xff]
        %5976 = vrot.lane.b32.xlu0 %v5968, 1
        %v5977 = vpop.permute.xlu0 %5976
        %5978 = vrot.lane.b32.xlu0 %v5969, 1
        %v5979 = vpop.permute.xlu0 %5978
        %5980 = vrot.lane.b32.xlu0 %v5970, 1
        %v5981 = vpop.permute.xlu0 %5980
        %5982 = vrot.lane.b32.xlu0 %v5971, 1
        %v5983 = vpop.permute.xlu0 %5982
        %5984 = vrot.lane.b32.xlu0 %v5972, 1
        %v5985 = vpop.permute.xlu0 %5984
        %5986 = vrot.lane.b32.xlu0 %v5973, 1
        %v5987 = vpop.permute.xlu0 %5986
        %5988 = vrot.lane.b32.xlu0 %v5974, 1
        %v5989 = vpop.permute.xlu0 %5988
        %5990 = vrot.lane.b32.xlu0 %v5975, 1
        %v5991 = vpop.permute.xlu0 %5990
        %v5992 = vsel %vm413, %v5977, 0.0
        %v5993 = vsel %vm413, %v5979, 0.0
        %v5994 = vsel %vm413, %v5981, 0.0
        %v5995 = vsel %vm413, %v5983, 0.0
        %v5996 = vsel %vm413, %v5985, 0.0
        %v5997 = vsel %vm413, %v5987, 0.0
        %v5998 = vsel %vm413, %v5989, 0.0
        %v5999 = vsel %vm413, %v5991, 0.0
        %6000 = vrot.lane.b32.xlu0 %v5968, 127
        %v6001 = vpop.permute.xlu0 %6000
        %6002 = vrot.lane.b32.xlu0 %v5969, 127
        %v6003 = vpop.permute.xlu0 %6002
        %6004 = vrot.lane.b32.xlu0 %v5970, 127
        %v6005 = vpop.permute.xlu0 %6004
        %6006 = vrot.lane.b32.xlu0 %v5971, 127
        %v6007 = vpop.permute.xlu0 %6006
        %6008 = vrot.lane.b32.xlu0 %v5972, 127
        %v6009 = vpop.permute.xlu0 %6008
        %6010 = vrot.lane.b32.xlu0 %v5973, 127
        %v6011 = vpop.permute.xlu0 %6010
        %6012 = vrot.lane.b32.xlu0 %v5974, 127
        %v6013 = vpop.permute.xlu0 %6012
        %6014 = vrot.lane.b32.xlu0 %v5975, 127
        %v6015 = vpop.permute.xlu0 %6014
        %v6016 = vsel %vm427, %v6001, 0.0
        %v6017 = vsel %vm427, %v6003, 0.0
        %v6018 = vsel %vm427, %v6005, 0.0
        %v6019 = vsel %vm427, %v6007, 0.0
        %v6020 = vsel %vm427, %v6009, 0.0
        %v6021 = vsel %vm427, %v6011, 0.0
        %v6022 = vsel %vm427, %v6013, 0.0
        %v6023 = vsel %vm427, %v6015, 0.0
        %v6024 = vand.u32 %v5975, 4294901760
        %6025 = vmatpush.msra.mxu0 %v6024
        %v6026 = vand.u32 %v5974, 4294901760
        %6027 = vmatpush.msra.mxu0 %v6026
        %v6028 = vand.u32 %v5973, 4294901760
        %6029 = vmatpush.msra.mxu0 %v6028
        %v6030 = vand.u32 %v5972, 4294901760
        %6031 = vmatpush.msra.mxu0 %v6030
        %v6032 = vand.u32 %v5971, 4294901760
        %6033 = vmatpush.msra.mxu0 %v6032
        %v6034 = vand.u32 %v5970, 4294901760
        %6035 = vmatpush.msra.mxu0 %v6034
        %v6036 = vand.u32 %v5969, 4294901760
        %6037 = vmatpush.msra.mxu0 %v6036
        %v6038 = vand.u32 %v5968, 4294901760
        %6039 = vmatpush.msra.mxu0 %v6038
        %v6040 = vand.u32 %v5999, 4294901760
        %6041 = vmatpush.msra.mxu0 %v6040
        %v6042 = vand.u32 %v5998, 4294901760
        %6043 = vmatpush.msra.mxu0 %v6042
        %v6044 = vand.u32 %v5997, 4294901760
        %6045 = vmatpush.msra.mxu0 %v6044
        %v6046 = vand.u32 %v5996, 4294901760
        %6047 = vmatpush.msra.mxu0 %v6046
        %v6048 = vand.u32 %v5995, 4294901760
        %6049 = vmatpush.msra.mxu0 %v6048
        %v6050 = vand.u32 %v5994, 4294901760
        %6051 = vmatpush.msra.mxu0 %v6050
        %v6052 = vand.u32 %v5993, 4294901760
        %6053 = vmatpush.msra.mxu0 %v6052
        %v6054 = vand.u32 %v5992, 4294901760
        %6055 = vmatpush.msra.mxu0 %v6054
        %v6056 = vand.u32 %v376, 4294901760
        %v6057 = vsub.f32 %v376, %v6056
        %v6058 = vand.u32 %v6057, 4294901760
        %v6059 = vsub.f32 %v6057, %v6058
        %v6060 = vand.u32 %v6059, 4294901760
        %6061 = vmatmul.f32.gmra.mxu0 %v6060
        %v6062 = vpop.f32.mrf.mxu0
        %v6063 = vadd.f32 %v2734, %v6062
        %v6064 = vand.u32 %v378, 4294901760
        %v6065 = vsub.f32 %v378, %v6064
        %v6066 = vand.u32 %v6065, 4294901760
        %v6067 = vsub.f32 %v6065, %v6066
        %v6068 = vand.u32 %v6067, 4294901760
        %6069 = vmatmul.f32.gmra.mxu0 %v6068
        %v6070 = vpop.f32.mrf.mxu0
        %v6071 = vadd.f32 %v2739, %v6070
        %v6072 = vand.u32 %v380, 4294901760
        %v6073 = vsub.f32 %v380, %v6072
        %v6074 = vand.u32 %v6073, 4294901760
        %v6075 = vsub.f32 %v6073, %v6074
        %v6076 = vand.u32 %v6075, 4294901760
        %6077 = vmatmul.f32.gmra.mxu0 %v6076
        %v6078 = vpop.f32.mrf.mxu0
        %v6079 = vadd.f32 %v2744, %v6078
        %v6080 = vand.u32 %v382, 4294901760
        %v6081 = vsub.f32 %v382, %v6080
        %v6082 = vand.u32 %v6081, 4294901760
        %v6083 = vsub.f32 %v6081, %v6082
        %v6084 = vand.u32 %v6083, 4294901760
        %6085 = vmatmul.f32.gmra.mxu0 %v6084
        %v6086 = vpop.f32.mrf.mxu0
        %v6087 = vadd.f32 %v2749, %v6086
        %v6088 = vand.u32 %v384, 4294901760
        %v6089 = vsub.f32 %v384, %v6088
        %v6090 = vand.u32 %v6089, 4294901760
        %v6091 = vsub.f32 %v6089, %v6090
        %v6092 = vand.u32 %v6091, 4294901760
        %6093 = vmatmul.f32.gmra.mxu0 %v6092
        %v6094 = vpop.f32.mrf.mxu0
        %v6095 = vadd.f32 %v2754, %v6094
        %v6096 = vand.u32 %v386, 4294901760
        %v6097 = vsub.f32 %v386, %v6096
        %v6098 = vand.u32 %v6097, 4294901760
        %v6099 = vsub.f32 %v6097, %v6098
        %v6100 = vand.u32 %v6099, 4294901760
        %6101 = vmatmul.f32.gmra.mxu0 %v6100
        %v6102 = vpop.f32.mrf.mxu0
        %v6103 = vadd.f32 %v2759, %v6102
        %v6104 = vand.u32 %v388, 4294901760
        %v6105 = vsub.f32 %v388, %v6104
        %v6106 = vand.u32 %v6105, 4294901760
        %v6107 = vsub.f32 %v6105, %v6106
        %v6108 = vand.u32 %v6107, 4294901760
        %6109 = vmatmul.f32.gmra.mxu0 %v6108
        %v6110 = vpop.f32.mrf.mxu0
        %v6111 = vadd.f32 %v2764, %v6110
        %v6112 = vand.u32 %v390, 4294901760
        %v6113 = vsub.f32 %v390, %v6112
        %v6114 = vand.u32 %v6113, 4294901760
        %v6115 = vsub.f32 %v6113, %v6114
        %v6116 = vand.u32 %v6115, 4294901760
        %6117 = vmatmul.f32.gmra.mxu0 %v6116
        %v6118 = vpop.f32.mrf.mxu0
        %v6119 = vadd.f32 %v2769, %v6118
        %6120 = vdwg.mxu0
        %v6121 = vand.u32 %v5975, 4294901760
        %v6122 = vsub.f32 %v5975, %v6121
        %v6123 = vand.u32 %v6122, 4294901760
        %v6124 = vsub.f32 %v6122, %v6123
        %v6125 = vand.u32 %v6124, 4294901760
        %6126 = vmatpush.msra.mxu0 %v6125
        %v6127 = vand.u32 %v5974, 4294901760
        %v6128 = vsub.f32 %v5974, %v6127
        %v6129 = vand.u32 %v6128, 4294901760
        %v6130 = vsub.f32 %v6128, %v6129
        %v6131 = vand.u32 %v6130, 4294901760
        %6132 = vmatpush.msra.mxu0 %v6131
        %v6133 = vand.u32 %v5973, 4294901760
        %v6134 = vsub.f32 %v5973, %v6133
        %v6135 = vand.u32 %v6134, 4294901760
        %v6136 = vsub.f32 %v6134, %v6135
        %v6137 = vand.u32 %v6136, 4294901760
        %6138 = vmatpush.msra.mxu0 %v6137
        %v6139 = vand.u32 %v5972, 4294901760
        %v6140 = vsub.f32 %v5972, %v6139
        %v6141 = vand.u32 %v6140, 4294901760
        %v6142 = vsub.f32 %v6140, %v6141
        %v6143 = vand.u32 %v6142, 4294901760
        %6144 = vmatpush.msra.mxu0 %v6143
        %v6145 = vand.u32 %v5971, 4294901760
        %v6146 = vsub.f32 %v5971, %v6145
        %v6147 = vand.u32 %v6146, 4294901760
        %v6148 = vsub.f32 %v6146, %v6147
        %v6149 = vand.u32 %v6148, 4294901760
        %6150 = vmatpush.msra.mxu0 %v6149
        %v6151 = vand.u32 %v5970, 4294901760
        %v6152 = vsub.f32 %v5970, %v6151
        %v6153 = vand.u32 %v6152, 4294901760
        %v6154 = vsub.f32 %v6152, %v6153
        %v6155 = vand.u32 %v6154, 4294901760
        %6156 = vmatpush.msra.mxu0 %v6155
        %v6157 = vand.u32 %v5969, 4294901760
        %v6158 = vsub.f32 %v5969, %v6157
        %v6159 = vand.u32 %v6158, 4294901760
        %v6160 = vsub.f32 %v6158, %v6159
        %v6161 = vand.u32 %v6160, 4294901760
        %6162 = vmatpush.msra.mxu0 %v6161
        %v6163 = vand.u32 %v5968, 4294901760
        %v6164 = vsub.f32 %v5968, %v6163
        %v6165 = vand.u32 %v6164, 4294901760
        %v6166 = vsub.f32 %v6164, %v6165
        %v6167 = vand.u32 %v6166, 4294901760
        %6168 = vmatpush.msra.mxu0 %v6167
        %v6169 = vand.u32 %v5999, 4294901760
        %v6170 = vsub.f32 %v5999, %v6169
        %v6171 = vand.u32 %v6170, 4294901760
        %v6172 = vsub.f32 %v6170, %v6171
        %v6173 = vand.u32 %v6172, 4294901760
        %6174 = vmatpush.msra.mxu0 %v6173
        %v6175 = vand.u32 %v5998, 4294901760
        %v6176 = vsub.f32 %v5998, %v6175
        %v6177 = vand.u32 %v6176, 4294901760
        %v6178 = vsub.f32 %v6176, %v6177
        %v6179 = vand.u32 %v6178, 4294901760
        %6180 = vmatpush.msra.mxu0 %v6179
        %v6181 = vand.u32 %v5997, 4294901760
        %v6182 = vsub.f32 %v5997, %v6181
        %v6183 = vand.u32 %v6182, 4294901760
        %v6184 = vsub.f32 %v6182, %v6183
        %v6185 = vand.u32 %v6184, 4294901760
        %6186 = vmatpush.msra.mxu0 %v6185
        %v6187 = vand.u32 %v5996, 4294901760
        %v6188 = vsub.f32 %v5996, %v6187
        %v6189 = vand.u32 %v6188, 4294901760
        %v6190 = vsub.f32 %v6188, %v6189
        %v6191 = vand.u32 %v6190, 4294901760
        %6192 = vmatpush.msra.mxu0 %v6191
        %v6193 = vand.u32 %v5995, 4294901760
        %v6194 = vsub.f32 %v5995, %v6193
        %v6195 = vand.u32 %v6194, 4294901760
        %v6196 = vsub.f32 %v6194, %v6195
        %v6197 = vand.u32 %v6196, 4294901760
        %6198 = vmatpush.msra.mxu0 %v6197
        %v6199 = vand.u32 %v5994, 4294901760
        %v6200 = vsub.f32 %v5994, %v6199
        %v6201 = vand.u32 %v6200, 4294901760
        %v6202 = vsub.f32 %v6200, %v6201
        %v6203 = vand.u32 %v6202, 4294901760
        %6204 = vmatpush.msra.mxu0 %v6203
        %v6205 = vand.u32 %v5993, 4294901760
        %v6206 = vsub.f32 %v5993, %v6205
        %v6207 = vand.u32 %v6206, 4294901760
        %v6208 = vsub.f32 %v6206, %v6207
        %v6209 = vand.u32 %v6208, 4294901760
        %6210 = vmatpush.msra.mxu0 %v6209
        %v6211 = vand.u32 %v5992, 4294901760
        %v6212 = vsub.f32 %v5992, %v6211
        %v6213 = vand.u32 %v6212, 4294901760
        %v6214 = vsub.f32 %v6212, %v6213
        %v6215 = vand.u32 %v6214, 4294901760
        %6216 = vmatpush.msra.mxu0 %v6215
        %v6217 = vand.u32 %v376, 4294901760
        %6218 = vmatmul.f32.gmra.mxu0 %v6217
        %v6219 = vpop.f32.mrf.mxu0
        %v6220 = vadd.f32 %v6063, %v6219
        %v6221 = vand.u32 %v378, 4294901760
        %6222 = vmatmul.f32.gmra.mxu0 %v6221
        %v6223 = vpop.f32.mrf.mxu0
        %v6224 = vadd.f32 %v6071, %v6223
        %v6225 = vand.u32 %v380, 4294901760
        %6226 = vmatmul.f32.gmra.mxu0 %v6225
        %v6227 = vpop.f32.mrf.mxu0
        %v6228 = vadd.f32 %v6079, %v6227
        %v6229 = vand.u32 %v382, 4294901760
        %6230 = vmatmul.f32.gmra.mxu0 %v6229
        %v6231 = vpop.f32.mrf.mxu0
        %v6232 = vadd.f32 %v6087, %v6231
        %v6233 = vand.u32 %v384, 4294901760
        %6234 = vmatmul.f32.gmra.mxu0 %v6233
        %v6235 = vpop.f32.mrf.mxu0
        %v6236 = vadd.f32 %v6095, %v6235
        %v6237 = vand.u32 %v386, 4294901760
        %6238 = vmatmul.f32.gmra.mxu0 %v6237
        %v6239 = vpop.f32.mrf.mxu0
        %v6240 = vadd.f32 %v6103, %v6239
        %v6241 = vand.u32 %v388, 4294901760
        %6242 = vmatmul.f32.gmra.mxu0 %v6241
        %v6243 = vpop.f32.mrf.mxu0
        %v6244 = vadd.f32 %v6111, %v6243
        %v6245 = vand.u32 %v390, 4294901760
        %6246 = vmatmul.f32.gmra.mxu0 %v6245
        %v6247 = vpop.f32.mrf.mxu0
        %v6248 = vadd.f32 %v6119, %v6247
        %6249 = vdwg.mxu0
        %v6250 = vand.u32 %v5975, 4294901760
        %v6251 = vsub.f32 %v5975, %v6250
        %6252 = vmatpush.msra.mxu0 %v6251
        %v6253 = vand.u32 %v5974, 4294901760
        %v6254 = vsub.f32 %v5974, %v6253
        %6255 = vmatpush.msra.mxu0 %v6254
        %v6256 = vand.u32 %v5973, 4294901760
        %v6257 = vsub.f32 %v5973, %v6256
        %6258 = vmatpush.msra.mxu0 %v6257
        %v6259 = vand.u32 %v5972, 4294901760
        %v6260 = vsub.f32 %v5972, %v6259
        %6261 = vmatpush.msra.mxu0 %v6260
        %v6262 = vand.u32 %v5971, 4294901760
        %v6263 = vsub.f32 %v5971, %v6262
        %6264 = vmatpush.msra.mxu0 %v6263
        %v6265 = vand.u32 %v5970, 4294901760
        %v6266 = vsub.f32 %v5970, %v6265
        %6267 = vmatpush.msra.mxu0 %v6266
        %v6268 = vand.u32 %v5969, 4294901760
        %v6269 = vsub.f32 %v5969, %v6268
        %6270 = vmatpush.msra.mxu0 %v6269
        %v6271 = vand.u32 %v5968, 4294901760
        %v6272 = vsub.f32 %v5968, %v6271
        %6273 = vmatpush.msra.mxu0 %v6272
        %v6274 = vand.u32 %v5999, 4294901760
        %v6275 = vsub.f32 %v5999, %v6274
        %6276 = vmatpush.msra.mxu0 %v6275
        %v6277 = vand.u32 %v5998, 4294901760
        %v6278 = vsub.f32 %v5998, %v6277
        %6279 = vmatpush.msra.mxu0 %v6278
        %v6280 = vand.u32 %v5997, 4294901760
        %v6281 = vsub.f32 %v5997, %v6280
        %6282 = vmatpush.msra.mxu0 %v6281
        %v6283 = vand.u32 %v5996, 4294901760
        %v6284 = vsub.f32 %v5996, %v6283
        %6285 = vmatpush.msra.mxu0 %v6284
        %v6286 = vand.u32 %v5995, 4294901760
        %v6287 = vsub.f32 %v5995, %v6286
        %6288 = vmatpush.msra.mxu0 %v6287
        %v6289 = vand.u32 %v5994, 4294901760
        %v6290 = vsub.f32 %v5994, %v6289
        %6291 = vmatpush.msra.mxu0 %v6290
        %v6292 = vand.u32 %v5993, 4294901760
        %v6293 = vsub.f32 %v5993, %v6292
        %6294 = vmatpush.msra.mxu0 %v6293
        %v6295 = vand.u32 %v5992, 4294901760
        %v6296 = vsub.f32 %v5992, %v6295
        %6297 = vmatpush.msra.mxu0 %v6296
        %v6298 = vand.u32 %v376, 4294901760
        %v6299 = vsub.f32 %v376, %v6298
        %6300 = vmatmul.f32.gmra.mxu0 %v6299
        %v6301 = vpop.f32.mrf.mxu0
        %v6302 = vadd.f32 %v6220, %v6301
        %v6303 = vand.u32 %v378, 4294901760
        %v6304 = vsub.f32 %v378, %v6303
        %6305 = vmatmul.f32.gmra.mxu0 %v6304
        %v6306 = vpop.f32.mrf.mxu0
        %v6307 = vadd.f32 %v6224, %v6306
        %v6308 = vand.u32 %v380, 4294901760
        %v6309 = vsub.f32 %v380, %v6308
        %6310 = vmatmul.f32.gmra.mxu0 %v6309
        %v6311 = vpop.f32.mrf.mxu0
        %v6312 = vadd.f32 %v6228, %v6311
        %v6313 = vand.u32 %v382, 4294901760
        %v6314 = vsub.f32 %v382, %v6313
        %6315 = vmatmul.f32.gmra.mxu0 %v6314
        %v6316 = vpop.f32.mrf.mxu0
        %v6317 = vadd.f32 %v6232, %v6316
        %v6318 = vand.u32 %v384, 4294901760
        %v6319 = vsub.f32 %v384, %v6318
        %6320 = vmatmul.f32.gmra.mxu0 %v6319
        %v6321 = vpop.f32.mrf.mxu0
        %v6322 = vadd.f32 %v6236, %v6321
        %v6323 = vand.u32 %v386, 4294901760
        %v6324 = vsub.f32 %v386, %v6323
        %6325 = vmatmul.f32.gmra.mxu0 %v6324
        %v6326 = vpop.f32.mrf.mxu0
        %v6327 = vadd.f32 %v6240, %v6326
        %v6328 = vand.u32 %v388, 4294901760
        %v6329 = vsub.f32 %v388, %v6328
        %6330 = vmatmul.f32.gmra.mxu0 %v6329
        %v6331 = vpop.f32.mrf.mxu0
        %v6332 = vadd.f32 %v6244, %v6331
        %v6333 = vand.u32 %v390, 4294901760
        %v6334 = vsub.f32 %v390, %v6333
        %6335 = vmatmul.f32.gmra.mxu0 %v6334
        %v6336 = vpop.f32.mrf.mxu0
        %v6337 = vadd.f32 %v6248, %v6336
        %6338 = vdwg.mxu0
        %v6339 = vand.u32 %v5975, 4294901760
        %6340 = vmatpush.msra.mxu0 %v6339
        %v6341 = vand.u32 %v5974, 4294901760
        %6342 = vmatpush.msra.mxu0 %v6341
        %v6343 = vand.u32 %v5973, 4294901760
        %6344 = vmatpush.msra.mxu0 %v6343
        %v6345 = vand.u32 %v5972, 4294901760
        %6346 = vmatpush.msra.mxu0 %v6345
        %v6347 = vand.u32 %v5971, 4294901760
        %6348 = vmatpush.msra.mxu0 %v6347
        %v6349 = vand.u32 %v5970, 4294901760
        %6350 = vmatpush.msra.mxu0 %v6349
        %v6351 = vand.u32 %v5969, 4294901760
        %6352 = vmatpush.msra.mxu0 %v6351
        %v6353 = vand.u32 %v5968, 4294901760
        %6354 = vmatpush.msra.mxu0 %v6353
        %v6355 = vand.u32 %v5999, 4294901760
        %6356 = vmatpush.msra.mxu0 %v6355
        %v6357 = vand.u32 %v5998, 4294901760
        %6358 = vmatpush.msra.mxu0 %v6357
        %v6359 = vand.u32 %v5997, 4294901760
        %6360 = vmatpush.msra.mxu0 %v6359
        %v6361 = vand.u32 %v5996, 4294901760
        %6362 = vmatpush.msra.mxu0 %v6361
        %v6363 = vand.u32 %v5995, 4294901760
        %6364 = vmatpush.msra.mxu0 %v6363
        %v6365 = vand.u32 %v5994, 4294901760
        %6366 = vmatpush.msra.mxu0 %v6365
        %v6367 = vand.u32 %v5993, 4294901760
        %6368 = vmatpush.msra.mxu0 %v6367
        %v6369 = vand.u32 %v5992, 4294901760
        %6370 = vmatpush.msra.mxu0 %v6369
        %v6371 = vand.u32 %v376, 4294901760
        %v6372 = vsub.f32 %v376, %v6371
        %v6373 = vand.u32 %v6372, 4294901760
        %6374 = vmatmul.f32.gmra.mxu0 %v6373
        %v6375 = vpop.f32.mrf.mxu0
        %v6376 = vadd.f32 %v6302, %v6375
        %v6377 = vand.u32 %v378, 4294901760
        %v6378 = vsub.f32 %v378, %v6377
        %v6379 = vand.u32 %v6378, 4294901760
        %6380 = vmatmul.f32.gmra.mxu0 %v6379
        %v6381 = vpop.f32.mrf.mxu0
        %v6382 = vadd.f32 %v6307, %v6381
        %v6383 = vand.u32 %v380, 4294901760
        %v6384 = vsub.f32 %v380, %v6383
        %v6385 = vand.u32 %v6384, 4294901760
        %6386 = vmatmul.f32.gmra.mxu0 %v6385
        %v6387 = vpop.f32.mrf.mxu0
        %v6388 = vadd.f32 %v6312, %v6387
        %v6389 = vand.u32 %v382, 4294901760
        %v6390 = vsub.f32 %v382, %v6389
        %v6391 = vand.u32 %v6390, 4294901760
        %6392 = vmatmul.f32.gmra.mxu0 %v6391
        %v6393 = vpop.f32.mrf.mxu0
        %v6394 = vadd.f32 %v6317, %v6393
        %v6395 = vand.u32 %v384, 4294901760
        %v6396 = vsub.f32 %v384, %v6395
        %v6397 = vand.u32 %v6396, 4294901760
        %6398 = vmatmul.f32.gmra.mxu0 %v6397
        %v6399 = vpop.f32.mrf.mxu0
        %v6400 = vadd.f32 %v6322, %v6399
        %v6401 = vand.u32 %v386, 4294901760
        %v6402 = vsub.f32 %v386, %v6401
        %v6403 = vand.u32 %v6402, 4294901760
        %6404 = vmatmul.f32.gmra.mxu0 %v6403
        %v6405 = vpop.f32.mrf.mxu0
        %v6406 = vadd.f32 %v6327, %v6405
        %v6407 = vand.u32 %v388, 4294901760
        %v6408 = vsub.f32 %v388, %v6407
        %v6409 = vand.u32 %v6408, 4294901760
        %6410 = vmatmul.f32.gmra.mxu0 %v6409
        %v6411 = vpop.f32.mrf.mxu0
        %v6412 = vadd.f32 %v6332, %v6411
        %v6413 = vand.u32 %v390, 4294901760
        %v6414 = vsub.f32 %v390, %v6413
        %v6415 = vand.u32 %v6414, 4294901760
        %6416 = vmatmul.f32.gmra.mxu0 %v6415
        %v6417 = vpop.f32.mrf.mxu0
        %v6418 = vadd.f32 %v6337, %v6417
        %6419 = vdwg.mxu0
        %v6420 = vand.u32 %v5975, 4294901760
        %v6421 = vsub.f32 %v5975, %v6420
        %v6422 = vand.u32 %v6421, 4294901760
        %6423 = vmatpush.msra.mxu0 %v6422
        %v6424 = vand.u32 %v5974, 4294901760
        %v6425 = vsub.f32 %v5974, %v6424
        %v6426 = vand.u32 %v6425, 4294901760
        %6427 = vmatpush.msra.mxu0 %v6426
        %v6428 = vand.u32 %v5973, 4294901760
        %v6429 = vsub.f32 %v5973, %v6428
        %v6430 = vand.u32 %v6429, 4294901760
        %6431 = vmatpush.msra.mxu0 %v6430
        %v6432 = vand.u32 %v5972, 4294901760
        %v6433 = vsub.f32 %v5972, %v6432
        %v6434 = vand.u32 %v6433, 4294901760
        %6435 = vmatpush.msra.mxu0 %v6434
        %v6436 = vand.u32 %v5971, 4294901760
        %v6437 = vsub.f32 %v5971, %v6436
        %v6438 = vand.u32 %v6437, 4294901760
        %6439 = vmatpush.msra.mxu0 %v6438
        %v6440 = vand.u32 %v5970, 4294901760
        %v6441 = vsub.f32 %v5970, %v6440
        %v6442 = vand.u32 %v6441, 4294901760
        %6443 = vmatpush.msra.mxu0 %v6442
        %v6444 = vand.u32 %v5969, 4294901760
        %v6445 = vsub.f32 %v5969, %v6444
        %v6446 = vand.u32 %v6445, 4294901760
        %6447 = vmatpush.msra.mxu0 %v6446
        %v6448 = vand.u32 %v5968, 4294901760
        %v6449 = vsub.f32 %v5968, %v6448
        %v6450 = vand.u32 %v6449, 4294901760
        %6451 = vmatpush.msra.mxu0 %v6450
        %v6452 = vand.u32 %v5999, 4294901760
        %v6453 = vsub.f32 %v5999, %v6452
        %v6454 = vand.u32 %v6453, 4294901760
        %6455 = vmatpush.msra.mxu0 %v6454
        %v6456 = vand.u32 %v5998, 4294901760
        %v6457 = vsub.f32 %v5998, %v6456
        %v6458 = vand.u32 %v6457, 4294901760
        %6459 = vmatpush.msra.mxu0 %v6458
        %v6460 = vand.u32 %v5997, 4294901760
        %v6461 = vsub.f32 %v5997, %v6460
        %v6462 = vand.u32 %v6461, 4294901760
        %6463 = vmatpush.msra.mxu0 %v6462
        %v6464 = vand.u32 %v5996, 4294901760
        %v6465 = vsub.f32 %v5996, %v6464
        %v6466 = vand.u32 %v6465, 4294901760
        %6467 = vmatpush.msra.mxu0 %v6466
        %v6468 = vand.u32 %v5995, 4294901760
        %v6469 = vsub.f32 %v5995, %v6468
        %v6470 = vand.u32 %v6469, 4294901760
        %6471 = vmatpush.msra.mxu0 %v6470
        %v6472 = vand.u32 %v5994, 4294901760
        %v6473 = vsub.f32 %v5994, %v6472
        %v6474 = vand.u32 %v6473, 4294901760
        %6475 = vmatpush.msra.mxu0 %v6474
        %v6476 = vand.u32 %v5993, 4294901760
        %v6477 = vsub.f32 %v5993, %v6476
        %v6478 = vand.u32 %v6477, 4294901760
        %6479 = vmatpush.msra.mxu0 %v6478
        %v6480 = vand.u32 %v5992, 4294901760
        %v6481 = vsub.f32 %v5992, %v6480
        %v6482 = vand.u32 %v6481, 4294901760
        %6483 = vmatpush.msra.mxu0 %v6482
        %v6484 = vand.u32 %v376, 4294901760
        %6485 = vmatmul.f32.gmra.mxu0 %v6484
        %v6486 = vpop.f32.mrf.mxu0
        %v6487 = vadd.f32 %v6376, %v6486
        %v6488 = vand.u32 %v378, 4294901760
        %6489 = vmatmul.f32.gmra.mxu0 %v6488
        %v6490 = vpop.f32.mrf.mxu0
        %v6491 = vadd.f32 %v6382, %v6490
        %v6492 = vand.u32 %v380, 4294901760
        %6493 = vmatmul.f32.gmra.mxu0 %v6492
        %v6494 = vpop.f32.mrf.mxu0
        %v6495 = vadd.f32 %v6388, %v6494
        %v6496 = vand.u32 %v382, 4294901760
        %6497 = vmatmul.f32.gmra.mxu0 %v6496
        %v6498 = vpop.f32.mrf.mxu0
        %v6499 = vadd.f32 %v6394, %v6498
        %v6500 = vand.u32 %v384, 4294901760
        %6501 = vmatmul.f32.gmra.mxu0 %v6500
        %v6502 = vpop.f32.mrf.mxu0
        %v6503 = vadd.f32 %v6400, %v6502
        %v6504 = vand.u32 %v386, 4294901760
        %6505 = vmatmul.f32.gmra.mxu0 %v6504
        %v6506 = vpop.f32.mrf.mxu0
        %v6507 = vadd.f32 %v6406, %v6506
        %v6508 = vand.u32 %v388, 4294901760
        %6509 = vmatmul.f32.gmra.mxu0 %v6508
        %v6510 = vpop.f32.mrf.mxu0
        %v6511 = vadd.f32 %v6412, %v6510
        %v6512 = vand.u32 %v390, 4294901760
        %6513 = vmatmul.f32.gmra.mxu0 %v6512
        %v6514 = vpop.f32.mrf.mxu0
        %v6515 = vadd.f32 %v6418, %v6514
        %6516 = vdwg.mxu0
        %v6517 = vand.u32 %v5975, 4294901760
        %6518 = vmatpush.msra.mxu0 %v6517
        %v6519 = vand.u32 %v5974, 4294901760
        %6520 = vmatpush.msra.mxu0 %v6519
        %v6521 = vand.u32 %v5973, 4294901760
        %6522 = vmatpush.msra.mxu0 %v6521
        %v6523 = vand.u32 %v5972, 4294901760
        %6524 = vmatpush.msra.mxu0 %v6523
        %v6525 = vand.u32 %v5971, 4294901760
        %6526 = vmatpush.msra.mxu0 %v6525
        %v6527 = vand.u32 %v5970, 4294901760
        %6528 = vmatpush.msra.mxu0 %v6527
        %v6529 = vand.u32 %v5969, 4294901760
        %6530 = vmatpush.msra.mxu0 %v6529
        %v6531 = vand.u32 %v5968, 4294901760
        %6532 = vmatpush.msra.mxu0 %v6531
        %v6533 = vand.u32 %v5999, 4294901760
        %6534 = vmatpush.msra.mxu0 %v6533
        %v6535 = vand.u32 %v5998, 4294901760
        %6536 = vmatpush.msra.mxu0 %v6535
        %v6537 = vand.u32 %v5997, 4294901760
        %6538 = vmatpush.msra.mxu0 %v6537
        %v6539 = vand.u32 %v5996, 4294901760
        %6540 = vmatpush.msra.mxu0 %v6539
        %v6541 = vand.u32 %v5995, 4294901760
        %6542 = vmatpush.msra.mxu0 %v6541
        %v6543 = vand.u32 %v5994, 4294901760
        %6544 = vmatpush.msra.mxu0 %v6543
        %v6545 = vand.u32 %v5993, 4294901760
        %6546 = vmatpush.msra.mxu0 %v6545
        %v6547 = vand.u32 %v5992, 4294901760
        %6548 = vmatpush.msra.mxu0 %v6547
        %v6549 = vand.u32 %v376, 4294901760
        %6550 = vmatmul.f32.gmra.mxu0 %v6549
        %v6551 = vpop.f32.mrf.mxu0
        %v6552 = vadd.f32 %v6487, %v6551
        %v6553 = vand.u32 %v378, 4294901760
        %6554 = vmatmul.f32.gmra.mxu0 %v6553
        %v6555 = vpop.f32.mrf.mxu0
        %v6556 = vadd.f32 %v6491, %v6555
        %v6557 = vand.u32 %v380, 4294901760
        %6558 = vmatmul.f32.gmra.mxu0 %v6557
        %v6559 = vpop.f32.mrf.mxu0
        %v6560 = vadd.f32 %v6495, %v6559
        %v6561 = vand.u32 %v382, 4294901760
        %6562 = vmatmul.f32.gmra.mxu0 %v6561
        %v6563 = vpop.f32.mrf.mxu0
        %v6564 = vadd.f32 %v6499, %v6563
        %v6565 = vand.u32 %v384, 4294901760
        %6566 = vmatmul.f32.gmra.mxu0 %v6565
        %v6567 = vpop.f32.mrf.mxu0
        %v6568 = vadd.f32 %v6503, %v6567
        %v6569 = vand.u32 %v386, 4294901760
        %6570 = vmatmul.f32.gmra.mxu0 %v6569
        %v6571 = vpop.f32.mrf.mxu0
        %v6572 = vadd.f32 %v6507, %v6571
        %v6573 = vand.u32 %v388, 4294901760
        %6574 = vmatmul.f32.gmra.mxu0 %v6573
        %v6575 = vpop.f32.mrf.mxu0
        %v6576 = vadd.f32 %v6511, %v6575
        %v6577 = vand.u32 %v390, 4294901760
        %6578 = vmatmul.f32.gmra.mxu0 %v6577
        %v6579 = vpop.f32.mrf.mxu0
        %v6580 = vadd.f32 %v6515, %v6579
        %6581 = vdwg.mxu0
        %6582 = vmatpush.msra.mxu0 0.0
        %6583 = vmatpush.msra.mxu0 0.0
        %6584 = vmatpush.msra.mxu0 0.0
        %6585 = vmatpush.msra.mxu0 0.0
        %6586 = vmatpush.msra.mxu0 0.0
        %6587 = vmatpush.msra.mxu0 0.0
        %6588 = vmatpush.msra.mxu0 0.0
        %6589 = vmatpush.msra.mxu0 0.0
        %v6590 = vand.u32 %v6023, 4294901760
        %6591 = vmatpush.msra.mxu0 %v6590
        %v6592 = vand.u32 %v6022, 4294901760
        %6593 = vmatpush.msra.mxu0 %v6592
        %v6594 = vand.u32 %v6021, 4294901760
        %6595 = vmatpush.msra.mxu0 %v6594
        %v6596 = vand.u32 %v6020, 4294901760
        %6597 = vmatpush.msra.mxu0 %v6596
        %v6598 = vand.u32 %v6019, 4294901760
        %6599 = vmatpush.msra.mxu0 %v6598
        %v6600 = vand.u32 %v6018, 4294901760
        %6601 = vmatpush.msra.mxu0 %v6600
        %v6602 = vand.u32 %v6017, 4294901760
        %6603 = vmatpush.msra.mxu0 %v6602
        %v6604 = vand.u32 %v6016, 4294901760
        %6605 = vmatpush.msra.mxu0 %v6604
        %v6606 = vand.u32 %v2773, 4294901760
        %v6607 = vsub.f32 %v2773, %v6606
        %v6608 = vand.u32 %v6607, 4294901760
        %v6609 = vsub.f32 %v6607, %v6608
        %v6610 = vand.u32 %v6609, 4294901760
        %6611 = vmatmul.f32.gmra.mxu0 %v6610
        %v6612 = vpop.f32.mrf.mxu0
        %v6613 = vadd.f32 %v6552, %v6612
        %v6614 = vand.u32 %v2776, 4294901760
        %v6615 = vsub.f32 %v2776, %v6614
        %v6616 = vand.u32 %v6615, 4294901760
        %v6617 = vsub.f32 %v6615, %v6616
        %v6618 = vand.u32 %v6617, 4294901760
        %6619 = vmatmul.f32.gmra.mxu0 %v6618
        %v6620 = vpop.f32.mrf.mxu0
        %v6621 = vadd.f32 %v6556, %v6620
        %v6622 = vand.u32 %v2779, 4294901760
        %v6623 = vsub.f32 %v2779, %v6622
        %v6624 = vand.u32 %v6623, 4294901760
        %v6625 = vsub.f32 %v6623, %v6624
        %v6626 = vand.u32 %v6625, 4294901760
        %6627 = vmatmul.f32.gmra.mxu0 %v6626
        %v6628 = vpop.f32.mrf.mxu0
        %v6629 = vadd.f32 %v6560, %v6628
        %v6630 = vand.u32 %v2782, 4294901760
        %v6631 = vsub.f32 %v2782, %v6630
        %v6632 = vand.u32 %v6631, 4294901760
        %v6633 = vsub.f32 %v6631, %v6632
        %v6634 = vand.u32 %v6633, 4294901760
        %6635 = vmatmul.f32.gmra.mxu0 %v6634
        %v6636 = vpop.f32.mrf.mxu0
        %v6637 = vadd.f32 %v6564, %v6636
        %v6638 = vand.u32 %v2785, 4294901760
        %v6639 = vsub.f32 %v2785, %v6638
        %v6640 = vand.u32 %v6639, 4294901760
        %v6641 = vsub.f32 %v6639, %v6640
        %v6642 = vand.u32 %v6641, 4294901760
        %6643 = vmatmul.f32.gmra.mxu0 %v6642
        %v6644 = vpop.f32.mrf.mxu0
        %v6645 = vadd.f32 %v6568, %v6644
        %v6646 = vand.u32 %v2788, 4294901760
        %v6647 = vsub.f32 %v2788, %v6646
        %v6648 = vand.u32 %v6647, 4294901760
        %v6649 = vsub.f32 %v6647, %v6648
        %v6650 = vand.u32 %v6649, 4294901760
        %6651 = vmatmul.f32.gmra.mxu0 %v6650
        %v6652 = vpop.f32.mrf.mxu0
        %v6653 = vadd.f32 %v6572, %v6652
        %v6654 = vand.u32 %v2791, 4294901760
        %v6655 = vsub.f32 %v2791, %v6654
        %v6656 = vand.u32 %v6655, 4294901760
        %v6657 = vsub.f32 %v6655, %v6656
        %v6658 = vand.u32 %v6657, 4294901760
        %6659 = vmatmul.f32.gmra.mxu0 %v6658
        %v6660 = vpop.f32.mrf.mxu0
        %v6661 = vadd.f32 %v6576, %v6660
        %v6662 = vand.u32 %v2794, 4294901760
        %v6663 = vsub.f32 %v2794, %v6662
        %v6664 = vand.u32 %v6663, 4294901760
        %v6665 = vsub.f32 %v6663, %v6664
        %v6666 = vand.u32 %v6665, 4294901760
        %6667 = vmatmul.f32.gmra.mxu0 %v6666
        %v6668 = vpop.f32.mrf.mxu0
        %v6669 = vadd.f32 %v6580, %v6668
        %6670 = vdwg.mxu0
        %6671 = vmatpush.msra.mxu0 0.0
        %6672 = vmatpush.msra.mxu0 0.0
        %6673 = vmatpush.msra.mxu0 0.0
        %6674 = vmatpush.msra.mxu0 0.0
        %6675 = vmatpush.msra.mxu0 0.0
        %6676 = vmatpush.msra.mxu0 0.0
        %6677 = vmatpush.msra.mxu0 0.0
        %6678 = vmatpush.msra.mxu0 0.0
        %v6679 = vand.u32 %v6023, 4294901760
        %v6680 = vsub.f32 %v6023, %v6679
        %v6681 = vand.u32 %v6680, 4294901760
        %v6682 = vsub.f32 %v6680, %v6681
        %v6683 = vand.u32 %v6682, 4294901760
        %6684 = vmatpush.msra.mxu0 %v6683
        %v6685 = vand.u32 %v6022, 4294901760
        %v6686 = vsub.f32 %v6022, %v6685
        %v6687 = vand.u32 %v6686, 4294901760
        %v6688 = vsub.f32 %v6686, %v6687
        %v6689 = vand.u32 %v6688, 4294901760
        %6690 = vmatpush.msra.mxu0 %v6689
        %v6691 = vand.u32 %v6021, 4294901760
        %v6692 = vsub.f32 %v6021, %v6691
        %v6693 = vand.u32 %v6692, 4294901760
        %v6694 = vsub.f32 %v6692, %v6693
        %v6695 = vand.u32 %v6694, 4294901760
        %6696 = vmatpush.msra.mxu0 %v6695
        %v6697 = vand.u32 %v6020, 4294901760
        %v6698 = vsub.f32 %v6020, %v6697
        %v6699 = vand.u32 %v6698, 4294901760
        %v6700 = vsub.f32 %v6698, %v6699
        %v6701 = vand.u32 %v6700, 4294901760
        %6702 = vmatpush.msra.mxu0 %v6701
        %v6703 = vand.u32 %v6019, 4294901760
        %v6704 = vsub.f32 %v6019, %v6703
        %v6705 = vand.u32 %v6704, 4294901760
        %v6706 = vsub.f32 %v6704, %v6705
        %v6707 = vand.u32 %v6706, 4294901760
        %6708 = vmatpush.msra.mxu0 %v6707
        %v6709 = vand.u32 %v6018, 4294901760
        %v6710 = vsub.f32 %v6018, %v6709
        %v6711 = vand.u32 %v6710, 4294901760
        %v6712 = vsub.f32 %v6710, %v6711
        %v6713 = vand.u32 %v6712, 4294901760
        %6714 = vmatpush.msra.mxu0 %v6713
        %v6715 = vand.u32 %v6017, 4294901760
        %v6716 = vsub.f32 %v6017, %v6715
        %v6717 = vand.u32 %v6716, 4294901760
        %v6718 = vsub.f32 %v6716, %v6717
        %v6719 = vand.u32 %v6718, 4294901760
        %6720 = vmatpush.msra.mxu0 %v6719
        %v6721 = vand.u32 %v6016, 4294901760
        %v6722 = vsub.f32 %v6016, %v6721
        %v6723 = vand.u32 %v6722, 4294901760
        %v6724 = vsub.f32 %v6722, %v6723
        %v6725 = vand.u32 %v6724, 4294901760
        %6726 = vmatpush.msra.mxu0 %v6725
        %v6727 = vand.u32 %v2773, 4294901760
        %6728 = vmatmul.f32.gmra.mxu0 %v6727
        %v6729 = vpop.f32.mrf.mxu0
        %v6730 = vadd.f32 %v6613, %v6729
        %v6731 = vand.u32 %v2776, 4294901760
        %6732 = vmatmul.f32.gmra.mxu0 %v6731
        %v6733 = vpop.f32.mrf.mxu0
        %v6734 = vadd.f32 %v6621, %v6733
        %v6735 = vand.u32 %v2779, 4294901760
        %6736 = vmatmul.f32.gmra.mxu0 %v6735
        %v6737 = vpop.f32.mrf.mxu0
        %v6738 = vadd.f32 %v6629, %v6737
        %v6739 = vand.u32 %v2782, 4294901760
        %6740 = vmatmul.f32.gmra.mxu0 %v6739
        %v6741 = vpop.f32.mrf.mxu0
        %v6742 = vadd.f32 %v6637, %v6741
        %v6743 = vand.u32 %v2785, 4294901760
        %6744 = vmatmul.f32.gmra.mxu0 %v6743
        %v6745 = vpop.f32.mrf.mxu0
        %v6746 = vadd.f32 %v6645, %v6745
        %v6747 = vand.u32 %v2788, 4294901760
        %6748 = vmatmul.f32.gmra.mxu0 %v6747
        %v6749 = vpop.f32.mrf.mxu0
        %v6750 = vadd.f32 %v6653, %v6749
        %v6751 = vand.u32 %v2791, 4294901760
        %6752 = vmatmul.f32.gmra.mxu0 %v6751
        %v6753 = vpop.f32.mrf.mxu0
        %v6754 = vadd.f32 %v6661, %v6753
        %v6755 = vand.u32 %v2794, 4294901760
        %6756 = vmatmul.f32.gmra.mxu0 %v6755
        %v6757 = vpop.f32.mrf.mxu0
        %v6758 = vadd.f32 %v6669, %v6757
        %6759 = vdwg.mxu0
        %6760 = vmatpush.msra.mxu0 0.0
        %6761 = vmatpush.msra.mxu0 0.0
        %6762 = vmatpush.msra.mxu0 0.0
        %6763 = vmatpush.msra.mxu0 0.0
        %6764 = vmatpush.msra.mxu0 0.0
        %6765 = vmatpush.msra.mxu0 0.0
        %6766 = vmatpush.msra.mxu0 0.0
        %6767 = vmatpush.msra.mxu0 0.0
        %v6768 = vand.u32 %v6023, 4294901760
        %v6769 = vsub.f32 %v6023, %v6768
        %6770 = vmatpush.msra.mxu0 %v6769
        %v6771 = vand.u32 %v6022, 4294901760
        %v6772 = vsub.f32 %v6022, %v6771
        %6773 = vmatpush.msra.mxu0 %v6772
        %v6774 = vand.u32 %v6021, 4294901760
        %v6775 = vsub.f32 %v6021, %v6774
        %6776 = vmatpush.msra.mxu0 %v6775
        %v6777 = vand.u32 %v6020, 4294901760
        %v6778 = vsub.f32 %v6020, %v6777
        %6779 = vmatpush.msra.mxu0 %v6778
        %v6780 = vand.u32 %v6019, 4294901760
        %v6781 = vsub.f32 %v6019, %v6780
        %6782 = vmatpush.msra.mxu0 %v6781
        %v6783 = vand.u32 %v6018, 4294901760
        %v6784 = vsub.f32 %v6018, %v6783
        %6785 = vmatpush.msra.mxu0 %v6784
        %v6786 = vand.u32 %v6017, 4294901760
        %v6787 = vsub.f32 %v6017, %v6786
        %6788 = vmatpush.msra.mxu0 %v6787
        %v6789 = vand.u32 %v6016, 4294901760
        %v6790 = vsub.f32 %v6016, %v6789
        %6791 = vmatpush.msra.mxu0 %v6790
        %v6792 = vand.u32 %v2773, 4294901760
        %v6793 = vsub.f32 %v2773, %v6792
        %6794 = vmatmul.f32.gmra.mxu0 %v6793
        %v6795 = vpop.f32.mrf.mxu0
        %v6796 = vadd.f32 %v6730, %v6795
        %v6797 = vand.u32 %v2776, 4294901760
        %v6798 = vsub.f32 %v2776, %v6797
        %6799 = vmatmul.f32.gmra.mxu0 %v6798
        %v6800 = vpop.f32.mrf.mxu0
        %v6801 = vadd.f32 %v6734, %v6800
        %v6802 = vand.u32 %v2779, 4294901760
        %v6803 = vsub.f32 %v2779, %v6802
        %6804 = vmatmul.f32.gmra.mxu0 %v6803
        %v6805 = vpop.f32.mrf.mxu0
        %v6806 = vadd.f32 %v6738, %v6805
        %v6807 = vand.u32 %v2782, 4294901760
        %v6808 = vsub.f32 %v2782, %v6807
        %6809 = vmatmul.f32.gmra.mxu0 %v6808
        %v6810 = vpop.f32.mrf.mxu0
        %v6811 = vadd.f32 %v6742, %v6810
        %v6812 = vand.u32 %v2785, 4294901760
        %v6813 = vsub.f32 %v2785, %v6812
        %6814 = vmatmul.f32.gmra.mxu0 %v6813
        %v6815 = vpop.f32.mrf.mxu0
        %v6816 = vadd.f32 %v6746, %v6815
        %v6817 = vand.u32 %v2788, 4294901760
        %v6818 = vsub.f32 %v2788, %v6817
        %6819 = vmatmul.f32.gmra.mxu0 %v6818
        %v6820 = vpop.f32.mrf.mxu0
        %v6821 = vadd.f32 %v6750, %v6820
        %v6822 = vand.u32 %v2791, 4294901760
        %v6823 = vsub.f32 %v2791, %v6822
        %6824 = vmatmul.f32.gmra.mxu0 %v6823
        %v6825 = vpop.f32.mrf.mxu0
        %v6826 = vadd.f32 %v6754, %v6825
        %v6827 = vand.u32 %v2794, 4294901760
        %v6828 = vsub.f32 %v2794, %v6827
        %6829 = vmatmul.f32.gmra.mxu0 %v6828
        %v6830 = vpop.f32.mrf.mxu0
        %v6831 = vadd.f32 %v6758, %v6830
        %6832 = vdwg.mxu0
        %6833 = vmatpush.msra.mxu0 0.0
        %6834 = vmatpush.msra.mxu0 0.0
        %6835 = vmatpush.msra.mxu0 0.0
        %6836 = vmatpush.msra.mxu0 0.0
        %6837 = vmatpush.msra.mxu0 0.0
        %6838 = vmatpush.msra.mxu0 0.0
        %6839 = vmatpush.msra.mxu0 0.0
        %6840 = vmatpush.msra.mxu0 0.0
        %v6841 = vand.u32 %v6023, 4294901760
        %6842 = vmatpush.msra.mxu0 %v6841
        %v6843 = vand.u32 %v6022, 4294901760
        %6844 = vmatpush.msra.mxu0 %v6843
        %v6845 = vand.u32 %v6021, 4294901760
        %6846 = vmatpush.msra.mxu0 %v6845
        %v6847 = vand.u32 %v6020, 4294901760
        %6848 = vmatpush.msra.mxu0 %v6847
        %v6849 = vand.u32 %v6019, 4294901760
        %6850 = vmatpush.msra.mxu0 %v6849
        %v6851 = vand.u32 %v6018, 4294901760
        %6852 = vmatpush.msra.mxu0 %v6851
        %v6853 = vand.u32 %v6017, 4294901760
        %6854 = vmatpush.msra.mxu0 %v6853
        %v6855 = vand.u32 %v6016, 4294901760
        %6856 = vmatpush.msra.mxu0 %v6855
        %v6857 = vand.u32 %v2773, 4294901760
        %v6858 = vsub.f32 %v2773, %v6857
        %v6859 = vand.u32 %v6858, 4294901760
        %6860 = vmatmul.f32.gmra.mxu0 %v6859
        %v6861 = vpop.f32.mrf.mxu0
        %v6862 = vadd.f32 %v6796, %v6861
        %v6863 = vand.u32 %v2776, 4294901760
        %v6864 = vsub.f32 %v2776, %v6863
        %v6865 = vand.u32 %v6864, 4294901760
        %6866 = vmatmul.f32.gmra.mxu0 %v6865
        %v6867 = vpop.f32.mrf.mxu0
        %v6868 = vadd.f32 %v6801, %v6867
        %v6869 = vand.u32 %v2779, 4294901760
        %v6870 = vsub.f32 %v2779, %v6869
        %v6871 = vand.u32 %v6870, 4294901760
        %6872 = vmatmul.f32.gmra.mxu0 %v6871
        %v6873 = vpop.f32.mrf.mxu0
        %v6874 = vadd.f32 %v6806, %v6873
        %v6875 = vand.u32 %v2782, 4294901760
        %v6876 = vsub.f32 %v2782, %v6875
        %v6877 = vand.u32 %v6876, 4294901760
        %6878 = vmatmul.f32.gmra.mxu0 %v6877
        %v6879 = vpop.f32.mrf.mxu0
        %v6880 = vadd.f32 %v6811, %v6879
        %v6881 = vand.u32 %v2785, 4294901760
        %v6882 = vsub.f32 %v2785, %v6881
        %v6883 = vand.u32 %v6882, 4294901760
        %6884 = vmatmul.f32.gmra.mxu0 %v6883
        %v6885 = vpop.f32.mrf.mxu0
        %v6886 = vadd.f32 %v6816, %v6885
        %v6887 = vand.u32 %v2788, 4294901760
        %v6888 = vsub.f32 %v2788, %v6887
        %v6889 = vand.u32 %v6888, 4294901760
        %6890 = vmatmul.f32.gmra.mxu0 %v6889
        %v6891 = vpop.f32.mrf.mxu0
        %v6892 = vadd.f32 %v6821, %v6891
        %v6893 = vand.u32 %v2791, 4294901760
        %v6894 = vsub.f32 %v2791, %v6893
        %v6895 = vand.u32 %v6894, 4294901760
        %6896 = vmatmul.f32.gmra.mxu0 %v6895
        %v6897 = vpop.f32.mrf.mxu0
        %v6898 = vadd.f32 %v6826, %v6897
        %v6899 = vand.u32 %v2794, 4294901760
        %v6900 = vsub.f32 %v2794, %v6899
        %v6901 = vand.u32 %v6900, 4294901760
        %6902 = vmatmul.f32.gmra.mxu0 %v6901
        %v6903 = vpop.f32.mrf.mxu0
        %v6904 = vadd.f32 %v6831, %v6903
        %6905 = vdwg.mxu0
        %6906 = vmatpush.msra.mxu0 0.0
        %6907 = vmatpush.msra.mxu0 0.0
        %6908 = vmatpush.msra.mxu0 0.0
        %6909 = vmatpush.msra.mxu0 0.0
        %6910 = vmatpush.msra.mxu0 0.0
        %6911 = vmatpush.msra.mxu0 0.0
        %6912 = vmatpush.msra.mxu0 0.0
        %6913 = vmatpush.msra.mxu0 0.0
        %v6914 = vand.u32 %v6023, 4294901760
        %v6915 = vsub.f32 %v6023, %v6914
        %v6916 = vand.u32 %v6915, 4294901760
        %6917 = vmatpush.msra.mxu0 %v6916
        %v6918 = vand.u32 %v6022, 4294901760
        %v6919 = vsub.f32 %v6022, %v6918
        %v6920 = vand.u32 %v6919, 4294901760
        %6921 = vmatpush.msra.mxu0 %v6920
        %v6922 = vand.u32 %v6021, 4294901760
        %v6923 = vsub.f32 %v6021, %v6922
        %v6924 = vand.u32 %v6923, 4294901760
        %6925 = vmatpush.msra.mxu0 %v6924
        %v6926 = vand.u32 %v6020, 4294901760
        %v6927 = vsub.f32 %v6020, %v6926
        %v6928 = vand.u32 %v6927, 4294901760
        %6929 = vmatpush.msra.mxu0 %v6928
        %v6930 = vand.u32 %v6019, 4294901760
        %v6931 = vsub.f32 %v6019, %v6930
        %v6932 = vand.u32 %v6931, 4294901760
        %6933 = vmatpush.msra.mxu0 %v6932
        %v6934 = vand.u32 %v6018, 4294901760
        %v6935 = vsub.f32 %v6018, %v6934
        %v6936 = vand.u32 %v6935, 4294901760
        %6937 = vmatpush.msra.mxu0 %v6936
        %v6938 = vand.u32 %v6017, 4294901760
        %v6939 = vsub.f32 %v6017, %v6938
        %v6940 = vand.u32 %v6939, 4294901760
        %6941 = vmatpush.msra.mxu0 %v6940
        %v6942 = vand.u32 %v6016, 4294901760
        %v6943 = vsub.f32 %v6016, %v6942
        %v6944 = vand.u32 %v6943, 4294901760
        %6945 = vmatpush.msra.mxu0 %v6944
        %v6946 = vand.u32 %v2773, 4294901760
        %6947 = vmatmul.f32.gmra.mxu0 %v6946
        %v6948 = vpop.f32.mrf.mxu0
        %v6949 = vadd.f32 %v6862, %v6948
        %v6950 = vand.u32 %v2776, 4294901760
        %6951 = vmatmul.f32.gmra.mxu0 %v6950
        %v6952 = vpop.f32.mrf.mxu0
        %v6953 = vadd.f32 %v6868, %v6952
        %v6954 = vand.u32 %v2779, 4294901760
        %6955 = vmatmul.f32.gmra.mxu0 %v6954
        %v6956 = vpop.f32.mrf.mxu0
        %v6957 = vadd.f32 %v6874, %v6956
        %v6958 = vand.u32 %v2782, 4294901760
        %6959 = vmatmul.f32.gmra.mxu0 %v6958
        %v6960 = vpop.f32.mrf.mxu0
        %v6961 = vadd.f32 %v6880, %v6960
        %v6962 = vand.u32 %v2785, 4294901760
        %6963 = vmatmul.f32.gmra.mxu0 %v6962
        %v6964 = vpop.f32.mrf.mxu0
        %v6965 = vadd.f32 %v6886, %v6964
        %v6966 = vand.u32 %v2788, 4294901760
        %6967 = vmatmul.f32.gmra.mxu0 %v6966
        %v6968 = vpop.f32.mrf.mxu0
        %v6969 = vadd.f32 %v6892, %v6968
        %v6970 = vand.u32 %v2791, 4294901760
        %6971 = vmatmul.f32.gmra.mxu0 %v6970
        %v6972 = vpop.f32.mrf.mxu0
        %v6973 = vadd.f32 %v6898, %v6972
        %v6974 = vand.u32 %v2794, 4294901760
        %6975 = vmatmul.f32.gmra.mxu0 %v6974
        %v6976 = vpop.f32.mrf.mxu0
        %v6977 = vadd.f32 %v6904, %v6976
        %6978 = vdwg.mxu0
        %6979 = vmatpush.msra.mxu0 0.0
        %6980 = vmatpush.msra.mxu0 0.0
        %6981 = vmatpush.msra.mxu0 0.0
        %6982 = vmatpush.msra.mxu0 0.0
        %6983 = vmatpush.msra.mxu0 0.0
        %6984 = vmatpush.msra.mxu0 0.0
        %6985 = vmatpush.msra.mxu0 0.0
        %6986 = vmatpush.msra.mxu0 0.0
        %v6987 = vand.u32 %v6023, 4294901760
        %6988 = vmatpush.msra.mxu0 %v6987
        %v6989 = vand.u32 %v6022, 4294901760
        %6990 = vmatpush.msra.mxu0 %v6989
        %v6991 = vand.u32 %v6021, 4294901760
        %6992 = vmatpush.msra.mxu0 %v6991
        %v6993 = vand.u32 %v6020, 4294901760
        %6994 = vmatpush.msra.mxu0 %v6993
        %v6995 = vand.u32 %v6019, 4294901760
        %6996 = vmatpush.msra.mxu0 %v6995
        %v6997 = vand.u32 %v6018, 4294901760
        %6998 = vmatpush.msra.mxu0 %v6997
        %v6999 = vand.u32 %v6017, 4294901760
        %7000 = vmatpush.msra.mxu0 %v6999
        %v7001 = vand.u32 %v6016, 4294901760
        %7002 = vmatpush.msra.mxu0 %v7001
        %v7003 = vand.u32 %v2773, 4294901760
        %7004 = vmatmul.f32.gmra.mxu0 %v7003
        %v7005 = vpop.f32.mrf.mxu0
        %v7006 = vadd.f32 %v6949, %v7005
        %v7007 = vand.u32 %v2776, 4294901760
        %7008 = vmatmul.f32.gmra.mxu0 %v7007
        %v7009 = vpop.f32.mrf.mxu0
        %v7010 = vadd.f32 %v6953, %v7009
        %v7011 = vand.u32 %v2779, 4294901760
        %7012 = vmatmul.f32.gmra.mxu0 %v7011
        %v7013 = vpop.f32.mrf.mxu0
        %v7014 = vadd.f32 %v6957, %v7013
        %v7015 = vand.u32 %v2782, 4294901760
        %7016 = vmatmul.f32.gmra.mxu0 %v7015
        %v7017 = vpop.f32.mrf.mxu0
        %v7018 = vadd.f32 %v6961, %v7017
        %v7019 = vand.u32 %v2785, 4294901760
        %7020 = vmatmul.f32.gmra.mxu0 %v7019
        %v7021 = vpop.f32.mrf.mxu0
        %v7022 = vadd.f32 %v6965, %v7021
        %v7023 = vand.u32 %v2788, 4294901760
        %7024 = vmatmul.f32.gmra.mxu0 %v7023
        %v7025 = vpop.f32.mrf.mxu0
        %v7026 = vadd.f32 %v6969, %v7025
        %v7027 = vand.u32 %v2791, 4294901760
        %7028 = vmatmul.f32.gmra.mxu0 %v7027
        %v7029 = vpop.f32.mrf.mxu0
        %v7030 = vadd.f32 %v6973, %v7029
        %v7031 = vand.u32 %v2794, 4294901760
        %7032 = vmatmul.f32.gmra.mxu0 %v7031
        %v7033 = vpop.f32.mrf.mxu0
        %v7034 = vadd.f32 %v6977, %v7033
        %7035 = vdwg.mxu0
        %7036 = vst [vmem:[%s2666] sm:$0xff] %v7006
        %7037 = vst [vmem:[%s2666 + $0x8] sm:$0xff] %v7010
        %7038 = vst [vmem:[%s2666 + $0x10] sm:$0xff] %v7014
        %7039 = vst [vmem:[%s2666 + $0x18] sm:$0xff] %v7018
        %7040 = vst [vmem:[%s2666 + $0x20] sm:$0xff] %v7022
        %7041 = vst [vmem:[%s2666 + $0x28] sm:$0xff] %v7026
        %7042 = vst [vmem:[%s2666 + $0x30] sm:$0xff] %v7030
        %7043 = vst [vmem:[%s2666 + $0x38] sm:$0xff] %v7034
        %v7044 = vld [vmem:[#allocation2] sm:$0xff]
        %v7045 = vld [vmem:[#allocation2 + $0x8] sm:$0xff]
        %v7046 = vld [vmem:[#allocation2 + $0x10] sm:$0xff]
        %v7047 = vld [vmem:[#allocation2 + $0x18] sm:$0xff]
        %v7048 = vld [vmem:[#allocation2 + $0x20] sm:$0xff]
        %v7049 = vld [vmem:[#allocation2 + $0x28] sm:$0xff]
        %v7050 = vld [vmem:[#allocation2 + $0x30] sm:$0xff]
        %v7051 = vld [vmem:[#allocation2 + $0x38] sm:$0xff]
        %v7052 = vld [vmem:[#allocation2 + $0x40] sm:$0xff]
        %v7053 = vld [vmem:[#allocation2 + $0x48] sm:$0xff]
        %v7054 = vld [vmem:[#allocation2 + $0x50] sm:$0xff]
        %v7055 = vld [vmem:[#allocation2 + $0x58] sm:$0xff]
        %v7056 = vld [vmem:[#allocation2 + $0x60] sm:$0xff]
        %v7057 = vld [vmem:[#allocation2 + $0x68] sm:$0xff]
        %v7058 = vld [vmem:[#allocation2 + $0x70] sm:$0xff]
        %v7059 = vld [vmem:[#allocation2 + $0x78] sm:$0xff]
        %v7060 = vld [vmem:[#allocation2 + $0x80] sm:$0xff]
        %v7061 = vld [vmem:[#allocation2 + $0x88] sm:$0xff]
        %v7062 = vld [vmem:[#allocation2 + $0x90] sm:$0xff]
        %v7063 = vld [vmem:[#allocation2 + $0x98] sm:$0xff]
        %v7064 = vld [vmem:[#allocation2 + $0xa0] sm:$0xff]
        %v7065 = vld [vmem:[#allocation2 + $0xa8] sm:$0xff]
        %v7066 = vld [vmem:[#allocation2 + $0xb0] sm:$0xff]
        %v7067 = vld [vmem:[#allocation2 + $0xb8] sm:$0xff]
        %v7068 = vld [vmem:[#allocation2 + $0xc0] sm:$0xff]
        %v7069 = vld [vmem:[#allocation2 + $0xc8] sm:$0xff]
        %v7070 = vld [vmem:[#allocation2 + $0xd0] sm:$0xff]
        %v7071 = vld [vmem:[#allocation2 + $0xd8] sm:$0xff]
        %v7072 = vld [vmem:[#allocation2 + $0xe0] sm:$0xff]
        %v7073 = vld [vmem:[#allocation2 + $0xe8] sm:$0xff]
        %v7074 = vld [vmem:[#allocation2 + $0xf0] sm:$0xff]
        %v7075 = vld [vmem:[#allocation2 + $0xf8] sm:$0xff]
        %7076 = vadd.xlane.f32.xlu0 %v7044
        %v7077 = vpop.xlane.xlu0 %7076
        %7078 = vadd.xlane.f32.xlu0 %v7045
        %v7079 = vpop.xlane.xlu0 %7078
        %7080 = vadd.xlane.f32.xlu0 %v7046
        %v7081 = vpop.xlane.xlu0 %7080
        %7082 = vadd.xlane.f32.xlu0 %v7047
        %v7083 = vpop.xlane.xlu0 %7082
        %7084 = vadd.xlane.f32.xlu0 %v7048
        %v7085 = vpop.xlane.xlu0 %7084
        %7086 = vadd.xlane.f32.xlu0 %v7049
        %v7087 = vpop.xlane.xlu0 %7086
        %7088 = vadd.xlane.f32.xlu0 %v7050
        %v7089 = vpop.xlane.xlu0 %7088
        %7090 = vadd.xlane.f32.xlu0 %v7051
        %v7091 = vpop.xlane.xlu0 %7090
        %7092 = vadd.xlane.f32.xlu0 %v7052
        %v7093 = vpop.xlane.xlu0 %7092
        %7094 = vadd.xlane.f32.xlu0 %v7053
        %v7095 = vpop.xlane.xlu0 %7094
        %7096 = vadd.xlane.f32.xlu0 %v7054
        %v7097 = vpop.xlane.xlu0 %7096
        %7098 = vadd.xlane.f32.xlu0 %v7055
        %v7099 = vpop.xlane.xlu0 %7098
        %7100 = vadd.xlane.f32.xlu0 %v7056
        %v7101 = vpop.xlane.xlu0 %7100
        %7102 = vadd.xlane.f32.xlu0 %v7057
        %v7103 = vpop.xlane.xlu0 %7102
        %7104 = vadd.xlane.f32.xlu0 %v7058
        %v7105 = vpop.xlane.xlu0 %7104
        %7106 = vadd.xlane.f32.xlu0 %v7059
        %v7107 = vpop.xlane.xlu0 %7106
        %7108 = vadd.xlane.f32.xlu0 %v7060
        %v7109 = vpop.xlane.xlu0 %7108
        %7110 = vadd.xlane.f32.xlu0 %v7061
        %v7111 = vpop.xlane.xlu0 %7110
        %7112 = vadd.xlane.f32.xlu0 %v7062
        %v7113 = vpop.xlane.xlu0 %7112
        %7114 = vadd.xlane.f32.xlu0 %v7063
        %v7115 = vpop.xlane.xlu0 %7114
        %7116 = vadd.xlane.f32.xlu0 %v7064
        %v7117 = vpop.xlane.xlu0 %7116
        %7118 = vadd.xlane.f32.xlu0 %v7065
        %v7119 = vpop.xlane.xlu0 %7118
        %7120 = vadd.xlane.f32.xlu0 %v7066
        %v7121 = vpop.xlane.xlu0 %7120
        %7122 = vadd.xlane.f32.xlu0 %v7067
        %v7123 = vpop.xlane.xlu0 %7122
        %7124 = vadd.xlane.f32.xlu0 %v7068
        %v7125 = vpop.xlane.xlu0 %7124
        %7126 = vadd.xlane.f32.xlu0 %v7069
        %v7127 = vpop.xlane.xlu0 %7126
        %7128 = vadd.xlane.f32.xlu0 %v7070
        %v7129 = vpop.xlane.xlu0 %7128
        %7130 = vadd.xlane.f32.xlu0 %v7071
        %v7131 = vpop.xlane.xlu0 %7130
        %7132 = vadd.xlane.f32.xlu0 %v7072
        %v7133 = vpop.xlane.xlu0 %7132
        %7134 = vadd.xlane.f32.xlu0 %v7073
        %v7135 = vpop.xlane.xlu0 %7134
        %7136 = vadd.xlane.f32.xlu0 %v7074
        %v7137 = vpop.xlane.xlu0 %7136
        %7138 = vadd.xlane.f32.xlu0 %v7075
        %v7139 = vpop.xlane.xlu0 %7138
        %v7140 = vld [vmem:[%s5] sm:$0xff]
        %v7141 = vld [vmem:[%s5 + $0x8] sm:$0xff]
        %v7142 = vld [vmem:[%s5 + $0x10] sm:$0xff]
        %v7143 = vld [vmem:[%s5 + $0x18] sm:$0xff]
        %v7144 = vld [vmem:[%s5 + $0x20] sm:$0xff]
        %v7145 = vld [vmem:[%s5 + $0x28] sm:$0xff]
        %v7146 = vld [vmem:[%s5 + $0x30] sm:$0xff]
        %v7147 = vld [vmem:[%s5 + $0x38] sm:$0xff]
        %v7180 = vperm.slane %v7077, %v357
        %v7181 = vadd.s32 %v357, 4294967288
        %v7182 = vperm.slane %v7079, %v7181
        %vm7183 = vcmask 130112
        %v7184 = vsel %vm7183, %v7182, %v7180
        %v7185 = vadd.s32 %v357, 4294967280
        %v7186 = vperm.slane %v7081, %v7185
        %vm7187 = vcmask 195712
        %v7188 = vsel %vm7187, %v7186, %v7184
        %v7189 = vadd.s32 %v357, 4294967272
        %v7190 = vperm.slane %v7083, %v7189
        %vm7191 = vcmask 261312
        %v7192 = vsel %vm7191, %v7190, %v7188
        %v7193 = vadd.s32 %v357, 4294967264
        %v7194 = vperm.slane %v7085, %v7193
        %vm7195 = vcmask 326912
        %v7196 = vsel %vm7195, %v7194, %v7192
        %v7197 = vadd.s32 %v357, 4294967256
        %v7198 = vperm.slane %v7087, %v7197
        %vm7199 = vcmask 392512
        %v7200 = vsel %vm7199, %v7198, %v7196
        %v7201 = vadd.s32 %v357, 4294967248
        %v7202 = vperm.slane %v7089, %v7201
        %vm7203 = vcmask 458112
        %v7204 = vsel %vm7203, %v7202, %v7200
        %v7205 = vadd.s32 %v357, 4294967240
        %v7206 = vperm.slane %v7091, %v7205
        %vm7207 = vcmask 523712
        %v7208 = vsel %vm7207, %v7206, %v7204
        %v7209 = vperm.slane %v7093, %v357
        %v7210 = vperm.slane %v7095, %v7181
        %v7211 = vsel %vm7183, %v7210, %v7209
        %v7212 = vperm.slane %v7097, %v7185
        %v7213 = vsel %vm7187, %v7212, %v7211
        %v7214 = vperm.slane %v7099, %v7189
        %v7215 = vsel %vm7191, %v7214, %v7213
        %v7216 = vperm.slane %v7101, %v7193
        %v7217 = vsel %vm7195, %v7216, %v7215
        %v7218 = vperm.slane %v7103, %v7197
        %v7219 = vsel %vm7199, %v7218, %v7217
        %v7220 = vperm.slane %v7105, %v7201
        %v7221 = vsel %vm7203, %v7220, %v7219
        %v7222 = vperm.slane %v7107, %v7205
        %v7223 = vsel %vm7207, %v7222, %v7221
        %v7224 = vperm.slane %v7109, %v357
        %v7225 = vperm.slane %v7111, %v7181
        %v7226 = vsel %vm7183, %v7225, %v7224
        %v7227 = vperm.slane %v7113, %v7185
        %v7228 = vsel %vm7187, %v7227, %v7226
        %v7229 = vperm.slane %v7115, %v7189
        %v7230 = vsel %vm7191, %v7229, %v7228
        %v7231 = vperm.slane %v7117, %v7193
        %v7232 = vsel %vm7195, %v7231, %v7230
        %v7233 = vperm.slane %v7119, %v7197
        %v7234 = vsel %vm7199, %v7233, %v7232
        %v7235 = vperm.slane %v7121, %v7201
        %v7236 = vsel %vm7203, %v7235, %v7234
        %v7237 = vperm.slane %v7123, %v7205
        %v7238 = vsel %vm7207, %v7237, %v7236
        %v7239 = vperm.slane %v7125, %v357
        %v7240 = vperm.slane %v7127, %v7181
        %v7241 = vsel %vm7183, %v7240, %v7239
        %v7242 = vperm.slane %v7129, %v7185
        %v7243 = vsel %vm7187, %v7242, %v7241
        %v7244 = vperm.slane %v7131, %v7189
        %v7245 = vsel %vm7191, %v7244, %v7243
        %v7246 = vperm.slane %v7133, %v7193
        %v7247 = vsel %vm7195, %v7246, %v7245
        %v7248 = vperm.slane %v7135, %v7197
        %v7249 = vsel %vm7199, %v7248, %v7247
        %v7250 = vperm.slane %v7137, %v7201
        %v7251 = vsel %vm7203, %v7250, %v7249
        %v7252 = vperm.slane %v7139, %v7205
        %v7253 = vsel %vm7207, %v7252, %v7251
        %vm7254 = vcmask 1041409
        %v7255 = vsel %vm7254, %v7223, %v7208
        %vm7256 = vcmask 1042434
        %v7257 = vsel %vm7256, %v7238, %v7255
        %vm7258 = vcmask 1043459
        %v7259 = vsel %vm7258, %v7253, %v7257
        %v7260 = vsel %vm2771, %v7259, 0
        %7262 = vmatpush.msra.mxu0 0.0
        %7263 = vmatpush.msra.mxu0 0.0
        %7264 = vmatpush.msra.mxu0 0.0
        %7265 = vmatpush.msra.mxu0 0.0
        %7266 = vmatpush.msra.mxu0 0.0
        %7267 = vmatpush.msra.mxu0 0.0
        %7268 = vmatpush.msra.mxu0 0.0
        %7269 = vmatpush.msra.mxu0 0.0
        %v7270 = vand.u32 %v7147, 4294901760
        %7271 = vmatpush.msra.mxu0 %v7270
        %v7272 = vand.u32 %v7146, 4294901760
        %7273 = vmatpush.msra.mxu0 %v7272
        %v7274 = vand.u32 %v7145, 4294901760
        %7275 = vmatpush.msra.mxu0 %v7274
        %v7276 = vand.u32 %v7144, 4294901760
        %7277 = vmatpush.msra.mxu0 %v7276
        %v7278 = vand.u32 %v7143, 4294901760
        %7279 = vmatpush.msra.mxu0 %v7278
        %v7280 = vand.u32 %v7142, 4294901760
        %7281 = vmatpush.msra.mxu0 %v7280
        %v7282 = vand.u32 %v7141, 4294901760
        %7283 = vmatpush.msra.mxu0 %v7282
        %v7284 = vand.u32 %v7140, 4294901760
        %7285 = vmatpush.msra.mxu0 %v7284
        %v7286 = vand.u32 %v7260, 4294901760
        %v7287 = vsub.f32 %v7260, %v7286
        %v7288 = vand.u32 %v7287, 4294901760
        %v7289 = vsub.f32 %v7287, %v7288
        %v7290 = vand.u32 %v7289, 4294901760
        %7291 = vmatmul.f32.gmra.mxu0 %v7290
        %v7292 = vpop.f32.mrf.mxu0
        %v7293 = vadd.f32 0.0, %v7292
        %7294 = vdwg.mxu0
        %7295 = vmatpush.msra.mxu0 0.0
        %7296 = vmatpush.msra.mxu0 0.0
        %7297 = vmatpush.msra.mxu0 0.0
        %7298 = vmatpush.msra.mxu0 0.0
        %7299 = vmatpush.msra.mxu0 0.0
        %7300 = vmatpush.msra.mxu0 0.0
        %7301 = vmatpush.msra.mxu0 0.0
        %7302 = vmatpush.msra.mxu0 0.0
        %v7303 = vand.u32 %v7147, 4294901760
        %v7304 = vsub.f32 %v7147, %v7303
        %v7305 = vand.u32 %v7304, 4294901760
        %v7306 = vsub.f32 %v7304, %v7305
        %v7307 = vand.u32 %v7306, 4294901760
        %7308 = vmatpush.msra.mxu0 %v7307
        %v7309 = vand.u32 %v7146, 4294901760
        %v7310 = vsub.f32 %v7146, %v7309
        %v7311 = vand.u32 %v7310, 4294901760
        %v7312 = vsub.f32 %v7310, %v7311
        %v7313 = vand.u32 %v7312, 4294901760
        %7314 = vmatpush.msra.mxu0 %v7313
        %v7315 = vand.u32 %v7145, 4294901760
        %v7316 = vsub.f32 %v7145, %v7315
        %v7317 = vand.u32 %v7316, 4294901760
        %v7318 = vsub.f32 %v7316, %v7317
        %v7319 = vand.u32 %v7318, 4294901760
        %7320 = vmatpush.msra.mxu0 %v7319
        %v7321 = vand.u32 %v7144, 4294901760
        %v7322 = vsub.f32 %v7144, %v7321
        %v7323 = vand.u32 %v7322, 4294901760
        %v7324 = vsub.f32 %v7322, %v7323
        %v7325 = vand.u32 %v7324, 4294901760
        %7326 = vmatpush.msra.mxu0 %v7325
        %v7327 = vand.u32 %v7143, 4294901760
        %v7328 = vsub.f32 %v7143, %v7327
        %v7329 = vand.u32 %v7328, 4294901760
        %v7330 = vsub.f32 %v7328, %v7329
        %v7331 = vand.u32 %v7330, 4294901760
        %7332 = vmatpush.msra.mxu0 %v7331
        %v7333 = vand.u32 %v7142, 4294901760
        %v7334 = vsub.f32 %v7142, %v7333
        %v7335 = vand.u32 %v7334, 4294901760
        %v7336 = vsub.f32 %v7334, %v7335
        %v7337 = vand.u32 %v7336, 4294901760
        %7338 = vmatpush.msra.mxu0 %v7337
        %v7339 = vand.u32 %v7141, 4294901760
        %v7340 = vsub.f32 %v7141, %v7339
        %v7341 = vand.u32 %v7340, 4294901760
        %v7342 = vsub.f32 %v7340, %v7341
        %v7343 = vand.u32 %v7342, 4294901760
        %7344 = vmatpush.msra.mxu0 %v7343
        %v7345 = vand.u32 %v7140, 4294901760
        %v7346 = vsub.f32 %v7140, %v7345
        %v7347 = vand.u32 %v7346, 4294901760
        %v7348 = vsub.f32 %v7346, %v7347
        %v7349 = vand.u32 %v7348, 4294901760
        %7350 = vmatpush.msra.mxu0 %v7349
        %v7351 = vand.u32 %v7260, 4294901760
        %7352 = vmatmul.f32.gmra.mxu0 %v7351
        %v7353 = vpop.f32.mrf.mxu0
        %v7354 = vadd.f32 %v7293, %v7353
        %7355 = vdwg.mxu0
        %7356 = vmatpush.msra.mxu0 0.0
        %7357 = vmatpush.msra.mxu0 0.0
        %7358 = vmatpush.msra.mxu0 0.0
        %7359 = vmatpush.msra.mxu0 0.0
        %7360 = vmatpush.msra.mxu0 0.0
        %7361 = vmatpush.msra.mxu0 0.0
        %7362 = vmatpush.msra.mxu0 0.0
        %7363 = vmatpush.msra.mxu0 0.0
        %v7364 = vand.u32 %v7147, 4294901760
        %v7365 = vsub.f32 %v7147, %v7364
        %7366 = vmatpush.msra.mxu0 %v7365
        %v7367 = vand.u32 %v7146, 4294901760
        %v7368 = vsub.f32 %v7146, %v7367
        %7369 = vmatpush.msra.mxu0 %v7368
        %v7370 = vand.u32 %v7145, 4294901760
        %v7371 = vsub.f32 %v7145, %v7370
        %7372 = vmatpush.msra.mxu0 %v7371
        %v7373 = vand.u32 %v7144, 4294901760
        %v7374 = vsub.f32 %v7144, %v7373
        %7375 = vmatpush.msra.mxu0 %v7374
        %v7376 = vand.u32 %v7143, 4294901760
        %v7377 = vsub.f32 %v7143, %v7376
        %7378 = vmatpush.msra.mxu0 %v7377
        %v7379 = vand.u32 %v7142, 4294901760
        %v7380 = vsub.f32 %v7142, %v7379
        %7381 = vmatpush.msra.mxu0 %v7380
        %v7382 = vand.u32 %v7141, 4294901760
        %v7383 = vsub.f32 %v7141, %v7382
        %7384 = vmatpush.msra.mxu0 %v7383
        %v7385 = vand.u32 %v7140, 4294901760
        %v7386 = vsub.f32 %v7140, %v7385
        %7387 = vmatpush.msra.mxu0 %v7386
        %v7388 = vand.u32 %v7260, 4294901760
        %v7389 = vsub.f32 %v7260, %v7388
        %7390 = vmatmul.f32.gmra.mxu0 %v7389
        %v7391 = vpop.f32.mrf.mxu0
        %v7392 = vadd.f32 %v7354, %v7391
        %7393 = vdwg.mxu0
        %7394 = vmatpush.msra.mxu0 0.0
        %7395 = vmatpush.msra.mxu0 0.0
        %7396 = vmatpush.msra.mxu0 0.0
        %7397 = vmatpush.msra.mxu0 0.0
        %7398 = vmatpush.msra.mxu0 0.0
        %7399 = vmatpush.msra.mxu0 0.0
        %7400 = vmatpush.msra.mxu0 0.0
        %7401 = vmatpush.msra.mxu0 0.0
        %v7402 = vand.u32 %v7147, 4294901760
        %7403 = vmatpush.msra.mxu0 %v7402
        %v7404 = vand.u32 %v7146, 4294901760
        %7405 = vmatpush.msra.mxu0 %v7404
        %v7406 = vand.u32 %v7145, 4294901760
        %7407 = vmatpush.msra.mxu0 %v7406
        %v7408 = vand.u32 %v7144, 4294901760
        %7409 = vmatpush.msra.mxu0 %v7408
        %v7410 = vand.u32 %v7143, 4294901760
        %7411 = vmatpush.msra.mxu0 %v7410
        %v7412 = vand.u32 %v7142, 4294901760
        %7413 = vmatpush.msra.mxu0 %v7412
        %v7414 = vand.u32 %v7141, 4294901760
        %7415 = vmatpush.msra.mxu0 %v7414
        %v7416 = vand.u32 %v7140, 4294901760
        %7417 = vmatpush.msra.mxu0 %v7416
        %v7418 = vand.u32 %v7260, 4294901760
        %v7419 = vsub.f32 %v7260, %v7418
        %v7420 = vand.u32 %v7419, 4294901760
        %7421 = vmatmul.f32.gmra.mxu0 %v7420
        %v7422 = vpop.f32.mrf.mxu0
        %v7423 = vadd.f32 %v7392, %v7422
        %7424 = vdwg.mxu0
        %7425 = vmatpush.msra.mxu0 0.0
        %7426 = vmatpush.msra.mxu0 0.0
        %7427 = vmatpush.msra.mxu0 0.0
        %7428 = vmatpush.msra.mxu0 0.0
        %7429 = vmatpush.msra.mxu0 0.0
        %7430 = vmatpush.msra.mxu0 0.0
        %7431 = vmatpush.msra.mxu0 0.0
        %7432 = vmatpush.msra.mxu0 0.0
        %v7433 = vand.u32 %v7147, 4294901760
        %v7434 = vsub.f32 %v7147, %v7433
        %v7435 = vand.u32 %v7434, 4294901760
        %7436 = vmatpush.msra.mxu0 %v7435
        %v7437 = vand.u32 %v7146, 4294901760
        %v7438 = vsub.f32 %v7146, %v7437
        %v7439 = vand.u32 %v7438, 4294901760
        %7440 = vmatpush.msra.mxu0 %v7439
        %v7441 = vand.u32 %v7145, 4294901760
        %v7442 = vsub.f32 %v7145, %v7441
        %v7443 = vand.u32 %v7442, 4294901760
        %7444 = vmatpush.msra.mxu0 %v7443
        %v7445 = vand.u32 %v7144, 4294901760
        %v7446 = vsub.f32 %v7144, %v7445
        %v7447 = vand.u32 %v7446, 4294901760
        %7448 = vmatpush.msra.mxu0 %v7447
        %v7449 = vand.u32 %v7143, 4294901760
        %v7450 = vsub.f32 %v7143, %v7449
        %v7451 = vand.u32 %v7450, 4294901760
        %7452 = vmatpush.msra.mxu0 %v7451
        %v7453 = vand.u32 %v7142, 4294901760
        %v7454 = vsub.f32 %v7142, %v7453
        %v7455 = vand.u32 %v7454, 4294901760
        %7456 = vmatpush.msra.mxu0 %v7455
        %v7457 = vand.u32 %v7141, 4294901760
        %v7458 = vsub.f32 %v7141, %v7457
        %v7459 = vand.u32 %v7458, 4294901760
        %7460 = vmatpush.msra.mxu0 %v7459
        %v7461 = vand.u32 %v7140, 4294901760
        %v7462 = vsub.f32 %v7140, %v7461
        %v7463 = vand.u32 %v7462, 4294901760
        %7464 = vmatpush.msra.mxu0 %v7463
        %v7465 = vand.u32 %v7260, 4294901760
        %7466 = vmatmul.f32.gmra.mxu0 %v7465
        %v7467 = vpop.f32.mrf.mxu0
        %v7468 = vadd.f32 %v7423, %v7467
        %7469 = vdwg.mxu0
        %7470 = vmatpush.msra.mxu0 0.0
        %7471 = vmatpush.msra.mxu0 0.0
        %7472 = vmatpush.msra.mxu0 0.0
        %7473 = vmatpush.msra.mxu0 0.0
        %7474 = vmatpush.msra.mxu0 0.0
        %7475 = vmatpush.msra.mxu0 0.0
        %7476 = vmatpush.msra.mxu0 0.0
        %7477 = vmatpush.msra.mxu0 0.0
        %v7478 = vand.u32 %v7147, 4294901760
        %7479 = vmatpush.msra.mxu0 %v7478
        %v7480 = vand.u32 %v7146, 4294901760
        %7481 = vmatpush.msra.mxu0 %v7480
        %v7482 = vand.u32 %v7145, 4294901760
        %7483 = vmatpush.msra.mxu0 %v7482
        %v7484 = vand.u32 %v7144, 4294901760
        %7485 = vmatpush.msra.mxu0 %v7484
        %v7486 = vand.u32 %v7143, 4294901760
        %7487 = vmatpush.msra.mxu0 %v7486
        %v7488 = vand.u32 %v7142, 4294901760
        %7489 = vmatpush.msra.mxu0 %v7488
        %v7490 = vand.u32 %v7141, 4294901760
        %7491 = vmatpush.msra.mxu0 %v7490
        %v7492 = vand.u32 %v7140, 4294901760
        %7493 = vmatpush.msra.mxu0 %v7492
        %v7494 = vand.u32 %v7260, 4294901760
        %7495 = vmatmul.f32.gmra.mxu0 %v7494
        %v7496 = vpop.f32.mrf.mxu0
        %v7497 = vadd.f32 %v7468, %v7496
        %7498 = vdwg.mxu0
        %v7499 = vmax.f32 %v7497, 0.0
        %v7500 = vld [vmem:[%s6] sm:$0xf]
        %vm7501 = vcmask 31744
        %v7503 = vsel %vm7501, %v7499, 0
        %vm7505 = vcmask 1043456
        %v7507 = vsel %vm7505, %v7500, 0
        %7509 = vmatpush.msra.mxu0 0.0
        %7510 = vmatpush.msra.mxu0 0.0
        %7511 = vmatpush.msra.mxu0 0.0
        %7512 = vmatpush.msra.mxu0 0.0
        %7513 = vmatpush.msra.mxu0 0.0
        %7514 = vmatpush.msra.mxu0 0.0
        %7515 = vmatpush.msra.mxu0 0.0
        %7516 = vmatpush.msra.mxu0 0.0
        %7517 = vmatpush.msra.mxu0 0.0
        %7518 = vmatpush.msra.mxu0 0.0
        %7519 = vmatpush.msra.mxu0 0.0
        %7520 = vmatpush.msra.mxu0 0.0
        %7521 = vmatpush.msra.mxu0 0.0
        %7522 = vmatpush.msra.mxu0 0.0
        %7523 = vmatpush.msra.mxu0 0.0
        %v7524 = vand.u32 %v7507, 4294901760
        %7525 = vmatpush.msra.mxu0 %v7524
        %v7526 = vand.u32 %v7503, 4294901760
        %v7527 = vsub.f32 %v7503, %v7526
        %v7528 = vand.u32 %v7527, 4294901760
        %v7529 = vsub.f32 %v7527, %v7528
        %v7530 = vand.u32 %v7529, 4294901760
        %7531 = vmatmul.f32.gmra.mxu0 %v7530
        %v7532 = vpop.f32.mrf.mxu0
        %v7533 = vadd.f32 0.0, %v7532
        %7534 = vdwg.mxu0
        %7535 = vmatpush.msra.mxu0 0.0
        %7536 = vmatpush.msra.mxu0 0.0
        %7537 = vmatpush.msra.mxu0 0.0
        %7538 = vmatpush.msra.mxu0 0.0
        %7539 = vmatpush.msra.mxu0 0.0
        %7540 = vmatpush.msra.mxu0 0.0
        %7541 = vmatpush.msra.mxu0 0.0
        %7542 = vmatpush.msra.mxu0 0.0
        %7543 = vmatpush.msra.mxu0 0.0
        %7544 = vmatpush.msra.mxu0 0.0
        %7545 = vmatpush.msra.mxu0 0.0
        %7546 = vmatpush.msra.mxu0 0.0
        %7547 = vmatpush.msra.mxu0 0.0
        %7548 = vmatpush.msra.mxu0 0.0
        %7549 = vmatpush.msra.mxu0 0.0
        %v7550 = vand.u32 %v7507, 4294901760
        %v7551 = vsub.f32 %v7507, %v7550
        %v7552 = vand.u32 %v7551, 4294901760
        %v7553 = vsub.f32 %v7551, %v7552
        %v7554 = vand.u32 %v7553, 4294901760
        %7555 = vmatpush.msra.mxu0 %v7554
        %v7556 = vand.u32 %v7503, 4294901760
        %7557 = vmatmul.f32.gmra.mxu0 %v7556
        %v7558 = vpop.f32.mrf.mxu0
        %v7559 = vadd.f32 %v7533, %v7558
        %7560 = vdwg.mxu0
        %7561 = vmatpush.msra.mxu0 0.0
        %7562 = vmatpush.msra.mxu0 0.0
        %7563 = vmatpush.msra.mxu0 0.0
        %7564 = vmatpush.msra.mxu0 0.0
        %7565 = vmatpush.msra.mxu0 0.0
        %7566 = vmatpush.msra.mxu0 0.0
        %7567 = vmatpush.msra.mxu0 0.0
        %7568 = vmatpush.msra.mxu0 0.0
        %7569 = vmatpush.msra.mxu0 0.0
        %7570 = vmatpush.msra.mxu0 0.0
        %7571 = vmatpush.msra.mxu0 0.0
        %7572 = vmatpush.msra.mxu0 0.0
        %7573 = vmatpush.msra.mxu0 0.0
        %7574 = vmatpush.msra.mxu0 0.0
        %7575 = vmatpush.msra.mxu0 0.0
        %v7576 = vand.u32 %v7507, 4294901760
        %v7577 = vsub.f32 %v7507, %v7576
        %7578 = vmatpush.msra.mxu0 %v7577
        %v7579 = vand.u32 %v7503, 4294901760
        %v7580 = vsub.f32 %v7503, %v7579
        %7581 = vmatmul.f32.gmra.mxu0 %v7580
        %v7582 = vpop.f32.mrf.mxu0
        %v7583 = vadd.f32 %v7559, %v7582
        %7584 = vdwg.mxu0
        %7585 = vmatpush.msra.mxu0 0.0
        %7586 = vmatpush.msra.mxu0 0.0
        %7587 = vmatpush.msra.mxu0 0.0
        %7588 = vmatpush.msra.mxu0 0.0
        %7589 = vmatpush.msra.mxu0 0.0
        %7590 = vmatpush.msra.mxu0 0.0
        %7591 = vmatpush.msra.mxu0 0.0
        %7592 = vmatpush.msra.mxu0 0.0
        %7593 = vmatpush.msra.mxu0 0.0
        %7594 = vmatpush.msra.mxu0 0.0
        %7595 = vmatpush.msra.mxu0 0.0
        %7596 = vmatpush.msra.mxu0 0.0
        %7597 = vmatpush.msra.mxu0 0.0
        %7598 = vmatpush.msra.mxu0 0.0
        %7599 = vmatpush.msra.mxu0 0.0
        %v7600 = vand.u32 %v7507, 4294901760
        %7601 = vmatpush.msra.mxu0 %v7600
        %v7602 = vand.u32 %v7503, 4294901760
        %v7603 = vsub.f32 %v7503, %v7602
        %v7604 = vand.u32 %v7603, 4294901760
        %7605 = vmatmul.f32.gmra.mxu0 %v7604
        %v7606 = vpop.f32.mrf.mxu0
        %v7607 = vadd.f32 %v7583, %v7606
        %7608 = vdwg.mxu0
        %7609 = vmatpush.msra.mxu0 0.0
        %7610 = vmatpush.msra.mxu0 0.0
        %7611 = vmatpush.msra.mxu0 0.0
        %7612 = vmatpush.msra.mxu0 0.0
        %7613 = vmatpush.msra.mxu0 0.0
        %7614 = vmatpush.msra.mxu0 0.0
        %7615 = vmatpush.msra.mxu0 0.0
        %7616 = vmatpush.msra.mxu0 0.0
        %7617 = vmatpush.msra.mxu0 0.0
        %7618 = vmatpush.msra.mxu0 0.0
        %7619 = vmatpush.msra.mxu0 0.0
        %7620 = vmatpush.msra.mxu0 0.0
        %7621 = vmatpush.msra.mxu0 0.0
        %7622 = vmatpush.msra.mxu0 0.0
        %7623 = vmatpush.msra.mxu0 0.0
        %v7624 = vand.u32 %v7507, 4294901760
        %v7625 = vsub.f32 %v7507, %v7624
        %v7626 = vand.u32 %v7625, 4294901760
        %7627 = vmatpush.msra.mxu0 %v7626
        %v7628 = vand.u32 %v7503, 4294901760
        %7629 = vmatmul.f32.gmra.mxu0 %v7628
        %v7630 = vpop.f32.mrf.mxu0
        %v7631 = vadd.f32 %v7607, %v7630
        %7632 = vdwg.mxu0
        %7633 = vmatpush.msra.mxu0 0.0
        %7634 = vmatpush.msra.mxu0 0.0
        %7635 = vmatpush.msra.mxu0 0.0
        %7636 = vmatpush.msra.mxu0 0.0
        %7637 = vmatpush.msra.mxu0 0.0
        %7638 = vmatpush.msra.mxu0 0.0
        %7639 = vmatpush.msra.mxu0 0.0
        %7640 = vmatpush.msra.mxu0 0.0
        %7641 = vmatpush.msra.mxu0 0.0
        %7642 = vmatpush.msra.mxu0 0.0
        %7643 = vmatpush.msra.mxu0 0.0
        %7644 = vmatpush.msra.mxu0 0.0
        %7645 = vmatpush.msra.mxu0 0.0
        %7646 = vmatpush.msra.mxu0 0.0
        %7647 = vmatpush.msra.mxu0 0.0
        %v7648 = vand.u32 %v7507, 4294901760
        %7649 = vmatpush.msra.mxu0 %v7648
        %v7650 = vand.u32 %v7503, 4294901760
        %7651 = vmatmul.f32.gmra.mxu0 %v7650
        %v7652 = vpop.f32.mrf.mxu0
        %v7653 = vadd.f32 %v7631, %v7652
        %7654 = vdwg.mxu0
        %v7655 = vxor.u32 %v7653, 2147483648
        %v7656 = vmul.f32 %v7655, 1.442695
        %v7657 = vpow.pop %v7656
        %v7658 = vadd.f32 %v7657, 1.0
        %v7659 = vrcp.pop %v7658
        %v7660 = vmul.f32 %v7658, %v7659
        %v7661 = vsub.f32 1.0, %v7660
        %v7662 = vmul.f32 %v7659, %v7661
        %v7663 = vadd.f32 %v7659, %v7662
        %vm7664 = vweird.f32 %v7658
        %vm7665 = vweird.f32 %v7659
        %vm7666 = vmor %vm7664, %vm7665
        %v7667 = vsel %vm7666, %v7659, %v7663
        %v7668 = vand.u32 2147483647, %v7658
        %vm7669 = vcmp.eq.f32.partialorder %v7668, 8.507059e+37
        %v7670 = vand.u32 %v7658, 2147483648
        %v7671 = vor.u32 1.1754944e-38, %v7670
        %v7672 = vsel %vm7669, %v7671, %v7667
        %v7673 = vmul.f32 1.0, %v7672
        %v7674 = vperm.slane %v7673, 0
        %v7675 = vlaneseq
        %v7676 = vshrl.u32 %v7675, 7
        %7678 = vset.pattern.permute.xlu0 %v7676
        %7679 = vperm.xlu0 %7678, %v7674
        %v7680 = vpop.permute.xlu0 %7679
        %v7681 = vlaneseq
        %v7682 = vshrl.u32 %v7681, 7
        %v7683 = vadd.s32 %v7682, 8
        %7684 = vset.pattern.permute.xlu0 %v7683
        %7685 = vperm.xlu0 %7684, %v7674
        %v7686 = vpop.permute.xlu0 %7685
        %v7687 = vlaneseq
        %v7688 = vshrl.u32 %v7687, 7
        %v7689 = vadd.s32 %v7688, 16
        %7690 = vset.pattern.permute.xlu0 %v7689
        %7691 = vperm.xlu0 %7690, %v7674
        %v7692 = vpop.permute.xlu0 %7691
        %v7693 = vlaneseq
        %v7694 = vshrl.u32 %v7693, 7
        %v7695 = vadd.s32 %v7694, 24
        %7696 = vset.pattern.permute.xlu0 %v7695
        %7697 = vperm.xlu0 %7696, %v7674
        %v7698 = vpop.permute.xlu0 %7697
        %v7699 = vlaneseq
        %v7700 = vshrl.u32 %v7699, 7
        %v7701 = vadd.s32 %v7700, 32
        %7702 = vset.pattern.permute.xlu0 %v7701
        %7703 = vperm.xlu0 %7702, %v7674
        %v7704 = vpop.permute.xlu0 %7703
        %v7705 = vlaneseq
        %v7706 = vshrl.u32 %v7705, 7
        %v7707 = vadd.s32 %v7706, 40
        %7708 = vset.pattern.permute.xlu0 %v7707
        %7709 = vperm.xlu0 %7708, %v7674
        %v7710 = vpop.permute.xlu0 %7709
        %v7711 = vlaneseq
        %v7712 = vshrl.u32 %v7711, 7
        %v7713 = vadd.s32 %v7712, 48
        %7714 = vset.pattern.permute.xlu0 %v7713
        %7715 = vperm.xlu0 %7714, %v7674
        %v7716 = vpop.permute.xlu0 %7715
        %v7717 = vlaneseq
        %v7718 = vshrl.u32 %v7717, 7
        %v7719 = vadd.s32 %v7718, 56
        %7720 = vset.pattern.permute.xlu0 %v7719
        %7721 = vperm.xlu0 %7720, %v7674
        %v7722 = vpop.permute.xlu0 %7721
        %v7723 = vperm.slane %v7673, 1
        %v7724 = vlaneseq
        %v7725 = vshrl.u32 %v7724, 7
        %7727 = vset.pattern.permute.xlu0 %v7725
        %7728 = vperm.xlu0 %7727, %v7723
        %v7729 = vpop.permute.xlu0 %7728
        %v7730 = vlaneseq
        %v7731 = vshrl.u32 %v7730, 7
        %v7732 = vadd.s32 %v7731, 8
        %7733 = vset.pattern.permute.xlu0 %v7732
        %7734 = vperm.xlu0 %7733, %v7723
        %v7735 = vpop.permute.xlu0 %7734
        %v7736 = vlaneseq
        %v7737 = vshrl.u32 %v7736, 7
        %v7738 = vadd.s32 %v7737, 16
        %7739 = vset.pattern.permute.xlu0 %v7738
        %7740 = vperm.xlu0 %7739, %v7723
        %v7741 = vpop.permute.xlu0 %7740
        %v7742 = vlaneseq
        %v7743 = vshrl.u32 %v7742, 7
        %v7744 = vadd.s32 %v7743, 24
        %7745 = vset.pattern.permute.xlu0 %v7744
        %7746 = vperm.xlu0 %7745, %v7723
        %v7747 = vpop.permute.xlu0 %7746
        %v7748 = vlaneseq
        %v7749 = vshrl.u32 %v7748, 7
        %v7750 = vadd.s32 %v7749, 32
        %7751 = vset.pattern.permute.xlu0 %v7750
        %7752 = vperm.xlu0 %7751, %v7723
        %v7753 = vpop.permute.xlu0 %7752
        %v7754 = vlaneseq
        %v7755 = vshrl.u32 %v7754, 7
        %v7756 = vadd.s32 %v7755, 40
        %7757 = vset.pattern.permute.xlu0 %v7756
        %7758 = vperm.xlu0 %7757, %v7723
        %v7759 = vpop.permute.xlu0 %7758
        %v7760 = vlaneseq
        %v7761 = vshrl.u32 %v7760, 7
        %v7762 = vadd.s32 %v7761, 48
        %7763 = vset.pattern.permute.xlu0 %v7762
        %7764 = vperm.xlu0 %7763, %v7723
        %v7765 = vpop.permute.xlu0 %7764
        %v7766 = vlaneseq
        %v7767 = vshrl.u32 %v7766, 7
        %v7768 = vadd.s32 %v7767, 56
        %7769 = vset.pattern.permute.xlu0 %v7768
        %7770 = vperm.xlu0 %7769, %v7723
        %v7771 = vpop.permute.xlu0 %7770
        %v7772 = vperm.slane %v7673, 2
        %v7773 = vlaneseq
        %v7774 = vshrl.u32 %v7773, 7
        %7776 = vset.pattern.permute.xlu0 %v7774
        %7777 = vperm.xlu0 %7776, %v7772
        %v7778 = vpop.permute.xlu0 %7777
        %v7779 = vlaneseq
        %v7780 = vshrl.u32 %v7779, 7
        %v7781 = vadd.s32 %v7780, 8
        %7782 = vset.pattern.permute.xlu0 %v7781
        %7783 = vperm.xlu0 %7782, %v7772
        %v7784 = vpop.permute.xlu0 %7783
        %v7785 = vlaneseq
        %v7786 = vshrl.u32 %v7785, 7
        %v7787 = vadd.s32 %v7786, 16
        %7788 = vset.pattern.permute.xlu0 %v7787
        %7789 = vperm.xlu0 %7788, %v7772
        %v7790 = vpop.permute.xlu0 %7789
        %v7791 = vlaneseq
        %v7792 = vshrl.u32 %v7791, 7
        %v7793 = vadd.s32 %v7792, 24
        %7794 = vset.pattern.permute.xlu0 %v7793
        %7795 = vperm.xlu0 %7794, %v7772
        %v7796 = vpop.permute.xlu0 %7795
        %v7797 = vlaneseq
        %v7798 = vshrl.u32 %v7797, 7
        %v7799 = vadd.s32 %v7798, 32
        %7800 = vset.pattern.permute.xlu0 %v7799
        %7801 = vperm.xlu0 %7800, %v7772
        %v7802 = vpop.permute.xlu0 %7801
        %v7803 = vlaneseq
        %v7804 = vshrl.u32 %v7803, 7
        %v7805 = vadd.s32 %v7804, 40
        %7806 = vset.pattern.permute.xlu0 %v7805
        %7807 = vperm.xlu0 %7806, %v7772
        %v7808 = vpop.permute.xlu0 %7807
        %v7809 = vlaneseq
        %v7810 = vshrl.u32 %v7809, 7
        %v7811 = vadd.s32 %v7810, 48
        %7812 = vset.pattern.permute.xlu0 %v7811
        %7813 = vperm.xlu0 %7812, %v7772
        %v7814 = vpop.permute.xlu0 %7813
        %v7815 = vlaneseq
        %v7816 = vshrl.u32 %v7815, 7
        %v7817 = vadd.s32 %v7816, 56
        %7818 = vset.pattern.permute.xlu0 %v7817
        %7819 = vperm.xlu0 %7818, %v7772
        %v7820 = vpop.permute.xlu0 %7819
        %v7821 = vperm.slane %v7673, 3
        %v7822 = vlaneseq
        %v7823 = vshrl.u32 %v7822, 7
        %7825 = vset.pattern.permute.xlu0 %v7823
        %7826 = vperm.xlu0 %7825, %v7821
        %v7827 = vpop.permute.xlu0 %7826
        %v7828 = vlaneseq
        %v7829 = vshrl.u32 %v7828, 7
        %v7830 = vadd.s32 %v7829, 8
        %7831 = vset.pattern.permute.xlu0 %v7830
        %7832 = vperm.xlu0 %7831, %v7821
        %v7833 = vpop.permute.xlu0 %7832
        %v7834 = vlaneseq
        %v7835 = vshrl.u32 %v7834, 7
        %v7836 = vadd.s32 %v7835, 16
        %7837 = vset.pattern.permute.xlu0 %v7836
        %7838 = vperm.xlu0 %7837, %v7821
        %v7839 = vpop.permute.xlu0 %7838
        %v7840 = vlaneseq
        %v7841 = vshrl.u32 %v7840, 7
        %v7842 = vadd.s32 %v7841, 24
        %7843 = vset.pattern.permute.xlu0 %v7842
        %7844 = vperm.xlu0 %7843, %v7821
        %v7845 = vpop.permute.xlu0 %7844
        %v7846 = vlaneseq
        %v7847 = vshrl.u32 %v7846, 7
        %v7848 = vadd.s32 %v7847, 32
        %7849 = vset.pattern.permute.xlu0 %v7848
        %7850 = vperm.xlu0 %7849, %v7821
        %v7851 = vpop.permute.xlu0 %7850
        %v7852 = vlaneseq
        %v7853 = vshrl.u32 %v7852, 7
        %v7854 = vadd.s32 %v7853, 40
        %7855 = vset.pattern.permute.xlu0 %v7854
        %7856 = vperm.xlu0 %7855, %v7821
        %v7857 = vpop.permute.xlu0 %7856
        %v7858 = vlaneseq
        %v7859 = vshrl.u32 %v7858, 7
        %v7860 = vadd.s32 %v7859, 48
        %7861 = vset.pattern.permute.xlu0 %v7860
        %7862 = vperm.xlu0 %7861, %v7821
        %v7863 = vpop.permute.xlu0 %7862
        %v7864 = vlaneseq
        %v7865 = vshrl.u32 %v7864, 7
        %v7866 = vadd.s32 %v7865, 56
        %7867 = vset.pattern.permute.xlu0 %v7866
        %7868 = vperm.xlu0 %7867, %v7821
        %v7869 = vpop.permute.xlu0 %7868
        %v7870 = vld [vmem:[%s7] sm:$0xff]
        %v7871 = vld [vmem:[%s7 + $0x8] sm:$0xff]
        %v7872 = vld [vmem:[%s7 + $0x10] sm:$0xff]
        %v7873 = vld [vmem:[%s7 + $0x18] sm:$0xff]
        %v7874 = vld [vmem:[%s7 + $0x20] sm:$0xff]
        %v7875 = vld [vmem:[%s7 + $0x28] sm:$0xff]
        %v7876 = vld [vmem:[%s7 + $0x30] sm:$0xff]
        %v7877 = vld [vmem:[%s7 + $0x38] sm:$0xff]
        %v7878 = vld [vmem:[%s8] sm:$0xff]
        %v7879 = vld [vmem:[%s8 + $0x8] sm:$0xff]
        %v7880 = vld [vmem:[%s8 + $0x10] sm:$0xff]
        %v7881 = vld [vmem:[%s8 + $0x18] sm:$0xff]
        %v7882 = vld [vmem:[%s8 + $0x20] sm:$0xff]
        %v7883 = vld [vmem:[%s8 + $0x28] sm:$0xff]
        %v7884 = vld [vmem:[%s8 + $0x30] sm:$0xff]
        %v7885 = vld [vmem:[%s8 + $0x38] sm:$0xff]
        %v7886 = vld [vmem:[#allocation2] sm:$0xff]
        %v7887 = vld [vmem:[#allocation2 + $0x8] sm:$0xff]
        %v7888 = vld [vmem:[#allocation2 + $0x10] sm:$0xff]
        %v7889 = vld [vmem:[#allocation2 + $0x18] sm:$0xff]
        %v7890 = vld [vmem:[#allocation2 + $0x20] sm:$0xff]
        %v7891 = vld [vmem:[#allocation2 + $0x28] sm:$0xff]
        %v7892 = vld [vmem:[#allocation2 + $0x30] sm:$0xff]
        %v7893 = vld [vmem:[#allocation2 + $0x38] sm:$0xff]
        %v7894 = vmul.f32 %v7886, %v7680
        %v7895 = vmul.f32 %v7887, %v7686
        %v7896 = vmul.f32 %v7888, %v7692
        %v7897 = vmul.f32 %v7889, %v7698
        %v7898 = vmul.f32 %v7890, %v7704
        %v7899 = vmul.f32 %v7891, %v7710
        %v7900 = vmul.f32 %v7892, %v7716
        %v7901 = vmul.f32 %v7893, %v7722
        %v7902 = vld [vmem:[%s318] sm:$0xff]
        %v7903 = vld [vmem:[%s318 + $0x8] sm:$0xff]
        %v7904 = vld [vmem:[%s318 + $0x10] sm:$0xff]
        %v7905 = vld [vmem:[%s318 + $0x18] sm:$0xff]
        %7907 = vset.pattern.permute.xlu0 0
        %7908 = vperm.xlu0 %7907, %v7878
        %v7909 = vpop.permute.xlu0 %7908
        %7912 = vset.pattern.permute.xlu0 0
        %7913 = vperm.xlu0 %7912, %v7879
        %v7914 = vpop.permute.xlu0 %7913
        %7917 = vset.pattern.permute.xlu0 0
        %7918 = vperm.xlu0 %7917, %v7880
        %v7919 = vpop.permute.xlu0 %7918
        %7922 = vset.pattern.permute.xlu0 0
        %7923 = vperm.xlu0 %7922, %v7881
        %v7924 = vpop.permute.xlu0 %7923
        %7927 = vset.pattern.permute.xlu0 0
        %7928 = vperm.xlu0 %7927, %v7882
        %v7929 = vpop.permute.xlu0 %7928
        %7932 = vset.pattern.permute.xlu0 0
        %7933 = vperm.xlu0 %7932, %v7883
        %v7934 = vpop.permute.xlu0 %7933
        %7937 = vset.pattern.permute.xlu0 0
        %7938 = vperm.xlu0 %7937, %v7884
        %v7939 = vpop.permute.xlu0 %7938
        %7942 = vset.pattern.permute.xlu0 0
        %7943 = vperm.xlu0 %7942, %v7885
        %v7944 = vpop.permute.xlu0 %7943
        %vm7946 = vcmask 261120
        %v7948 = vsel %vm7946, %v7870, 0
        %v7951 = vsel %vm7946, %v7871, 0
        %v7954 = vsel %vm7946, %v7872, 0
        %v7957 = vsel %vm7946, %v7873, 0
        %v7960 = vsel %vm7946, %v7874, 0
        %v7963 = vsel %vm7946, %v7875, 0
        %v7966 = vsel %vm7946, %v7876, 0
        %v7969 = vsel %vm7946, %v7877, 0
        %7971 = vmatpush.msra.mxu0 0.0
        %7972 = vmatpush.msra.mxu0 0.0
        %7973 = vmatpush.msra.mxu0 0.0
        %7974 = vmatpush.msra.mxu0 0.0
        %7975 = vmatpush.msra.mxu0 0.0
        %7976 = vmatpush.msra.mxu0 0.0
        %7977 = vmatpush.msra.mxu0 0.0
        %7978 = vmatpush.msra.mxu0 0.0
        %7979 = vmatpush.msra.mxu0 0.0
        %7980 = vmatpush.msra.mxu0 0.0
        %7981 = vmatpush.msra.mxu0 0.0
        %7982 = vmatpush.msra.mxu0 0.0
        %v7983 = vand.u32 %v7905, 4294901760
        %7984 = vmatpush.msra.mxu0 %v7983
        %v7985 = vand.u32 %v7904, 4294901760
        %7986 = vmatpush.msra.mxu0 %v7985
        %v7987 = vand.u32 %v7903, 4294901760
        %7988 = vmatpush.msra.mxu0 %v7987
        %v7989 = vand.u32 %v7902, 4294901760
        %7990 = vmatpush.msra.mxu0 %v7989
        %v7991 = vand.u32 %v7948, 4294901760
        %v7992 = vsub.f32 %v7948, %v7991
        %v7993 = vand.u32 %v7992, 4294901760
        %v7994 = vsub.f32 %v7992, %v7993
        %v7995 = vand.u32 %v7994, 4294901760
        %7996 = vmatmul.f32.gmra.mxu0 %v7995
        %v7997 = vpop.f32.mrf.mxu0
        %v7998 = vadd.f32 %v7909, %v7997
        %v7999 = vand.u32 %v7951, 4294901760
        %v8000 = vsub.f32 %v7951, %v7999
        %v8001 = vand.u32 %v8000, 4294901760
        %v8002 = vsub.f32 %v8000, %v8001
        %v8003 = vand.u32 %v8002, 4294901760
        %8004 = vmatmul.f32.gmra.mxu0 %v8003
        %v8005 = vpop.f32.mrf.mxu0
        %v8006 = vadd.f32 %v7914, %v8005
        %v8007 = vand.u32 %v7954, 4294901760
        %v8008 = vsub.f32 %v7954, %v8007
        %v8009 = vand.u32 %v8008, 4294901760
        %v8010 = vsub.f32 %v8008, %v8009
        %v8011 = vand.u32 %v8010, 4294901760
        %8012 = vmatmul.f32.gmra.mxu0 %v8011
        %v8013 = vpop.f32.mrf.mxu0
        %v8014 = vadd.f32 %v7919, %v8013
        %v8015 = vand.u32 %v7957, 4294901760
        %v8016 = vsub.f32 %v7957, %v8015
        %v8017 = vand.u32 %v8016, 4294901760
        %v8018 = vsub.f32 %v8016, %v8017
        %v8019 = vand.u32 %v8018, 4294901760
        %8020 = vmatmul.f32.gmra.mxu0 %v8019
        %v8021 = vpop.f32.mrf.mxu0
        %v8022 = vadd.f32 %v7924, %v8021
        %v8023 = vand.u32 %v7960, 4294901760
        %v8024 = vsub.f32 %v7960, %v8023
        %v8025 = vand.u32 %v8024, 4294901760
        %v8026 = vsub.f32 %v8024, %v8025
        %v8027 = vand.u32 %v8026, 4294901760
        %8028 = vmatmul.f32.gmra.mxu0 %v8027
        %v8029 = vpop.f32.mrf.mxu0
        %v8030 = vadd.f32 %v7929, %v8029
        %v8031 = vand.u32 %v7963, 4294901760
        %v8032 = vsub.f32 %v7963, %v8031
        %v8033 = vand.u32 %v8032, 4294901760
        %v8034 = vsub.f32 %v8032, %v8033
        %v8035 = vand.u32 %v8034, 4294901760
        %8036 = vmatmul.f32.gmra.mxu0 %v8035
        %v8037 = vpop.f32.mrf.mxu0
        %v8038 = vadd.f32 %v7934, %v8037
        %v8039 = vand.u32 %v7966, 4294901760
        %v8040 = vsub.f32 %v7966, %v8039
        %v8041 = vand.u32 %v8040, 4294901760
        %v8042 = vsub.f32 %v8040, %v8041
        %v8043 = vand.u32 %v8042, 4294901760
        %8044 = vmatmul.f32.gmra.mxu0 %v8043
        %v8045 = vpop.f32.mrf.mxu0
        %v8046 = vadd.f32 %v7939, %v8045
        %v8047 = vand.u32 %v7969, 4294901760
        %v8048 = vsub.f32 %v7969, %v8047
        %v8049 = vand.u32 %v8048, 4294901760
        %v8050 = vsub.f32 %v8048, %v8049
        %v8051 = vand.u32 %v8050, 4294901760
        %8052 = vmatmul.f32.gmra.mxu0 %v8051
        %v8053 = vpop.f32.mrf.mxu0
        %v8054 = vadd.f32 %v7944, %v8053
        %8055 = vdwg.mxu0
        %8056 = vmatpush.msra.mxu0 0.0
        %8057 = vmatpush.msra.mxu0 0.0
        %8058 = vmatpush.msra.mxu0 0.0
        %8059 = vmatpush.msra.mxu0 0.0
        %8060 = vmatpush.msra.mxu0 0.0
        %8061 = vmatpush.msra.mxu0 0.0
        %8062 = vmatpush.msra.mxu0 0.0
        %8063 = vmatpush.msra.mxu0 0.0
        %8064 = vmatpush.msra.mxu0 0.0
        %8065 = vmatpush.msra.mxu0 0.0
        %8066 = vmatpush.msra.mxu0 0.0
        %8067 = vmatpush.msra.mxu0 0.0
        %v8068 = vand.u32 %v7905, 4294901760
        %v8069 = vsub.f32 %v7905, %v8068
        %v8070 = vand.u32 %v8069, 4294901760
        %v8071 = vsub.f32 %v8069, %v8070
        %v8072 = vand.u32 %v8071, 4294901760
        %8073 = vmatpush.msra.mxu0 %v8072
        %v8074 = vand.u32 %v7904, 4294901760
        %v8075 = vsub.f32 %v7904, %v8074
        %v8076 = vand.u32 %v8075, 4294901760
        %v8077 = vsub.f32 %v8075, %v8076
        %v8078 = vand.u32 %v8077, 4294901760
        %8079 = vmatpush.msra.mxu0 %v8078
        %v8080 = vand.u32 %v7903, 4294901760
        %v8081 = vsub.f32 %v7903, %v8080
        %v8082 = vand.u32 %v8081, 4294901760
        %v8083 = vsub.f32 %v8081, %v8082
        %v8084 = vand.u32 %v8083, 4294901760
        %8085 = vmatpush.msra.mxu0 %v8084
        %v8086 = vand.u32 %v7902, 4294901760
        %v8087 = vsub.f32 %v7902, %v8086
        %v8088 = vand.u32 %v8087, 4294901760
        %v8089 = vsub.f32 %v8087, %v8088
        %v8090 = vand.u32 %v8089, 4294901760
        %8091 = vmatpush.msra.mxu0 %v8090
        %v8092 = vand.u32 %v7948, 4294901760
        %8093 = vmatmul.f32.gmra.mxu0 %v8092
        %v8094 = vpop.f32.mrf.mxu0
        %v8095 = vadd.f32 %v7998, %v8094
        %v8096 = vand.u32 %v7951, 4294901760
        %8097 = vmatmul.f32.gmra.mxu0 %v8096
        %v8098 = vpop.f32.mrf.mxu0
        %v8099 = vadd.f32 %v8006, %v8098
        %v8100 = vand.u32 %v7954, 4294901760
        %8101 = vmatmul.f32.gmra.mxu0 %v8100
        %v8102 = vpop.f32.mrf.mxu0
        %v8103 = vadd.f32 %v8014, %v8102
        %v8104 = vand.u32 %v7957, 4294901760
        %8105 = vmatmul.f32.gmra.mxu0 %v8104
        %v8106 = vpop.f32.mrf.mxu0
        %v8107 = vadd.f32 %v8022, %v8106
        %v8108 = vand.u32 %v7960, 4294901760
        %8109 = vmatmul.f32.gmra.mxu0 %v8108
        %v8110 = vpop.f32.mrf.mxu0
        %v8111 = vadd.f32 %v8030, %v8110
        %v8112 = vand.u32 %v7963, 4294901760
        %8113 = vmatmul.f32.gmra.mxu0 %v8112
        %v8114 = vpop.f32.mrf.mxu0
        %v8115 = vadd.f32 %v8038, %v8114
        %v8116 = vand.u32 %v7966, 4294901760
        %8117 = vmatmul.f32.gmra.mxu0 %v8116
        %v8118 = vpop.f32.mrf.mxu0
        %v8119 = vadd.f32 %v8046, %v8118
        %v8120 = vand.u32 %v7969, 4294901760
        %8121 = vmatmul.f32.gmra.mxu0 %v8120
        %v8122 = vpop.f32.mrf.mxu0
        %v8123 = vadd.f32 %v8054, %v8122
        %8124 = vdwg.mxu0
        %8125 = vmatpush.msra.mxu0 0.0
        %8126 = vmatpush.msra.mxu0 0.0
        %8127 = vmatpush.msra.mxu0 0.0
        %8128 = vmatpush.msra.mxu0 0.0
        %8129 = vmatpush.msra.mxu0 0.0
        %8130 = vmatpush.msra.mxu0 0.0
        %8131 = vmatpush.msra.mxu0 0.0
        %8132 = vmatpush.msra.mxu0 0.0
        %8133 = vmatpush.msra.mxu0 0.0
        %8134 = vmatpush.msra.mxu0 0.0
        %8135 = vmatpush.msra.mxu0 0.0
        %8136 = vmatpush.msra.mxu0 0.0
        %v8137 = vand.u32 %v7905, 4294901760
        %v8138 = vsub.f32 %v7905, %v8137
        %8139 = vmatpush.msra.mxu0 %v8138
        %v8140 = vand.u32 %v7904, 4294901760
        %v8141 = vsub.f32 %v7904, %v8140
        %8142 = vmatpush.msra.mxu0 %v8141
        %v8143 = vand.u32 %v7903, 4294901760
        %v8144 = vsub.f32 %v7903, %v8143
        %8145 = vmatpush.msra.mxu0 %v8144
        %v8146 = vand.u32 %v7902, 4294901760
        %v8147 = vsub.f32 %v7902, %v8146
        %8148 = vmatpush.msra.mxu0 %v8147
        %v8149 = vand.u32 %v7948, 4294901760
        %v8150 = vsub.f32 %v7948, %v8149
        %8151 = vmatmul.f32.gmra.mxu0 %v8150
        %v8152 = vpop.f32.mrf.mxu0
        %v8153 = vadd.f32 %v8095, %v8152
        %v8154 = vand.u32 %v7951, 4294901760
        %v8155 = vsub.f32 %v7951, %v8154
        %8156 = vmatmul.f32.gmra.mxu0 %v8155
        %v8157 = vpop.f32.mrf.mxu0
        %v8158 = vadd.f32 %v8099, %v8157
        %v8159 = vand.u32 %v7954, 4294901760
        %v8160 = vsub.f32 %v7954, %v8159
        %8161 = vmatmul.f32.gmra.mxu0 %v8160
        %v8162 = vpop.f32.mrf.mxu0
        %v8163 = vadd.f32 %v8103, %v8162
        %v8164 = vand.u32 %v7957, 4294901760
        %v8165 = vsub.f32 %v7957, %v8164
        %8166 = vmatmul.f32.gmra.mxu0 %v8165
        %v8167 = vpop.f32.mrf.mxu0
        %v8168 = vadd.f32 %v8107, %v8167
        %v8169 = vand.u32 %v7960, 4294901760
        %v8170 = vsub.f32 %v7960, %v8169
        %8171 = vmatmul.f32.gmra.mxu0 %v8170
        %v8172 = vpop.f32.mrf.mxu0
        %v8173 = vadd.f32 %v8111, %v8172
        %v8174 = vand.u32 %v7963, 4294901760
        %v8175 = vsub.f32 %v7963, %v8174
        %8176 = vmatmul.f32.gmra.mxu0 %v8175
        %v8177 = vpop.f32.mrf.mxu0
        %v8178 = vadd.f32 %v8115, %v8177
        %v8179 = vand.u32 %v7966, 4294901760
        %v8180 = vsub.f32 %v7966, %v8179
        %8181 = vmatmul.f32.gmra.mxu0 %v8180
        %v8182 = vpop.f32.mrf.mxu0
        %v8183 = vadd.f32 %v8119, %v8182
        %v8184 = vand.u32 %v7969, 4294901760
        %v8185 = vsub.f32 %v7969, %v8184
        %8186 = vmatmul.f32.gmra.mxu0 %v8185
        %v8187 = vpop.f32.mrf.mxu0
        %v8188 = vadd.f32 %v8123, %v8187
        %8189 = vdwg.mxu0
        %8190 = vmatpush.msra.mxu0 0.0
        %8191 = vmatpush.msra.mxu0 0.0
        %8192 = vmatpush.msra.mxu0 0.0
        %8193 = vmatpush.msra.mxu0 0.0
        %8194 = vmatpush.msra.mxu0 0.0
        %8195 = vmatpush.msra.mxu0 0.0
        %8196 = vmatpush.msra.mxu0 0.0
        %8197 = vmatpush.msra.mxu0 0.0
        %8198 = vmatpush.msra.mxu0 0.0
        %8199 = vmatpush.msra.mxu0 0.0
        %8200 = vmatpush.msra.mxu0 0.0
        %8201 = vmatpush.msra.mxu0 0.0
        %v8202 = vand.u32 %v7905, 4294901760
        %8203 = vmatpush.msra.mxu0 %v8202
        %v8204 = vand.u32 %v7904, 4294901760
        %8205 = vmatpush.msra.mxu0 %v8204
        %v8206 = vand.u32 %v7903, 4294901760
        %8207 = vmatpush.msra.mxu0 %v8206
        %v8208 = vand.u32 %v7902, 4294901760
        %8209 = vmatpush.msra.mxu0 %v8208
        %v8210 = vand.u32 %v7948, 4294901760
        %v8211 = vsub.f32 %v7948, %v8210
        %v8212 = vand.u32 %v8211, 4294901760
        %8213 = vmatmul.f32.gmra.mxu0 %v8212
        %v8214 = vpop.f32.mrf.mxu0
        %v8215 = vadd.f32 %v8153, %v8214
        %v8216 = vand.u32 %v7951, 4294901760
        %v8217 = vsub.f32 %v7951, %v8216
        %v8218 = vand.u32 %v8217, 4294901760
        %8219 = vmatmul.f32.gmra.mxu0 %v8218
        %v8220 = vpop.f32.mrf.mxu0
        %v8221 = vadd.f32 %v8158, %v8220
        %v8222 = vand.u32 %v7954, 4294901760
        %v8223 = vsub.f32 %v7954, %v8222
        %v8224 = vand.u32 %v8223, 4294901760
        %8225 = vmatmul.f32.gmra.mxu0 %v8224
        %v8226 = vpop.f32.mrf.mxu0
        %v8227 = vadd.f32 %v8163, %v8226
        %v8228 = vand.u32 %v7957, 4294901760
        %v8229 = vsub.f32 %v7957, %v8228
        %v8230 = vand.u32 %v8229, 4294901760
        %8231 = vmatmul.f32.gmra.mxu0 %v8230
        %v8232 = vpop.f32.mrf.mxu0
        %v8233 = vadd.f32 %v8168, %v8232
        %v8234 = vand.u32 %v7960, 4294901760
        %v8235 = vsub.f32 %v7960, %v8234
        %v8236 = vand.u32 %v8235, 4294901760
        %8237 = vmatmul.f32.gmra.mxu0 %v8236
        %v8238 = vpop.f32.mrf.mxu0
        %v8239 = vadd.f32 %v8173, %v8238
        %v8240 = vand.u32 %v7963, 4294901760
        %v8241 = vsub.f32 %v7963, %v8240
        %v8242 = vand.u32 %v8241, 4294901760
        %8243 = vmatmul.f32.gmra.mxu0 %v8242
        %v8244 = vpop.f32.mrf.mxu0
        %v8245 = vadd.f32 %v8178, %v8244
        %v8246 = vand.u32 %v7966, 4294901760
        %v8247 = vsub.f32 %v7966, %v8246
        %v8248 = vand.u32 %v8247, 4294901760
        %8249 = vmatmul.f32.gmra.mxu0 %v8248
        %v8250 = vpop.f32.mrf.mxu0
        %v8251 = vadd.f32 %v8183, %v8250
        %v8252 = vand.u32 %v7969, 4294901760
        %v8253 = vsub.f32 %v7969, %v8252
        %v8254 = vand.u32 %v8253, 4294901760
        %8255 = vmatmul.f32.gmra.mxu0 %v8254
        %v8256 = vpop.f32.mrf.mxu0
        %v8257 = vadd.f32 %v8188, %v8256
        %8258 = vdwg.mxu0
        %8259 = vmatpush.msra.mxu0 0.0
        %8260 = vmatpush.msra.mxu0 0.0
        %8261 = vmatpush.msra.mxu0 0.0
        %8262 = vmatpush.msra.mxu0 0.0
        %8263 = vmatpush.msra.mxu0 0.0
        %8264 = vmatpush.msra.mxu0 0.0
        %8265 = vmatpush.msra.mxu0 0.0
        %8266 = vmatpush.msra.mxu0 0.0
        %8267 = vmatpush.msra.mxu0 0.0
        %8268 = vmatpush.msra.mxu0 0.0
        %8269 = vmatpush.msra.mxu0 0.0
        %8270 = vmatpush.msra.mxu0 0.0
        %v8271 = vand.u32 %v7905, 4294901760
        %v8272 = vsub.f32 %v7905, %v8271
        %v8273 = vand.u32 %v8272, 4294901760
        %8274 = vmatpush.msra.mxu0 %v8273
        %v8275 = vand.u32 %v7904, 4294901760
        %v8276 = vsub.f32 %v7904, %v8275
        %v8277 = vand.u32 %v8276, 4294901760
        %8278 = vmatpush.msra.mxu0 %v8277
        %v8279 = vand.u32 %v7903, 4294901760
        %v8280 = vsub.f32 %v7903, %v8279
        %v8281 = vand.u32 %v8280, 4294901760
        %8282 = vmatpush.msra.mxu0 %v8281
        %v8283 = vand.u32 %v7902, 4294901760
        %v8284 = vsub.f32 %v7902, %v8283
        %v8285 = vand.u32 %v8284, 4294901760
        %8286 = vmatpush.msra.mxu0 %v8285
        %v8287 = vand.u32 %v7948, 4294901760
        %8288 = vmatmul.f32.gmra.mxu0 %v8287
        %v8289 = vpop.f32.mrf.mxu0
        %v8290 = vadd.f32 %v8215, %v8289
        %v8291 = vand.u32 %v7951, 4294901760
        %8292 = vmatmul.f32.gmra.mxu0 %v8291
        %v8293 = vpop.f32.mrf.mxu0
        %v8294 = vadd.f32 %v8221, %v8293
        %v8295 = vand.u32 %v7954, 4294901760
        %8296 = vmatmul.f32.gmra.mxu0 %v8295
        %v8297 = vpop.f32.mrf.mxu0
        %v8298 = vadd.f32 %v8227, %v8297
        %v8299 = vand.u32 %v7957, 4294901760
        %8300 = vmatmul.f32.gmra.mxu0 %v8299
        %v8301 = vpop.f32.mrf.mxu0
        %v8302 = vadd.f32 %v8233, %v8301
        %v8303 = vand.u32 %v7960, 4294901760
        %8304 = vmatmul.f32.gmra.mxu0 %v8303
        %v8305 = vpop.f32.mrf.mxu0
        %v8306 = vadd.f32 %v8239, %v8305
        %v8307 = vand.u32 %v7963, 4294901760
        %8308 = vmatmul.f32.gmra.mxu0 %v8307
        %v8309 = vpop.f32.mrf.mxu0
        %v8310 = vadd.f32 %v8245, %v8309
        %v8311 = vand.u32 %v7966, 4294901760
        %8312 = vmatmul.f32.gmra.mxu0 %v8311
        %v8313 = vpop.f32.mrf.mxu0
        %v8314 = vadd.f32 %v8251, %v8313
        %v8315 = vand.u32 %v7969, 4294901760
        %8316 = vmatmul.f32.gmra.mxu0 %v8315
        %v8317 = vpop.f32.mrf.mxu0
        %v8318 = vadd.f32 %v8257, %v8317
        %8319 = vdwg.mxu0
        %8320 = vmatpush.msra.mxu0 0.0
        %8321 = vmatpush.msra.mxu0 0.0
        %8322 = vmatpush.msra.mxu0 0.0
        %8323 = vmatpush.msra.mxu0 0.0
        %8324 = vmatpush.msra.mxu0 0.0
        %8325 = vmatpush.msra.mxu0 0.0
        %8326 = vmatpush.msra.mxu0 0.0
        %8327 = vmatpush.msra.mxu0 0.0
        %8328 = vmatpush.msra.mxu0 0.0
        %8329 = vmatpush.msra.mxu0 0.0
        %8330 = vmatpush.msra.mxu0 0.0
        %8331 = vmatpush.msra.mxu0 0.0
        %v8332 = vand.u32 %v7905, 4294901760
        %8333 = vmatpush.msra.mxu0 %v8332
        %v8334 = vand.u32 %v7904, 4294901760
        %8335 = vmatpush.msra.mxu0 %v8334
        %v8336 = vand.u32 %v7903, 4294901760
        %8337 = vmatpush.msra.mxu0 %v8336
        %v8338 = vand.u32 %v7902, 4294901760
        %8339 = vmatpush.msra.mxu0 %v8338
        %v8340 = vand.u32 %v7948, 4294901760
        %8341 = vmatmul.f32.gmra.mxu0 %v8340
        %v8342 = vpop.f32.mrf.mxu0
        %v8343 = vadd.f32 %v8290, %v8342
        %v8344 = vand.u32 %v7951, 4294901760
        %8345 = vmatmul.f32.gmra.mxu0 %v8344
        %v8346 = vpop.f32.mrf.mxu0
        %v8347 = vadd.f32 %v8294, %v8346
        %v8348 = vand.u32 %v7954, 4294901760
        %8349 = vmatmul.f32.gmra.mxu0 %v8348
        %v8350 = vpop.f32.mrf.mxu0
        %v8351 = vadd.f32 %v8298, %v8350
        %v8352 = vand.u32 %v7957, 4294901760
        %8353 = vmatmul.f32.gmra.mxu0 %v8352
        %v8354 = vpop.f32.mrf.mxu0
        %v8355 = vadd.f32 %v8302, %v8354
        %v8356 = vand.u32 %v7960, 4294901760
        %8357 = vmatmul.f32.gmra.mxu0 %v8356
        %v8358 = vpop.f32.mrf.mxu0
        %v8359 = vadd.f32 %v8306, %v8358
        %v8360 = vand.u32 %v7963, 4294901760
        %8361 = vmatmul.f32.gmra.mxu0 %v8360
        %v8362 = vpop.f32.mrf.mxu0
        %v8363 = vadd.f32 %v8310, %v8362
        %v8364 = vand.u32 %v7966, 4294901760
        %8365 = vmatmul.f32.gmra.mxu0 %v8364
        %v8366 = vpop.f32.mrf.mxu0
        %v8367 = vadd.f32 %v8314, %v8366
        %v8368 = vand.u32 %v7969, 4294901760
        %8369 = vmatmul.f32.gmra.mxu0 %v8368
        %v8370 = vpop.f32.mrf.mxu0
        %v8371 = vadd.f32 %v8318, %v8370
        %8372 = vdwg.mxu0
        %v8373 = vadd.f32 %v7894, %v8343
        %v8374 = vadd.f32 %v7895, %v8347
        %v8375 = vadd.f32 %v7896, %v8351
        %v8376 = vadd.f32 %v7897, %v8355
        %v8377 = vadd.f32 %v7898, %v8359
        %v8378 = vadd.f32 %v7899, %v8363
        %v8379 = vadd.f32 %v7900, %v8367
        %v8380 = vadd.f32 %v7901, %v8371
        %v8381 = vmax.f32 %v8373, 0.0
        %v8382 = vmax.f32 %v8374, 0.0
        %v8383 = vmax.f32 %v8375, 0.0
        %v8384 = vmax.f32 %v8376, 0.0
        %v8385 = vmax.f32 %v8377, 0.0
        %v8386 = vmax.f32 %v8378, 0.0
        %v8387 = vmax.f32 %v8379, 0.0
        %v8388 = vmax.f32 %v8380, 0.0
        %8389 = vst [vmem:[%s353] sm:$0xff] %v8381
        %8390 = vst [vmem:[%s353 + $0x8] sm:$0xff] %v8382
        %8391 = vst [vmem:[%s353 + $0x10] sm:$0xff] %v8383
        %8392 = vst [vmem:[%s353 + $0x18] sm:$0xff] %v8384
        %8393 = vst [vmem:[%s353 + $0x20] sm:$0xff] %v8385
        %8394 = vst [vmem:[%s353 + $0x28] sm:$0xff] %v8386
        %8395 = vst [vmem:[%s353 + $0x30] sm:$0xff] %v8387
        %8396 = vst [vmem:[%s353 + $0x38] sm:$0xff] %v8388
        %v8397 = vld [vmem:[%s1562] sm:$0xff]
        %v8398 = vld [vmem:[%s1562 + $0x8] sm:$0xff]
        %v8399 = vld [vmem:[%s1562 + $0x10] sm:$0xff]
        %v8400 = vld [vmem:[%s1562 + $0x18] sm:$0xff]
        %v8401 = vld [vmem:[%s1562 + $0x20] sm:$0xff]
        %v8402 = vld [vmem:[%s1562 + $0x28] sm:$0xff]
        %v8403 = vld [vmem:[%s1562 + $0x30] sm:$0xff]
        %v8404 = vld [vmem:[%s1562 + $0x38] sm:$0xff]
        %v8405 = vmul.f32 %v8397, %v7729
        %v8406 = vmul.f32 %v8398, %v7735
        %v8407 = vmul.f32 %v8399, %v7741
        %v8408 = vmul.f32 %v8400, %v7747
        %v8409 = vmul.f32 %v8401, %v7753
        %v8410 = vmul.f32 %v8402, %v7759
        %v8411 = vmul.f32 %v8403, %v7765
        %v8412 = vmul.f32 %v8404, %v7771
        %v8413 = vld [vmem:[%s1019] sm:$0xff]
        %v8414 = vld [vmem:[%s1019 + $0x8] sm:$0xff]
        %v8415 = vld [vmem:[%s1019 + $0x10] sm:$0xff]
        %v8416 = vld [vmem:[%s1019 + $0x18] sm:$0xff]
        %8417 = vmatpush.msra.mxu0 0.0
        %8418 = vmatpush.msra.mxu0 0.0
        %8419 = vmatpush.msra.mxu0 0.0
        %8420 = vmatpush.msra.mxu0 0.0
        %8421 = vmatpush.msra.mxu0 0.0
        %8422 = vmatpush.msra.mxu0 0.0
        %8423 = vmatpush.msra.mxu0 0.0
        %8424 = vmatpush.msra.mxu0 0.0
        %8425 = vmatpush.msra.mxu0 0.0
        %8426 = vmatpush.msra.mxu0 0.0
        %8427 = vmatpush.msra.mxu0 0.0
        %8428 = vmatpush.msra.mxu0 0.0
        %v8429 = vand.u32 %v8416, 4294901760
        %8430 = vmatpush.msra.mxu0 %v8429
        %v8431 = vand.u32 %v8415, 4294901760
        %8432 = vmatpush.msra.mxu0 %v8431
        %v8433 = vand.u32 %v8414, 4294901760
        %8434 = vmatpush.msra.mxu0 %v8433
        %v8435 = vand.u32 %v8413, 4294901760
        %8436 = vmatpush.msra.mxu0 %v8435
        %v8437 = vand.u32 %v7948, 4294901760
        %v8438 = vsub.f32 %v7948, %v8437
        %v8439 = vand.u32 %v8438, 4294901760
        %v8440 = vsub.f32 %v8438, %v8439
        %v8441 = vand.u32 %v8440, 4294901760
        %8442 = vmatmul.f32.gmra.mxu0 %v8441
        %v8443 = vpop.f32.mrf.mxu0
        %v8444 = vadd.f32 %v7909, %v8443
        %v8445 = vand.u32 %v7951, 4294901760
        %v8446 = vsub.f32 %v7951, %v8445
        %v8447 = vand.u32 %v8446, 4294901760
        %v8448 = vsub.f32 %v8446, %v8447
        %v8449 = vand.u32 %v8448, 4294901760
        %8450 = vmatmul.f32.gmra.mxu0 %v8449
        %v8451 = vpop.f32.mrf.mxu0
        %v8452 = vadd.f32 %v7914, %v8451
        %v8453 = vand.u32 %v7954, 4294901760
        %v8454 = vsub.f32 %v7954, %v8453
        %v8455 = vand.u32 %v8454, 4294901760
        %v8456 = vsub.f32 %v8454, %v8455
        %v8457 = vand.u32 %v8456, 4294901760
        %8458 = vmatmul.f32.gmra.mxu0 %v8457
        %v8459 = vpop.f32.mrf.mxu0
        %v8460 = vadd.f32 %v7919, %v8459
        %v8461 = vand.u32 %v7957, 4294901760
        %v8462 = vsub.f32 %v7957, %v8461
        %v8463 = vand.u32 %v8462, 4294901760
        %v8464 = vsub.f32 %v8462, %v8463
        %v8465 = vand.u32 %v8464, 4294901760
        %8466 = vmatmul.f32.gmra.mxu0 %v8465
        %v8467 = vpop.f32.mrf.mxu0
        %v8468 = vadd.f32 %v7924, %v8467
        %v8469 = vand.u32 %v7960, 4294901760
        %v8470 = vsub.f32 %v7960, %v8469
        %v8471 = vand.u32 %v8470, 4294901760
        %v8472 = vsub.f32 %v8470, %v8471
        %v8473 = vand.u32 %v8472, 4294901760
        %8474 = vmatmul.f32.gmra.mxu0 %v8473
        %v8475 = vpop.f32.mrf.mxu0
        %v8476 = vadd.f32 %v7929, %v8475
        %v8477 = vand.u32 %v7963, 4294901760
        %v8478 = vsub.f32 %v7963, %v8477
        %v8479 = vand.u32 %v8478, 4294901760
        %v8480 = vsub.f32 %v8478, %v8479
        %v8481 = vand.u32 %v8480, 4294901760
        %8482 = vmatmul.f32.gmra.mxu0 %v8481
        %v8483 = vpop.f32.mrf.mxu0
        %v8484 = vadd.f32 %v7934, %v8483
        %v8485 = vand.u32 %v7966, 4294901760
        %v8486 = vsub.f32 %v7966, %v8485
        %v8487 = vand.u32 %v8486, 4294901760
        %v8488 = vsub.f32 %v8486, %v8487
        %v8489 = vand.u32 %v8488, 4294901760
        %8490 = vmatmul.f32.gmra.mxu0 %v8489
        %v8491 = vpop.f32.mrf.mxu0
        %v8492 = vadd.f32 %v7939, %v8491
        %v8493 = vand.u32 %v7969, 4294901760
        %v8494 = vsub.f32 %v7969, %v8493
        %v8495 = vand.u32 %v8494, 4294901760
        %v8496 = vsub.f32 %v8494, %v8495
        %v8497 = vand.u32 %v8496, 4294901760
        %8498 = vmatmul.f32.gmra.mxu0 %v8497
        %v8499 = vpop.f32.mrf.mxu0
        %v8500 = vadd.f32 %v7944, %v8499
        %8501 = vdwg.mxu0
        %8502 = vmatpush.msra.mxu0 0.0
        %8503 = vmatpush.msra.mxu0 0.0
        %8504 = vmatpush.msra.mxu0 0.0
        %8505 = vmatpush.msra.mxu0 0.0
        %8506 = vmatpush.msra.mxu0 0.0
        %8507 = vmatpush.msra.mxu0 0.0
        %8508 = vmatpush.msra.mxu0 0.0
        %8509 = vmatpush.msra.mxu0 0.0
        %8510 = vmatpush.msra.mxu0 0.0
        %8511 = vmatpush.msra.mxu0 0.0
        %8512 = vmatpush.msra.mxu0 0.0
        %8513 = vmatpush.msra.mxu0 0.0
        %v8514 = vand.u32 %v8416, 4294901760
        %v8515 = vsub.f32 %v8416, %v8514
        %v8516 = vand.u32 %v8515, 4294901760
        %v8517 = vsub.f32 %v8515, %v8516
        %v8518 = vand.u32 %v8517, 4294901760
        %8519 = vmatpush.msra.mxu0 %v8518
        %v8520 = vand.u32 %v8415, 4294901760
        %v8521 = vsub.f32 %v8415, %v8520
        %v8522 = vand.u32 %v8521, 4294901760
        %v8523 = vsub.f32 %v8521, %v8522
        %v8524 = vand.u32 %v8523, 4294901760
        %8525 = vmatpush.msra.mxu0 %v8524
        %v8526 = vand.u32 %v8414, 4294901760
        %v8527 = vsub.f32 %v8414, %v8526
        %v8528 = vand.u32 %v8527, 4294901760
        %v8529 = vsub.f32 %v8527, %v8528
        %v8530 = vand.u32 %v8529, 4294901760
        %8531 = vmatpush.msra.mxu0 %v8530
        %v8532 = vand.u32 %v8413, 4294901760
        %v8533 = vsub.f32 %v8413, %v8532
        %v8534 = vand.u32 %v8533, 4294901760
        %v8535 = vsub.f32 %v8533, %v8534
        %v8536 = vand.u32 %v8535, 4294901760
        %8537 = vmatpush.msra.mxu0 %v8536
        %v8538 = vand.u32 %v7948, 4294901760
        %8539 = vmatmul.f32.gmra.mxu0 %v8538
        %v8540 = vpop.f32.mrf.mxu0
        %v8541 = vadd.f32 %v8444, %v8540
        %v8542 = vand.u32 %v7951, 4294901760
        %8543 = vmatmul.f32.gmra.mxu0 %v8542
        %v8544 = vpop.f32.mrf.mxu0
        %v8545 = vadd.f32 %v8452, %v8544
        %v8546 = vand.u32 %v7954, 4294901760
        %8547 = vmatmul.f32.gmra.mxu0 %v8546
        %v8548 = vpop.f32.mrf.mxu0
        %v8549 = vadd.f32 %v8460, %v8548
        %v8550 = vand.u32 %v7957, 4294901760
        %8551 = vmatmul.f32.gmra.mxu0 %v8550
        %v8552 = vpop.f32.mrf.mxu0
        %v8553 = vadd.f32 %v8468, %v8552
        %v8554 = vand.u32 %v7960, 4294901760
        %8555 = vmatmul.f32.gmra.mxu0 %v8554
        %v8556 = vpop.f32.mrf.mxu0
        %v8557 = vadd.f32 %v8476, %v8556
        %v8558 = vand.u32 %v7963, 4294901760
        %8559 = vmatmul.f32.gmra.mxu0 %v8558
        %v8560 = vpop.f32.mrf.mxu0
        %v8561 = vadd.f32 %v8484, %v8560
        %v8562 = vand.u32 %v7966, 4294901760
        %8563 = vmatmul.f32.gmra.mxu0 %v8562
        %v8564 = vpop.f32.mrf.mxu0
        %v8565 = vadd.f32 %v8492, %v8564
        %v8566 = vand.u32 %v7969, 4294901760
        %8567 = vmatmul.f32.gmra.mxu0 %v8566
        %v8568 = vpop.f32.mrf.mxu0
        %v8569 = vadd.f32 %v8500, %v8568
        %8570 = vdwg.mxu0
        %8571 = vmatpush.msra.mxu0 0.0
        %8572 = vmatpush.msra.mxu0 0.0
        %8573 = vmatpush.msra.mxu0 0.0
        %8574 = vmatpush.msra.mxu0 0.0
        %8575 = vmatpush.msra.mxu0 0.0
        %8576 = vmatpush.msra.mxu0 0.0
        %8577 = vmatpush.msra.mxu0 0.0
        %8578 = vmatpush.msra.mxu0 0.0
        %8579 = vmatpush.msra.mxu0 0.0
        %8580 = vmatpush.msra.mxu0 0.0
        %8581 = vmatpush.msra.mxu0 0.0
        %8582 = vmatpush.msra.mxu0 0.0
        %v8583 = vand.u32 %v8416, 4294901760
        %v8584 = vsub.f32 %v8416, %v8583
        %8585 = vmatpush.msra.mxu0 %v8584
        %v8586 = vand.u32 %v8415, 4294901760
        %v8587 = vsub.f32 %v8415, %v8586
        %8588 = vmatpush.msra.mxu0 %v8587
        %v8589 = vand.u32 %v8414, 4294901760
        %v8590 = vsub.f32 %v8414, %v8589
        %8591 = vmatpush.msra.mxu0 %v8590
        %v8592 = vand.u32 %v8413, 4294901760
        %v8593 = vsub.f32 %v8413, %v8592
        %8594 = vmatpush.msra.mxu0 %v8593
        %v8595 = vand.u32 %v7948, 4294901760
        %v8596 = vsub.f32 %v7948, %v8595
        %8597 = vmatmul.f32.gmra.mxu0 %v8596
        %v8598 = vpop.f32.mrf.mxu0
        %v8599 = vadd.f32 %v8541, %v8598
        %v8600 = vand.u32 %v7951, 4294901760
        %v8601 = vsub.f32 %v7951, %v8600
        %8602 = vmatmul.f32.gmra.mxu0 %v8601
        %v8603 = vpop.f32.mrf.mxu0
        %v8604 = vadd.f32 %v8545, %v8603
        %v8605 = vand.u32 %v7954, 4294901760
        %v8606 = vsub.f32 %v7954, %v8605
        %8607 = vmatmul.f32.gmra.mxu0 %v8606
        %v8608 = vpop.f32.mrf.mxu0
        %v8609 = vadd.f32 %v8549, %v8608
        %v8610 = vand.u32 %v7957, 4294901760
        %v8611 = vsub.f32 %v7957, %v8610
        %8612 = vmatmul.f32.gmra.mxu0 %v8611
        %v8613 = vpop.f32.mrf.mxu0
        %v8614 = vadd.f32 %v8553, %v8613
        %v8615 = vand.u32 %v7960, 4294901760
        %v8616 = vsub.f32 %v7960, %v8615
        %8617 = vmatmul.f32.gmra.mxu0 %v8616
        %v8618 = vpop.f32.mrf.mxu0
        %v8619 = vadd.f32 %v8557, %v8618
        %v8620 = vand.u32 %v7963, 4294901760
        %v8621 = vsub.f32 %v7963, %v8620
        %8622 = vmatmul.f32.gmra.mxu0 %v8621
        %v8623 = vpop.f32.mrf.mxu0
        %v8624 = vadd.f32 %v8561, %v8623
        %v8625 = vand.u32 %v7966, 4294901760
        %v8626 = vsub.f32 %v7966, %v8625
        %8627 = vmatmul.f32.gmra.mxu0 %v8626
        %v8628 = vpop.f32.mrf.mxu0
        %v8629 = vadd.f32 %v8565, %v8628
        %v8630 = vand.u32 %v7969, 4294901760
        %v8631 = vsub.f32 %v7969, %v8630
        %8632 = vmatmul.f32.gmra.mxu0 %v8631
        %v8633 = vpop.f32.mrf.mxu0
        %v8634 = vadd.f32 %v8569, %v8633
        %8635 = vdwg.mxu0
        %8636 = vmatpush.msra.mxu0 0.0
        %8637 = vmatpush.msra.mxu0 0.0
        %8638 = vmatpush.msra.mxu0 0.0
        %8639 = vmatpush.msra.mxu0 0.0
        %8640 = vmatpush.msra.mxu0 0.0
        %8641 = vmatpush.msra.mxu0 0.0
        %8642 = vmatpush.msra.mxu0 0.0
        %8643 = vmatpush.msra.mxu0 0.0
        %8644 = vmatpush.msra.mxu0 0.0
        %8645 = vmatpush.msra.mxu0 0.0
        %8646 = vmatpush.msra.mxu0 0.0
        %8647 = vmatpush.msra.mxu0 0.0
        %v8648 = vand.u32 %v8416, 4294901760
        %8649 = vmatpush.msra.mxu0 %v8648
        %v8650 = vand.u32 %v8415, 4294901760
        %8651 = vmatpush.msra.mxu0 %v8650
        %v8652 = vand.u32 %v8414, 4294901760
        %8653 = vmatpush.msra.mxu0 %v8652
        %v8654 = vand.u32 %v8413, 4294901760
        %8655 = vmatpush.msra.mxu0 %v8654
        %v8656 = vand.u32 %v7948, 4294901760
        %v8657 = vsub.f32 %v7948, %v8656
        %v8658 = vand.u32 %v8657, 4294901760
        %8659 = vmatmul.f32.gmra.mxu0 %v8658
        %v8660 = vpop.f32.mrf.mxu0
        %v8661 = vadd.f32 %v8599, %v8660
        %v8662 = vand.u32 %v7951, 4294901760
        %v8663 = vsub.f32 %v7951, %v8662
        %v8664 = vand.u32 %v8663, 4294901760
        %8665 = vmatmul.f32.gmra.mxu0 %v8664
        %v8666 = vpop.f32.mrf.mxu0
        %v8667 = vadd.f32 %v8604, %v8666
        %v8668 = vand.u32 %v7954, 4294901760
        %v8669 = vsub.f32 %v7954, %v8668
        %v8670 = vand.u32 %v8669, 4294901760
        %8671 = vmatmul.f32.gmra.mxu0 %v8670
        %v8672 = vpop.f32.mrf.mxu0
        %v8673 = vadd.f32 %v8609, %v8672
        %v8674 = vand.u32 %v7957, 4294901760
        %v8675 = vsub.f32 %v7957, %v8674
        %v8676 = vand.u32 %v8675, 4294901760
        %8677 = vmatmul.f32.gmra.mxu0 %v8676
        %v8678 = vpop.f32.mrf.mxu0
        %v8679 = vadd.f32 %v8614, %v8678
        %v8680 = vand.u32 %v7960, 4294901760
        %v8681 = vsub.f32 %v7960, %v8680
        %v8682 = vand.u32 %v8681, 4294901760
        %8683 = vmatmul.f32.gmra.mxu0 %v8682
        %v8684 = vpop.f32.mrf.mxu0
        %v8685 = vadd.f32 %v8619, %v8684
        %v8686 = vand.u32 %v7963, 4294901760
        %v8687 = vsub.f32 %v7963, %v8686
        %v8688 = vand.u32 %v8687, 4294901760
        %8689 = vmatmul.f32.gmra.mxu0 %v8688
        %v8690 = vpop.f32.mrf.mxu0
        %v8691 = vadd.f32 %v8624, %v8690
        %v8692 = vand.u32 %v7966, 4294901760
        %v8693 = vsub.f32 %v7966, %v8692
        %v8694 = vand.u32 %v8693, 4294901760
        %8695 = vmatmul.f32.gmra.mxu0 %v8694
        %v8696 = vpop.f32.mrf.mxu0
        %v8697 = vadd.f32 %v8629, %v8696
        %v8698 = vand.u32 %v7969, 4294901760
        %v8699 = vsub.f32 %v7969, %v8698
        %v8700 = vand.u32 %v8699, 4294901760
        %8701 = vmatmul.f32.gmra.mxu0 %v8700
        %v8702 = vpop.f32.mrf.mxu0
        %v8703 = vadd.f32 %v8634, %v8702
        %8704 = vdwg.mxu0
        %8705 = vmatpush.msra.mxu0 0.0
        %8706 = vmatpush.msra.mxu0 0.0
        %8707 = vmatpush.msra.mxu0 0.0
        %8708 = vmatpush.msra.mxu0 0.0
        %8709 = vmatpush.msra.mxu0 0.0
        %8710 = vmatpush.msra.mxu0 0.0
        %8711 = vmatpush.msra.mxu0 0.0
        %8712 = vmatpush.msra.mxu0 0.0
        %8713 = vmatpush.msra.mxu0 0.0
        %8714 = vmatpush.msra.mxu0 0.0
        %8715 = vmatpush.msra.mxu0 0.0
        %8716 = vmatpush.msra.mxu0 0.0
        %v8717 = vand.u32 %v8416, 4294901760
        %v8718 = vsub.f32 %v8416, %v8717
        %v8719 = vand.u32 %v8718, 4294901760
        %8720 = vmatpush.msra.mxu0 %v8719
        %v8721 = vand.u32 %v8415, 4294901760
        %v8722 = vsub.f32 %v8415, %v8721
        %v8723 = vand.u32 %v8722, 4294901760
        %8724 = vmatpush.msra.mxu0 %v8723
        %v8725 = vand.u32 %v8414, 4294901760
        %v8726 = vsub.f32 %v8414, %v8725
        %v8727 = vand.u32 %v8726, 4294901760
        %8728 = vmatpush.msra.mxu0 %v8727
        %v8729 = vand.u32 %v8413, 4294901760
        %v8730 = vsub.f32 %v8413, %v8729
        %v8731 = vand.u32 %v8730, 4294901760
        %8732 = vmatpush.msra.mxu0 %v8731
        %v8733 = vand.u32 %v7948, 4294901760
        %8734 = vmatmul.f32.gmra.mxu0 %v8733
        %v8735 = vpop.f32.mrf.mxu0
        %v8736 = vadd.f32 %v8661, %v8735
        %v8737 = vand.u32 %v7951, 4294901760
        %8738 = vmatmul.f32.gmra.mxu0 %v8737
        %v8739 = vpop.f32.mrf.mxu0
        %v8740 = vadd.f32 %v8667, %v8739
        %v8741 = vand.u32 %v7954, 4294901760
        %8742 = vmatmul.f32.gmra.mxu0 %v8741
        %v8743 = vpop.f32.mrf.mxu0
        %v8744 = vadd.f32 %v8673, %v8743
        %v8745 = vand.u32 %v7957, 4294901760
        %8746 = vmatmul.f32.gmra.mxu0 %v8745
        %v8747 = vpop.f32.mrf.mxu0
        %v8748 = vadd.f32 %v8679, %v8747
        %v8749 = vand.u32 %v7960, 4294901760
        %8750 = vmatmul.f32.gmra.mxu0 %v8749
        %v8751 = vpop.f32.mrf.mxu0
        %v8752 = vadd.f32 %v8685, %v8751
        %v8753 = vand.u32 %v7963, 4294901760
        %8754 = vmatmul.f32.gmra.mxu0 %v8753
        %v8755 = vpop.f32.mrf.mxu0
        %v8756 = vadd.f32 %v8691, %v8755
        %v8757 = vand.u32 %v7966, 4294901760
        %8758 = vmatmul.f32.gmra.mxu0 %v8757
        %v8759 = vpop.f32.mrf.mxu0
        %v8760 = vadd.f32 %v8697, %v8759
        %v8761 = vand.u32 %v7969, 4294901760
        %8762 = vmatmul.f32.gmra.mxu0 %v8761
        %v8763 = vpop.f32.mrf.mxu0
        %v8764 = vadd.f32 %v8703, %v8763
        %8765 = vdwg.mxu0
        %8766 = vmatpush.msra.mxu0 0.0
        %8767 = vmatpush.msra.mxu0 0.0
        %8768 = vmatpush.msra.mxu0 0.0
        %8769 = vmatpush.msra.mxu0 0.0
        %8770 = vmatpush.msra.mxu0 0.0
        %8771 = vmatpush.msra.mxu0 0.0
        %8772 = vmatpush.msra.mxu0 0.0
        %8773 = vmatpush.msra.mxu0 0.0
        %8774 = vmatpush.msra.mxu0 0.0
        %8775 = vmatpush.msra.mxu0 0.0
        %8776 = vmatpush.msra.mxu0 0.0
        %8777 = vmatpush.msra.mxu0 0.0
        %v8778 = vand.u32 %v8416, 4294901760
        %8779 = vmatpush.msra.mxu0 %v8778
        %v8780 = vand.u32 %v8415, 4294901760
        %8781 = vmatpush.msra.mxu0 %v8780
        %v8782 = vand.u32 %v8414, 4294901760
        %8783 = vmatpush.msra.mxu0 %v8782
        %v8784 = vand.u32 %v8413, 4294901760
        %8785 = vmatpush.msra.mxu0 %v8784
        %v8786 = vand.u32 %v7948, 4294901760
        %8787 = vmatmul.f32.gmra.mxu0 %v8786
        %v8788 = vpop.f32.mrf.mxu0
        %v8789 = vadd.f32 %v8736, %v8788
        %v8790 = vand.u32 %v7951, 4294901760
        %8791 = vmatmul.f32.gmra.mxu0 %v8790
        %v8792 = vpop.f32.mrf.mxu0
        %v8793 = vadd.f32 %v8740, %v8792
        %v8794 = vand.u32 %v7954, 4294901760
        %8795 = vmatmul.f32.gmra.mxu0 %v8794
        %v8796 = vpop.f32.mrf.mxu0
        %v8797 = vadd.f32 %v8744, %v8796
        %v8798 = vand.u32 %v7957, 4294901760
        %8799 = vmatmul.f32.gmra.mxu0 %v8798
        %v8800 = vpop.f32.mrf.mxu0
        %v8801 = vadd.f32 %v8748, %v8800
        %v8802 = vand.u32 %v7960, 4294901760
        %8803 = vmatmul.f32.gmra.mxu0 %v8802
        %v8804 = vpop.f32.mrf.mxu0
        %v8805 = vadd.f32 %v8752, %v8804
        %v8806 = vand.u32 %v7963, 4294901760
        %8807 = vmatmul.f32.gmra.mxu0 %v8806
        %v8808 = vpop.f32.mrf.mxu0
        %v8809 = vadd.f32 %v8756, %v8808
        %v8810 = vand.u32 %v7966, 4294901760
        %8811 = vmatmul.f32.gmra.mxu0 %v8810
        %v8812 = vpop.f32.mrf.mxu0
        %v8813 = vadd.f32 %v8760, %v8812
        %v8814 = vand.u32 %v7969, 4294901760
        %8815 = vmatmul.f32.gmra.mxu0 %v8814
        %v8816 = vpop.f32.mrf.mxu0
        %v8817 = vadd.f32 %v8764, %v8816
        %8818 = vdwg.mxu0
        %v8819 = vadd.f32 %v8405, %v8789
        %v8820 = vadd.f32 %v8406, %v8793
        %v8821 = vadd.f32 %v8407, %v8797
        %v8822 = vadd.f32 %v8408, %v8801
        %v8823 = vadd.f32 %v8409, %v8805
        %v8824 = vadd.f32 %v8410, %v8809
        %v8825 = vadd.f32 %v8411, %v8813
        %v8826 = vadd.f32 %v8412, %v8817
        %v8827 = vmax.f32 %v8819, 0.0
        %v8828 = vmax.f32 %v8820, 0.0
        %v8829 = vmax.f32 %v8821, 0.0
        %v8830 = vmax.f32 %v8822, 0.0
        %v8831 = vmax.f32 %v8823, 0.0
        %v8832 = vmax.f32 %v8824, 0.0
        %v8833 = vmax.f32 %v8825, 0.0
        %v8834 = vmax.f32 %v8826, 0.0
        %s8835 = scalar_lea.vmem %s353, 64 [#allocation6]
        %8836 = vst [vmem:[%s8835] sm:$0xff] %v8827
        %8837 = vst [vmem:[%s8835 + $0x8] sm:$0xff] %v8828
        %8838 = vst [vmem:[%s8835 + $0x10] sm:$0xff] %v8829
        %8839 = vst [vmem:[%s8835 + $0x18] sm:$0xff] %v8830
        %8840 = vst [vmem:[%s8835 + $0x20] sm:$0xff] %v8831
        %8841 = vst [vmem:[%s8835 + $0x28] sm:$0xff] %v8832
        %8842 = vst [vmem:[%s8835 + $0x30] sm:$0xff] %v8833
        %8843 = vst [vmem:[%s8835 + $0x38] sm:$0xff] %v8834
        %v8844 = vld [vmem:[%s2114] sm:$0xff]
        %v8845 = vld [vmem:[%s2114 + $0x8] sm:$0xff]
        %v8846 = vld [vmem:[%s2114 + $0x10] sm:$0xff]
        %v8847 = vld [vmem:[%s2114 + $0x18] sm:$0xff]
        %v8848 = vld [vmem:[%s2114 + $0x20] sm:$0xff]
        %v8849 = vld [vmem:[%s2114 + $0x28] sm:$0xff]
        %v8850 = vld [vmem:[%s2114 + $0x30] sm:$0xff]
        %v8851 = vld [vmem:[%s2114 + $0x38] sm:$0xff]
        %v8852 = vmul.f32 %v8844, %v7778
        %v8853 = vmul.f32 %v8845, %v7784
        %v8854 = vmul.f32 %v8846, %v7790
        %v8855 = vmul.f32 %v8847, %v7796
        %v8856 = vmul.f32 %v8848, %v7802
        %v8857 = vmul.f32 %v8849, %v7808
        %v8858 = vmul.f32 %v8850, %v7814
        %v8859 = vmul.f32 %v8851, %v7820
        %v8860 = vld [vmem:[%s1571] sm:$0xff]
        %v8861 = vld [vmem:[%s1571 + $0x8] sm:$0xff]
        %v8862 = vld [vmem:[%s1571 + $0x10] sm:$0xff]
        %v8863 = vld [vmem:[%s1571 + $0x18] sm:$0xff]
        %8864 = vmatpush.msra.mxu0 0.0
        %8865 = vmatpush.msra.mxu0 0.0
        %8866 = vmatpush.msra.mxu0 0.0
        %8867 = vmatpush.msra.mxu0 0.0
        %8868 = vmatpush.msra.mxu0 0.0
        %8869 = vmatpush.msra.mxu0 0.0
        %8870 = vmatpush.msra.mxu0 0.0
        %8871 = vmatpush.msra.mxu0 0.0
        %8872 = vmatpush.msra.mxu0 0.0
        %8873 = vmatpush.msra.mxu0 0.0
        %8874 = vmatpush.msra.mxu0 0.0
        %8875 = vmatpush.msra.mxu0 0.0
        %v8876 = vand.u32 %v8863, 4294901760
        %8877 = vmatpush.msra.mxu0 %v8876
        %v8878 = vand.u32 %v8862, 4294901760
        %8879 = vmatpush.msra.mxu0 %v8878
        %v8880 = vand.u32 %v8861, 4294901760
        %8881 = vmatpush.msra.mxu0 %v8880
        %v8882 = vand.u32 %v8860, 4294901760
        %8883 = vmatpush.msra.mxu0 %v8882
        %v8884 = vand.u32 %v7948, 4294901760
        %v8885 = vsub.f32 %v7948, %v8884
        %v8886 = vand.u32 %v8885, 4294901760
        %v8887 = vsub.f32 %v8885, %v8886
        %v8888 = vand.u32 %v8887, 4294901760
        %8889 = vmatmul.f32.gmra.mxu0 %v8888
        %v8890 = vpop.f32.mrf.mxu0
        %v8891 = vadd.f32 %v7909, %v8890
        %v8892 = vand.u32 %v7951, 4294901760
        %v8893 = vsub.f32 %v7951, %v8892
        %v8894 = vand.u32 %v8893, 4294901760
        %v8895 = vsub.f32 %v8893, %v8894
        %v8896 = vand.u32 %v8895, 4294901760
        %8897 = vmatmul.f32.gmra.mxu0 %v8896
        %v8898 = vpop.f32.mrf.mxu0
        %v8899 = vadd.f32 %v7914, %v8898
        %v8900 = vand.u32 %v7954, 4294901760
        %v8901 = vsub.f32 %v7954, %v8900
        %v8902 = vand.u32 %v8901, 4294901760
        %v8903 = vsub.f32 %v8901, %v8902
        %v8904 = vand.u32 %v8903, 4294901760
        %8905 = vmatmul.f32.gmra.mxu0 %v8904
        %v8906 = vpop.f32.mrf.mxu0
        %v8907 = vadd.f32 %v7919, %v8906
        %v8908 = vand.u32 %v7957, 4294901760
        %v8909 = vsub.f32 %v7957, %v8908
        %v8910 = vand.u32 %v8909, 4294901760
        %v8911 = vsub.f32 %v8909, %v8910
        %v8912 = vand.u32 %v8911, 4294901760
        %8913 = vmatmul.f32.gmra.mxu0 %v8912
        %v8914 = vpop.f32.mrf.mxu0
        %v8915 = vadd.f32 %v7924, %v8914
        %v8916 = vand.u32 %v7960, 4294901760
        %v8917 = vsub.f32 %v7960, %v8916
        %v8918 = vand.u32 %v8917, 4294901760
        %v8919 = vsub.f32 %v8917, %v8918
        %v8920 = vand.u32 %v8919, 4294901760
        %8921 = vmatmul.f32.gmra.mxu0 %v8920
        %v8922 = vpop.f32.mrf.mxu0
        %v8923 = vadd.f32 %v7929, %v8922
        %v8924 = vand.u32 %v7963, 4294901760
        %v8925 = vsub.f32 %v7963, %v8924
        %v8926 = vand.u32 %v8925, 4294901760
        %v8927 = vsub.f32 %v8925, %v8926
        %v8928 = vand.u32 %v8927, 4294901760
        %8929 = vmatmul.f32.gmra.mxu0 %v8928
        %v8930 = vpop.f32.mrf.mxu0
        %v8931 = vadd.f32 %v7934, %v8930
        %v8932 = vand.u32 %v7966, 4294901760
        %v8933 = vsub.f32 %v7966, %v8932
        %v8934 = vand.u32 %v8933, 4294901760
        %v8935 = vsub.f32 %v8933, %v8934
        %v8936 = vand.u32 %v8935, 4294901760
        %8937 = vmatmul.f32.gmra.mxu0 %v8936
        %v8938 = vpop.f32.mrf.mxu0
        %v8939 = vadd.f32 %v7939, %v8938
        %v8940 = vand.u32 %v7969, 4294901760
        %v8941 = vsub.f32 %v7969, %v8940
        %v8942 = vand.u32 %v8941, 4294901760
        %v8943 = vsub.f32 %v8941, %v8942
        %v8944 = vand.u32 %v8943, 4294901760
        %8945 = vmatmul.f32.gmra.mxu0 %v8944
        %v8946 = vpop.f32.mrf.mxu0
        %v8947 = vadd.f32 %v7944, %v8946
        %8948 = vdwg.mxu0
        %8949 = vmatpush.msra.mxu0 0.0
        %8950 = vmatpush.msra.mxu0 0.0
        %8951 = vmatpush.msra.mxu0 0.0
        %8952 = vmatpush.msra.mxu0 0.0
        %8953 = vmatpush.msra.mxu0 0.0
        %8954 = vmatpush.msra.mxu0 0.0
        %8955 = vmatpush.msra.mxu0 0.0
        %8956 = vmatpush.msra.mxu0 0.0
        %8957 = vmatpush.msra.mxu0 0.0
        %8958 = vmatpush.msra.mxu0 0.0
        %8959 = vmatpush.msra.mxu0 0.0
        %8960 = vmatpush.msra.mxu0 0.0
        %v8961 = vand.u32 %v8863, 4294901760
        %v8962 = vsub.f32 %v8863, %v8961
        %v8963 = vand.u32 %v8962, 4294901760
        %v8964 = vsub.f32 %v8962, %v8963
        %v8965 = vand.u32 %v8964, 4294901760
        %8966 = vmatpush.msra.mxu0 %v8965
        %v8967 = vand.u32 %v8862, 4294901760
        %v8968 = vsub.f32 %v8862, %v8967
        %v8969 = vand.u32 %v8968, 4294901760
        %v8970 = vsub.f32 %v8968, %v8969
        %v8971 = vand.u32 %v8970, 4294901760
        %8972 = vmatpush.msra.mxu0 %v8971
        %v8973 = vand.u32 %v8861, 4294901760
        %v8974 = vsub.f32 %v8861, %v8973
        %v8975 = vand.u32 %v8974, 4294901760
        %v8976 = vsub.f32 %v8974, %v8975
        %v8977 = vand.u32 %v8976, 4294901760
        %8978 = vmatpush.msra.mxu0 %v8977
        %v8979 = vand.u32 %v8860, 4294901760
        %v8980 = vsub.f32 %v8860, %v8979
        %v8981 = vand.u32 %v8980, 4294901760
        %v8982 = vsub.f32 %v8980, %v8981
        %v8983 = vand.u32 %v8982, 4294901760
        %8984 = vmatpush.msra.mxu0 %v8983
        %v8985 = vand.u32 %v7948, 4294901760
        %8986 = vmatmul.f32.gmra.mxu0 %v8985
        %v8987 = vpop.f32.mrf.mxu0
        %v8988 = vadd.f32 %v8891, %v8987
        %v8989 = vand.u32 %v7951, 4294901760
        %8990 = vmatmul.f32.gmra.mxu0 %v8989
        %v8991 = vpop.f32.mrf.mxu0
        %v8992 = vadd.f32 %v8899, %v8991
        %v8993 = vand.u32 %v7954, 4294901760
        %8994 = vmatmul.f32.gmra.mxu0 %v8993
        %v8995 = vpop.f32.mrf.mxu0
        %v8996 = vadd.f32 %v8907, %v8995
        %v8997 = vand.u32 %v7957, 4294901760
        %8998 = vmatmul.f32.gmra.mxu0 %v8997
        %v8999 = vpop.f32.mrf.mxu0
        %v9000 = vadd.f32 %v8915, %v8999
        %v9001 = vand.u32 %v7960, 4294901760
        %9002 = vmatmul.f32.gmra.mxu0 %v9001
        %v9003 = vpop.f32.mrf.mxu0
        %v9004 = vadd.f32 %v8923, %v9003
        %v9005 = vand.u32 %v7963, 4294901760
        %9006 = vmatmul.f32.gmra.mxu0 %v9005
        %v9007 = vpop.f32.mrf.mxu0
        %v9008 = vadd.f32 %v8931, %v9007
        %v9009 = vand.u32 %v7966, 4294901760
        %9010 = vmatmul.f32.gmra.mxu0 %v9009
        %v9011 = vpop.f32.mrf.mxu0
        %v9012 = vadd.f32 %v8939, %v9011
        %v9013 = vand.u32 %v7969, 4294901760
        %9014 = vmatmul.f32.gmra.mxu0 %v9013
        %v9015 = vpop.f32.mrf.mxu0
        %v9016 = vadd.f32 %v8947, %v9015
        %9017 = vdwg.mxu0
        %9018 = vmatpush.msra.mxu0 0.0
        %9019 = vmatpush.msra.mxu0 0.0
        %9020 = vmatpush.msra.mxu0 0.0
        %9021 = vmatpush.msra.mxu0 0.0
        %9022 = vmatpush.msra.mxu0 0.0
        %9023 = vmatpush.msra.mxu0 0.0
        %9024 = vmatpush.msra.mxu0 0.0
        %9025 = vmatpush.msra.mxu0 0.0
        %9026 = vmatpush.msra.mxu0 0.0
        %9027 = vmatpush.msra.mxu0 0.0
        %9028 = vmatpush.msra.mxu0 0.0
        %9029 = vmatpush.msra.mxu0 0.0
        %v9030 = vand.u32 %v8863, 4294901760
        %v9031 = vsub.f32 %v8863, %v9030
        %9032 = vmatpush.msra.mxu0 %v9031
        %v9033 = vand.u32 %v8862, 4294901760
        %v9034 = vsub.f32 %v8862, %v9033
        %9035 = vmatpush.msra.mxu0 %v9034
        %v9036 = vand.u32 %v8861, 4294901760
        %v9037 = vsub.f32 %v8861, %v9036
        %9038 = vmatpush.msra.mxu0 %v9037
        %v9039 = vand.u32 %v8860, 4294901760
        %v9040 = vsub.f32 %v8860, %v9039
        %9041 = vmatpush.msra.mxu0 %v9040
        %v9042 = vand.u32 %v7948, 4294901760
        %v9043 = vsub.f32 %v7948, %v9042
        %9044 = vmatmul.f32.gmra.mxu0 %v9043
        %v9045 = vpop.f32.mrf.mxu0
        %v9046 = vadd.f32 %v8988, %v9045
        %v9047 = vand.u32 %v7951, 4294901760
        %v9048 = vsub.f32 %v7951, %v9047
        %9049 = vmatmul.f32.gmra.mxu0 %v9048
        %v9050 = vpop.f32.mrf.mxu0
        %v9051 = vadd.f32 %v8992, %v9050
        %v9052 = vand.u32 %v7954, 4294901760
        %v9053 = vsub.f32 %v7954, %v9052
        %9054 = vmatmul.f32.gmra.mxu0 %v9053
        %v9055 = vpop.f32.mrf.mxu0
        %v9056 = vadd.f32 %v8996, %v9055
        %v9057 = vand.u32 %v7957, 4294901760
        %v9058 = vsub.f32 %v7957, %v9057
        %9059 = vmatmul.f32.gmra.mxu0 %v9058
        %v9060 = vpop.f32.mrf.mxu0
        %v9061 = vadd.f32 %v9000, %v9060
        %v9062 = vand.u32 %v7960, 4294901760
        %v9063 = vsub.f32 %v7960, %v9062
        %9064 = vmatmul.f32.gmra.mxu0 %v9063
        %v9065 = vpop.f32.mrf.mxu0
        %v9066 = vadd.f32 %v9004, %v9065
        %v9067 = vand.u32 %v7963, 4294901760
        %v9068 = vsub.f32 %v7963, %v9067
        %9069 = vmatmul.f32.gmra.mxu0 %v9068
        %v9070 = vpop.f32.mrf.mxu0
        %v9071 = vadd.f32 %v9008, %v9070
        %v9072 = vand.u32 %v7966, 4294901760
        %v9073 = vsub.f32 %v7966, %v9072
        %9074 = vmatmul.f32.gmra.mxu0 %v9073
        %v9075 = vpop.f32.mrf.mxu0
        %v9076 = vadd.f32 %v9012, %v9075
        %v9077 = vand.u32 %v7969, 4294901760
        %v9078 = vsub.f32 %v7969, %v9077
        %9079 = vmatmul.f32.gmra.mxu0 %v9078
        %v9080 = vpop.f32.mrf.mxu0
        %v9081 = vadd.f32 %v9016, %v9080
        %9082 = vdwg.mxu0
        %9083 = vmatpush.msra.mxu0 0.0
        %9084 = vmatpush.msra.mxu0 0.0
        %9085 = vmatpush.msra.mxu0 0.0
        %9086 = vmatpush.msra.mxu0 0.0
        %9087 = vmatpush.msra.mxu0 0.0
        %9088 = vmatpush.msra.mxu0 0.0
        %9089 = vmatpush.msra.mxu0 0.0
        %9090 = vmatpush.msra.mxu0 0.0
        %9091 = vmatpush.msra.mxu0 0.0
        %9092 = vmatpush.msra.mxu0 0.0
        %9093 = vmatpush.msra.mxu0 0.0
        %9094 = vmatpush.msra.mxu0 0.0
        %v9095 = vand.u32 %v8863, 4294901760
        %9096 = vmatpush.msra.mxu0 %v9095
        %v9097 = vand.u32 %v8862, 4294901760
        %9098 = vmatpush.msra.mxu0 %v9097
        %v9099 = vand.u32 %v8861, 4294901760
        %9100 = vmatpush.msra.mxu0 %v9099
        %v9101 = vand.u32 %v8860, 4294901760
        %9102 = vmatpush.msra.mxu0 %v9101
        %v9103 = vand.u32 %v7948, 4294901760
        %v9104 = vsub.f32 %v7948, %v9103
        %v9105 = vand.u32 %v9104, 4294901760
        %9106 = vmatmul.f32.gmra.mxu0 %v9105
        %v9107 = vpop.f32.mrf.mxu0
        %v9108 = vadd.f32 %v9046, %v9107
        %v9109 = vand.u32 %v7951, 4294901760
        %v9110 = vsub.f32 %v7951, %v9109
        %v9111 = vand.u32 %v9110, 4294901760
        %9112 = vmatmul.f32.gmra.mxu0 %v9111
        %v9113 = vpop.f32.mrf.mxu0
        %v9114 = vadd.f32 %v9051, %v9113
        %v9115 = vand.u32 %v7954, 4294901760
        %v9116 = vsub.f32 %v7954, %v9115
        %v9117 = vand.u32 %v9116, 4294901760
        %9118 = vmatmul.f32.gmra.mxu0 %v9117
        %v9119 = vpop.f32.mrf.mxu0
        %v9120 = vadd.f32 %v9056, %v9119
        %v9121 = vand.u32 %v7957, 4294901760
        %v9122 = vsub.f32 %v7957, %v9121
        %v9123 = vand.u32 %v9122, 4294901760
        %9124 = vmatmul.f32.gmra.mxu0 %v9123
        %v9125 = vpop.f32.mrf.mxu0
        %v9126 = vadd.f32 %v9061, %v9125
        %v9127 = vand.u32 %v7960, 4294901760
        %v9128 = vsub.f32 %v7960, %v9127
        %v9129 = vand.u32 %v9128, 4294901760
        %9130 = vmatmul.f32.gmra.mxu0 %v9129
        %v9131 = vpop.f32.mrf.mxu0
        %v9132 = vadd.f32 %v9066, %v9131
        %v9133 = vand.u32 %v7963, 4294901760
        %v9134 = vsub.f32 %v7963, %v9133
        %v9135 = vand.u32 %v9134, 4294901760
        %9136 = vmatmul.f32.gmra.mxu0 %v9135
        %v9137 = vpop.f32.mrf.mxu0
        %v9138 = vadd.f32 %v9071, %v9137
        %v9139 = vand.u32 %v7966, 4294901760
        %v9140 = vsub.f32 %v7966, %v9139
        %v9141 = vand.u32 %v9140, 4294901760
        %9142 = vmatmul.f32.gmra.mxu0 %v9141
        %v9143 = vpop.f32.mrf.mxu0
        %v9144 = vadd.f32 %v9076, %v9143
        %v9145 = vand.u32 %v7969, 4294901760
        %v9146 = vsub.f32 %v7969, %v9145
        %v9147 = vand.u32 %v9146, 4294901760
        %9148 = vmatmul.f32.gmra.mxu0 %v9147
        %v9149 = vpop.f32.mrf.mxu0
        %v9150 = vadd.f32 %v9081, %v9149
        %9151 = vdwg.mxu0
        %9152 = vmatpush.msra.mxu0 0.0
        %9153 = vmatpush.msra.mxu0 0.0
        %9154 = vmatpush.msra.mxu0 0.0
        %9155 = vmatpush.msra.mxu0 0.0
        %9156 = vmatpush.msra.mxu0 0.0
        %9157 = vmatpush.msra.mxu0 0.0
        %9158 = vmatpush.msra.mxu0 0.0
        %9159 = vmatpush.msra.mxu0 0.0
        %9160 = vmatpush.msra.mxu0 0.0
        %9161 = vmatpush.msra.mxu0 0.0
        %9162 = vmatpush.msra.mxu0 0.0
        %9163 = vmatpush.msra.mxu0 0.0
        %v9164 = vand.u32 %v8863, 4294901760
        %v9165 = vsub.f32 %v8863, %v9164
        %v9166 = vand.u32 %v9165, 4294901760
        %9167 = vmatpush.msra.mxu0 %v9166
        %v9168 = vand.u32 %v8862, 4294901760
        %v9169 = vsub.f32 %v8862, %v9168
        %v9170 = vand.u32 %v9169, 4294901760
        %9171 = vmatpush.msra.mxu0 %v9170
        %v9172 = vand.u32 %v8861, 4294901760
        %v9173 = vsub.f32 %v8861, %v9172
        %v9174 = vand.u32 %v9173, 4294901760
        %9175 = vmatpush.msra.mxu0 %v9174
        %v9176 = vand.u32 %v8860, 4294901760
        %v9177 = vsub.f32 %v8860, %v9176
        %v9178 = vand.u32 %v9177, 4294901760
        %9179 = vmatpush.msra.mxu0 %v9178
        %v9180 = vand.u32 %v7948, 4294901760
        %9181 = vmatmul.f32.gmra.mxu0 %v9180
        %v9182 = vpop.f32.mrf.mxu0
        %v9183 = vadd.f32 %v9108, %v9182
        %v9184 = vand.u32 %v7951, 4294901760
        %9185 = vmatmul.f32.gmra.mxu0 %v9184
        %v9186 = vpop.f32.mrf.mxu0
        %v9187 = vadd.f32 %v9114, %v9186
        %v9188 = vand.u32 %v7954, 4294901760
        %9189 = vmatmul.f32.gmra.mxu0 %v9188
        %v9190 = vpop.f32.mrf.mxu0
        %v9191 = vadd.f32 %v9120, %v9190
        %v9192 = vand.u32 %v7957, 4294901760
        %9193 = vmatmul.f32.gmra.mxu0 %v9192
        %v9194 = vpop.f32.mrf.mxu0
        %v9195 = vadd.f32 %v9126, %v9194
        %v9196 = vand.u32 %v7960, 4294901760
        %9197 = vmatmul.f32.gmra.mxu0 %v9196
        %v9198 = vpop.f32.mrf.mxu0
        %v9199 = vadd.f32 %v9132, %v9198
        %v9200 = vand.u32 %v7963, 4294901760
        %9201 = vmatmul.f32.gmra.mxu0 %v9200
        %v9202 = vpop.f32.mrf.mxu0
        %v9203 = vadd.f32 %v9138, %v9202
        %v9204 = vand.u32 %v7966, 4294901760
        %9205 = vmatmul.f32.gmra.mxu0 %v9204
        %v9206 = vpop.f32.mrf.mxu0
        %v9207 = vadd.f32 %v9144, %v9206
        %v9208 = vand.u32 %v7969, 4294901760
        %9209 = vmatmul.f32.gmra.mxu0 %v9208
        %v9210 = vpop.f32.mrf.mxu0
        %v9211 = vadd.f32 %v9150, %v9210
        %9212 = vdwg.mxu0
        %9213 = vmatpush.msra.mxu0 0.0
        %9214 = vmatpush.msra.mxu0 0.0
        %9215 = vmatpush.msra.mxu0 0.0
        %9216 = vmatpush.msra.mxu0 0.0
        %9217 = vmatpush.msra.mxu0 0.0
        %9218 = vmatpush.msra.mxu0 0.0
        %9219 = vmatpush.msra.mxu0 0.0
        %9220 = vmatpush.msra.mxu0 0.0
        %9221 = vmatpush.msra.mxu0 0.0
        %9222 = vmatpush.msra.mxu0 0.0
        %9223 = vmatpush.msra.mxu0 0.0
        %9224 = vmatpush.msra.mxu0 0.0
        %v9225 = vand.u32 %v8863, 4294901760
        %9226 = vmatpush.msra.mxu0 %v9225
        %v9227 = vand.u32 %v8862, 4294901760
        %9228 = vmatpush.msra.mxu0 %v9227
        %v9229 = vand.u32 %v8861, 4294901760
        %9230 = vmatpush.msra.mxu0 %v9229
        %v9231 = vand.u32 %v8860, 4294901760
        %9232 = vmatpush.msra.mxu0 %v9231
        %v9233 = vand.u32 %v7948, 4294901760
        %9234 = vmatmul.f32.gmra.mxu0 %v9233
        %v9235 = vpop.f32.mrf.mxu0
        %v9236 = vadd.f32 %v9183, %v9235
        %v9237 = vand.u32 %v7951, 4294901760
        %9238 = vmatmul.f32.gmra.mxu0 %v9237
        %v9239 = vpop.f32.mrf.mxu0
        %v9240 = vadd.f32 %v9187, %v9239
        %v9241 = vand.u32 %v7954, 4294901760
        %9242 = vmatmul.f32.gmra.mxu0 %v9241
        %v9243 = vpop.f32.mrf.mxu0
        %v9244 = vadd.f32 %v9191, %v9243
        %v9245 = vand.u32 %v7957, 4294901760
        %9246 = vmatmul.f32.gmra.mxu0 %v9245
        %v9247 = vpop.f32.mrf.mxu0
        %v9248 = vadd.f32 %v9195, %v9247
        %v9249 = vand.u32 %v7960, 4294901760
        %9250 = vmatmul.f32.gmra.mxu0 %v9249
        %v9251 = vpop.f32.mrf.mxu0
        %v9252 = vadd.f32 %v9199, %v9251
        %v9253 = vand.u32 %v7963, 4294901760
        %9254 = vmatmul.f32.gmra.mxu0 %v9253
        %v9255 = vpop.f32.mrf.mxu0
        %v9256 = vadd.f32 %v9203, %v9255
        %v9257 = vand.u32 %v7966, 4294901760
        %9258 = vmatmul.f32.gmra.mxu0 %v9257
        %v9259 = vpop.f32.mrf.mxu0
        %v9260 = vadd.f32 %v9207, %v9259
        %v9261 = vand.u32 %v7969, 4294901760
        %9262 = vmatmul.f32.gmra.mxu0 %v9261
        %v9263 = vpop.f32.mrf.mxu0
        %v9264 = vadd.f32 %v9211, %v9263
        %9265 = vdwg.mxu0
        %v9266 = vadd.f32 %v8852, %v9236
        %v9267 = vadd.f32 %v8853, %v9240
        %v9268 = vadd.f32 %v8854, %v9244
        %v9269 = vadd.f32 %v8855, %v9248
        %v9270 = vadd.f32 %v8856, %v9252
        %v9271 = vadd.f32 %v8857, %v9256
        %v9272 = vadd.f32 %v8858, %v9260
        %v9273 = vadd.f32 %v8859, %v9264
        %v9274 = vmax.f32 %v9266, 0.0
        %v9275 = vmax.f32 %v9267, 0.0
        %v9276 = vmax.f32 %v9268, 0.0
        %v9277 = vmax.f32 %v9269, 0.0
        %v9278 = vmax.f32 %v9270, 0.0
        %v9279 = vmax.f32 %v9271, 0.0
        %v9280 = vmax.f32 %v9272, 0.0
        %v9281 = vmax.f32 %v9273, 0.0
        %s9282 = scalar_lea.vmem %s353, 128 [#allocation6]
        %9283 = vst [vmem:[%s9282] sm:$0xff] %v9274
        %9284 = vst [vmem:[%s9282 + $0x8] sm:$0xff] %v9275
        %9285 = vst [vmem:[%s9282 + $0x10] sm:$0xff] %v9276
        %9286 = vst [vmem:[%s9282 + $0x18] sm:$0xff] %v9277
        %9287 = vst [vmem:[%s9282 + $0x20] sm:$0xff] %v9278
        %9288 = vst [vmem:[%s9282 + $0x28] sm:$0xff] %v9279
        %9289 = vst [vmem:[%s9282 + $0x30] sm:$0xff] %v9280
        %9290 = vst [vmem:[%s9282 + $0x38] sm:$0xff] %v9281
        %v9291 = vld [vmem:[%s2666] sm:$0xff]
        %v9292 = vld [vmem:[%s2666 + $0x8] sm:$0xff]
        %v9293 = vld [vmem:[%s2666 + $0x10] sm:$0xff]
        %v9294 = vld [vmem:[%s2666 + $0x18] sm:$0xff]
        %v9295 = vld [vmem:[%s2666 + $0x20] sm:$0xff]
        %v9296 = vld [vmem:[%s2666 + $0x28] sm:$0xff]
        %v9297 = vld [vmem:[%s2666 + $0x30] sm:$0xff]
        %v9298 = vld [vmem:[%s2666 + $0x38] sm:$0xff]
        %v9299 = vmul.f32 %v9291, %v7827
        %v9300 = vmul.f32 %v9292, %v7833
        %v9301 = vmul.f32 %v9293, %v7839
        %v9302 = vmul.f32 %v9294, %v7845
        %v9303 = vmul.f32 %v9295, %v7851
        %v9304 = vmul.f32 %v9296, %v7857
        %v9305 = vmul.f32 %v9297, %v7863
        %v9306 = vmul.f32 %v9298, %v7869
        %v9307 = vld [vmem:[%s2123] sm:$0xff]
        %v9308 = vld [vmem:[%s2123 + $0x8] sm:$0xff]
        %v9309 = vld [vmem:[%s2123 + $0x10] sm:$0xff]
        %v9310 = vld [vmem:[%s2123 + $0x18] sm:$0xff]
        %9311 = vmatpush.msra.mxu0 0.0
        %9312 = vmatpush.msra.mxu0 0.0
        %9313 = vmatpush.msra.mxu0 0.0
        %9314 = vmatpush.msra.mxu0 0.0
        %9315 = vmatpush.msra.mxu0 0.0
        %9316 = vmatpush.msra.mxu0 0.0
        %9317 = vmatpush.msra.mxu0 0.0
        %9318 = vmatpush.msra.mxu0 0.0
        %9319 = vmatpush.msra.mxu0 0.0
        %9320 = vmatpush.msra.mxu0 0.0
        %9321 = vmatpush.msra.mxu0 0.0
        %9322 = vmatpush.msra.mxu0 0.0
        %v9323 = vand.u32 %v9310, 4294901760
        %9324 = vmatpush.msra.mxu0 %v9323
        %v9325 = vand.u32 %v9309, 4294901760
        %9326 = vmatpush.msra.mxu0 %v9325
        %v9327 = vand.u32 %v9308, 4294901760
        %9328 = vmatpush.msra.mxu0 %v9327
        %v9329 = vand.u32 %v9307, 4294901760
        %9330 = vmatpush.msra.mxu0 %v9329
        %v9331 = vand.u32 %v7948, 4294901760
        %v9332 = vsub.f32 %v7948, %v9331
        %v9333 = vand.u32 %v9332, 4294901760
        %v9334 = vsub.f32 %v9332, %v9333
        %v9335 = vand.u32 %v9334, 4294901760
        %9336 = vmatmul.f32.gmra.mxu0 %v9335
        %v9337 = vpop.f32.mrf.mxu0
        %v9338 = vadd.f32 %v7909, %v9337
        %v9339 = vand.u32 %v7951, 4294901760
        %v9340 = vsub.f32 %v7951, %v9339
        %v9341 = vand.u32 %v9340, 4294901760
        %v9342 = vsub.f32 %v9340, %v9341
        %v9343 = vand.u32 %v9342, 4294901760
        %9344 = vmatmul.f32.gmra.mxu0 %v9343
        %v9345 = vpop.f32.mrf.mxu0
        %v9346 = vadd.f32 %v7914, %v9345
        %v9347 = vand.u32 %v7954, 4294901760
        %v9348 = vsub.f32 %v7954, %v9347
        %v9349 = vand.u32 %v9348, 4294901760
        %v9350 = vsub.f32 %v9348, %v9349
        %v9351 = vand.u32 %v9350, 4294901760
        %9352 = vmatmul.f32.gmra.mxu0 %v9351
        %v9353 = vpop.f32.mrf.mxu0
        %v9354 = vadd.f32 %v7919, %v9353
        %v9355 = vand.u32 %v7957, 4294901760
        %v9356 = vsub.f32 %v7957, %v9355
        %v9357 = vand.u32 %v9356, 4294901760
        %v9358 = vsub.f32 %v9356, %v9357
        %v9359 = vand.u32 %v9358, 4294901760
        %9360 = vmatmul.f32.gmra.mxu0 %v9359
        %v9361 = vpop.f32.mrf.mxu0
        %v9362 = vadd.f32 %v7924, %v9361
        %v9363 = vand.u32 %v7960, 4294901760
        %v9364 = vsub.f32 %v7960, %v9363
        %v9365 = vand.u32 %v9364, 4294901760
        %v9366 = vsub.f32 %v9364, %v9365
        %v9367 = vand.u32 %v9366, 4294901760
        %9368 = vmatmul.f32.gmra.mxu0 %v9367
        %v9369 = vpop.f32.mrf.mxu0
        %v9370 = vadd.f32 %v7929, %v9369
        %v9371 = vand.u32 %v7963, 4294901760
        %v9372 = vsub.f32 %v7963, %v9371
        %v9373 = vand.u32 %v9372, 4294901760
        %v9374 = vsub.f32 %v9372, %v9373
        %v9375 = vand.u32 %v9374, 4294901760
        %9376 = vmatmul.f32.gmra.mxu0 %v9375
        %v9377 = vpop.f32.mrf.mxu0
        %v9378 = vadd.f32 %v7934, %v9377
        %v9379 = vand.u32 %v7966, 4294901760
        %v9380 = vsub.f32 %v7966, %v9379
        %v9381 = vand.u32 %v9380, 4294901760
        %v9382 = vsub.f32 %v9380, %v9381
        %v9383 = vand.u32 %v9382, 4294901760
        %9384 = vmatmul.f32.gmra.mxu0 %v9383
        %v9385 = vpop.f32.mrf.mxu0
        %v9386 = vadd.f32 %v7939, %v9385
        %v9387 = vand.u32 %v7969, 4294901760
        %v9388 = vsub.f32 %v7969, %v9387
        %v9389 = vand.u32 %v9388, 4294901760
        %v9390 = vsub.f32 %v9388, %v9389
        %v9391 = vand.u32 %v9390, 4294901760
        %9392 = vmatmul.f32.gmra.mxu0 %v9391
        %v9393 = vpop.f32.mrf.mxu0
        %v9394 = vadd.f32 %v7944, %v9393
        %9395 = vdwg.mxu0
        %9396 = vmatpush.msra.mxu0 0.0
        %9397 = vmatpush.msra.mxu0 0.0
        %9398 = vmatpush.msra.mxu0 0.0
        %9399 = vmatpush.msra.mxu0 0.0
        %9400 = vmatpush.msra.mxu0 0.0
        %9401 = vmatpush.msra.mxu0 0.0
        %9402 = vmatpush.msra.mxu0 0.0
        %9403 = vmatpush.msra.mxu0 0.0
        %9404 = vmatpush.msra.mxu0 0.0
        %9405 = vmatpush.msra.mxu0 0.0
        %9406 = vmatpush.msra.mxu0 0.0
        %9407 = vmatpush.msra.mxu0 0.0
        %v9408 = vand.u32 %v9310, 4294901760
        %v9409 = vsub.f32 %v9310, %v9408
        %v9410 = vand.u32 %v9409, 4294901760
        %v9411 = vsub.f32 %v9409, %v9410
        %v9412 = vand.u32 %v9411, 4294901760
        %9413 = vmatpush.msra.mxu0 %v9412
        %v9414 = vand.u32 %v9309, 4294901760
        %v9415 = vsub.f32 %v9309, %v9414
        %v9416 = vand.u32 %v9415, 4294901760
        %v9417 = vsub.f32 %v9415, %v9416
        %v9418 = vand.u32 %v9417, 4294901760
        %9419 = vmatpush.msra.mxu0 %v9418
        %v9420 = vand.u32 %v9308, 4294901760
        %v9421 = vsub.f32 %v9308, %v9420
        %v9422 = vand.u32 %v9421, 4294901760
        %v9423 = vsub.f32 %v9421, %v9422
        %v9424 = vand.u32 %v9423, 4294901760
        %9425 = vmatpush.msra.mxu0 %v9424
        %v9426 = vand.u32 %v9307, 4294901760
        %v9427 = vsub.f32 %v9307, %v9426
        %v9428 = vand.u32 %v9427, 4294901760
        %v9429 = vsub.f32 %v9427, %v9428
        %v9430 = vand.u32 %v9429, 4294901760
        %9431 = vmatpush.msra.mxu0 %v9430
        %v9432 = vand.u32 %v7948, 4294901760
        %9433 = vmatmul.f32.gmra.mxu0 %v9432
        %v9434 = vpop.f32.mrf.mxu0
        %v9435 = vadd.f32 %v9338, %v9434
        %v9436 = vand.u32 %v7951, 4294901760
        %9437 = vmatmul.f32.gmra.mxu0 %v9436
        %v9438 = vpop.f32.mrf.mxu0
        %v9439 = vadd.f32 %v9346, %v9438
        %v9440 = vand.u32 %v7954, 4294901760
        %9441 = vmatmul.f32.gmra.mxu0 %v9440
        %v9442 = vpop.f32.mrf.mxu0
        %v9443 = vadd.f32 %v9354, %v9442
        %v9444 = vand.u32 %v7957, 4294901760
        %9445 = vmatmul.f32.gmra.mxu0 %v9444
        %v9446 = vpop.f32.mrf.mxu0
        %v9447 = vadd.f32 %v9362, %v9446
        %v9448 = vand.u32 %v7960, 4294901760
        %9449 = vmatmul.f32.gmra.mxu0 %v9448
        %v9450 = vpop.f32.mrf.mxu0
        %v9451 = vadd.f32 %v9370, %v9450
        %v9452 = vand.u32 %v7963, 4294901760
        %9453 = vmatmul.f32.gmra.mxu0 %v9452
        %v9454 = vpop.f32.mrf.mxu0
        %v9455 = vadd.f32 %v9378, %v9454
        %v9456 = vand.u32 %v7966, 4294901760
        %9457 = vmatmul.f32.gmra.mxu0 %v9456
        %v9458 = vpop.f32.mrf.mxu0
        %v9459 = vadd.f32 %v9386, %v9458
        %v9460 = vand.u32 %v7969, 4294901760
        %9461 = vmatmul.f32.gmra.mxu0 %v9460
        %v9462 = vpop.f32.mrf.mxu0
        %v9463 = vadd.f32 %v9394, %v9462
        %9464 = vdwg.mxu0
        %9465 = vmatpush.msra.mxu0 0.0
        %9466 = vmatpush.msra.mxu0 0.0
        %9467 = vmatpush.msra.mxu0 0.0
        %9468 = vmatpush.msra.mxu0 0.0
        %9469 = vmatpush.msra.mxu0 0.0
        %9470 = vmatpush.msra.mxu0 0.0
        %9471 = vmatpush.msra.mxu0 0.0
        %9472 = vmatpush.msra.mxu0 0.0
        %9473 = vmatpush.msra.mxu0 0.0
        %9474 = vmatpush.msra.mxu0 0.0
        %9475 = vmatpush.msra.mxu0 0.0
        %9476 = vmatpush.msra.mxu0 0.0
        %v9477 = vand.u32 %v9310, 4294901760
        %v9478 = vsub.f32 %v9310, %v9477
        %9479 = vmatpush.msra.mxu0 %v9478
        %v9480 = vand.u32 %v9309, 4294901760
        %v9481 = vsub.f32 %v9309, %v9480
        %9482 = vmatpush.msra.mxu0 %v9481
        %v9483 = vand.u32 %v9308, 4294901760
        %v9484 = vsub.f32 %v9308, %v9483
        %9485 = vmatpush.msra.mxu0 %v9484
        %v9486 = vand.u32 %v9307, 4294901760
        %v9487 = vsub.f32 %v9307, %v9486
        %9488 = vmatpush.msra.mxu0 %v9487
        %v9489 = vand.u32 %v7948, 4294901760
        %v9490 = vsub.f32 %v7948, %v9489
        %9491 = vmatmul.f32.gmra.mxu0 %v9490
        %v9492 = vpop.f32.mrf.mxu0
        %v9493 = vadd.f32 %v9435, %v9492
        %v9494 = vand.u32 %v7951, 4294901760
        %v9495 = vsub.f32 %v7951, %v9494
        %9496 = vmatmul.f32.gmra.mxu0 %v9495
        %v9497 = vpop.f32.mrf.mxu0
        %v9498 = vadd.f32 %v9439, %v9497
        %v9499 = vand.u32 %v7954, 4294901760
        %v9500 = vsub.f32 %v7954, %v9499
        %9501 = vmatmul.f32.gmra.mxu0 %v9500
        %v9502 = vpop.f32.mrf.mxu0
        %v9503 = vadd.f32 %v9443, %v9502
        %v9504 = vand.u32 %v7957, 4294901760
        %v9505 = vsub.f32 %v7957, %v9504
        %9506 = vmatmul.f32.gmra.mxu0 %v9505
        %v9507 = vpop.f32.mrf.mxu0
        %v9508 = vadd.f32 %v9447, %v9507
        %v9509 = vand.u32 %v7960, 4294901760
        %v9510 = vsub.f32 %v7960, %v9509
        %9511 = vmatmul.f32.gmra.mxu0 %v9510
        %v9512 = vpop.f32.mrf.mxu0
        %v9513 = vadd.f32 %v9451, %v9512
        %v9514 = vand.u32 %v7963, 4294901760
        %v9515 = vsub.f32 %v7963, %v9514
        %9516 = vmatmul.f32.gmra.mxu0 %v9515
        %v9517 = vpop.f32.mrf.mxu0
        %v9518 = vadd.f32 %v9455, %v9517
        %v9519 = vand.u32 %v7966, 4294901760
        %v9520 = vsub.f32 %v7966, %v9519
        %9521 = vmatmul.f32.gmra.mxu0 %v9520
        %v9522 = vpop.f32.mrf.mxu0
        %v9523 = vadd.f32 %v9459, %v9522
        %v9524 = vand.u32 %v7969, 4294901760
        %v9525 = vsub.f32 %v7969, %v9524
        %9526 = vmatmul.f32.gmra.mxu0 %v9525
        %v9527 = vpop.f32.mrf.mxu0
        %v9528 = vadd.f32 %v9463, %v9527
        %9529 = vdwg.mxu0
        %9530 = vmatpush.msra.mxu0 0.0
        %9531 = vmatpush.msra.mxu0 0.0
        %9532 = vmatpush.msra.mxu0 0.0
        %9533 = vmatpush.msra.mxu0 0.0
        %9534 = vmatpush.msra.mxu0 0.0
        %9535 = vmatpush.msra.mxu0 0.0
        %9536 = vmatpush.msra.mxu0 0.0
        %9537 = vmatpush.msra.mxu0 0.0
        %9538 = vmatpush.msra.mxu0 0.0
        %9539 = vmatpush.msra.mxu0 0.0
        %9540 = vmatpush.msra.mxu0 0.0
        %9541 = vmatpush.msra.mxu0 0.0
        %v9542 = vand.u32 %v9310, 4294901760
        %9543 = vmatpush.msra.mxu0 %v9542
        %v9544 = vand.u32 %v9309, 4294901760
        %9545 = vmatpush.msra.mxu0 %v9544
        %v9546 = vand.u32 %v9308, 4294901760
        %9547 = vmatpush.msra.mxu0 %v9546
        %v9548 = vand.u32 %v9307, 4294901760
        %9549 = vmatpush.msra.mxu0 %v9548
        %v9550 = vand.u32 %v7948, 4294901760
        %v9551 = vsub.f32 %v7948, %v9550
        %v9552 = vand.u32 %v9551, 4294901760
        %9553 = vmatmul.f32.gmra.mxu0 %v9552
        %v9554 = vpop.f32.mrf.mxu0
        %v9555 = vadd.f32 %v9493, %v9554
        %v9556 = vand.u32 %v7951, 4294901760
        %v9557 = vsub.f32 %v7951, %v9556
        %v9558 = vand.u32 %v9557, 4294901760
        %9559 = vmatmul.f32.gmra.mxu0 %v9558
        %v9560 = vpop.f32.mrf.mxu0
        %v9561 = vadd.f32 %v9498, %v9560
        %v9562 = vand.u32 %v7954, 4294901760
        %v9563 = vsub.f32 %v7954, %v9562
        %v9564 = vand.u32 %v9563, 4294901760
        %9565 = vmatmul.f32.gmra.mxu0 %v9564
        %v9566 = vpop.f32.mrf.mxu0
        %v9567 = vadd.f32 %v9503, %v9566
        %v9568 = vand.u32 %v7957, 4294901760
        %v9569 = vsub.f32 %v7957, %v9568
        %v9570 = vand.u32 %v9569, 4294901760
        %9571 = vmatmul.f32.gmra.mxu0 %v9570
        %v9572 = vpop.f32.mrf.mxu0
        %v9573 = vadd.f32 %v9508, %v9572
        %v9574 = vand.u32 %v7960, 4294901760
        %v9575 = vsub.f32 %v7960, %v9574
        %v9576 = vand.u32 %v9575, 4294901760
        %9577 = vmatmul.f32.gmra.mxu0 %v9576
        %v9578 = vpop.f32.mrf.mxu0
        %v9579 = vadd.f32 %v9513, %v9578
        %v9580 = vand.u32 %v7963, 4294901760
        %v9581 = vsub.f32 %v7963, %v9580
        %v9582 = vand.u32 %v9581, 4294901760
        %9583 = vmatmul.f32.gmra.mxu0 %v9582
        %v9584 = vpop.f32.mrf.mxu0
        %v9585 = vadd.f32 %v9518, %v9584
        %v9586 = vand.u32 %v7966, 4294901760
        %v9587 = vsub.f32 %v7966, %v9586
        %v9588 = vand.u32 %v9587, 4294901760
        %9589 = vmatmul.f32.gmra.mxu0 %v9588
        %v9590 = vpop.f32.mrf.mxu0
        %v9591 = vadd.f32 %v9523, %v9590
        %v9592 = vand.u32 %v7969, 4294901760
        %v9593 = vsub.f32 %v7969, %v9592
        %v9594 = vand.u32 %v9593, 4294901760
        %9595 = vmatmul.f32.gmra.mxu0 %v9594
        %v9596 = vpop.f32.mrf.mxu0
        %v9597 = vadd.f32 %v9528, %v9596
        %9598 = vdwg.mxu0
        %9599 = vmatpush.msra.mxu0 0.0
        %9600 = vmatpush.msra.mxu0 0.0
        %9601 = vmatpush.msra.mxu0 0.0
        %9602 = vmatpush.msra.mxu0 0.0
        %9603 = vmatpush.msra.mxu0 0.0
        %9604 = vmatpush.msra.mxu0 0.0
        %9605 = vmatpush.msra.mxu0 0.0
        %9606 = vmatpush.msra.mxu0 0.0
        %9607 = vmatpush.msra.mxu0 0.0
        %9608 = vmatpush.msra.mxu0 0.0
        %9609 = vmatpush.msra.mxu0 0.0
        %9610 = vmatpush.msra.mxu0 0.0
        %v9611 = vand.u32 %v9310, 4294901760
        %v9612 = vsub.f32 %v9310, %v9611
        %v9613 = vand.u32 %v9612, 4294901760
        %9614 = vmatpush.msra.mxu0 %v9613
        %v9615 = vand.u32 %v9309, 4294901760
        %v9616 = vsub.f32 %v9309, %v9615
        %v9617 = vand.u32 %v9616, 4294901760
        %9618 = vmatpush.msra.mxu0 %v9617
        %v9619 = vand.u32 %v9308, 4294901760
        %v9620 = vsub.f32 %v9308, %v9619
        %v9621 = vand.u32 %v9620, 4294901760
        %9622 = vmatpush.msra.mxu0 %v9621
        %v9623 = vand.u32 %v9307, 4294901760
        %v9624 = vsub.f32 %v9307, %v9623
        %v9625 = vand.u32 %v9624, 4294901760
        %9626 = vmatpush.msra.mxu0 %v9625
        %v9627 = vand.u32 %v7948, 4294901760
        %9628 = vmatmul.f32.gmra.mxu0 %v9627
        %v9629 = vpop.f32.mrf.mxu0
        %v9630 = vadd.f32 %v9555, %v9629
        %v9631 = vand.u32 %v7951, 4294901760
        %9632 = vmatmul.f32.gmra.mxu0 %v9631
        %v9633 = vpop.f32.mrf.mxu0
        %v9634 = vadd.f32 %v9561, %v9633
        %v9635 = vand.u32 %v7954, 4294901760
        %9636 = vmatmul.f32.gmra.mxu0 %v9635
        %v9637 = vpop.f32.mrf.mxu0
        %v9638 = vadd.f32 %v9567, %v9637
        %v9639 = vand.u32 %v7957, 4294901760
        %9640 = vmatmul.f32.gmra.mxu0 %v9639
        %v9641 = vpop.f32.mrf.mxu0
        %v9642 = vadd.f32 %v9573, %v9641
        %v9643 = vand.u32 %v7960, 4294901760
        %9644 = vmatmul.f32.gmra.mxu0 %v9643
        %v9645 = vpop.f32.mrf.mxu0
        %v9646 = vadd.f32 %v9579, %v9645
        %v9647 = vand.u32 %v7963, 4294901760
        %9648 = vmatmul.f32.gmra.mxu0 %v9647
        %v9649 = vpop.f32.mrf.mxu0
        %v9650 = vadd.f32 %v9585, %v9649
        %v9651 = vand.u32 %v7966, 4294901760
        %9652 = vmatmul.f32.gmra.mxu0 %v9651
        %v9653 = vpop.f32.mrf.mxu0
        %v9654 = vadd.f32 %v9591, %v9653
        %v9655 = vand.u32 %v7969, 4294901760
        %9656 = vmatmul.f32.gmra.mxu0 %v9655
        %v9657 = vpop.f32.mrf.mxu0
        %v9658 = vadd.f32 %v9597, %v9657
        %9659 = vdwg.mxu0
        %9660 = vmatpush.msra.mxu0 0.0
        %9661 = vmatpush.msra.mxu0 0.0
        %9662 = vmatpush.msra.mxu0 0.0
        %9663 = vmatpush.msra.mxu0 0.0
        %9664 = vmatpush.msra.mxu0 0.0
        %9665 = vmatpush.msra.mxu0 0.0
        %9666 = vmatpush.msra.mxu0 0.0
        %9667 = vmatpush.msra.mxu0 0.0
        %9668 = vmatpush.msra.mxu0 0.0
        %9669 = vmatpush.msra.mxu0 0.0
        %9670 = vmatpush.msra.mxu0 0.0
        %9671 = vmatpush.msra.mxu0 0.0
        %v9672 = vand.u32 %v9310, 4294901760
        %9673 = vmatpush.msra.mxu0 %v9672
        %v9674 = vand.u32 %v9309, 4294901760
        %9675 = vmatpush.msra.mxu0 %v9674
        %v9676 = vand.u32 %v9308, 4294901760
        %9677 = vmatpush.msra.mxu0 %v9676
        %v9678 = vand.u32 %v9307, 4294901760
        %9679 = vmatpush.msra.mxu0 %v9678
        %v9680 = vand.u32 %v7948, 4294901760
        %9681 = vmatmul.f32.gmra.mxu0 %v9680
        %v9682 = vpop.f32.mrf.mxu0
        %v9683 = vadd.f32 %v9630, %v9682
        %v9684 = vand.u32 %v7951, 4294901760
        %9685 = vmatmul.f32.gmra.mxu0 %v9684
        %v9686 = vpop.f32.mrf.mxu0
        %v9687 = vadd.f32 %v9634, %v9686
        %v9688 = vand.u32 %v7954, 4294901760
        %9689 = vmatmul.f32.gmra.mxu0 %v9688
        %v9690 = vpop.f32.mrf.mxu0
        %v9691 = vadd.f32 %v9638, %v9690
        %v9692 = vand.u32 %v7957, 4294901760
        %9693 = vmatmul.f32.gmra.mxu0 %v9692
        %v9694 = vpop.f32.mrf.mxu0
        %v9695 = vadd.f32 %v9642, %v9694
        %v9696 = vand.u32 %v7960, 4294901760
        %9697 = vmatmul.f32.gmra.mxu0 %v9696
        %v9698 = vpop.f32.mrf.mxu0
        %v9699 = vadd.f32 %v9646, %v9698
        %v9700 = vand.u32 %v7963, 4294901760
        %9701 = vmatmul.f32.gmra.mxu0 %v9700
        %v9702 = vpop.f32.mrf.mxu0
        %v9703 = vadd.f32 %v9650, %v9702
        %v9704 = vand.u32 %v7966, 4294901760
        %9705 = vmatmul.f32.gmra.mxu0 %v9704
        %v9706 = vpop.f32.mrf.mxu0
        %v9707 = vadd.f32 %v9654, %v9706
        %v9708 = vand.u32 %v7969, 4294901760
        %9709 = vmatmul.f32.gmra.mxu0 %v9708
        %v9710 = vpop.f32.mrf.mxu0
        %v9711 = vadd.f32 %v9658, %v9710
        %9712 = vdwg.mxu0
        %v9713 = vadd.f32 %v9299, %v9683
        %v9714 = vadd.f32 %v9300, %v9687
        %v9715 = vadd.f32 %v9301, %v9691
        %v9716 = vadd.f32 %v9302, %v9695
        %v9717 = vadd.f32 %v9303, %v9699
        %v9718 = vadd.f32 %v9304, %v9703
        %v9719 = vadd.f32 %v9305, %v9707
        %v9720 = vadd.f32 %v9306, %v9711
        %v9721 = vmax.f32 %v9713, 0.0
        %v9722 = vmax.f32 %v9714, 0.0
        %v9723 = vmax.f32 %v9715, 0.0
        %v9724 = vmax.f32 %v9716, 0.0
        %v9725 = vmax.f32 %v9717, 0.0
        %v9726 = vmax.f32 %v9718, 0.0
        %v9727 = vmax.f32 %v9719, 0.0
        %v9728 = vmax.f32 %v9720, 0.0
        %s9729 = scalar_lea.vmem %s353, 192 [#allocation6]
        %9730 = vst [vmem:[%s9729] sm:$0xff] %v9721
        %9731 = vst [vmem:[%s9729 + $0x8] sm:$0xff] %v9722
        %9732 = vst [vmem:[%s9729 + $0x10] sm:$0xff] %v9723
        %9733 = vst [vmem:[%s9729 + $0x18] sm:$0xff] %v9724
        %9734 = vst [vmem:[%s9729 + $0x20] sm:$0xff] %v9725
        %9735 = vst [vmem:[%s9729 + $0x28] sm:$0xff] %v9726
        %9736 = vst [vmem:[%s9729 + $0x30] sm:$0xff] %v9727
        %9737 = vst [vmem:[%s9729 + $0x38] sm:$0xff] %v9728
        %s9738 = sand.u32 %s228, 1
        %s9739 = scalar_lea.sflag [#allocation5], %s9738
        %s9740 = sand.u32 %s228, 1
        %s9741 = smul.addr %s9740, 256
        %s9742 = scalar_lea.vmem [#allocation6], %s9741
        // Predicated region
        $region61: #{tpu_custom_call.1} parent=55 // pred_check
          %p9743 = pneg %p238
        $region62: #{tpu_custom_call.1} parent=55 // pred_check_branch
          %9745 = sbr.rel (%p9743) target = $region64
        $region63: #{tpu_custom_call.1} parent=55 // pred_region
          %s9746 = smul.u32 4, %s26
          %9748 = vsyncadd %s9739, 0
          %s9749 = smul.addr %s9746, 8
          %s9750 = smul.addr %s9749, 8
          %s9751 = scalar_lea.hbm %s9, %s9750
          %s9752 = sshll.u32 %s9742, 4
          %s9753 = int_to_ptr.vmem [resolvable:$true] %s9752
          %s9754 = sshll.u32 %s9751, 4
          %s9755 = int_to_ptr.hbm [resolvable:$true] %s9754
          %9760 = dma.vmem_to_hbm [thread:$0]  %s9753, 4096, %s9755, %s9739, 128, 128, 8
        $region64: #{tpu_custom_call.1} parent=55 // pred_fallthru
          _
      $region56: #{tpu_custom_call.1} parent=5 // pred_fallthru
        _
      %p9761 = scmp.le.s32.totalorder 2, %s21
      // Predicated region
      $region65: #{tpu_custom_call.1} parent=5 // pred_check
        %p9762 = pneg %p9761
      $region66: #{tpu_custom_call.1} parent=5 // pred_check_branch
        %9764 = sbr.rel (%p9762) target = $region68
      $region67: #{tpu_custom_call.1} parent=5 // pred_region
        %s9765 = ssub.s32 %s21, 2
        // Predicated region
        $region69: #{tpu_custom_call.1} parent=67 // pred_check
          %p9766 = pneg %p244
        $region70: #{tpu_custom_call.1} parent=67 // pred_check_branch
          %9768 = sbr.rel (%p9766) target = $region72
        $region71: #{tpu_custom_call.1} parent=67 // pred_region
          %s9769 = sand.u32 %s229, 1
          %s9770 = scalar_lea.sflag [#allocation5], %s9769
          %s9771 = sand.u32 %s229, 1
          %s9772 = smul.addr %s9771, 256
          %s9773 = scalar_lea.vmem [#allocation6], %s9772
          %9775 = dma.done %s9770, 4096
        $region72: #{tpu_custom_call.1} parent=67 // pred_fallthru
          _
      $region68: #{tpu_custom_call.1} parent=5 // pred_fallthru
        _
    $region6: #{tpu_custom_call.1} parent=1 // loop_footer
      %s25 = sadd.s32 1, %s21
    $region7: #{tpu_custom_call.1} parent=1 // loop_footer_branch
      %20 = sbr.rel target = $region3
    $region8: #{tpu_custom_call.1} parent=1 // loop_exit
      _
    %9776 = vsyncpa [#allocation4], 1
    %s9777 = scalar_lea.sflag [#allocation4], 1
    %9778 = vsyncpa %s9777, 1
    %9779 = vsyncpa [#allocation5], 1
    %s9780 = scalar_lea.sflag [#allocation5], 1
    %9781 = vsyncpa %s9780, 1

</llo_original>
